<compile_context>
chip_gen: v6e
topology: v6e:2x2x1
jax: 0.10.0
libtpu: 0.0.40
codegen_flags: <defaults>
</compile_context>

<pallas_src>
import functools

import jax
import jax.numpy as jnp
from jax.experimental import pallas as pl
from jax.experimental.pallas import tpu as pltpu

EPS = 1e-5      # nn.BatchNorm2d default eps
SLOPE = 0.2     # leaky_relu negative slope
_PARITIES = ((0, 0), (0, 1), (1, 0), (1, 1))


def _round_up(x, m):
    return (x + m - 1) // m * m


def _choose_kp(k):
    kp = _round_up(k, 128)
    if kp > 512:                      # tile K at 512 once it exceeds one tile
        kp = _round_up(k, 512)
    return kp


# ------------------- fused GEMM + BatchNorm + activation --------------------

def _fused_kernel(*refs, count, groups, cp, with_bn, apply_sigmoid):
    """grid=(nk,): accumulate A@B over K, then (optional) BN with batch stats
    computed over the resident output block, affine, LeakyReLU, sigmoid."""
    if with_bn:
        a_ref, b_ref, g_ref, be_ref, o_ref, acc_ref = refs
    else:
        a_ref, b_ref, o_ref, acc_ref = refs

    k = pl.program_id(0)
    nk = pl.num_programs(0)

    @pl.when(k == 0)
    def _():
        acc_ref[...] = jnp.zeros_like(acc_ref)

    acc_ref[...] += jnp.dot(a_ref[...], b_ref[...],
                            preferred_element_type=jnp.float32)

    @pl.when(k == nk - 1)
    def _():
        res = acc_ref[...]
        if with_bn:
            # Zero-padded rows/columns contribute exactly zero to the sums.
            s = jnp.sum(res, axis=0, keepdims=True)
            q = jnp.sum(res * res, axis=0, keepdims=True)
            if groups > 1:
                # fold the parity groups: column g*cp + c is channel c
                s = sum(s[:, g * cp:(g + 1) * cp] for g in range(groups))
                q = sum(q[:, g * cp:(g + 1) * cp] for g in range(groups))
            inv = 1.0 / count
            mean = s * inv
            var = jnp.maximum(q * inv - mean * mean, 0.0)
            scale = g_ref[...] * jax.lax.rsqrt(var + EPS)
            shift = be_ref[...] - mean * scale
            if groups > 1:
                scale = jnp.concatenate([scale] * groups, axis=1)
                shift = jnp.concatenate([shift] * groups, axis=1)
            res = res * scale + shift
        res = jnp.where(res >= 0.0, res, SLOPE * res)
        if apply_sigmoid:
            res = jax.nn.sigmoid(res)
        o_ref[...] = res


def fused_layer(patches, w_mat, gamma=None, beta=None, *, count=1.0,
                groups=1, apply_sigmoid=False):
    """(M,K) patches @ (Kp,Np) packed weights -> padded (Mp,Np) activations.

    w_mat is pre-padded (Kp multiple of its K tile, Np multiple of 128) and
    bf16.  The whole output block stays resident in VMEM across the K sweep so
    BN / activation are applied in the epilogue.
    """
    M, K = patches.shape
    Kp, Np = w_mat.shape
    tk = min(512, Kp)
    assert Kp % tk == 0
    nk = Kp // tk
    Mp = _round_up(max(M, 16), 16)
    cp = Np // groups
    with_bn = gamma is not None

    a_p = jnp.pad(patches, ((0, Mp - M), (0, Kp - K))).astype(jnp.bfloat16)

    # Fused single-block design: resident output + acc + double-buffered tiles.
    vmem_est = 4 * Mp * Np * 3 + 2 * (Mp * tk + tk * Np) * 2
    if vmem_est > 24 * 1024 * 1024:
        # TODO(synk): tiled two-pass fallback for very large layers.
        raise NotImplementedError("fused layer does not fit in VMEM")

    in_specs = [pl.BlockSpec((Mp, tk), lambda k: (0, k)),
                pl.BlockSpec((tk, Np), lambda k: (k, 0))]
    args = [a_p, w_mat]
    if with_bn:
        in_specs += [pl.BlockSpec((1, cp), lambda k: (0, 0)),
                     pl.BlockSpec((1, cp), lambda k: (0, 0))]
        args += [gamma, beta]

    cost = pl.CostEstimate(
        flops=2 * Mp * Np * Kp,
        transcendentals=Mp * Np if apply_sigmoid else 0,
        bytes_accessed=2 * (Mp * Kp + Kp * Np) + 4 * Mp * Np)

    return pl.pallas_call(
        functools.partial(_fused_kernel, count=float(count), groups=groups,
                          cp=cp, with_bn=with_bn, apply_sigmoid=apply_sigmoid),
        out_shape=jax.ShapeDtypeStruct((Mp, Np), jnp.float32),
        grid=(nk,),
        in_specs=in_specs,
        out_specs=pl.BlockSpec((Mp, Np), lambda k: (0, 0)),
        scratch_shapes=[pltpu.VMEM((Mp, Np), jnp.float32)],
        compiler_params=pltpu.CompilerParams(
            dimension_semantics=("arbitrary",),
            vmem_limit_bytes=32 * 1024 * 1024),
        cost_estimate=cost,
    )(*args)


# ------------------------------ im2col glue ---------------------------------

def _im2col(x_nhwc, kh, kw, stride, pad_h, pad_w):
    x = jnp.pad(x_nhwc, ((0, 0), pad_h, pad_w, (0, 0)))
    n, hp, wp, c = x.shape
    oh = (hp - kh) // stride + 1
    ow = (wp - kw) // stride + 1
    cols = []
    for i in range(kh):
        for j in range(kw):
            cols.append(x[:, i:i + stride * oh:stride,
                          j:j + stride * ow:stride, :])
    p = jnp.concatenate(cols, axis=-1)                  # (N, oh, ow, kh*kw*C)
    return p.reshape(n * oh * ow, kh * kw * c), oh, ow


# -------------------------------- layers -------------------------------------

def conv_layer(x_nhwc, w_mat, oc, gamma=None, beta=None):
    """Conv2d(k=4,s=2,p=1, no bias) [+ BN(batch stats)] + LeakyReLU."""
    n = x_nhwc.shape[0]
    patches, oh, ow = _im2col(x_nhwc, 4, 4, 2, (1, 1), (1, 1))
    M = patches.shape[0]
    out = fused_layer(patches, w_mat, gamma, beta, count=M, groups=1)
    return out[:M, :oc].reshape(n, oh, ow, oc)


def deconv_layer(x_nhwc, w_mat, oc, gamma, beta, apply_sigmoid=False):
    """ConvTranspose2d(k=4,s=2,p=1) + BN + LeakyReLU (+ sigmoid).

    Sub-pixel decomposition with a shared 3x3 patch matrix and parity-
    concatenated weights: one GEMM produces all 4 output parities side by side.
    """
    n, h, w, _ = x_nhwc.shape
    cp = _round_up(oc, 128)
    patches, _, _ = _im2col(x_nhwc, 3, 3, 1, (1, 1), (1, 1))
    M = patches.shape[0]                                 # n*h*w
    out = fused_layer(patches, w_mat, gamma, beta, count=4 * M, groups=4,
                      apply_sigmoid=apply_sigmoid)
    parts = [out[:M, g * cp:g * cp + oc] for g in range(4)]   # parity (a,b)
    y = jnp.stack(parts, axis=1).reshape(n, h, w, 2, 2, oc)
    y = jnp.transpose(y, (0, 1, 3, 2, 4, 5)).reshape(n, 2 * h, 2 * w, oc)
    return y


# ------------------------------ parameters -----------------------------------

def init_params(key, nchannels, nfeats):
    nf = nfeats
    shapes = {
        'w1': (nf, nchannels, 4, 4),
        'w2': (2 * nf, nf, 4, 4),
        'w3': (4 * nf, 2 * nf, 4, 4),
        'w4': (8 * nf, 4 * nf, 4, 4),
        # ConvTranspose2d weights are (in_ch, out_ch, kh, kw)
        'w5': (8 * nf, 4 * nf, 4, 4),
        'w6': (4 * nf, 2 * nf, 4, 4),
        'w7': (2 * nf, nf, 4, 4),
        'w8': (nf, 1, 4, 4),
    }
    params = {}
    keys = jax.random.split(key, len(shapes))
    for k, (name, shp) in zip(keys, shapes.items()):
        params[name] = 0.05 * jax.random.normal(k, shp, dtype=jnp.float32)
    bn_ch = {'2': 2 * nf, '3': 4 * nf, '4': 8 * nf,
             '5': 4 * nf, '6': 2 * nf, '7': nf, '8': 1}
    for idx, c in bn_ch.items():   # PyTorch BN default init: gamma=1, beta=0
        params['g' + idx] = jnp.ones((c,), jnp.float32)
        params['b' + idx] = jnp.zeros((c,), jnp.float32)
    return params


def _pad_weight(mat):
    K, N = mat.shape
    Kp = _choose_kp(K)
    Np = _round_up(N, 128)
    return jnp.pad(mat, ((0, Kp - K), (0, Np - N))).astype(jnp.bfloat16)


def prepare_params(params):
    """Hoist weight packing/flipping/padding and BN-param padding out of the
    jitted forward.  Returns (arrays_dict, static_meta_dict)."""
    pk, meta = {}, {}
    # Encoder convs: OIHW -> (kh*kw*ic, oc) im2col weight matrix.
    for name in ('w1', 'w2', 'w3', 'w4'):
        w = params[name]
        oc, ic, kh, kw = w.shape
        meta[name] = int(oc)
        mat = jnp.transpose(w, (2, 3, 1, 0)).reshape(kh * kw * ic, oc)
        pk[name] = _pad_weight(mat)
    # Transposed convs: IOHW -> 4 parity 2x2 sub-kernels embedded in the 3x3
    # tap space, each padded to 128 output lanes, concatenated along N.
    for name in ('w5', 'w6', 'w7', 'w8'):
        w = params[name]
        ic, oc, _, _ = w.shape
        meta[name] = int(oc)
        cp = _round_up(oc, 128)
        w_conv = jnp.transpose(w[:, :, ::-1, ::-1], (1, 0, 2, 3))  # OIHW, flipped
        mats = []
        for a, b in _PARITIES:
            sub = w_conv[:, :, a::2, b::2]                     # (oc, ic, 2, 2)
            sub_t = jnp.transpose(sub, (2, 3, 1, 0))           # (2, 2, ic, oc)
            emb = jnp.zeros((3, 3, ic, oc), jnp.float32)
            emb = emb.at[a:a + 2, b:b + 2].set(sub_t)
            mat = emb.reshape(9 * ic, oc)
            mats.append(jnp.pad(mat, ((0, 0), (0, cp - oc))))
        pk[name] = _pad_weight(jnp.concatenate(mats, axis=1))  # (Kp, 4*cp)
    # BN params, padded to the 128-lane channel width used in the kernels.
    for idx in ('2', '3', '4', '5', '6', '7', '8'):
        g, b = params['g' + idx], params['b' + idx]
        c = g.shape[0]
        cpad = _round_up(c, 128)
        pk['g' + idx] = jnp.pad(g, (0, cpad - c)).reshape(1, cpad).astype(jnp.float32)
        pk['b' + idx] = jnp.pad(b, (0, cpad - c)).reshape(1, cpad).astype(jnp.float32)
    return pk, meta


# -------------------------------- network ------------------------------------

def net_forward(x_nchw, pk, *, meta):
    x = jnp.transpose(x_nchw, (0, 2, 3, 1)).astype(jnp.float32)     # -> NHWC
    x = conv_layer(x, pk['w1'], meta['w1'])
    x = conv_layer(x, pk['w2'], meta['w2'], pk['g2'], pk['b2'])
    x = conv_layer(x, pk['w3'], meta['w3'], pk['g3'], pk['b3'])
    x = conv_layer(x, pk['w4'], meta['w4'], pk['g4'], pk['b4'])
    x = deconv_layer(x, pk['w5'], meta['w5'], pk['g5'], pk['b5'])
    x = deconv_layer(x, pk['w6'], meta['w6'], pk['g6'], pk['b6'])
    x = deconv_layer(x, pk['w7'], meta['w7'], pk['g7'], pk['b7'])
    x = deconv_layer(x, pk['w8'], meta['w8'], pk['g8'], pk['b8'],
                     apply_sigmoid=True)
    return jnp.transpose(x, (0, 3, 1, 2))                            # -> NCHW


# ------------------------- pure-JAX reference check --------------------------

def reference_forward(x, p):
    dn = ('NCHW', 'OIHW', 'NCHW')

    def conv(h, w):
        return jax.lax.conv_general_dilated(h, w, (2, 2), ((1, 1), (1, 1)),
                                            dimension_numbers=dn)

    def convt(h, w_iohw):
        w_eq = jnp.transpose(w_iohw[:, :, ::-1, ::-1], (1, 0, 2, 3))
        return jax.lax.conv_general_dilated(h, w_eq, (1, 1), ((2, 2), (2, 2)),
                                            lhs_dilation=(2, 2),
                                            dimension_numbers=dn)

    def bn(h, g, b):
        mean = jnp.mean(h, axis=(0, 2, 3), keepdims=True)
        var = jnp.mean(jnp.square(h - mean), axis=(0, 2, 3), keepdims=True)
        return ((h - mean) * jax.lax.rsqrt(var + EPS)
                * g.reshape(1, -1, 1, 1) + b.reshape(1, -1, 1, 1))

    def lrelu(h):
        return jnp.where(h >= 0, h, SLOPE * h)

    h = lrelu(conv(x, p['w1']))
    h = lrelu(bn(conv(h, p['w2']), p['g2'], p['b2']))
    h = lrelu(bn(conv(h, p['w3']), p['g3'], p['b3']))
    h = lrelu(bn(conv(h, p['w4']), p['g4'], p['b4']))
    h = lrelu(bn(convt(h, p['w5']), p['g5'], p['b5']))
    h = lrelu(bn(convt(h, p['w6']), p['g6'], p['b6']))
    h = lrelu(bn(convt(h, p['w7']), p['g7'], p['b7']))
    h = lrelu(bn(convt(h, p['w8']), p['g8'], p['b8']))
    return jax.nn.sigmoid(h)


# ----------------------------------- main ------------------------------------

if __name__ == "__main__":
    batch, nchannels, nfeats, hw = 2, 4, 8, 16
    key = jax.random.PRNGKey(0)
    kx, kp = jax.random.split(key)
    x = jax.random.normal(kx, (batch, nchannels, hw, hw), dtype=jnp.float32)
    params = init_params(kp, nchannels, nfeats)
    packed, meta = prepare_params(params)      # hoisted packing (static meta)

    fwd = jax.jit(functools.partial(net_forward, meta=meta))
    out = jax.block_until_ready(fwd(x, packed))
    ref = jax.block_until_ready(reference_forward(x, params))

    assert out.shape == (batch, 1, hw, hw), out.shape
    assert bool(jnp.all(jnp.isfinite(out)))
    max_err = float(jnp.max(jnp.abs(out - ref)))
    # bf16 matmul operands (f32 accumulation) -> slightly looser tolerance.
    assert bool(jnp.allclose(out, ref, atol=3e-2, rtol=3e-2)), max_err
    print("KERNEL_OK")
</pallas_src>

<mosaic_0001>
module attributes {stable_mosaic.version = 11 : i64} {
  func.func @_fused_kernel(%arg0: i32, %arg1: memref<128x128xbf16, #tpu.memory_space<vmem>>, %arg2: memref<128x128xbf16, #tpu.memory_space<vmem>>, %arg3: memref<128x128xf32, #tpu.memory_space<vmem>>, %arg4: memref<128x128xf32, #tpu.memory_space<vmem>>) attributes {dimension_semantics = [#tpu.dimension_semantics<arbitrary>], iteration_bounds = array<i64: 1>, scalar_prefetch = 0 : i64, scratch_operands = 1 : i64, tpu.core_type = #tpu.core_type<tc>, window_params = [{transform_indices = @transform_0, window_bounds = array<i64: 128, 128>}, {transform_indices = @transform_1, window_bounds = array<i64: 128, 128>}, {pipeline_mode = #tpu.pipeline_mode<synchronous>, transform_indices = @transform_2, window_bounds = array<i64: 128, 128>}]} {
    %c0_i32 = arith.constant 0 : i32
    %0 = arith.cmpi eq, %arg0, %c0_i32 : i32
    %1 = arith.extui %0 : i1 to i32
    %c0_i32_0 = arith.constant 0 : i32
    %2 = arith.cmpi ne, %1, %c0_i32_0 : i32
    scf.if %2 {
      %cst_10 = arith.constant 0.000000e+00 : f32
      %12 = vector.broadcast %cst_10 : f32 to vector<128x128xf32>
      %c0_11 = arith.constant 0 : index
      %c0_12 = arith.constant 0 : index
      %13 = vector.load %arg4[%c0_11, %c0_12] : memref<128x128xf32, #tpu.memory_space<vmem>>, vector<128x128xf32>
      tpu.vector_store %arg4[%c0_11, %c0_12], %12 {strides = array<i32>} : memref<128x128xf32, #tpu.memory_space<vmem>>, vector<128x128xf32>,
    } else {
    }
    %c0 = arith.constant 0 : index
    %c0_1 = arith.constant 0 : index
    %3 = vector.load %arg4[%c0, %c0_1] : memref<128x128xf32, #tpu.memory_space<vmem>>, vector<128x128xf32>
    %c0_2 = arith.constant 0 : index
    %c0_3 = arith.constant 0 : index
    %4 = vector.load %arg1[%c0_2, %c0_3] : memref<128x128xbf16, #tpu.memory_space<vmem>>, vector<128x128xbf16>
    %c0_4 = arith.constant 0 : index
    %c0_5 = arith.constant 0 : index
    %5 = vector.load %arg2[%c0_4, %c0_5] : memref<128x128xbf16, #tpu.memory_space<vmem>>, vector<128x128xbf16>
    %cst = arith.constant dense<0.000000e+00> : vector<128x128xf32>
    %6 = tpu.matmul %4, %5, %cst {dimension_numbers = #tpu.dot_dimension_numbers<[1], [0], [0], [1], [0, 0, 1, 1], [], []>} : vector<128x128xbf16>, vector<128x128xbf16>, vector<128x128xf32> -> vector<128x128xf32>
    %7 = arith.addf %3, %6 : vector<128x128xf32>
    %c0_6 = arith.constant 0 : index
    %c0_7 = arith.constant 0 : index
    %8 = vector.load %arg4[%c0_6, %c0_7] : memref<128x128xf32, #tpu.memory_space<vmem>>, vector<128x128xf32>
    tpu.vector_store %arg4[%c0_6, %c0_7], %7 {strides = array<i32>} : memref<128x128xf32, #tpu.memory_space<vmem>>, vector<128x128xf32>,
    %c0_i32_8 = arith.constant 0 : i32
    %9 = arith.cmpi eq, %arg0, %c0_i32_8 : i32
    %10 = arith.extui %9 : i1 to i32
    %c0_i32_9 = arith.constant 0 : i32
    %11 = arith.cmpi ne, %10, %c0_i32_9 : i32
    scf.if %11 {
      %c0_10 = arith.constant 0 : index
      %c0_11 = arith.constant 0 : index
      %12 = vector.load %arg4[%c0_10, %c0_11] : memref<128x128xf32, #tpu.memory_space<vmem>>, vector<128x128xf32>
      %cst_12 = arith.constant 0.000000e+00 : f32
      %13 = vector.broadcast %cst_12 : f32 to vector<128x128xf32>
      %14 = arith.cmpf oge, %12, %13 : vector<128x128xf32>
      %cst_13 = arith.constant 2.000000e-01 : f32
      %15 = vector.broadcast %cst_13 : f32 to vector<128x128xf32>
      %16 = arith.mulf %15, %12 : vector<128x128xf32>
      %17 = arith.select %14, %12, %16 : vector<128x128xi1>, vector<128x128xf32>
      %c0_14 = arith.constant 0 : index
      %c0_15 = arith.constant 0 : index
      %18 = vector.load %arg3[%c0_14, %c0_15] : memref<128x128xf32, #tpu.memory_space<vmem>>, vector<128x128xf32>
      tpu.vector_store %arg3[%c0_14, %c0_15], %17 {strides = array<i32>} : memref<128x128xf32, #tpu.memory_space<vmem>>, vector<128x128xf32>,
    } else {
    }
    return
  }
  func.func @transform_0(%arg0: i32) -> (i32, i32) {
    %c0_i32 = arith.constant 0 : i32
    %c0_i32_0 = arith.constant 0 : i32
    return %c0_i32, %arg0 : i32, i32
  }
  func.func @transform_1(%arg0: i32) -> (i32, i32) {
    %c0_i32 = arith.constant 0 : i32
    %c0_i32_0 = arith.constant 0 : i32
    return %arg0, %c0_i32 : i32, i32
  }
  func.func @transform_2(%arg0: i32) -> (i32, i32) {
    %c0_i32 = arith.constant 0 : i32
    %c0_i32_0 = arith.constant 0 : i32
    %c0_i32_1 = arith.constant 0 : i32
    return %c0_i32, %c0_i32_0 : i32, i32
  }
}

module attributes {stable_mosaic.version = 11 : i64} {
  func.func @_fused_kernel(%arg0: i32, %arg1: memref<32x128xbf16, #tpu.memory_space<vmem>>, %arg2: memref<128x128xbf16, #tpu.memory_space<vmem>>, %arg3: memref<1x128xf32, #tpu.memory_space<vmem>>, %arg4: memref<1x128xf32, #tpu.memory_space<vmem>>, %arg5: memref<32x128xf32, #tpu.memory_space<vmem>>, %arg6: memref<32x128xf32, #tpu.memory_space<vmem>>) attributes {dimension_semantics = [#tpu.dimension_semantics<arbitrary>], iteration_bounds = array<i64: 1>, scalar_prefetch = 0 : i64, scratch_operands = 1 : i64, tpu.core_type = #tpu.core_type<tc>, window_params = [{transform_indices = @transform_0, window_bounds = array<i64: 32, 128>}, {transform_indices = @transform_1, window_bounds = array<i64: 128, 128>}, {pipeline_mode = #tpu.pipeline_mode<synchronous>, transform_indices = @transform_2, window_bounds = array<i64: 1, 128>}, {pipeline_mode = #tpu.pipeline_mode<synchronous>, transform_indices = @transform_3, window_bounds = array<i64: 1, 128>}, {pipeline_mode = #tpu.pipeline_mode<synchronous>, transform_indices = @transform_4, window_bounds = array<i64: 32, 128>}]} {
    %c0_i32 = arith.constant 0 : i32
    %0 = arith.cmpi eq, %arg0, %c0_i32 : i32
    %1 = arith.extui %0 : i1 to i32
    %c0_i32_0 = arith.constant 0 : i32
    %2 = arith.cmpi ne, %1, %c0_i32_0 : i32
    scf.if %2 {
      %cst_10 = arith.constant 0.000000e+00 : f32
      %12 = vector.broadcast %cst_10 : f32 to vector<32x128xf32>
      %c0_11 = arith.constant 0 : index
      %c0_12 = arith.constant 0 : index
      %13 = vector.load %arg6[%c0_11, %c0_12] : memref<32x128xf32, #tpu.memory_space<vmem>>, vector<32x128xf32>
      tpu.vector_store %arg6[%c0_11, %c0_12], %12 {strides = array<i32>} : memref<32x128xf32, #tpu.memory_space<vmem>>, vector<32x128xf32>,
    } else {
    }
    %c0 = arith.constant 0 : index
    %c0_1 = arith.constant 0 : index
    %3 = vector.load %arg6[%c0, %c0_1] : memref<32x128xf32, #tpu.memory_space<vmem>>, vector<32x128xf32>
    %c0_2 = arith.constant 0 : index
    %c0_3 = arith.constant 0 : index
    %4 = vector.load %arg1[%c0_2, %c0_3] : memref<32x128xbf16, #tpu.memory_space<vmem>>, vector<32x128xbf16>
    %c0_4 = arith.constant 0 : index
    %c0_5 = arith.constant 0 : index
    %5 = vector.load %arg2[%c0_4, %c0_5] : memref<128x128xbf16, #tpu.memory_space<vmem>>, vector<128x128xbf16>
    %cst = arith.constant dense<0.000000e+00> : vector<32x128xf32>
    %6 = tpu.matmul %4, %5, %cst {dimension_numbers = #tpu.dot_dimension_numbers<[1], [0], [0], [1], [0, 0, 1, 1], [], []>} : vector<32x128xbf16>, vector<128x128xbf16>, vector<32x128xf32> -> vector<32x128xf32>
    %7 = arith.addf %3, %6 : vector<32x128xf32>
    %c0_6 = arith.constant 0 : index
    %c0_7 = arith.constant 0 : index
    %8 = vector.load %arg6[%c0_6, %c0_7] : memref<32x128xf32, #tpu.memory_space<vmem>>, vector<32x128xf32>
    tpu.vector_store %arg6[%c0_6, %c0_7], %7 {strides = array<i32>} : memref<32x128xf32, #tpu.memory_space<vmem>>, vector<32x128xf32>,
    %c0_i32_8 = arith.constant 0 : i32
    %9 = arith.cmpi eq, %arg0, %c0_i32_8 : i32
    %10 = arith.extui %9 : i1 to i32
    %c0_i32_9 = arith.constant 0 : i32
    %11 = arith.cmpi ne, %10, %c0_i32_9 : i32
    scf.if %11 {
      %c0_10 = arith.constant 0 : index
      %c0_11 = arith.constant 0 : index
      %12 = vector.load %arg6[%c0_10, %c0_11] : memref<32x128xf32, #tpu.memory_space<vmem>>, vector<32x128xf32>
      %cst_12 = arith.constant dense<0.000000e+00> : vector<128xf32>
      %13 = vector.multi_reduction <add>, %12, %cst_12 [0] : vector<32x128xf32> to vector<128xf32>
      %14 = vector.shape_cast %13 : vector<128xf32> to vector<1x128xf32>
      %15 = arith.mulf %12, %12 : vector<32x128xf32>
      %cst_13 = arith.constant dense<0.000000e+00> : vector<128xf32>
      %16 = vector.multi_reduction <add>, %15, %cst_13 [0] : vector<32x128xf32> to vector<128xf32>
      %17 = vector.shape_cast %16 : vector<128xf32> to vector<1x128xf32>
      %cst_14 = arith.constant 3.125000e-02 : f32
      %18 = vector.broadcast %cst_14 : f32 to vector<1x128xf32>
      %19 = arith.mulf %14, %18 : vector<1x128xf32>
      %cst_15 = arith.constant 3.125000e-02 : f32
      %20 = vector.broadcast %cst_15 : f32 to vector<1x128xf32>
      %21 = arith.mulf %17, %20 : vector<1x128xf32>
      %22 = arith.mulf %19, %19 : vector<1x128xf32>
      %23 = arith.subf %21, %22 : vector<1x128xf32>
      %cst_16 = arith.constant 0.000000e+00 : f32
      %24 = vector.broadcast %cst_16 : f32 to vector<1x128xf32>
      %25 = arith.maximumf %23, %24 : vector<1x128xf32>
      %c0_17 = arith.constant 0 : index
      %c0_18 = arith.constant 0 : index
      %26 = vector.load %arg3[%c0_17, %c0_18] : memref<1x128xf32, #tpu.memory_space<vmem>>, vector<1x128xf32>
      %cst_19 = arith.constant 9.99999974E-6 : f32
      %27 = vector.broadcast %cst_19 : f32 to vector<1x128xf32>
      %28 = arith.addf %25, %27 : vector<1x128xf32>
      %29 = math.rsqrt %28 : vector<1x128xf32>
      %30 = arith.mulf %26, %29 : vector<1x128xf32>
      %c0_20 = arith.constant 0 : index
      %c0_21 = arith.constant 0 : index
      %31 = vector.load %arg4[%c0_20, %c0_21] : memref<1x128xf32, #tpu.memory_space<vmem>>, vector<1x128xf32>
      %32 = arith.mulf %19, %30 : vector<1x128xf32>
      %33 = arith.subf %31, %32 : vector<1x128xf32>
      %34 = vector.broadcast %30 : vector<1x128xf32> to vector<32x128xf32>
      %35 = arith.mulf %12, %34 : vector<32x128xf32>
      %36 = vector.broadcast %33 : vector<1x128xf32> to vector<32x128xf32>
      %37 = arith.addf %35, %36 : vector<32x128xf32>
      %cst_22 = arith.constant 0.000000e+00 : f32
      %38 = vector.broadcast %cst_22 : f32 to vector<32x128xf32>
      %39 = arith.cmpf oge, %37, %38 : vector<32x128xf32>
      %cst_23 = arith.constant 2.000000e-01 : f32
      %40 = vector.broadcast %cst_23 : f32 to vector<32x128xf32>
      %41 = arith.mulf %40, %37 : vector<32x128xf32>
      %42 = arith.select %39, %37, %41 : vector<32x128xi1>, vector<32x128xf32>
      %c0_24 = arith.constant 0 : index
      %c0_25 = arith.constant 0 : index
      %43 = vector.load %arg5[%c0_24, %c0_25] : memref<32x128xf32, #tpu.memory_space<vmem>>, vector<32x128xf32>
      tpu.vector_store %arg5[%c0_24, %c0_25], %42 {strides = array<i32>} : memref<32x128xf32, #tpu.memory_space<vmem>>, vector<32x128xf32>,
    } else {
    }
    return
  }
  func.func @transform_0(%arg0: i32) -> (i32, i32) {
    %c0_i32 = arith.constant 0 : i32
    %c0_i32_0 = arith.constant 0 : i32
    return %c0_i32, %arg0 : i32, i32
  }
  func.func @transform_1(%arg0: i32) -> (i32, i32) {
    %c0_i32 = arith.constant 0 : i32
    %c0_i32_0 = arith.constant 0 : i32
    return %arg0, %c0_i32 : i32, i32
  }
  func.func @transform_2(%arg0: i32) -> (i32, i32) {
    %c0_i32 = arith.constant 0 : i32
    %c0_i32_0 = arith.constant 0 : i32
    %c0_i32_1 = arith.constant 0 : i32
    return %c0_i32, %c0_i32_0 : i32, i32
  }
  func.func @transform_3(%arg0: i32) -> (i32, i32) {
    %c0_i32 = arith.constant 0 : i32
    %c0_i32_0 = arith.constant 0 : i32
    %c0_i32_1 = arith.constant 0 : i32
    return %c0_i32, %c0_i32_0 : i32, i32
  }
  func.func @transform_4(%arg0: i32) -> (i32, i32) {
    %c0_i32 = arith.constant 0 : i32
    %c0_i32_0 = arith.constant 0 : i32
    %c0_i32_1 = arith.constant 0 : i32
    return %c0_i32, %c0_i32_0 : i32, i32
  }
}

module attributes {stable_mosaic.version = 11 : i64} {
  func.func @_fused_kernel(%arg0: i32, %arg1: memref<16x512xbf16, #tpu.memory_space<vmem>>, %arg2: memref<512x128xbf16, #tpu.memory_space<vmem>>, %arg3: memref<1x128xf32, #tpu.memory_space<vmem>>, %arg4: memref<1x128xf32, #tpu.memory_space<vmem>>, %arg5: memref<16x128xf32, #tpu.memory_space<vmem>>, %arg6: memref<16x128xf32, #tpu.memory_space<vmem>>) attributes {dimension_semantics = [#tpu.dimension_semantics<arbitrary>], iteration_bounds = array<i64: 1>, scalar_prefetch = 0 : i64, scratch_operands = 1 : i64, tpu.core_type = #tpu.core_type<tc>, window_params = [{transform_indices = @transform_0, window_bounds = array<i64: 16, 512>}, {transform_indices = @transform_1, window_bounds = array<i64: 512, 128>}, {pipeline_mode = #tpu.pipeline_mode<synchronous>, transform_indices = @transform_2, window_bounds = array<i64: 1, 128>}, {pipeline_mode = #tpu.pipeline_mode<synchronous>, transform_indices = @transform_3, window_bounds = array<i64: 1, 128>}, {pipeline_mode = #tpu.pipeline_mode<synchronous>, transform_indices = @transform_4, window_bounds = array<i64: 16, 128>}]} {
    %c0_i32 = arith.constant 0 : i32
    %0 = arith.cmpi eq, %arg0, %c0_i32 : i32
    %1 = arith.extui %0 : i1 to i32
    %c0_i32_0 = arith.constant 0 : i32
    %2 = arith.cmpi ne, %1, %c0_i32_0 : i32
    scf.if %2 {
      %cst_10 = arith.constant 0.000000e+00 : f32
      %12 = vector.broadcast %cst_10 : f32 to vector<16x128xf32>
      %c0_11 = arith.constant 0 : index
      %c0_12 = arith.constant 0 : index
      %13 = vector.load %arg6[%c0_11, %c0_12] : memref<16x128xf32, #tpu.memory_space<vmem>>, vector<16x128xf32>
      tpu.vector_store %arg6[%c0_11, %c0_12], %12 {strides = array<i32>} : memref<16x128xf32, #tpu.memory_space<vmem>>, vector<16x128xf32>,
    } else {
    }
    %c0 = arith.constant 0 : index
    %c0_1 = arith.constant 0 : index
    %3 = vector.load %arg6[%c0, %c0_1] : memref<16x128xf32, #tpu.memory_space<vmem>>, vector<16x128xf32>
    %c0_2 = arith.constant 0 : index
    %c0_3 = arith.constant 0 : index
    %4 = vector.load %arg1[%c0_2, %c0_3] : memref<16x512xbf16, #tpu.memory_space<vmem>>, vector<16x512xbf16>
    %c0_4 = arith.constant 0 : index
    %c0_5 = arith.constant 0 : index
    %5 = vector.load %arg2[%c0_4, %c0_5] : memref<512x128xbf16, #tpu.memory_space<vmem>>, vector<512x128xbf16>
    %cst = arith.constant dense<0.000000e+00> : vector<16x128xf32>
    %6 = tpu.matmul %4, %5, %cst {dimension_numbers = #tpu.dot_dimension_numbers<[1], [0], [0], [1], [0, 0, 1, 1], [], []>} : vector<16x512xbf16>, vector<512x128xbf16>, vector<16x128xf32> -> vector<16x128xf32>
    %7 = arith.addf %3, %6 : vector<16x128xf32>
    %c0_6 = arith.constant 0 : index
    %c0_7 = arith.constant 0 : index
    %8 = vector.load %arg6[%c0_6, %c0_7] : memref<16x128xf32, #tpu.memory_space<vmem>>, vector<16x128xf32>
    tpu.vector_store %arg6[%c0_6, %c0_7], %7 {strides = array<i32>} : memref<16x128xf32, #tpu.memory_space<vmem>>, vector<16x128xf32>,
    %c0_i32_8 = arith.constant 0 : i32
    %9 = arith.cmpi eq, %arg0, %c0_i32_8 : i32
    %10 = arith.extui %9 : i1 to i32
    %c0_i32_9 = arith.constant 0 : i32
    %11 = arith.cmpi ne, %10, %c0_i32_9 : i32
    scf.if %11 {
      %c0_10 = arith.constant 0 : index
      %c0_11 = arith.constant 0 : index
      %12 = vector.load %arg6[%c0_10, %c0_11] : memref<16x128xf32, #tpu.memory_space<vmem>>, vector<16x128xf32>
      %cst_12 = arith.constant dense<0.000000e+00> : vector<128xf32>
      %13 = vector.multi_reduction <add>, %12, %cst_12 [0] : vector<16x128xf32> to vector<128xf32>
      %14 = vector.shape_cast %13 : vector<128xf32> to vector<1x128xf32>
      %15 = arith.mulf %12, %12 : vector<16x128xf32>
      %cst_13 = arith.constant dense<0.000000e+00> : vector<128xf32>
      %16 = vector.multi_reduction <add>, %15, %cst_13 [0] : vector<16x128xf32> to vector<128xf32>
      %17 = vector.shape_cast %16 : vector<128xf32> to vector<1x128xf32>
      %cst_14 = arith.constant 5.000000e-01 : f32
      %18 = vector.broadcast %cst_14 : f32 to vector<1x128xf32>
      %19 = arith.mulf %14, %18 : vector<1x128xf32>
      %cst_15 = arith.constant 5.000000e-01 : f32
      %20 = vector.broadcast %cst_15 : f32 to vector<1x128xf32>
      %21 = arith.mulf %17, %20 : vector<1x128xf32>
      %22 = arith.mulf %19, %19 : vector<1x128xf32>
      %23 = arith.subf %21, %22 : vector<1x128xf32>
      %cst_16 = arith.constant 0.000000e+00 : f32
      %24 = vector.broadcast %cst_16 : f32 to vector<1x128xf32>
      %25 = arith.maximumf %23, %24 : vector<1x128xf32>
      %c0_17 = arith.constant 0 : index
      %c0_18 = arith.constant 0 : index
      %26 = vector.load %arg3[%c0_17, %c0_18] : memref<1x128xf32, #tpu.memory_space<vmem>>, vector<1x128xf32>
      %cst_19 = arith.constant 9.99999974E-6 : f32
      %27 = vector.broadcast %cst_19 : f32 to vector<1x128xf32>
      %28 = arith.addf %25, %27 : vector<1x128xf32>
      %29 = math.rsqrt %28 : vector<1x128xf32>
      %30 = arith.mulf %26, %29 : vector<1x128xf32>
      %c0_20 = arith.constant 0 : index
      %c0_21 = arith.constant 0 : index
      %31 = vector.load %arg4[%c0_20, %c0_21] : memref<1x128xf32, #tpu.memory_space<vmem>>, vector<1x128xf32>
      %32 = arith.mulf %19, %30 : vector<1x128xf32>
      %33 = arith.subf %31, %32 : vector<1x128xf32>
      %34 = vector.broadcast %30 : vector<1x128xf32> to vector<16x128xf32>
      %35 = arith.mulf %12, %34 : vector<16x128xf32>
      %36 = vector.broadcast %33 : vector<1x128xf32> to vector<16x128xf32>
      %37 = arith.addf %35, %36 : vector<16x128xf32>
      %cst_22 = arith.constant 0.000000e+00 : f32
      %38 = vector.broadcast %cst_22 : f32 to vector<16x128xf32>
      %39 = arith.cmpf oge, %37, %38 : vector<16x128xf32>
      %cst_23 = arith.constant 2.000000e-01 : f32
      %40 = vector.broadcast %cst_23 : f32 to vector<16x128xf32>
      %41 = arith.mulf %40, %37 : vector<16x128xf32>
      %42 = arith.select %39, %37, %41 : vector<16x128xi1>, vector<16x128xf32>
      %c0_24 = arith.constant 0 : index
      %c0_25 = arith.constant 0 : index
      %43 = vector.load %arg5[%c0_24, %c0_25] : memref<16x128xf32, #tpu.memory_space<vmem>>, vector<16x128xf32>
      tpu.vector_store %arg5[%c0_24, %c0_25], %42 {strides = array<i32>} : memref<16x128xf32, #tpu.memory_space<vmem>>, vector<16x128xf32>,
    } else {
    }
    return
  }
  func.func @transform_0(%arg0: i32) -> (i32, i32) {
    %c0_i32 = arith.constant 0 : i32
    %c0_i32_0 = arith.constant 0 : i32
    return %c0_i32, %arg0 : i32, i32
  }
  func.func @transform_1(%arg0: i32) -> (i32, i32) {
    %c0_i32 = arith.constant 0 : i32
    %c0_i32_0 = arith.constant 0 : i32
    return %arg0, %c0_i32 : i32, i32
  }
  func.func @transform_2(%arg0: i32) -> (i32, i32) {
    %c0_i32 = arith.constant 0 : i32
    %c0_i32_0 = arith.constant 0 : i32
    %c0_i32_1 = arith.constant 0 : i32
    return %c0_i32, %c0_i32_0 : i32, i32
  }
  func.func @transform_3(%arg0: i32) -> (i32, i32) {
    %c0_i32 = arith.constant 0 : i32
    %c0_i32_0 = arith.constant 0 : i32
    %c0_i32_1 = arith.constant 0 : i32
    return %c0_i32, %c0_i32_0 : i32, i32
  }
  func.func @transform_4(%arg0: i32) -> (i32, i32) {
    %c0_i32 = arith.constant 0 : i32
    %c0_i32_0 = arith.constant 0 : i32
    %c0_i32_1 = arith.constant 0 : i32
    return %c0_i32, %c0_i32_0 : i32, i32
  }
}

module attributes {stable_mosaic.version = 11 : i64} {
  func.func @_fused_kernel(%arg0: i32, %arg1: memref<16x256xbf16, #tpu.memory_space<vmem>>, %arg2: memref<256x128xbf16, #tpu.memory_space<vmem>>, %arg3: memref<1x128xf32, #tpu.memory_space<vmem>>, %arg4: memref<1x128xf32, #tpu.memory_space<vmem>>, %arg5: memref<16x128xf32, #tpu.memory_space<vmem>>, %arg6: memref<16x128xf32, #tpu.memory_space<vmem>>) attributes {dimension_semantics = [#tpu.dimension_semantics<arbitrary>], iteration_bounds = array<i64: 1>, scalar_prefetch = 0 : i64, scratch_operands = 1 : i64, tpu.core_type = #tpu.core_type<tc>, window_params = [{transform_indices = @transform_0, window_bounds = array<i64: 16, 256>}, {transform_indices = @transform_1, window_bounds = array<i64: 256, 128>}, {pipeline_mode = #tpu.pipeline_mode<synchronous>, transform_indices = @transform_2, window_bounds = array<i64: 1, 128>}, {pipeline_mode = #tpu.pipeline_mode<synchronous>, transform_indices = @transform_3, window_bounds = array<i64: 1, 128>}, {pipeline_mode = #tpu.pipeline_mode<synchronous>, transform_indices = @transform_4, window_bounds = array<i64: 16, 128>}]} {
    %c0_i32 = arith.constant 0 : i32
    %0 = arith.cmpi eq, %arg0, %c0_i32 : i32
    %1 = arith.extui %0 : i1 to i32
    %c0_i32_0 = arith.constant 0 : i32
    %2 = arith.cmpi ne, %1, %c0_i32_0 : i32
    scf.if %2 {
      %cst_10 = arith.constant 0.000000e+00 : f32
      %12 = vector.broadcast %cst_10 : f32 to vector<16x128xf32>
      %c0_11 = arith.constant 0 : index
      %c0_12 = arith.constant 0 : index
      %13 = vector.load %arg6[%c0_11, %c0_12] : memref<16x128xf32, #tpu.memory_space<vmem>>, vector<16x128xf32>
      tpu.vector_store %arg6[%c0_11, %c0_12], %12 {strides = array<i32>} : memref<16x128xf32, #tpu.memory_space<vmem>>, vector<16x128xf32>,
    } else {
    }
    %c0 = arith.constant 0 : index
    %c0_1 = arith.constant 0 : index
    %3 = vector.load %arg6[%c0, %c0_1] : memref<16x128xf32, #tpu.memory_space<vmem>>, vector<16x128xf32>
    %c0_2 = arith.constant 0 : index
    %c0_3 = arith.constant 0 : index
    %4 = vector.load %arg1[%c0_2, %c0_3] : memref<16x256xbf16, #tpu.memory_space<vmem>>, vector<16x256xbf16>
    %c0_4 = arith.constant 0 : index
    %c0_5 = arith.constant 0 : index
    %5 = vector.load %arg2[%c0_4, %c0_5] : memref<256x128xbf16, #tpu.memory_space<vmem>>, vector<256x128xbf16>
    %cst = arith.constant dense<0.000000e+00> : vector<16x128xf32>
    %6 = tpu.matmul %4, %5, %cst {dimension_numbers = #tpu.dot_dimension_numbers<[1], [0], [0], [1], [0, 0, 1, 1], [], []>} : vector<16x256xbf16>, vector<256x128xbf16>, vector<16x128xf32> -> vector<16x128xf32>
    %7 = arith.addf %3, %6 : vector<16x128xf32>
    %c0_6 = arith.constant 0 : index
    %c0_7 = arith.constant 0 : index
    %8 = vector.load %arg6[%c0_6, %c0_7] : memref<16x128xf32, #tpu.memory_space<vmem>>, vector<16x128xf32>
    tpu.vector_store %arg6[%c0_6, %c0_7], %7 {strides = array<i32>} : memref<16x128xf32, #tpu.memory_space<vmem>>, vector<16x128xf32>,
    %c0_i32_8 = arith.constant 0 : i32
    %9 = arith.cmpi eq, %arg0, %c0_i32_8 : i32
    %10 = arith.extui %9 : i1 to i32
    %c0_i32_9 = arith.constant 0 : i32
    %11 = arith.cmpi ne, %10, %c0_i32_9 : i32
    scf.if %11 {
      %c0_10 = arith.constant 0 : index
      %c0_11 = arith.constant 0 : index
      %12 = vector.load %arg6[%c0_10, %c0_11] : memref<16x128xf32, #tpu.memory_space<vmem>>, vector<16x128xf32>
      %cst_12 = arith.constant dense<0.000000e+00> : vector<128xf32>
      %13 = vector.multi_reduction <add>, %12, %cst_12 [0] : vector<16x128xf32> to vector<128xf32>
      %14 = vector.shape_cast %13 : vector<128xf32> to vector<1x128xf32>
      %15 = arith.mulf %12, %12 : vector<16x128xf32>
      %cst_13 = arith.constant dense<0.000000e+00> : vector<128xf32>
      %16 = vector.multi_reduction <add>, %15, %cst_13 [0] : vector<16x128xf32> to vector<128xf32>
      %17 = vector.shape_cast %16 : vector<128xf32> to vector<1x128xf32>
      %cst_14 = arith.constant 1.250000e-01 : f32
      %18 = vector.broadcast %cst_14 : f32 to vector<1x128xf32>
      %19 = arith.mulf %14, %18 : vector<1x128xf32>
      %cst_15 = arith.constant 1.250000e-01 : f32
      %20 = vector.broadcast %cst_15 : f32 to vector<1x128xf32>
      %21 = arith.mulf %17, %20 : vector<1x128xf32>
      %22 = arith.mulf %19, %19 : vector<1x128xf32>
      %23 = arith.subf %21, %22 : vector<1x128xf32>
      %cst_16 = arith.constant 0.000000e+00 : f32
      %24 = vector.broadcast %cst_16 : f32 to vector<1x128xf32>
      %25 = arith.maximumf %23, %24 : vector<1x128xf32>
      %c0_17 = arith.constant 0 : index
      %c0_18 = arith.constant 0 : index
      %26 = vector.load %arg3[%c0_17, %c0_18] : memref<1x128xf32, #tpu.memory_space<vmem>>, vector<1x128xf32>
      %cst_19 = arith.constant 9.99999974E-6 : f32
      %27 = vector.broadcast %cst_19 : f32 to vector<1x128xf32>
      %28 = arith.addf %25, %27 : vector<1x128xf32>
      %29 = math.rsqrt %28 : vector<1x128xf32>
      %30 = arith.mulf %26, %29 : vector<1x128xf32>
      %c0_20 = arith.constant 0 : index
      %c0_21 = arith.constant 0 : index
      %31 = vector.load %arg4[%c0_20, %c0_21] : memref<1x128xf32, #tpu.memory_space<vmem>>, vector<1x128xf32>
      %32 = arith.mulf %19, %30 : vector<1x128xf32>
      %33 = arith.subf %31, %32 : vector<1x128xf32>
      %34 = vector.broadcast %30 : vector<1x128xf32> to vector<16x128xf32>
      %35 = arith.mulf %12, %34 : vector<16x128xf32>
      %36 = vector.broadcast %33 : vector<1x128xf32> to vector<16x128xf32>
      %37 = arith.addf %35, %36 : vector<16x128xf32>
      %cst_22 = arith.constant 0.000000e+00 : f32
      %38 = vector.broadcast %cst_22 : f32 to vector<16x128xf32>
      %39 = arith.cmpf oge, %37, %38 : vector<16x128xf32>
      %cst_23 = arith.constant 2.000000e-01 : f32
      %40 = vector.broadcast %cst_23 : f32 to vector<16x128xf32>
      %41 = arith.mulf %40, %37 : vector<16x128xf32>
      %42 = arith.select %39, %37, %41 : vector<16x128xi1>, vector<16x128xf32>
      %c0_24 = arith.constant 0 : index
      %c0_25 = arith.constant 0 : index
      %43 = vector.load %arg5[%c0_24, %c0_25] : memref<16x128xf32, #tpu.memory_space<vmem>>, vector<16x128xf32>
      tpu.vector_store %arg5[%c0_24, %c0_25], %42 {strides = array<i32>} : memref<16x128xf32, #tpu.memory_space<vmem>>, vector<16x128xf32>,
    } else {
    }
    return
  }
  func.func @transform_0(%arg0: i32) -> (i32, i32) {
    %c0_i32 = arith.constant 0 : i32
    %c0_i32_0 = arith.constant 0 : i32
    return %c0_i32, %arg0 : i32, i32
  }
  func.func @transform_1(%arg0: i32) -> (i32, i32) {
    %c0_i32 = arith.constant 0 : i32
    %c0_i32_0 = arith.constant 0 : i32
    return %arg0, %c0_i32 : i32, i32
  }
  func.func @transform_2(%arg0: i32) -> (i32, i32) {
    %c0_i32 = arith.constant 0 : i32
    %c0_i32_0 = arith.constant 0 : i32
    %c0_i32_1 = arith.constant 0 : i32
    return %c0_i32, %c0_i32_0 : i32, i32
  }
  func.func @transform_3(%arg0: i32) -> (i32, i32) {
    %c0_i32 = arith.constant 0 : i32
    %c0_i32_0 = arith.constant 0 : i32
    %c0_i32_1 = arith.constant 0 : i32
    return %c0_i32, %c0_i32_0 : i32, i32
  }
  func.func @transform_4(%arg0: i32) -> (i32, i32) {
    %c0_i32 = arith.constant 0 : i32
    %c0_i32_0 = arith.constant 0 : i32
    %c0_i32_1 = arith.constant 0 : i32
    return %c0_i32, %c0_i32_0 : i32, i32
  }
}

module attributes {stable_mosaic.version = 11 : i64} {
  func.func @_fused_kernel(%arg0: i32, %arg1: memref<16x512xbf16, #tpu.memory_space<vmem>>, %arg2: memref<512x512xbf16, #tpu.memory_space<vmem>>, %arg3: memref<1x128xf32, #tpu.memory_space<vmem>>, %arg4: memref<1x128xf32, #tpu.memory_space<vmem>>, %arg5: memref<16x512xf32, #tpu.memory_space<vmem>>, %arg6: memref<16x512xf32, #tpu.memory_space<vmem>>) attributes {dimension_semantics = [#tpu.dimension_semantics<arbitrary>], iteration_bounds = array<i64: 2>, scalar_prefetch = 0 : i64, scratch_operands = 1 : i64, tpu.core_type = #tpu.core_type<tc>, window_params = [{transform_indices = @transform_0, window_bounds = array<i64: 16, 512>}, {transform_indices = @transform_1, window_bounds = array<i64: 512, 512>}, {pipeline_mode = #tpu.pipeline_mode<synchronous>, transform_indices = @transform_2, window_bounds = array<i64: 1, 128>}, {pipeline_mode = #tpu.pipeline_mode<synchronous>, transform_indices = @transform_3, window_bounds = array<i64: 1, 128>}, {pipeline_mode = #tpu.pipeline_mode<synchronous>, transform_indices = @transform_4, window_bounds = array<i64: 16, 512>}]} {
    %c0_i32 = arith.constant 0 : i32
    %0 = arith.cmpi eq, %arg0, %c0_i32 : i32
    %1 = arith.extui %0 : i1 to i32
    %c0_i32_0 = arith.constant 0 : i32
    %2 = arith.cmpi ne, %1, %c0_i32_0 : i32
    scf.if %2 {
      %cst_9 = arith.constant 0.000000e+00 : f32
      %12 = vector.broadcast %cst_9 : f32 to vector<16x512xf32>
      %c0_10 = arith.constant 0 : index
      %c0_11 = arith.constant 0 : index
      %13 = vector.load %arg6[%c0_10, %c0_11] : memref<16x512xf32, #tpu.memory_space<vmem>>, vector<16x512xf32>
      tpu.vector_store %arg6[%c0_10, %c0_11], %12 {strides = array<i32>} : memref<16x512xf32, #tpu.memory_space<vmem>>, vector<16x512xf32>,
    } else {
    }
    %c0 = arith.constant 0 : index
    %c0_1 = arith.constant 0 : index
    %3 = vector.load %arg6[%c0, %c0_1] : memref<16x512xf32, #tpu.memory_space<vmem>>, vector<16x512xf32>
    %c0_2 = arith.constant 0 : index
    %c0_3 = arith.constant 0 : index
    %4 = vector.load %arg1[%c0_2, %c0_3] : memref<16x512xbf16, #tpu.memory_space<vmem>>, vector<16x512xbf16>
    %c0_4 = arith.constant 0 : index
    %c0_5 = arith.constant 0 : index
    %5 = vector.load %arg2[%c0_4, %c0_5] : memref<512x512xbf16, #tpu.memory_space<vmem>>, vector<512x512xbf16>
    %cst = arith.constant dense<0.000000e+00> : vector<16x512xf32>
    %6 = tpu.matmul %4, %5, %cst {dimension_numbers = #tpu.dot_dimension_numbers<[1], [0], [0], [1], [0, 0, 1, 1], [], []>} : vector<16x512xbf16>, vector<512x512xbf16>, vector<16x512xf32> -> vector<16x512xf32>
    %7 = arith.addf %3, %6 : vector<16x512xf32>
    %c0_6 = arith.constant 0 : index
    %c0_7 = arith.constant 0 : index
    %8 = vector.load %arg6[%c0_6, %c0_7] : memref<16x512xf32, #tpu.memory_space<vmem>>, vector<16x512xf32>
    tpu.vector_store %arg6[%c0_6, %c0_7], %7 {strides = array<i32>} : memref<16x512xf32, #tpu.memory_space<vmem>>, vector<16x512xf32>,
    %c1_i32 = arith.constant 1 : i32
    %9 = arith.cmpi eq, %arg0, %c1_i32 : i32
    %10 = arith.extui %9 : i1 to i32
    %c0_i32_8 = arith.constant 0 : i32
    %11 = arith.cmpi ne, %10, %c0_i32_8 : i32
    scf.if %11 {
      %c0_9 = arith.constant 0 : index
      %c0_10 = arith.constant 0 : index
      %12 = vector.load %arg6[%c0_9, %c0_10] : memref<16x512xf32, #tpu.memory_space<vmem>>, vector<16x512xf32>
      %cst_11 = arith.constant dense<0.000000e+00> : vector<512xf32>
      %13 = vector.multi_reduction <add>, %12, %cst_11 [0] : vector<16x512xf32> to vector<512xf32>
      %14 = vector.shape_cast %13 : vector<512xf32> to vector<1x512xf32>
      %15 = arith.mulf %12, %12 : vector<16x512xf32>
      %cst_12 = arith.constant dense<0.000000e+00> : vector<512xf32>
      %16 = vector.multi_reduction <add>, %15, %cst_12 [0] : vector<16x512xf32> to vector<512xf32>
      %17 = vector.shape_cast %16 : vector<512xf32> to vector<1x512xf32>
      %18 = vector.extract_strided_slice %14 {offsets = [0, 0], sizes = [1, 128], strides = [1, 1]} : vector<1x512xf32> to vector<1x128xf32>
      %cst_13 = arith.constant 0.000000e+00 : f32
      %19 = vector.broadcast %cst_13 : f32 to vector<1x128xf32>
      %20 = arith.addf %19, %18 : vector<1x128xf32>
      %21 = vector.extract_strided_slice %14 {offsets = [0, 128], sizes = [1, 128], strides = [1, 1]} : vector<1x512xf32> to vector<1x128xf32>
      %22 = arith.addf %20, %21 : vector<1x128xf32>
      %23 = vector.extract_strided_slice %14 {offsets = [0, 256], sizes = [1, 128], strides = [1, 1]} : vector<1x512xf32> to vector<1x128xf32>
      %24 = arith.addf %22, %23 : vector<1x128xf32>
      %25 = vector.extract_strided_slice %14 {offsets = [0, 384], sizes = [1, 128], strides = [1, 1]} : vector<1x512xf32> to vector<1x128xf32>
      %26 = arith.addf %24, %25 : vector<1x128xf32>
      %27 = vector.extract_strided_slice %17 {offsets = [0, 0], sizes = [1, 128], strides = [1, 1]} : vector<1x512xf32> to vector<1x128xf32>
      %cst_14 = arith.constant 0.000000e+00 : f32
      %28 = vector.broadcast %cst_14 : f32 to vector<1x128xf32>
      %29 = arith.addf %28, %27 : vector<1x128xf32>
      %30 = vector.extract_strided_slice %17 {offsets = [0, 128], sizes = [1, 128], strides = [1, 1]} : vector<1x512xf32> to vector<1x128xf32>
      %31 = arith.addf %29, %30 : vector<1x128xf32>
      %32 = vector.extract_strided_slice %17 {offsets = [0, 256], sizes = [1, 128], strides = [1, 1]} : vector<1x512xf32> to vector<1x128xf32>
      %33 = arith.addf %31, %32 : vector<1x128xf32>
      %34 = vector.extract_strided_slice %17 {offsets = [0, 384], sizes = [1, 128], strides = [1, 1]} : vector<1x512xf32> to vector<1x128xf32>
      %35 = arith.addf %33, %34 : vector<1x128xf32>
      %cst_15 = arith.constant 1.250000e-01 : f32
      %36 = vector.broadcast %cst_15 : f32 to vector<1x128xf32>
      %37 = arith.mulf %26, %36 : vector<1x128xf32>
      %cst_16 = arith.constant 1.250000e-01 : f32
      %38 = vector.broadcast %cst_16 : f32 to vector<1x128xf32>
      %39 = arith.mulf %35, %38 : vector<1x128xf32>
      %40 = arith.mulf %37, %37 : vector<1x128xf32>
      %41 = arith.subf %39, %40 : vector<1x128xf32>
      %cst_17 = arith.constant 0.000000e+00 : f32
      %42 = vector.broadcast %cst_17 : f32 to vector<1x128xf32>
      %43 = arith.maximumf %41, %42 : vector<1x128xf32>
      %c0_18 = arith.constant 0 : index
      %c0_19 = arith.constant 0 : index
      %44 = vector.load %arg3[%c0_18, %c0_19] : memref<1x128xf32, #tpu.memory_space<vmem>>, vector<1x128xf32>
      %cst_20 = arith.constant 9.99999974E-6 : f32
      %45 = vector.broadcast %cst_20 : f32 to vector<1x128xf32>
      %46 = arith.addf %43, %45 : vector<1x128xf32>
      %47 = math.rsqrt %46 : vector<1x128xf32>
      %48 = arith.mulf %44, %47 : vector<1x128xf32>
      %c0_21 = arith.constant 0 : index
      %c0_22 = arith.constant 0 : index
      %49 = vector.load %arg4[%c0_21, %c0_22] : memref<1x128xf32, #tpu.memory_space<vmem>>, vector<1x128xf32>
      %50 = arith.mulf %37, %48 : vector<1x128xf32>
      %51 = arith.subf %49, %50 : vector<1x128xf32>
      %52 = tpu.concatenate %48, %48, %48, %48 in 1 : vector<1x128xf32>, vector<1x128xf32>, vector<1x128xf32>, vector<1x128xf32> -> vector<1x512xf32>
      %53 = tpu.concatenate %51, %51, %51, %51 in 1 : vector<1x128xf32>, vector<1x128xf32>, vector<1x128xf32>, vector<1x128xf32> -> vector<1x512xf32>
      %54 = vector.broadcast %52 : vector<1x512xf32> to vector<16x512xf32>
      %55 = arith.mulf %12, %54 : vector<16x512xf32>
      %56 = vector.broadcast %53 : vector<1x512xf32> to vector<16x512xf32>
      %57 = arith.addf %55, %56 : vector<16x512xf32>
      %cst_23 = arith.constant 0.000000e+00 : f32
      %58 = vector.broadcast %cst_23 : f32 to vector<16x512xf32>
      %59 = arith.cmpf oge, %57, %58 : vector<16x512xf32>
      %cst_24 = arith.constant 2.000000e-01 : f32
      %60 = vector.broadcast %cst_24 : f32 to vector<16x512xf32>
      %61 = arith.mulf %60, %57 : vector<16x512xf32>
      %62 = arith.select %59, %57, %61 : vector<16x512xi1>, vector<16x512xf32>
      %c0_25 = arith.constant 0 : index
      %c0_26 = arith.constant 0 : index
      %63 = vector.load %arg5[%c0_25, %c0_26] : memref<16x512xf32, #tpu.memory_space<vmem>>, vector<16x512xf32>
      tpu.vector_store %arg5[%c0_25, %c0_26], %62 {strides = array<i32>} : memref<16x512xf32, #tpu.memory_space<vmem>>, vector<16x512xf32>,
    } else {
    }
    return
  }
  func.func @transform_0(%arg0: i32) -> (i32, i32) {
    %c0_i32 = arith.constant 0 : i32
    %c0_i32_0 = arith.constant 0 : i32
    return %c0_i32, %arg0 : i32, i32
  }
  func.func @transform_1(%arg0: i32) -> (i32, i32) {
    %c0_i32 = arith.constant 0 : i32
    %c0_i32_0 = arith.constant 0 : i32
    return %arg0, %c0_i32 : i32, i32
  }
  func.func @transform_2(%arg0: i32) -> (i32, i32) {
    %c0_i32 = arith.constant 0 : i32
    %c0_i32_0 = arith.constant 0 : i32
    %c0_i32_1 = arith.constant 0 : i32
    return %c0_i32, %c0_i32_0 : i32, i32
  }
  func.func @transform_3(%arg0: i32) -> (i32, i32) {
    %c0_i32 = arith.constant 0 : i32
    %c0_i32_0 = arith.constant 0 : i32
    %c0_i32_1 = arith.constant 0 : i32
    return %c0_i32, %c0_i32_0 : i32, i32
  }
  func.func @transform_4(%arg0: i32) -> (i32, i32) {
    %c0_i32 = arith.constant 0 : i32
    %c0_i32_0 = arith.constant 0 : i32
    %c0_i32_1 = arith.constant 0 : i32
    return %c0_i32, %c0_i32_0 : i32, i32
  }
}

module attributes {stable_mosaic.version = 11 : i64} {
  func.func @_fused_kernel(%arg0: i32, %arg1: memref<16x384xbf16, #tpu.memory_space<vmem>>, %arg2: memref<384x512xbf16, #tpu.memory_space<vmem>>, %arg3: memref<1x128xf32, #tpu.memory_space<vmem>>, %arg4: memref<1x128xf32, #tpu.memory_space<vmem>>, %arg5: memref<16x512xf32, #tpu.memory_space<vmem>>, %arg6: memref<16x512xf32, #tpu.memory_space<vmem>>) attributes {dimension_semantics = [#tpu.dimension_semantics<arbitrary>], iteration_bounds = array<i64: 1>, scalar_prefetch = 0 : i64, scratch_operands = 1 : i64, tpu.core_type = #tpu.core_type<tc>, window_params = [{transform_indices = @transform_0, window_bounds = array<i64: 16, 384>}, {transform_indices = @transform_1, window_bounds = array<i64: 384, 512>}, {pipeline_mode = #tpu.pipeline_mode<synchronous>, transform_indices = @transform_2, window_bounds = array<i64: 1, 128>}, {pipeline_mode = #tpu.pipeline_mode<synchronous>, transform_indices = @transform_3, window_bounds = array<i64: 1, 128>}, {pipeline_mode = #tpu.pipeline_mode<synchronous>, transform_indices = @transform_4, window_bounds = array<i64: 16, 512>}]} {
    %c0_i32 = arith.constant 0 : i32
    %0 = arith.cmpi eq, %arg0, %c0_i32 : i32
    %1 = arith.extui %0 : i1 to i32
    %c0_i32_0 = arith.constant 0 : i32
    %2 = arith.cmpi ne, %1, %c0_i32_0 : i32
    scf.if %2 {
      %cst_10 = arith.constant 0.000000e+00 : f32
      %12 = vector.broadcast %cst_10 : f32 to vector<16x512xf32>
      %c0_11 = arith.constant 0 : index
      %c0_12 = arith.constant 0 : index
      %13 = vector.load %arg6[%c0_11, %c0_12] : memref<16x512xf32, #tpu.memory_space<vmem>>, vector<16x512xf32>
      tpu.vector_store %arg6[%c0_11, %c0_12], %12 {strides = array<i32>} : memref<16x512xf32, #tpu.memory_space<vmem>>, vector<16x512xf32>,
    } else {
    }
    %c0 = arith.constant 0 : index
    %c0_1 = arith.constant 0 : index
    %3 = vector.load %arg6[%c0, %c0_1] : memref<16x512xf32, #tpu.memory_space<vmem>>, vector<16x512xf32>
    %c0_2 = arith.constant 0 : index
    %c0_3 = arith.constant 0 : index
    %4 = vector.load %arg1[%c0_2, %c0_3] : memref<16x384xbf16, #tpu.memory_space<vmem>>, vector<16x384xbf16>
    %c0_4 = arith.constant 0 : index
    %c0_5 = arith.constant 0 : index
    %5 = vector.load %arg2[%c0_4, %c0_5] : memref<384x512xbf16, #tpu.memory_space<vmem>>, vector<384x512xbf16>
    %cst = arith.constant dense<0.000000e+00> : vector<16x512xf32>
    %6 = tpu.matmul %4, %5, %cst {dimension_numbers = #tpu.dot_dimension_numbers<[1], [0], [0], [1], [0, 0, 1, 1], [], []>} : vector<16x384xbf16>, vector<384x512xbf16>, vector<16x512xf32> -> vector<16x512xf32>
    %7 = arith.addf %3, %6 : vector<16x512xf32>
    %c0_6 = arith.constant 0 : index
    %c0_7 = arith.constant 0 : index
    %8 = vector.load %arg6[%c0_6, %c0_7] : memref<16x512xf32, #tpu.memory_space<vmem>>, vector<16x512xf32>
    tpu.vector_store %arg6[%c0_6, %c0_7], %7 {strides = array<i32>} : memref<16x512xf32, #tpu.memory_space<vmem>>, vector<16x512xf32>,
    %c0_i32_8 = arith.constant 0 : i32
    %9 = arith.cmpi eq, %arg0, %c0_i32_8 : i32
    %10 = arith.extui %9 : i1 to i32
    %c0_i32_9 = arith.constant 0 : i32
    %11 = arith.cmpi ne, %10, %c0_i32_9 : i32
    scf.if %11 {
      %c0_10 = arith.constant 0 : index
      %c0_11 = arith.constant 0 : index
      %12 = vector.load %arg6[%c0_10, %c0_11] : memref<16x512xf32, #tpu.memory_space<vmem>>, vector<16x512xf32>
      %cst_12 = arith.constant dense<0.000000e+00> : vector<512xf32>
      %13 = vector.multi_reduction <add>, %12, %cst_12 [0] : vector<16x512xf32> to vector<512xf32>
      %14 = vector.shape_cast %13 : vector<512xf32> to vector<1x512xf32>
      %15 = arith.mulf %12, %12 : vector<16x512xf32>
      %cst_13 = arith.constant dense<0.000000e+00> : vector<512xf32>
      %16 = vector.multi_reduction <add>, %15, %cst_13 [0] : vector<16x512xf32> to vector<512xf32>
      %17 = vector.shape_cast %16 : vector<512xf32> to vector<1x512xf32>
      %18 = vector.extract_strided_slice %14 {offsets = [0, 0], sizes = [1, 128], strides = [1, 1]} : vector<1x512xf32> to vector<1x128xf32>
      %cst_14 = arith.constant 0.000000e+00 : f32
      %19 = vector.broadcast %cst_14 : f32 to vector<1x128xf32>
      %20 = arith.addf %19, %18 : vector<1x128xf32>
      %21 = vector.extract_strided_slice %14 {offsets = [0, 128], sizes = [1, 128], strides = [1, 1]} : vector<1x512xf32> to vector<1x128xf32>
      %22 = arith.addf %20, %21 : vector<1x128xf32>
      %23 = vector.extract_strided_slice %14 {offsets = [0, 256], sizes = [1, 128], strides = [1, 1]} : vector<1x512xf32> to vector<1x128xf32>
      %24 = arith.addf %22, %23 : vector<1x128xf32>
      %25 = vector.extract_strided_slice %14 {offsets = [0, 384], sizes = [1, 128], strides = [1, 1]} : vector<1x512xf32> to vector<1x128xf32>
      %26 = arith.addf %24, %25 : vector<1x128xf32>
      %27 = vector.extract_strided_slice %17 {offsets = [0, 0], sizes = [1, 128], strides = [1, 1]} : vector<1x512xf32> to vector<1x128xf32>
      %cst_15 = arith.constant 0.000000e+00 : f32
      %28 = vector.broadcast %cst_15 : f32 to vector<1x128xf32>
      %29 = arith.addf %28, %27 : vector<1x128xf32>
      %30 = vector.extract_strided_slice %17 {offsets = [0, 128], sizes = [1, 128], strides = [1, 1]} : vector<1x512xf32> to vector<1x128xf32>
      %31 = arith.addf %29, %30 : vector<1x128xf32>
      %32 = vector.extract_strided_slice %17 {offsets = [0, 256], sizes = [1, 128], strides = [1, 1]} : vector<1x512xf32> to vector<1x128xf32>
      %33 = arith.addf %31, %32 : vector<1x128xf32>
      %34 = vector.extract_strided_slice %17 {offsets = [0, 384], sizes = [1, 128], strides = [1, 1]} : vector<1x512xf32> to vector<1x128xf32>
      %35 = arith.addf %33, %34 : vector<1x128xf32>
      %cst_16 = arith.constant 3.125000e-02 : f32
      %36 = vector.broadcast %cst_16 : f32 to vector<1x128xf32>
      %37 = arith.mulf %26, %36 : vector<1x128xf32>
      %cst_17 = arith.constant 3.125000e-02 : f32
      %38 = vector.broadcast %cst_17 : f32 to vector<1x128xf32>
      %39 = arith.mulf %35, %38 : vector<1x128xf32>
      %40 = arith.mulf %37, %37 : vector<1x128xf32>
      %41 = arith.subf %39, %40 : vector<1x128xf32>
      %cst_18 = arith.constant 0.000000e+00 : f32
      %42 = vector.broadcast %cst_18 : f32 to vector<1x128xf32>
      %43 = arith.maximumf %41, %42 : vector<1x128xf32>
      %c0_19 = arith.constant 0 : index
      %c0_20 = arith.constant 0 : index
      %44 = vector.load %arg3[%c0_19, %c0_20] : memref<1x128xf32, #tpu.memory_space<vmem>>, vector<1x128xf32>
      %cst_21 = arith.constant 9.99999974E-6 : f32
      %45 = vector.broadcast %cst_21 : f32 to vector<1x128xf32>
      %46 = arith.addf %43, %45 : vector<1x128xf32>
      %47 = math.rsqrt %46 : vector<1x128xf32>
      %48 = arith.mulf %44, %47 : vector<1x128xf32>
      %c0_22 = arith.constant 0 : index
      %c0_23 = arith.constant 0 : index
      %49 = vector.load %arg4[%c0_22, %c0_23] : memref<1x128xf32, #tpu.memory_space<vmem>>, vector<1x128xf32>
      %50 = arith.mulf %37, %48 : vector<1x128xf32>
      %51 = arith.subf %49, %50 : vector<1x128xf32>
      %52 = tpu.concatenate %48, %48, %48, %48 in 1 : vector<1x128xf32>, vector<1x128xf32>, vector<1x128xf32>, vector<1x128xf32> -> vector<1x512xf32>
      %53 = tpu.concatenate %51, %51, %51, %51 in 1 : vector<1x128xf32>, vector<1x128xf32>, vector<1x128xf32>, vector<1x128xf32> -> vector<1x512xf32>
      %54 = vector.broadcast %52 : vector<1x512xf32> to vector<16x512xf32>
      %55 = arith.mulf %12, %54 : vector<16x512xf32>
      %56 = vector.broadcast %53 : vector<1x512xf32> to vector<16x512xf32>
      %57 = arith.addf %55, %56 : vector<16x512xf32>
      %cst_24 = arith.constant 0.000000e+00 : f32
      %58 = vector.broadcast %cst_24 : f32 to vector<16x512xf32>
      %59 = arith.cmpf oge, %57, %58 : vector<16x512xf32>
      %cst_25 = arith.constant 2.000000e-01 : f32
      %60 = vector.broadcast %cst_25 : f32 to vector<16x512xf32>
      %61 = arith.mulf %60, %57 : vector<16x512xf32>
      %62 = arith.select %59, %57, %61 : vector<16x512xi1>, vector<16x512xf32>
      %c0_26 = arith.constant 0 : index
      %c0_27 = arith.constant 0 : index
      %63 = vector.load %arg5[%c0_26, %c0_27] : memref<16x512xf32, #tpu.memory_space<vmem>>, vector<16x512xf32>
      tpu.vector_store %arg5[%c0_26, %c0_27], %62 {strides = array<i32>} : memref<16x512xf32, #tpu.memory_space<vmem>>, vector<16x512xf32>,
    } else {
    }
    return
  }
  func.func @transform_0(%arg0: i32) -> (i32, i32) {
    %c0_i32 = arith.constant 0 : i32
    %c0_i32_0 = arith.constant 0 : i32
    return %c0_i32, %arg0 : i32, i32
  }
  func.func @transform_1(%arg0: i32) -> (i32, i32) {
    %c0_i32 = arith.constant 0 : i32
    %c0_i32_0 = arith.constant 0 : i32
    return %arg0, %c0_i32 : i32, i32
  }
  func.func @transform_2(%arg0: i32) -> (i32, i32) {
    %c0_i32 = arith.constant 0 : i32
    %c0_i32_0 = arith.constant 0 : i32
    %c0_i32_1 = arith.constant 0 : i32
    return %c0_i32, %c0_i32_0 : i32, i32
  }
  func.func @transform_3(%arg0: i32) -> (i32, i32) {
    %c0_i32 = arith.constant 0 : i32
    %c0_i32_0 = arith.constant 0 : i32
    %c0_i32_1 = arith.constant 0 : i32
    return %c0_i32, %c0_i32_0 : i32, i32
  }
  func.func @transform_4(%arg0: i32) -> (i32, i32) {
    %c0_i32 = arith.constant 0 : i32
    %c0_i32_0 = arith.constant 0 : i32
    %c0_i32_1 = arith.constant 0 : i32
    return %c0_i32, %c0_i32_0 : i32, i32
  }
}

module attributes {stable_mosaic.version = 11 : i64} {
  func.func @_fused_kernel(%arg0: i32, %arg1: memref<32x256xbf16, #tpu.memory_space<vmem>>, %arg2: memref<256x512xbf16, #tpu.memory_space<vmem>>, %arg3: memref<1x128xf32, #tpu.memory_space<vmem>>, %arg4: memref<1x128xf32, #tpu.memory_space<vmem>>, %arg5: memref<32x512xf32, #tpu.memory_space<vmem>>, %arg6: memref<32x512xf32, #tpu.memory_space<vmem>>) attributes {dimension_semantics = [#tpu.dimension_semantics<arbitrary>], iteration_bounds = array<i64: 1>, scalar_prefetch = 0 : i64, scratch_operands = 1 : i64, tpu.core_type = #tpu.core_type<tc>, window_params = [{transform_indices = @transform_0, window_bounds = array<i64: 32, 256>}, {transform_indices = @transform_1, window_bounds = array<i64: 256, 512>}, {pipeline_mode = #tpu.pipeline_mode<synchronous>, transform_indices = @transform_2, window_bounds = array<i64: 1, 128>}, {pipeline_mode = #tpu.pipeline_mode<synchronous>, transform_indices = @transform_3, window_bounds = array<i64: 1, 128>}, {pipeline_mode = #tpu.pipeline_mode<synchronous>, transform_indices = @transform_4, window_bounds = array<i64: 32, 512>}]} {
    %c0_i32 = arith.constant 0 : i32
    %0 = arith.cmpi eq, %arg0, %c0_i32 : i32
    %1 = arith.extui %0 : i1 to i32
    %c0_i32_0 = arith.constant 0 : i32
    %2 = arith.cmpi ne, %1, %c0_i32_0 : i32
    scf.if %2 {
      %cst_10 = arith.constant 0.000000e+00 : f32
      %12 = vector.broadcast %cst_10 : f32 to vector<32x512xf32>
      %c0_11 = arith.constant 0 : index
      %c0_12 = arith.constant 0 : index
      %13 = vector.load %arg6[%c0_11, %c0_12] : memref<32x512xf32, #tpu.memory_space<vmem>>, vector<32x512xf32>
      tpu.vector_store %arg6[%c0_11, %c0_12], %12 {strides = array<i32>} : memref<32x512xf32, #tpu.memory_space<vmem>>, vector<32x512xf32>,
    } else {
    }
    %c0 = arith.constant 0 : index
    %c0_1 = arith.constant 0 : index
    %3 = vector.load %arg6[%c0, %c0_1] : memref<32x512xf32, #tpu.memory_space<vmem>>, vector<32x512xf32>
    %c0_2 = arith.constant 0 : index
    %c0_3 = arith.constant 0 : index
    %4 = vector.load %arg1[%c0_2, %c0_3] : memref<32x256xbf16, #tpu.memory_space<vmem>>, vector<32x256xbf16>
    %c0_4 = arith.constant 0 : index
    %c0_5 = arith.constant 0 : index
    %5 = vector.load %arg2[%c0_4, %c0_5] : memref<256x512xbf16, #tpu.memory_space<vmem>>, vector<256x512xbf16>
    %cst = arith.constant dense<0.000000e+00> : vector<32x512xf32>
    %6 = tpu.matmul %4, %5, %cst {dimension_numbers = #tpu.dot_dimension_numbers<[1], [0], [0], [1], [0, 0, 1, 1], [], []>} : vector<32x256xbf16>, vector<256x512xbf16>, vector<32x512xf32> -> vector<32x512xf32>
    %7 = arith.addf %3, %6 : vector<32x512xf32>
    %c0_6 = arith.constant 0 : index
    %c0_7 = arith.constant 0 : index
    %8 = vector.load %arg6[%c0_6, %c0_7] : memref<32x512xf32, #tpu.memory_space<vmem>>, vector<32x512xf32>
    tpu.vector_store %arg6[%c0_6, %c0_7], %7 {strides = array<i32>} : memref<32x512xf32, #tpu.memory_space<vmem>>, vector<32x512xf32>,
    %c0_i32_8 = arith.constant 0 : i32
    %9 = arith.cmpi eq, %arg0, %c0_i32_8 : i32
    %10 = arith.extui %9 : i1 to i32
    %c0_i32_9 = arith.constant 0 : i32
    %11 = arith.cmpi ne, %10, %c0_i32_9 : i32
    scf.if %11 {
      %c0_10 = arith.constant 0 : index
      %c0_11 = arith.constant 0 : index
      %12 = vector.load %arg6[%c0_10, %c0_11] : memref<32x512xf32, #tpu.memory_space<vmem>>, vector<32x512xf32>
      %cst_12 = arith.constant dense<0.000000e+00> : vector<512xf32>
      %13 = vector.multi_reduction <add>, %12, %cst_12 [0] : vector<32x512xf32> to vector<512xf32>
      %14 = vector.shape_cast %13 : vector<512xf32> to vector<1x512xf32>
      %15 = arith.mulf %12, %12 : vector<32x512xf32>
      %cst_13 = arith.constant dense<0.000000e+00> : vector<512xf32>
      %16 = vector.multi_reduction <add>, %15, %cst_13 [0] : vector<32x512xf32> to vector<512xf32>
      %17 = vector.shape_cast %16 : vector<512xf32> to vector<1x512xf32>
      %18 = vector.extract_strided_slice %14 {offsets = [0, 0], sizes = [1, 128], strides = [1, 1]} : vector<1x512xf32> to vector<1x128xf32>
      %cst_14 = arith.constant 0.000000e+00 : f32
      %19 = vector.broadcast %cst_14 : f32 to vector<1x128xf32>
      %20 = arith.addf %19, %18 : vector<1x128xf32>
      %21 = vector.extract_strided_slice %14 {offsets = [0, 128], sizes = [1, 128], strides = [1, 1]} : vector<1x512xf32> to vector<1x128xf32>
      %22 = arith.addf %20, %21 : vector<1x128xf32>
      %23 = vector.extract_strided_slice %14 {offsets = [0, 256], sizes = [1, 128], strides = [1, 1]} : vector<1x512xf32> to vector<1x128xf32>
      %24 = arith.addf %22, %23 : vector<1x128xf32>
      %25 = vector.extract_strided_slice %14 {offsets = [0, 384], sizes = [1, 128], strides = [1, 1]} : vector<1x512xf32> to vector<1x128xf32>
      %26 = arith.addf %24, %25 : vector<1x128xf32>
      %27 = vector.extract_strided_slice %17 {offsets = [0, 0], sizes = [1, 128], strides = [1, 1]} : vector<1x512xf32> to vector<1x128xf32>
      %cst_15 = arith.constant 0.000000e+00 : f32
      %28 = vector.broadcast %cst_15 : f32 to vector<1x128xf32>
      %29 = arith.addf %28, %27 : vector<1x128xf32>
      %30 = vector.extract_strided_slice %17 {offsets = [0, 128], sizes = [1, 128], strides = [1, 1]} : vector<1x512xf32> to vector<1x128xf32>
      %31 = arith.addf %29, %30 : vector<1x128xf32>
      %32 = vector.extract_strided_slice %17 {offsets = [0, 256], sizes = [1, 128], strides = [1, 1]} : vector<1x512xf32> to vector<1x128xf32>
      %33 = arith.addf %31, %32 : vector<1x128xf32>
      %34 = vector.extract_strided_slice %17 {offsets = [0, 384], sizes = [1, 128], strides = [1, 1]} : vector<1x512xf32> to vector<1x128xf32>
      %35 = arith.addf %33, %34 : vector<1x128xf32>
      %cst_16 = arith.constant 7.812500e-03 : f32
      %36 = vector.broadcast %cst_16 : f32 to vector<1x128xf32>
      %37 = arith.mulf %26, %36 : vector<1x128xf32>
      %cst_17 = arith.constant 7.812500e-03 : f32
      %38 = vector.broadcast %cst_17 : f32 to vector<1x128xf32>
      %39 = arith.mulf %35, %38 : vector<1x128xf32>
      %40 = arith.mulf %37, %37 : vector<1x128xf32>
      %41 = arith.subf %39, %40 : vector<1x128xf32>
      %cst_18 = arith.constant 0.000000e+00 : f32
      %42 = vector.broadcast %cst_18 : f32 to vector<1x128xf32>
      %43 = arith.maximumf %41, %42 : vector<1x128xf32>
      %c0_19 = arith.constant 0 : index
      %c0_20 = arith.constant 0 : index
      %44 = vector.load %arg3[%c0_19, %c0_20] : memref<1x128xf32, #tpu.memory_space<vmem>>, vector<1x128xf32>
      %cst_21 = arith.constant 9.99999974E-6 : f32
      %45 = vector.broadcast %cst_21 : f32 to vector<1x128xf32>
      %46 = arith.addf %43, %45 : vector<1x128xf32>
      %47 = math.rsqrt %46 : vector<1x128xf32>
      %48 = arith.mulf %44, %47 : vector<1x128xf32>
      %c0_22 = arith.constant 0 : index
      %c0_23 = arith.constant 0 : index
      %49 = vector.load %arg4[%c0_22, %c0_23] : memref<1x128xf32, #tpu.memory_space<vmem>>, vector<1x128xf32>
      %50 = arith.mulf %37, %48 : vector<1x128xf32>
      %51 = arith.subf %49, %50 : vector<1x128xf32>
      %52 = tpu.concatenate %48, %48, %48, %48 in 1 : vector<1x128xf32>, vector<1x128xf32>, vector<1x128xf32>, vector<1x128xf32> -> vector<1x512xf32>
      %53 = tpu.concatenate %51, %51, %51, %51 in 1 : vector<1x128xf32>, vector<1x128xf32>, vector<1x128xf32>, vector<1x128xf32> -> vector<1x512xf32>
      %54 = vector.broadcast %52 : vector<1x512xf32> to vector<32x512xf32>
      %55 = arith.mulf %12, %54 : vector<32x512xf32>
      %56 = vector.broadcast %53 : vector<1x512xf32> to vector<32x512xf32>
      %57 = arith.addf %55, %56 : vector<32x512xf32>
      %cst_24 = arith.constant 0.000000e+00 : f32
      %58 = vector.broadcast %cst_24 : f32 to vector<32x512xf32>
      %59 = arith.cmpf oge, %57, %58 : vector<32x512xf32>
      %cst_25 = arith.constant 2.000000e-01 : f32
      %60 = vector.broadcast %cst_25 : f32 to vector<32x512xf32>
      %61 = arith.mulf %60, %57 : vector<32x512xf32>
      %62 = arith.select %59, %57, %61 : vector<32x512xi1>, vector<32x512xf32>
      %c0_26 = arith.constant 0 : index
      %c0_27 = arith.constant 0 : index
      %63 = vector.load %arg5[%c0_26, %c0_27] : memref<32x512xf32, #tpu.memory_space<vmem>>, vector<32x512xf32>
      tpu.vector_store %arg5[%c0_26, %c0_27], %62 {strides = array<i32>} : memref<32x512xf32, #tpu.memory_space<vmem>>, vector<32x512xf32>,
    } else {
    }
    return
  }
  func.func @transform_0(%arg0: i32) -> (i32, i32) {
    %c0_i32 = arith.constant 0 : i32
    %c0_i32_0 = arith.constant 0 : i32
    return %c0_i32, %arg0 : i32, i32
  }
  func.func @transform_1(%arg0: i32) -> (i32, i32) {
    %c0_i32 = arith.constant 0 : i32
    %c0_i32_0 = arith.constant 0 : i32
    return %arg0, %c0_i32 : i32, i32
  }
  func.func @transform_2(%arg0: i32) -> (i32, i32) {
    %c0_i32 = arith.constant 0 : i32
    %c0_i32_0 = arith.constant 0 : i32
    %c0_i32_1 = arith.constant 0 : i32
    return %c0_i32, %c0_i32_0 : i32, i32
  }
  func.func @transform_3(%arg0: i32) -> (i32, i32) {
    %c0_i32 = arith.constant 0 : i32
    %c0_i32_0 = arith.constant 0 : i32
    %c0_i32_1 = arith.constant 0 : i32
    return %c0_i32, %c0_i32_0 : i32, i32
  }
  func.func @transform_4(%arg0: i32) -> (i32, i32) {
    %c0_i32 = arith.constant 0 : i32
    %c0_i32_0 = arith.constant 0 : i32
    %c0_i32_1 = arith.constant 0 : i32
    return %c0_i32, %c0_i32_0 : i32, i32
  }
}

module attributes {stable_mosaic.version = 11 : i64} {
  func.func @_fused_kernel(%arg0: i32, %arg1: memref<128x128xbf16, #tpu.memory_space<vmem>>, %arg2: memref<128x512xbf16, #tpu.memory_space<vmem>>, %arg3: memref<1x128xf32, #tpu.memory_space<vmem>>, %arg4: memref<1x128xf32, #tpu.memory_space<vmem>>, %arg5: memref<128x512xf32, #tpu.memory_space<vmem>>, %arg6: memref<128x512xf32, #tpu.memory_space<vmem>>) attributes {dimension_semantics = [#tpu.dimension_semantics<arbitrary>], iteration_bounds = array<i64: 1>, scalar_prefetch = 0 : i64, scratch_operands = 1 : i64, tpu.core_type = #tpu.core_type<tc>, window_params = [{transform_indices = @transform_0, window_bounds = array<i64: 128, 128>}, {transform_indices = @transform_1, window_bounds = array<i64: 128, 512>}, {pipeline_mode = #tpu.pipeline_mode<synchronous>, transform_indices = @transform_2, window_bounds = array<i64: 1, 128>}, {pipeline_mode = #tpu.pipeline_mode<synchronous>, transform_indices = @transform_3, window_bounds = array<i64: 1, 128>}, {pipeline_mode = #tpu.pipeline_mode<synchronous>, transform_indices = @transform_4, window_bounds = array<i64: 128, 512>}]} {
    %c0_i32 = arith.constant 0 : i32
    %0 = arith.cmpi eq, %arg0, %c0_i32 : i32
    %1 = arith.extui %0 : i1 to i32
    %c0_i32_0 = arith.constant 0 : i32
    %2 = arith.cmpi ne, %1, %c0_i32_0 : i32
    scf.if %2 {
      %cst_10 = arith.constant 0.000000e+00 : f32
      %12 = vector.broadcast %cst_10 : f32 to vector<128x512xf32>
      %c0_11 = arith.constant 0 : index
      %c0_12 = arith.constant 0 : index
      %13 = vector.load %arg6[%c0_11, %c0_12] : memref<128x512xf32, #tpu.memory_space<vmem>>, vector<128x512xf32>
      tpu.vector_store %arg6[%c0_11, %c0_12], %12 {strides = array<i32>} : memref<128x512xf32, #tpu.memory_space<vmem>>, vector<128x512xf32>,
    } else {
    }
    %c0 = arith.constant 0 : index
    %c0_1 = arith.constant 0 : index
    %3 = vector.load %arg6[%c0, %c0_1] : memref<128x512xf32, #tpu.memory_space<vmem>>, vector<128x512xf32>
    %c0_2 = arith.constant 0 : index
    %c0_3 = arith.constant 0 : index
    %4 = vector.load %arg1[%c0_2, %c0_3] : memref<128x128xbf16, #tpu.memory_space<vmem>>, vector<128x128xbf16>
    %c0_4 = arith.constant 0 : index
    %c0_5 = arith.constant 0 : index
    %5 = vector.load %arg2[%c0_4, %c0_5] : memref<128x512xbf16, #tpu.memory_space<vmem>>, vector<128x512xbf16>
    %cst = arith.constant dense<0.000000e+00> : vector<128x512xf32>
    %6 = tpu.matmul %4, %5, %cst {dimension_numbers = #tpu.dot_dimension_numbers<[1], [0], [0], [1], [0, 0, 1, 1], [], []>} : vector<128x128xbf16>, vector<128x512xbf16>, vector<128x512xf32> -> vector<128x512xf32>
    %7 = arith.addf %3, %6 : vector<128x512xf32>
    %c0_6 = arith.constant 0 : index
    %c0_7 = arith.constant 0 : index
    %8 = vector.load %arg6[%c0_6, %c0_7] : memref<128x512xf32, #tpu.memory_space<vmem>>, vector<128x512xf32>
    tpu.vector_store %arg6[%c0_6, %c0_7], %7 {strides = array<i32>} : memref<128x512xf32, #tpu.memory_space<vmem>>, vector<128x512xf32>,
    %c0_i32_8 = arith.constant 0 : i32
    %9 = arith.cmpi eq, %arg0, %c0_i32_8 : i32
    %10 = arith.extui %9 : i1 to i32
    %c0_i32_9 = arith.constant 0 : i32
    %11 = arith.cmpi ne, %10, %c0_i32_9 : i32
    scf.if %11 {
      %c0_10 = arith.constant 0 : index
      %c0_11 = arith.constant 0 : index
      %12 = vector.load %arg6[%c0_10, %c0_11] : memref<128x512xf32, #tpu.memory_space<vmem>>, vector<128x512xf32>
      %cst_12 = arith.constant dense<0.000000e+00> : vector<512xf32>
      %13 = vector.multi_reduction <add>, %12, %cst_12 [0] : vector<128x512xf32> to vector<512xf32>
      %14 = vector.shape_cast %13 : vector<512xf32> to vector<1x512xf32>
      %15 = arith.mulf %12, %12 : vector<128x512xf32>
      %cst_13 = arith.constant dense<0.000000e+00> : vector<512xf32>
      %16 = vector.multi_reduction <add>, %15, %cst_13 [0] : vector<128x512xf32> to vector<512xf32>
      %17 = vector.shape_cast %16 : vector<512xf32> to vector<1x512xf32>
      %18 = vector.extract_strided_slice %14 {offsets = [0, 0], sizes = [1, 128], strides = [1, 1]} : vector<1x512xf32> to vector<1x128xf32>
      %cst_14 = arith.constant 0.000000e+00 : f32
      %19 = vector.broadcast %cst_14 : f32 to vector<1x128xf32>
      %20 = arith.addf %19, %18 : vector<1x128xf32>
      %21 = vector.extract_strided_slice %14 {offsets = [0, 128], sizes = [1, 128], strides = [1, 1]} : vector<1x512xf32> to vector<1x128xf32>
      %22 = arith.addf %20, %21 : vector<1x128xf32>
      %23 = vector.extract_strided_slice %14 {offsets = [0, 256], sizes = [1, 128], strides = [1, 1]} : vector<1x512xf32> to vector<1x128xf32>
      %24 = arith.addf %22, %23 : vector<1x128xf32>
      %25 = vector.extract_strided_slice %14 {offsets = [0, 384], sizes = [1, 128], strides = [1, 1]} : vector<1x512xf32> to vector<1x128xf32>
      %26 = arith.addf %24, %25 : vector<1x128xf32>
      %27 = vector.extract_strided_slice %17 {offsets = [0, 0], sizes = [1, 128], strides = [1, 1]} : vector<1x512xf32> to vector<1x128xf32>
      %cst_15 = arith.constant 0.000000e+00 : f32
      %28 = vector.broadcast %cst_15 : f32 to vector<1x128xf32>
      %29 = arith.addf %28, %27 : vector<1x128xf32>
      %30 = vector.extract_strided_slice %17 {offsets = [0, 128], sizes = [1, 128], strides = [1, 1]} : vector<1x512xf32> to vector<1x128xf32>
      %31 = arith.addf %29, %30 : vector<1x128xf32>
      %32 = vector.extract_strided_slice %17 {offsets = [0, 256], sizes = [1, 128], strides = [1, 1]} : vector<1x512xf32> to vector<1x128xf32>
      %33 = arith.addf %31, %32 : vector<1x128xf32>
      %34 = vector.extract_strided_slice %17 {offsets = [0, 384], sizes = [1, 128], strides = [1, 1]} : vector<1x512xf32> to vector<1x128xf32>
      %35 = arith.addf %33, %34 : vector<1x128xf32>
      %cst_16 = arith.constant 0.001953125 : f32
      %36 = vector.broadcast %cst_16 : f32 to vector<1x128xf32>
      %37 = arith.mulf %26, %36 : vector<1x128xf32>
      %cst_17 = arith.constant 0.001953125 : f32
      %38 = vector.broadcast %cst_17 : f32 to vector<1x128xf32>
      %39 = arith.mulf %35, %38 : vector<1x128xf32>
      %40 = arith.mulf %37, %37 : vector<1x128xf32>
      %41 = arith.subf %39, %40 : vector<1x128xf32>
      %cst_18 = arith.constant 0.000000e+00 : f32
      %42 = vector.broadcast %cst_18 : f32 to vector<1x128xf32>
      %43 = arith.maximumf %41, %42 : vector<1x128xf32>
      %c0_19 = arith.constant 0 : index
      %c0_20 = arith.constant 0 : index
      %44 = vector.load %arg3[%c0_19, %c0_20] : memref<1x128xf32, #tpu.memory_space<vmem>>, vector<1x128xf32>
      %cst_21 = arith.constant 9.99999974E-6 : f32
      %45 = vector.broadcast %cst_21 : f32 to vector<1x128xf32>
      %46 = arith.addf %43, %45 : vector<1x128xf32>
      %47 = math.rsqrt %46 : vector<1x128xf32>
      %48 = arith.mulf %44, %47 : vector<1x128xf32>
      %c0_22 = arith.constant 0 : index
      %c0_23 = arith.constant 0 : index
      %49 = vector.load %arg4[%c0_22, %c0_23] : memref<1x128xf32, #tpu.memory_space<vmem>>, vector<1x128xf32>
      %50 = arith.mulf %37, %48 : vector<1x128xf32>
      %51 = arith.subf %49, %50 : vector<1x128xf32>
      %52 = tpu.concatenate %48, %48, %48, %48 in 1 : vector<1x128xf32>, vector<1x128xf32>, vector<1x128xf32>, vector<1x128xf32> -> vector<1x512xf32>
      %53 = tpu.concatenate %51, %51, %51, %51 in 1 : vector<1x128xf32>, vector<1x128xf32>, vector<1x128xf32>, vector<1x128xf32> -> vector<1x512xf32>
      %54 = vector.broadcast %52 : vector<1x512xf32> to vector<128x512xf32>
      %55 = arith.mulf %12, %54 : vector<128x512xf32>
      %56 = vector.broadcast %53 : vector<1x512xf32> to vector<128x512xf32>
      %57 = arith.addf %55, %56 : vector<128x512xf32>
      %cst_24 = arith.constant 0.000000e+00 : f32
      %58 = vector.broadcast %cst_24 : f32 to vector<128x512xf32>
      %59 = arith.cmpf oge, %57, %58 : vector<128x512xf32>
      %cst_25 = arith.constant 2.000000e-01 : f32
      %60 = vector.broadcast %cst_25 : f32 to vector<128x512xf32>
      %61 = arith.mulf %60, %57 : vector<128x512xf32>
      %62 = arith.select %59, %57, %61 : vector<128x512xi1>, vector<128x512xf32>
      %63 = arith.negf %62 : vector<128x512xf32>
      %64 = math.exp %63 : vector<128x512xf32>
      %cst_26 = arith.constant 1.000000e+00 : f32
      %65 = vector.broadcast %cst_26 : f32 to vector<128x512xf32>
      %66 = arith.addf %65, %64 : vector<128x512xf32>
      %67 = arith.divf %65, %66 : vector<128x512xf32>
      %c0_27 = arith.constant 0 : index
      %c0_28 = arith.constant 0 : index
      %68 = vector.load %arg5[%c0_27, %c0_28] : memref<128x512xf32, #tpu.memory_space<vmem>>, vector<128x512xf32>
      tpu.vector_store %arg5[%c0_27, %c0_28], %67 {strides = array<i32>} : memref<128x512xf32, #tpu.memory_space<vmem>>, vector<128x512xf32>,
    } else {
    }
    return
  }
  func.func @transform_0(%arg0: i32) -> (i32, i32) {
    %c0_i32 = arith.constant 0 : i32
    %c0_i32_0 = arith.constant 0 : i32
    return %c0_i32, %arg0 : i32, i32
  }
  func.func @transform_1(%arg0: i32) -> (i32, i32) {
    %c0_i32 = arith.constant 0 : i32
    %c0_i32_0 = arith.constant 0 : i32
    return %arg0, %c0_i32 : i32, i32
  }
  func.func @transform_2(%arg0: i32) -> (i32, i32) {
    %c0_i32 = arith.constant 0 : i32
    %c0_i32_0 = arith.constant 0 : i32
    %c0_i32_1 = arith.constant 0 : i32
    return %c0_i32, %c0_i32_0 : i32, i32
  }
  func.func @transform_3(%arg0: i32) -> (i32, i32) {
    %c0_i32 = arith.constant 0 : i32
    %c0_i32_0 = arith.constant 0 : i32
    %c0_i32_1 = arith.constant 0 : i32
    return %c0_i32, %c0_i32_0 : i32, i32
  }
  func.func @transform_4(%arg0: i32) -> (i32, i32) {
    %c0_i32 = arith.constant 0 : i32
    %c0_i32_0 = arith.constant 0 : i32
    %c0_i32_1 = arith.constant 0 : i32
    return %c0_i32, %c0_i32_0 : i32, i32
  }
}

</mosaic_0001>

<llo_original>
// kernel: net_forward.8
$region0: #{net_forward.8}
  #allocation0 [shape = 'u32[]', space=smem, size = 0x4, offset = 0x4, fixed_abs, tag = 'smem constant byte address 0x4 - core index']
  #allocation1 [shape = 'u32[144,128]{1,0:T(1,128)}', space=vmem, size = 0x12000, scoped, tag = 'internal scratch']
  #allocation2 [shape = 'f32[128,128]{1,0:T(8,128)}', space=vmem, size = 0x10000, scoped, tag = 'scratch operand']
  %s0 = inlined_call_operand.vmem [shape: bf16[128,128], index: 0, kind: input, shape index: {}]
  %s1 = inlined_call_operand.vmem [shape: bf16[128,128], index: 1, kind: input, shape index: {}]
  %s2 = inlined_call_operand.vmem [shape: f32[128,128], index: 2, kind: output, shape index: {}]
  %s3 = sld [smem:[#allocation0]]
  $region26: #{net_forward.8} parent=0
    _
  %s5 = ssub.s32 1, %s3
  %s6 = scalar_select 0, %s5, %s3
  // Predicated region
  $region2: #{net_forward.8} parent=0 // pred_check
    _
  $region3: #{net_forward.8} parent=0 // pred_check_branch
    %8 = sbr.rel (0) target = $region5
  $region4: #{net_forward.8} parent=0 // pred_region
    _
  $region5: #{net_forward.8} parent=0 // pred_fallthru
    _
  // Predicated region
  $region6: #{net_forward.8} parent=0 // pred_check
    _
  $region7: #{net_forward.8} parent=0 // pred_check_branch
    %10 = sbr.rel (0) target = $region9
  $region8: #{net_forward.8} parent=0 // pred_region
    _
  $region9: #{net_forward.8} parent=0 // pred_fallthru
    _
  %p12 = scmp.eq.s32.totalorder 0, 0
  // Predicated region
  $region10: #{net_forward.8} parent=0 // pred_check
    %p13 = pneg %p12
  $region11: #{net_forward.8} parent=0 // pred_check_branch
    %15 = sbr.rel (%p13) target = $region13
  $region12: #{net_forward.8} parent=0 // pred_region
    %16 = vst [vmem:[#allocation2] sm:$0xff] 0.0
    %17 = vst [vmem:[#allocation2 + $0x8] sm:$0xff] 0.0
    %18 = vst [vmem:[#allocation2 + $0x10] sm:$0xff] 0.0
    %19 = vst [vmem:[#allocation2 + $0x18] sm:$0xff] 0.0
    %20 = vst [vmem:[#allocation2 + $0x20] sm:$0xff] 0.0
    %21 = vst [vmem:[#allocation2 + $0x28] sm:$0xff] 0.0
    %22 = vst [vmem:[#allocation2 + $0x30] sm:$0xff] 0.0
    %23 = vst [vmem:[#allocation2 + $0x38] sm:$0xff] 0.0
    %24 = vst [vmem:[#allocation2 + $0x40] sm:$0xff] 0.0
    %25 = vst [vmem:[#allocation2 + $0x48] sm:$0xff] 0.0
    %26 = vst [vmem:[#allocation2 + $0x50] sm:$0xff] 0.0
    %27 = vst [vmem:[#allocation2 + $0x58] sm:$0xff] 0.0
    %28 = vst [vmem:[#allocation2 + $0x60] sm:$0xff] 0.0
    %29 = vst [vmem:[#allocation2 + $0x68] sm:$0xff] 0.0
    %30 = vst [vmem:[#allocation2 + $0x70] sm:$0xff] 0.0
    %31 = vst [vmem:[#allocation2 + $0x78] sm:$0xff] 0.0
  $region13: #{net_forward.8} parent=0 // pred_fallthru
    _
  %v32 = vld [vmem:[#allocation2] sm:$0xff]
  %v33 = vld [vmem:[#allocation2 + $0x8] sm:$0xff]
  %v34 = vld [vmem:[#allocation2 + $0x10] sm:$0xff]
  %v35 = vld [vmem:[#allocation2 + $0x18] sm:$0xff]
  %v36 = vld [vmem:[#allocation2 + $0x20] sm:$0xff]
  %v37 = vld [vmem:[#allocation2 + $0x28] sm:$0xff]
  %v38 = vld [vmem:[#allocation2 + $0x30] sm:$0xff]
  %v39 = vld [vmem:[#allocation2 + $0x38] sm:$0xff]
  %v40 = vld [vmem:[#allocation2 + $0x40] sm:$0xff]
  %v41 = vld [vmem:[#allocation2 + $0x48] sm:$0xff]
  %v42 = vld [vmem:[#allocation2 + $0x50] sm:$0xff]
  %v43 = vld [vmem:[#allocation2 + $0x58] sm:$0xff]
  %v44 = vld [vmem:[#allocation2 + $0x60] sm:$0xff]
  %v45 = vld [vmem:[#allocation2 + $0x68] sm:$0xff]
  %v46 = vld [vmem:[#allocation2 + $0x70] sm:$0xff]
  %v47 = vld [vmem:[#allocation2 + $0x78] sm:$0xff]
  %v48 = vld [vmem:[%s0] sm:$0xf]
  %v49 = vld [vmem:[%s0 + $0x4] sm:$0xf]
  %v50 = vld [vmem:[%s0 + $0x8] sm:$0xf]
  %v51 = vld [vmem:[%s0 + $0xc] sm:$0xf]
  %v52 = vld [vmem:[%s0 + $0x10] sm:$0xf]
  %v53 = vld [vmem:[%s0 + $0x14] sm:$0xf]
  %v54 = vld [vmem:[%s0 + $0x18] sm:$0xf]
  %v55 = vld [vmem:[%s0 + $0x1c] sm:$0xf]
  %v56 = vld [vmem:[%s0 + $0x20] sm:$0xf]
  %v57 = vld [vmem:[%s0 + $0x24] sm:$0xf]
  %v58 = vld [vmem:[%s0 + $0x28] sm:$0xf]
  %v59 = vld [vmem:[%s0 + $0x2c] sm:$0xf]
  %v60 = vld [vmem:[%s0 + $0x30] sm:$0xf]
  %v61 = vld [vmem:[%s0 + $0x34] sm:$0xf]
  %v62 = vld [vmem:[%s0 + $0x38] sm:$0xf]
  %v63 = vld [vmem:[%s0 + $0x3c] sm:$0xf]
  %v64 = vld [vmem:[%s1] sm:$0xf]
  %v65 = vld [vmem:[%s1 + $0x4] sm:$0xf]
  %v66 = vld [vmem:[%s1 + $0x8] sm:$0xf]
  %v67 = vld [vmem:[%s1 + $0xc] sm:$0xf]
  %v68 = vld [vmem:[%s1 + $0x10] sm:$0xf]
  %v69 = vld [vmem:[%s1 + $0x14] sm:$0xf]
  %v70 = vld [vmem:[%s1 + $0x18] sm:$0xf]
  %v71 = vld [vmem:[%s1 + $0x1c] sm:$0xf]
  %v72 = vld [vmem:[%s1 + $0x20] sm:$0xf]
  %v73 = vld [vmem:[%s1 + $0x24] sm:$0xf]
  %v74 = vld [vmem:[%s1 + $0x28] sm:$0xf]
  %v75 = vld [vmem:[%s1 + $0x2c] sm:$0xf]
  %v76 = vld [vmem:[%s1 + $0x30] sm:$0xf]
  %v77 = vld [vmem:[%s1 + $0x34] sm:$0xf]
  %v78 = vld [vmem:[%s1 + $0x38] sm:$0xf]
  %v79 = vld [vmem:[%s1 + $0x3c] sm:$0xf]
  %v96 = vunpack.c.l.b16 %v48
  %v97 = vunpack.c.l.b16 %v49
  %v98 = vunpack.c.l.b16 %v50
  %v99 = vunpack.c.l.b16 %v51
  %v100 = vunpack.c.l.b16 %v52
  %v101 = vunpack.c.l.b16 %v53
  %v102 = vunpack.c.l.b16 %v54
  %v103 = vunpack.c.l.b16 %v55
  %v104 = vunpack.c.l.b16 %v56
  %v105 = vunpack.c.l.b16 %v57
  %v106 = vunpack.c.l.b16 %v58
  %v107 = vunpack.c.l.b16 %v59
  %v108 = vunpack.c.l.b16 %v60
  %v109 = vunpack.c.l.b16 %v61
  %v110 = vunpack.c.l.b16 %v62
  %v111 = vunpack.c.l.b16 %v63
  %v112 = vpack.c.b16 %v97, %v96
  %v113 = vpack.c.b16 %v99, %v98
  %v114 = vpack.c.b16 %v101, %v100
  %v115 = vpack.c.b16 %v103, %v102
  %v116 = vpack.c.b16 %v105, %v104
  %v117 = vpack.c.b16 %v107, %v106
  %v118 = vpack.c.b16 %v109, %v108
  %v119 = vpack.c.b16 %v111, %v110
  %v144 = vunpack.c.l.b16 %v64
  %v145 = vunpack.c.l.b16 %v65
  %v146 = vunpack.c.l.b16 %v66
  %v147 = vunpack.c.l.b16 %v67
  %v148 = vunpack.c.l.b16 %v68
  %v149 = vunpack.c.l.b16 %v69
  %v150 = vunpack.c.l.b16 %v70
  %v151 = vunpack.c.l.b16 %v71
  %v152 = vunpack.c.l.b16 %v72
  %v153 = vunpack.c.l.b16 %v73
  %v154 = vunpack.c.l.b16 %v74
  %v155 = vunpack.c.l.b16 %v75
  %v156 = vunpack.c.l.b16 %v76
  %v157 = vunpack.c.l.b16 %v77
  %v158 = vunpack.c.l.b16 %v78
  %v159 = vunpack.c.l.b16 %v79
  %v160 = vpack.c.b16 %v145, %v144
  %v161 = vpack.c.b16 %v147, %v146
  %v162 = vpack.c.b16 %v149, %v148
  %v163 = vpack.c.b16 %v151, %v150
  %v164 = vpack.c.b16 %v153, %v152
  %v165 = vpack.c.b16 %v155, %v154
  %v166 = vpack.c.b16 %v157, %v156
  %v167 = vpack.c.b16 %v159, %v158
  %176 = vmatprep.subr.bf16.mxu0 0
  %177 = vmatpush1.bf16.msra.mxu0 %v167
  %178 = vmatprep.subr.bf16.mxu0 0
  %179 = vmatpush1.bf16.msra.mxu0 %v166
  %180 = vmatprep.subr.bf16.mxu0 0
  %181 = vmatpush1.bf16.msra.mxu0 %v165
  %182 = vmatprep.subr.bf16.mxu0 0
  %183 = vmatpush1.bf16.msra.mxu0 %v164
  %184 = vmatprep.subr.bf16.mxu0 0
  %185 = vmatpush1.bf16.msra.mxu0 %v163
  %186 = vmatprep.subr.bf16.mxu0 0
  %187 = vmatpush1.bf16.msra.mxu0 %v162
  %188 = vmatprep.subr.bf16.mxu0 0
  %189 = vmatpush1.bf16.msra.mxu0 %v161
  %190 = vmatprep.subr.bf16.mxu0 0
  %191 = vmatpush1.bf16.msra.mxu0 %v160
  %192 = vmatprep.subr.bf16.mxu0 0
  %193 = vmatpush2.bf16.msra.mxu0 0
  %194 = vmatprep.subr.bf16.mxu0 0
  %195 = vmatpush2.bf16.msra.mxu0 0
  %196 = vmatprep.subr.bf16.mxu0 0
  %197 = vmatpush2.bf16.msra.mxu0 0
  %198 = vmatprep.subr.bf16.mxu0 0
  %199 = vmatpush2.bf16.msra.mxu0 0
  %200 = vmatprep.subr.bf16.mxu0 0
  %201 = vmatpush2.bf16.msra.mxu0 0
  %202 = vmatprep.subr.bf16.mxu0 0
  %203 = vmatpush2.bf16.msra.mxu0 0
  %204 = vmatprep.subr.bf16.mxu0 0
  %205 = vmatpush2.bf16.msra.mxu0 0
  %206 = vmatprep.subr.bf16.mxu0 0
  %207 = vmatpush2.bf16.msra.mxu0 0
  %208 = vmatprep.mubr.bf16.mxu0 0
  %209 = vmatmul.mubr.bf16.gmra.mxu0 %v112
  %v210 = vpop.f32.mrf.mxu0
  %v211 = vadd.f32 0.0, %v210
  %v212 = vpop.f32.mrf.mxu0
  %v213 = vpop.f32.mrf.mxu0
  %v214 = vadd.f32 0.0, %v213
  %v215 = vpop.f32.mrf.mxu0
  %216 = vmatprep.mubr.bf16.mxu0 0
  %217 = vmatmul.mubr.bf16.gmra.mxu0 %v113
  %v218 = vpop.f32.mrf.mxu0
  %v219 = vadd.f32 0.0, %v218
  %v220 = vpop.f32.mrf.mxu0
  %v221 = vpop.f32.mrf.mxu0
  %v222 = vadd.f32 0.0, %v221
  %v223 = vpop.f32.mrf.mxu0
  %224 = vmatprep.mubr.bf16.mxu0 0
  %225 = vmatmul.mubr.bf16.gmra.mxu0 %v114
  %v226 = vpop.f32.mrf.mxu0
  %v227 = vadd.f32 0.0, %v226
  %v228 = vpop.f32.mrf.mxu0
  %v229 = vpop.f32.mrf.mxu0
  %v230 = vadd.f32 0.0, %v229
  %v231 = vpop.f32.mrf.mxu0
  %232 = vmatprep.mubr.bf16.mxu0 0
  %233 = vmatmul.mubr.bf16.gmra.mxu0 %v115
  %v234 = vpop.f32.mrf.mxu0
  %v235 = vadd.f32 0.0, %v234
  %v236 = vpop.f32.mrf.mxu0
  %v237 = vpop.f32.mrf.mxu0
  %v238 = vadd.f32 0.0, %v237
  %v239 = vpop.f32.mrf.mxu0
  %240 = vmatprep.mubr.bf16.mxu0 0
  %241 = vmatmul.mubr.bf16.gmra.mxu0 %v116
  %v242 = vpop.f32.mrf.mxu0
  %v243 = vadd.f32 0.0, %v242
  %v244 = vpop.f32.mrf.mxu0
  %v245 = vpop.f32.mrf.mxu0
  %v246 = vadd.f32 0.0, %v245
  %v247 = vpop.f32.mrf.mxu0
  %248 = vmatprep.mubr.bf16.mxu0 0
  %249 = vmatmul.mubr.bf16.gmra.mxu0 %v117
  %v250 = vpop.f32.mrf.mxu0
  %v251 = vadd.f32 0.0, %v250
  %v252 = vpop.f32.mrf.mxu0
  %v253 = vpop.f32.mrf.mxu0
  %v254 = vadd.f32 0.0, %v253
  %v255 = vpop.f32.mrf.mxu0
  %256 = vmatprep.mubr.bf16.mxu0 0
  %257 = vmatmul.mubr.bf16.gmra.mxu0 %v118
  %v258 = vpop.f32.mrf.mxu0
  %v259 = vadd.f32 0.0, %v258
  %v260 = vpop.f32.mrf.mxu0
  %v261 = vpop.f32.mrf.mxu0
  %v262 = vadd.f32 0.0, %v261
  %v263 = vpop.f32.mrf.mxu0
  %264 = vmatprep.mubr.bf16.mxu0 0
  %265 = vmatmul.mubr.bf16.gmra.mxu0 %v119
  %v266 = vpop.f32.mrf.mxu0
  %v267 = vadd.f32 0.0, %v266
  %v268 = vpop.f32.mrf.mxu0
  %v269 = vpop.f32.mrf.mxu0
  %v270 = vadd.f32 0.0, %v269
  %v271 = vpop.f32.mrf.mxu0
  %272 = vdwg.mxu0
  %v273 = vadd.f32 %v32, %v211
  %v274 = vadd.f32 %v33, %v214
  %v275 = vadd.f32 %v34, %v219
  %v276 = vadd.f32 %v35, %v222
  %v277 = vadd.f32 %v36, %v227
  %v278 = vadd.f32 %v37, %v230
  %v279 = vadd.f32 %v38, %v235
  %v280 = vadd.f32 %v39, %v238
  %v281 = vadd.f32 %v40, %v243
  %v282 = vadd.f32 %v41, %v246
  %v283 = vadd.f32 %v42, %v251
  %v284 = vadd.f32 %v43, %v254
  %v285 = vadd.f32 %v44, %v259
  %v286 = vadd.f32 %v45, %v262
  %v287 = vadd.f32 %v46, %v267
  %v288 = vadd.f32 %v47, %v270
  %289 = vst [vmem:[#allocation2] sm:$0xff] %v273
  %290 = vst [vmem:[#allocation2 + $0x8] sm:$0xff] %v274
  %291 = vst [vmem:[#allocation2 + $0x10] sm:$0xff] %v275
  %292 = vst [vmem:[#allocation2 + $0x18] sm:$0xff] %v276
  %293 = vst [vmem:[#allocation2 + $0x20] sm:$0xff] %v277
  %294 = vst [vmem:[#allocation2 + $0x28] sm:$0xff] %v278
  %295 = vst [vmem:[#allocation2 + $0x30] sm:$0xff] %v279
  %296 = vst [vmem:[#allocation2 + $0x38] sm:$0xff] %v280
  %297 = vst [vmem:[#allocation2 + $0x40] sm:$0xff] %v281
  %298 = vst [vmem:[#allocation2 + $0x48] sm:$0xff] %v282
  %299 = vst [vmem:[#allocation2 + $0x50] sm:$0xff] %v283
  %300 = vst [vmem:[#allocation2 + $0x58] sm:$0xff] %v284
  %301 = vst [vmem:[#allocation2 + $0x60] sm:$0xff] %v285
  %302 = vst [vmem:[#allocation2 + $0x68] sm:$0xff] %v286
  %303 = vst [vmem:[#allocation2 + $0x70] sm:$0xff] %v287
  %304 = vst [vmem:[#allocation2 + $0x78] sm:$0xff] %v288
  // Predicated region
  $region14: #{net_forward.8} parent=0 // pred_check
    %p305 = pneg %p12
  $region15: #{net_forward.8} parent=0 // pred_check_branch
    %307 = sbr.rel (%p305) target = $region17
  $region16: #{net_forward.8} parent=0 // pred_region
    %v308 = vld [vmem:[#allocation2] sm:$0xff]
    %v309 = vld [vmem:[#allocation2 + $0x8] sm:$0xff]
    %v310 = vld [vmem:[#allocation2 + $0x10] sm:$0xff]
    %v311 = vld [vmem:[#allocation2 + $0x18] sm:$0xff]
    %v312 = vld [vmem:[#allocation2 + $0x20] sm:$0xff]
    %v313 = vld [vmem:[#allocation2 + $0x28] sm:$0xff]
    %v314 = vld [vmem:[#allocation2 + $0x30] sm:$0xff]
    %v315 = vld [vmem:[#allocation2 + $0x38] sm:$0xff]
    %v316 = vld [vmem:[#allocation2 + $0x40] sm:$0xff]
    %v317 = vld [vmem:[#allocation2 + $0x48] sm:$0xff]
    %v318 = vld [vmem:[#allocation2 + $0x50] sm:$0xff]
    %v319 = vld [vmem:[#allocation2 + $0x58] sm:$0xff]
    %v320 = vld [vmem:[#allocation2 + $0x60] sm:$0xff]
    %v321 = vld [vmem:[#allocation2 + $0x68] sm:$0xff]
    %v322 = vld [vmem:[#allocation2 + $0x70] sm:$0xff]
    %v323 = vld [vmem:[#allocation2 + $0x78] sm:$0xff]
    %vm324 = vcmp.ge.f32.partialorder %v308, 0.0
    %vm325 = vcmp.ge.f32.partialorder %v309, 0.0
    %vm326 = vcmp.ge.f32.partialorder %v310, 0.0
    %vm327 = vcmp.ge.f32.partialorder %v311, 0.0
    %vm328 = vcmp.ge.f32.partialorder %v312, 0.0
    %vm329 = vcmp.ge.f32.partialorder %v313, 0.0
    %vm330 = vcmp.ge.f32.partialorder %v314, 0.0
    %vm331 = vcmp.ge.f32.partialorder %v315, 0.0
    %vm332 = vcmp.ge.f32.partialorder %v316, 0.0
    %vm333 = vcmp.ge.f32.partialorder %v317, 0.0
    %vm334 = vcmp.ge.f32.partialorder %v318, 0.0
    %vm335 = vcmp.ge.f32.partialorder %v319, 0.0
    %vm336 = vcmp.ge.f32.partialorder %v320, 0.0
    %vm337 = vcmp.ge.f32.partialorder %v321, 0.0
    %vm338 = vcmp.ge.f32.partialorder %v322, 0.0
    %vm339 = vcmp.ge.f32.partialorder %v323, 0.0
    %v340 = vmul.f32 %v308, 0.2
    %v341 = vmul.f32 %v309, 0.2
    %v342 = vmul.f32 %v310, 0.2
    %v343 = vmul.f32 %v311, 0.2
    %v344 = vmul.f32 %v312, 0.2
    %v345 = vmul.f32 %v313, 0.2
    %v346 = vmul.f32 %v314, 0.2
    %v347 = vmul.f32 %v315, 0.2
    %v348 = vmul.f32 %v316, 0.2
    %v349 = vmul.f32 %v317, 0.2
    %v350 = vmul.f32 %v318, 0.2
    %v351 = vmul.f32 %v319, 0.2
    %v352 = vmul.f32 %v320, 0.2
    %v353 = vmul.f32 %v321, 0.2
    %v354 = vmul.f32 %v322, 0.2
    %v355 = vmul.f32 %v323, 0.2
    %v356 = vsel %vm324, %v308, %v340
    %v357 = vsel %vm325, %v309, %v341
    %v358 = vsel %vm326, %v310, %v342
    %v359 = vsel %vm327, %v311, %v343
    %v360 = vsel %vm328, %v312, %v344
    %v361 = vsel %vm329, %v313, %v345
    %v362 = vsel %vm330, %v314, %v346
    %v363 = vsel %vm331, %v315, %v347
    %v364 = vsel %vm332, %v316, %v348
    %v365 = vsel %vm333, %v317, %v349
    %v366 = vsel %vm334, %v318, %v350
    %v367 = vsel %vm335, %v319, %v351
    %v368 = vsel %vm336, %v320, %v352
    %v369 = vsel %vm337, %v321, %v353
    %v370 = vsel %vm338, %v322, %v354
    %v371 = vsel %vm339, %v323, %v355
    %372 = vst [vmem:[%s2] sm:$0xff] %v356
    %373 = vst [vmem:[%s2 + $0x8] sm:$0xff] %v357
    %374 = vst [vmem:[%s2 + $0x10] sm:$0xff] %v358
    %375 = vst [vmem:[%s2 + $0x18] sm:$0xff] %v359
    %376 = vst [vmem:[%s2 + $0x20] sm:$0xff] %v360
    %377 = vst [vmem:[%s2 + $0x28] sm:$0xff] %v361
    %378 = vst [vmem:[%s2 + $0x30] sm:$0xff] %v362
    %379 = vst [vmem:[%s2 + $0x38] sm:$0xff] %v363
    %380 = vst [vmem:[%s2 + $0x40] sm:$0xff] %v364
    %381 = vst [vmem:[%s2 + $0x48] sm:$0xff] %v365
    %382 = vst [vmem:[%s2 + $0x50] sm:$0xff] %v366
    %383 = vst [vmem:[%s2 + $0x58] sm:$0xff] %v367
    %384 = vst [vmem:[%s2 + $0x60] sm:$0xff] %v368
    %385 = vst [vmem:[%s2 + $0x68] sm:$0xff] %v369
    %386 = vst [vmem:[%s2 + $0x70] sm:$0xff] %v370
    %387 = vst [vmem:[%s2 + $0x78] sm:$0xff] %v371
  $region17: #{net_forward.8} parent=0 // pred_fallthru
    _
  // Predicated region
  $region18: #{net_forward.8} parent=0 // pred_check
    _
  $region19: #{net_forward.8} parent=0 // pred_check_branch
    %389 = sbr.rel (0) target = $region21
  $region20: #{net_forward.8} parent=0 // pred_region
    _
  $region21: #{net_forward.8} parent=0 // pred_fallthru
    _
  // Predicated region
  $region22: #{net_forward.8} parent=0 // pred_check
    _
  $region23: #{net_forward.8} parent=0 // pred_check_branch
    %391 = sbr.rel (0) target = $region25
  $region24: #{net_forward.8} parent=0 // pred_region
    _
  $region25: #{net_forward.8} parent=0 // pred_fallthru
    _

// kernel: net_forward.9
$region0: #{net_forward.9}
  #allocation0 [shape = 'u32[]', space=smem, size = 0x4, offset = 0x4, fixed_abs, tag = 'smem constant byte address 0x4 - core index']
  #allocation1 [shape = 'u32[144,128]{1,0:T(1,128)}', space=vmem, size = 0x12000, scoped, tag = 'internal scratch']
  #allocation2 [shape = 'f32[32,128]{1,0:T(8,128)}', space=vmem, size = 0x4000, scoped, tag = 'scratch operand']
  %s0 = inlined_call_operand.vmem [shape: bf16[32,128], index: 0, kind: input, shape index: {}]
  %s1 = inlined_call_operand.vmem [shape: bf16[128,128], index: 1, kind: input, shape index: {}]
  %s2 = inlined_call_operand.vmem [shape: f32[1,128], index: 2, kind: input, shape index: {}]
  %s3 = inlined_call_operand.vmem [shape: f32[1,128], index: 3, kind: input, shape index: {}]
  %s4 = inlined_call_operand.vmem [shape: f32[32,128], index: 4, kind: output, shape index: {}]
  %s5 = sld [smem:[#allocation0]]
  $region34: #{net_forward.9} parent=0
    _
  %s7 = ssub.s32 1, %s5
  %s8 = scalar_select 0, %s7, %s5
  // Predicated region
  $region2: #{net_forward.9} parent=0 // pred_check
    _
  $region3: #{net_forward.9} parent=0 // pred_check_branch
    %10 = sbr.rel (0) target = $region5
  $region4: #{net_forward.9} parent=0 // pred_region
    _
  $region5: #{net_forward.9} parent=0 // pred_fallthru
    _
  // Predicated region
  $region6: #{net_forward.9} parent=0 // pred_check
    _
  $region7: #{net_forward.9} parent=0 // pred_check_branch
    %12 = sbr.rel (0) target = $region9
  $region8: #{net_forward.9} parent=0 // pred_region
    _
  $region9: #{net_forward.9} parent=0 // pred_fallthru
    _
  // Predicated region
  $region10: #{net_forward.9} parent=0 // pred_check
    _
  $region11: #{net_forward.9} parent=0 // pred_check_branch
    %14 = sbr.rel (0) target = $region13
  $region12: #{net_forward.9} parent=0 // pred_region
    _
  $region13: #{net_forward.9} parent=0 // pred_fallthru
    _
  // Predicated region
  $region14: #{net_forward.9} parent=0 // pred_check
    _
  $region15: #{net_forward.9} parent=0 // pred_check_branch
    %16 = sbr.rel (0) target = $region17
  $region16: #{net_forward.9} parent=0 // pred_region
    _
  $region17: #{net_forward.9} parent=0 // pred_fallthru
    _
  %p18 = scmp.eq.s32.totalorder 0, 0
  // Predicated region
  $region18: #{net_forward.9} parent=0 // pred_check
    %p19 = pneg %p18
  $region19: #{net_forward.9} parent=0 // pred_check_branch
    %21 = sbr.rel (%p19) target = $region21
  $region20: #{net_forward.9} parent=0 // pred_region
    %22 = vst [vmem:[#allocation2] sm:$0xff] 0.0
    %23 = vst [vmem:[#allocation2 + $0x8] sm:$0xff] 0.0
    %24 = vst [vmem:[#allocation2 + $0x10] sm:$0xff] 0.0
    %25 = vst [vmem:[#allocation2 + $0x18] sm:$0xff] 0.0
  $region21: #{net_forward.9} parent=0 // pred_fallthru
    _
  %v26 = vld [vmem:[#allocation2] sm:$0xff]
  %v27 = vld [vmem:[#allocation2 + $0x8] sm:$0xff]
  %v28 = vld [vmem:[#allocation2 + $0x10] sm:$0xff]
  %v29 = vld [vmem:[#allocation2 + $0x18] sm:$0xff]
  %v30 = vld [vmem:[%s0] sm:$0xf]
  %v31 = vld [vmem:[%s0 + $0x4] sm:$0xf]
  %v32 = vld [vmem:[%s0 + $0x8] sm:$0xf]
  %v33 = vld [vmem:[%s0 + $0xc] sm:$0xf]
  %v34 = vld [vmem:[%s1] sm:$0xf]
  %v35 = vld [vmem:[%s1 + $0x4] sm:$0xf]
  %v36 = vld [vmem:[%s1 + $0x8] sm:$0xf]
  %v37 = vld [vmem:[%s1 + $0xc] sm:$0xf]
  %v38 = vld [vmem:[%s1 + $0x10] sm:$0xf]
  %v39 = vld [vmem:[%s1 + $0x14] sm:$0xf]
  %v40 = vld [vmem:[%s1 + $0x18] sm:$0xf]
  %v41 = vld [vmem:[%s1 + $0x1c] sm:$0xf]
  %v42 = vld [vmem:[%s1 + $0x20] sm:$0xf]
  %v43 = vld [vmem:[%s1 + $0x24] sm:$0xf]
  %v44 = vld [vmem:[%s1 + $0x28] sm:$0xf]
  %v45 = vld [vmem:[%s1 + $0x2c] sm:$0xf]
  %v46 = vld [vmem:[%s1 + $0x30] sm:$0xf]
  %v47 = vld [vmem:[%s1 + $0x34] sm:$0xf]
  %v48 = vld [vmem:[%s1 + $0x38] sm:$0xf]
  %v49 = vld [vmem:[%s1 + $0x3c] sm:$0xf]
  %v54 = vunpack.c.l.b16 %v30
  %v55 = vunpack.c.l.b16 %v31
  %v56 = vunpack.c.l.b16 %v32
  %v57 = vunpack.c.l.b16 %v33
  %v58 = vpack.c.b16 %v55, %v54
  %v59 = vpack.c.b16 %v57, %v56
  %v78 = vunpack.c.l.b16 %v34
  %v79 = vunpack.c.l.b16 %v35
  %v80 = vunpack.c.l.b16 %v36
  %v81 = vunpack.c.l.b16 %v37
  %v82 = vunpack.c.l.b16 %v38
  %v83 = vunpack.c.l.b16 %v39
  %v84 = vunpack.c.l.b16 %v40
  %v85 = vunpack.c.l.b16 %v41
  %v86 = vunpack.c.l.b16 %v42
  %v87 = vunpack.c.l.b16 %v43
  %v88 = vunpack.c.l.b16 %v44
  %v89 = vunpack.c.l.b16 %v45
  %v90 = vunpack.c.l.b16 %v46
  %v91 = vunpack.c.l.b16 %v47
  %v92 = vunpack.c.l.b16 %v48
  %v93 = vunpack.c.l.b16 %v49
  %v94 = vpack.c.b16 %v79, %v78
  %v95 = vpack.c.b16 %v81, %v80
  %v96 = vpack.c.b16 %v83, %v82
  %v97 = vpack.c.b16 %v85, %v84
  %v98 = vpack.c.b16 %v87, %v86
  %v99 = vpack.c.b16 %v89, %v88
  %v100 = vpack.c.b16 %v91, %v90
  %v101 = vpack.c.b16 %v93, %v92
  %110 = vmatprep.subr.bf16.mxu0 0
  %111 = vmatpush1.bf16.msra.mxu0 %v101
  %112 = vmatprep.subr.bf16.mxu0 0
  %113 = vmatpush1.bf16.msra.mxu0 %v100
  %114 = vmatprep.subr.bf16.mxu0 0
  %115 = vmatpush1.bf16.msra.mxu0 %v99
  %116 = vmatprep.subr.bf16.mxu0 0
  %117 = vmatpush1.bf16.msra.mxu0 %v98
  %118 = vmatprep.subr.bf16.mxu0 0
  %119 = vmatpush1.bf16.msra.mxu0 %v97
  %120 = vmatprep.subr.bf16.mxu0 0
  %121 = vmatpush1.bf16.msra.mxu0 %v96
  %122 = vmatprep.subr.bf16.mxu0 0
  %123 = vmatpush1.bf16.msra.mxu0 %v95
  %124 = vmatprep.subr.bf16.mxu0 0
  %125 = vmatpush1.bf16.msra.mxu0 %v94
  %126 = vmatprep.subr.bf16.mxu0 0
  %127 = vmatpush2.bf16.msra.mxu0 0
  %128 = vmatprep.subr.bf16.mxu0 0
  %129 = vmatpush2.bf16.msra.mxu0 0
  %130 = vmatprep.subr.bf16.mxu0 0
  %131 = vmatpush2.bf16.msra.mxu0 0
  %132 = vmatprep.subr.bf16.mxu0 0
  %133 = vmatpush2.bf16.msra.mxu0 0
  %134 = vmatprep.subr.bf16.mxu0 0
  %135 = vmatpush2.bf16.msra.mxu0 0
  %136 = vmatprep.subr.bf16.mxu0 0
  %137 = vmatpush2.bf16.msra.mxu0 0
  %138 = vmatprep.subr.bf16.mxu0 0
  %139 = vmatpush2.bf16.msra.mxu0 0
  %140 = vmatprep.subr.bf16.mxu0 0
  %141 = vmatpush2.bf16.msra.mxu0 0
  %142 = vmatprep.mubr.bf16.mxu0 0
  %143 = vmatmul.mubr.bf16.gmra.mxu0 %v58
  %v144 = vpop.f32.mrf.mxu0
  %v145 = vadd.f32 0.0, %v144
  %v146 = vpop.f32.mrf.mxu0
  %v147 = vpop.f32.mrf.mxu0
  %v148 = vadd.f32 0.0, %v147
  %v149 = vpop.f32.mrf.mxu0
  %150 = vmatprep.mubr.bf16.mxu0 0
  %151 = vmatmul.mubr.bf16.gmra.mxu0 %v59
  %v152 = vpop.f32.mrf.mxu0
  %v153 = vadd.f32 0.0, %v152
  %v154 = vpop.f32.mrf.mxu0
  %v155 = vpop.f32.mrf.mxu0
  %v156 = vadd.f32 0.0, %v155
  %v157 = vpop.f32.mrf.mxu0
  %158 = vdwg.mxu0
  %v159 = vadd.f32 %v26, %v145
  %v160 = vadd.f32 %v27, %v148
  %v161 = vadd.f32 %v28, %v153
  %v162 = vadd.f32 %v29, %v156
  %163 = vst [vmem:[#allocation2] sm:$0xff] %v159
  %164 = vst [vmem:[#allocation2 + $0x8] sm:$0xff] %v160
  %165 = vst [vmem:[#allocation2 + $0x10] sm:$0xff] %v161
  %166 = vst [vmem:[#allocation2 + $0x18] sm:$0xff] %v162
  // Predicated region
  $region22: #{net_forward.9} parent=0 // pred_check
    %p167 = pneg %p18
  $region23: #{net_forward.9} parent=0 // pred_check_branch
    %169 = sbr.rel (%p167) target = $region25
  $region24: #{net_forward.9} parent=0 // pred_region
    %v170 = vld [vmem:[#allocation2] sm:$0xff]
    %v171 = vld [vmem:[#allocation2 + $0x8] sm:$0xff]
    %v172 = vld [vmem:[#allocation2 + $0x10] sm:$0xff]
    %v173 = vld [vmem:[#allocation2 + $0x18] sm:$0xff]
    %v174 = vadd.f32 %v170, %v171
    %v175 = vadd.f32 %v174, %v172
    %v176 = vadd.f32 %v175, %v173
    %v177 = vrot.slane %v176, 4
    %v178 = vadd.f32 %v176, %v177
    %v179 = vrot.slane %v178, 2
    %v180 = vadd.f32 %v178, %v179
    %v181 = vrot.slane %v180, 1
    %v182 = vadd.f32 %v180, %v181
    %v183 = vmul.f32 %v170, %v170
    %v184 = vmul.f32 %v171, %v171
    %v185 = vmul.f32 %v172, %v172
    %v186 = vmul.f32 %v173, %v173
    %v187 = vadd.f32 %v183, %v184
    %v188 = vadd.f32 %v187, %v185
    %v189 = vadd.f32 %v188, %v186
    %v190 = vrot.slane %v189, 4
    %v191 = vadd.f32 %v189, %v190
    %v192 = vrot.slane %v191, 2
    %v193 = vadd.f32 %v191, %v192
    %v194 = vrot.slane %v193, 1
    %v195 = vadd.f32 %v193, %v194
    %v196 = vmul.f32 %v182, 0.03125
    %v197 = vmul.f32 %v195, 0.03125
    %v198 = vmul.f32 %v196, %v196
    %v199 = vsub.f32 %v197, %v198
    %v200 = vmax.f32 %v199, 0.0
    %v201 = vld [vmem:[%s2] sm:$0x1]
    %v202 = vadd.f32 %v200, 1e-05
    %v203 = vrsqrt.pop %v202
    %v204 = vmul.f32 %v201, %v203
    %v205 = vld [vmem:[%s3] sm:$0x1]
    %v206 = vmul.f32 %v196, %v204
    %v207 = vsub.f32 %v205, %v206
    %v209 = vlaneseq
    %v210 = vshrl.u32 %v209, 7
    %v211 = vsub.s32 0, %v210
    %v212 = vrot.slane %v204, %v211
    %v214 = vmul.f32 %v170, %v212
    %v215 = vmul.f32 %v171, %v212
    %v216 = vmul.f32 %v172, %v212
    %v217 = vmul.f32 %v173, %v212
    %v219 = vlaneseq
    %v220 = vshrl.u32 %v219, 7
    %v221 = vsub.s32 0, %v220
    %v222 = vrot.slane %v207, %v221
    %v224 = vadd.f32 %v214, %v222
    %v225 = vadd.f32 %v215, %v222
    %v226 = vadd.f32 %v216, %v222
    %v227 = vadd.f32 %v217, %v222
    %vm228 = vcmp.ge.f32.partialorder %v224, 0.0
    %vm229 = vcmp.ge.f32.partialorder %v225, 0.0
    %vm230 = vcmp.ge.f32.partialorder %v226, 0.0
    %vm231 = vcmp.ge.f32.partialorder %v227, 0.0
    %v232 = vmul.f32 %v224, 0.2
    %v233 = vmul.f32 %v225, 0.2
    %v234 = vmul.f32 %v226, 0.2
    %v235 = vmul.f32 %v227, 0.2
    %v236 = vsel %vm228, %v224, %v232
    %v237 = vsel %vm229, %v225, %v233
    %v238 = vsel %vm230, %v226, %v234
    %v239 = vsel %vm231, %v227, %v235
    %240 = vst [vmem:[%s4] sm:$0xff] %v236
    %241 = vst [vmem:[%s4 + $0x8] sm:$0xff] %v237
    %242 = vst [vmem:[%s4 + $0x10] sm:$0xff] %v238
    %243 = vst [vmem:[%s4 + $0x18] sm:$0xff] %v239
  $region25: #{net_forward.9} parent=0 // pred_fallthru
    _
  // Predicated region
  $region26: #{net_forward.9} parent=0 // pred_check
    _
  $region27: #{net_forward.9} parent=0 // pred_check_branch
    %245 = sbr.rel (0) target = $region29
  $region28: #{net_forward.9} parent=0 // pred_region
    _
  $region29: #{net_forward.9} parent=0 // pred_fallthru
    _
  // Predicated region
  $region30: #{net_forward.9} parent=0 // pred_check
    _
  $region31: #{net_forward.9} parent=0 // pred_check_branch
    %247 = sbr.rel (0) target = $region33
  $region32: #{net_forward.9} parent=0 // pred_region
    _
  $region33: #{net_forward.9} parent=0 // pred_fallthru
    _

// kernel: net_forward.11
$region0: #{net_forward.11}
  #allocation0 [shape = 'u32[]', space=smem, size = 0x4, offset = 0x4, fixed_abs, tag = 'smem constant byte address 0x4 - core index']
  #allocation1 [shape = 'u32[144,128]{1,0:T(1,128)}', space=vmem, size = 0x12000, scoped, tag = 'internal scratch']
  #allocation2 [shape = 'f32[16,128]{1,0:T(8,128)}', space=vmem, size = 0x2000, scoped, tag = 'scratch operand']
  %s0 = inlined_call_operand.vmem [shape: bf16[16,512], index: 0, kind: input, shape index: {}]
  %s1 = inlined_call_operand.vmem [shape: bf16[512,128], index: 1, kind: input, shape index: {}]
  %s2 = inlined_call_operand.vmem [shape: f32[1,128], index: 2, kind: input, shape index: {}]
  %s3 = inlined_call_operand.vmem [shape: f32[1,128], index: 3, kind: input, shape index: {}]
  %s4 = inlined_call_operand.vmem [shape: f32[16,128], index: 4, kind: output, shape index: {}]
  %s5 = sld [smem:[#allocation0]]
  $region34: #{net_forward.11} parent=0
    _
  %s7 = ssub.s32 1, %s5
  %s8 = scalar_select 0, %s7, %s5
  // Predicated region
  $region2: #{net_forward.11} parent=0 // pred_check
    _
  $region3: #{net_forward.11} parent=0 // pred_check_branch
    %10 = sbr.rel (0) target = $region5
  $region4: #{net_forward.11} parent=0 // pred_region
    _
  $region5: #{net_forward.11} parent=0 // pred_fallthru
    _
  // Predicated region
  $region6: #{net_forward.11} parent=0 // pred_check
    _
  $region7: #{net_forward.11} parent=0 // pred_check_branch
    %12 = sbr.rel (0) target = $region9
  $region8: #{net_forward.11} parent=0 // pred_region
    _
  $region9: #{net_forward.11} parent=0 // pred_fallthru
    _
  // Predicated region
  $region10: #{net_forward.11} parent=0 // pred_check
    _
  $region11: #{net_forward.11} parent=0 // pred_check_branch
    %14 = sbr.rel (0) target = $region13
  $region12: #{net_forward.11} parent=0 // pred_region
    _
  $region13: #{net_forward.11} parent=0 // pred_fallthru
    _
  // Predicated region
  $region14: #{net_forward.11} parent=0 // pred_check
    _
  $region15: #{net_forward.11} parent=0 // pred_check_branch
    %16 = sbr.rel (0) target = $region17
  $region16: #{net_forward.11} parent=0 // pred_region
    _
  $region17: #{net_forward.11} parent=0 // pred_fallthru
    _
  %p18 = scmp.eq.s32.totalorder 0, 0
  // Predicated region
  $region18: #{net_forward.11} parent=0 // pred_check
    %p19 = pneg %p18
  $region19: #{net_forward.11} parent=0 // pred_check_branch
    %21 = sbr.rel (%p19) target = $region21
  $region20: #{net_forward.11} parent=0 // pred_region
    %22 = vst [vmem:[#allocation2] sm:$0xff] 0.0
    %23 = vst [vmem:[#allocation2 + $0x8] sm:$0xff] 0.0
  $region21: #{net_forward.11} parent=0 // pred_fallthru
    _
  %v24 = vld [vmem:[#allocation2] sm:$0xff]
  %v25 = vld [vmem:[#allocation2 + $0x8] sm:$0xff]
  %v26 = vld [vmem:[%s0] sm:$0xff]
  %v27 = vld [vmem:[%s0 + $0x8] sm:$0xff]
  %v28 = vld [vmem:[%s0 + $0x10] sm:$0xff]
  %v29 = vld [vmem:[%s0 + $0x18] sm:$0xff]
  %v30 = vld [vmem:[%s1] sm:$0xf]
  %v31 = vld [vmem:[%s1 + $0x4] sm:$0xf]
  %v32 = vld [vmem:[%s1 + $0x8] sm:$0xf]
  %v33 = vld [vmem:[%s1 + $0xc] sm:$0xf]
  %v34 = vld [vmem:[%s1 + $0x10] sm:$0xf]
  %v35 = vld [vmem:[%s1 + $0x14] sm:$0xf]
  %v36 = vld [vmem:[%s1 + $0x18] sm:$0xf]
  %v37 = vld [vmem:[%s1 + $0x1c] sm:$0xf]
  %v38 = vld [vmem:[%s1 + $0x20] sm:$0xf]
  %v39 = vld [vmem:[%s1 + $0x24] sm:$0xf]
  %v40 = vld [vmem:[%s1 + $0x28] sm:$0xf]
  %v41 = vld [vmem:[%s1 + $0x2c] sm:$0xf]
  %v42 = vld [vmem:[%s1 + $0x30] sm:$0xf]
  %v43 = vld [vmem:[%s1 + $0x34] sm:$0xf]
  %v44 = vld [vmem:[%s1 + $0x38] sm:$0xf]
  %v45 = vld [vmem:[%s1 + $0x3c] sm:$0xf]
  %v46 = vld [vmem:[%s1 + $0x40] sm:$0xf]
  %v47 = vld [vmem:[%s1 + $0x44] sm:$0xf]
  %v48 = vld [vmem:[%s1 + $0x48] sm:$0xf]
  %v49 = vld [vmem:[%s1 + $0x4c] sm:$0xf]
  %v50 = vld [vmem:[%s1 + $0x50] sm:$0xf]
  %v51 = vld [vmem:[%s1 + $0x54] sm:$0xf]
  %v52 = vld [vmem:[%s1 + $0x58] sm:$0xf]
  %v53 = vld [vmem:[%s1 + $0x5c] sm:$0xf]
  %v54 = vld [vmem:[%s1 + $0x60] sm:$0xf]
  %v55 = vld [vmem:[%s1 + $0x64] sm:$0xf]
  %v56 = vld [vmem:[%s1 + $0x68] sm:$0xf]
  %v57 = vld [vmem:[%s1 + $0x6c] sm:$0xf]
  %v58 = vld [vmem:[%s1 + $0x70] sm:$0xf]
  %v59 = vld [vmem:[%s1 + $0x74] sm:$0xf]
  %v60 = vld [vmem:[%s1 + $0x78] sm:$0xf]
  %v61 = vld [vmem:[%s1 + $0x7c] sm:$0xf]
  %v62 = vld [vmem:[%s1 + $0x80] sm:$0xf]
  %v63 = vld [vmem:[%s1 + $0x84] sm:$0xf]
  %v64 = vld [vmem:[%s1 + $0x88] sm:$0xf]
  %v65 = vld [vmem:[%s1 + $0x8c] sm:$0xf]
  %v66 = vld [vmem:[%s1 + $0x90] sm:$0xf]
  %v67 = vld [vmem:[%s1 + $0x94] sm:$0xf]
  %v68 = vld [vmem:[%s1 + $0x98] sm:$0xf]
  %v69 = vld [vmem:[%s1 + $0x9c] sm:$0xf]
  %v70 = vld [vmem:[%s1 + $0xa0] sm:$0xf]
  %v71 = vld [vmem:[%s1 + $0xa4] sm:$0xf]
  %v72 = vld [vmem:[%s1 + $0xa8] sm:$0xf]
  %v73 = vld [vmem:[%s1 + $0xac] sm:$0xf]
  %v74 = vld [vmem:[%s1 + $0xb0] sm:$0xf]
  %v75 = vld [vmem:[%s1 + $0xb4] sm:$0xf]
  %v76 = vld [vmem:[%s1 + $0xb8] sm:$0xf]
  %v77 = vld [vmem:[%s1 + $0xbc] sm:$0xf]
  %v78 = vld [vmem:[%s1 + $0xc0] sm:$0xf]
  %v79 = vld [vmem:[%s1 + $0xc4] sm:$0xf]
  %v80 = vld [vmem:[%s1 + $0xc8] sm:$0xf]
  %v81 = vld [vmem:[%s1 + $0xcc] sm:$0xf]
  %v82 = vld [vmem:[%s1 + $0xd0] sm:$0xf]
  %v83 = vld [vmem:[%s1 + $0xd4] sm:$0xf]
  %v84 = vld [vmem:[%s1 + $0xd8] sm:$0xf]
  %v85 = vld [vmem:[%s1 + $0xdc] sm:$0xf]
  %v86 = vld [vmem:[%s1 + $0xe0] sm:$0xf]
  %v87 = vld [vmem:[%s1 + $0xe4] sm:$0xf]
  %v88 = vld [vmem:[%s1 + $0xe8] sm:$0xf]
  %v89 = vld [vmem:[%s1 + $0xec] sm:$0xf]
  %v90 = vld [vmem:[%s1 + $0xf0] sm:$0xf]
  %v91 = vld [vmem:[%s1 + $0xf4] sm:$0xf]
  %v92 = vld [vmem:[%s1 + $0xf8] sm:$0xf]
  %v93 = vld [vmem:[%s1 + $0xfc] sm:$0xf]
  %v98 = vunpack.c.l.b16 %v26
  %v99 = vunpack.c.h.b16 %v26
  %v100 = vunpack.c.l.b16 %v27
  %v101 = vunpack.c.h.b16 %v27
  %v102 = vunpack.c.l.b16 %v28
  %v103 = vunpack.c.h.b16 %v28
  %v104 = vunpack.c.l.b16 %v29
  %v105 = vunpack.c.h.b16 %v29
  %v106 = vpack.c.b16 %v102, %v98
  %v107 = vpack.c.b16 %v103, %v99
  %v108 = vpack.c.b16 %v104, %v100
  %v109 = vpack.c.b16 %v105, %v101
  %v178 = vunpack.c.l.b16 %v30
  %v179 = vunpack.c.l.b16 %v31
  %v180 = vunpack.c.l.b16 %v32
  %v181 = vunpack.c.l.b16 %v33
  %v182 = vunpack.c.l.b16 %v34
  %v183 = vunpack.c.l.b16 %v35
  %v184 = vunpack.c.l.b16 %v36
  %v185 = vunpack.c.l.b16 %v37
  %v186 = vunpack.c.l.b16 %v38
  %v187 = vunpack.c.l.b16 %v39
  %v188 = vunpack.c.l.b16 %v40
  %v189 = vunpack.c.l.b16 %v41
  %v190 = vunpack.c.l.b16 %v42
  %v191 = vunpack.c.l.b16 %v43
  %v192 = vunpack.c.l.b16 %v44
  %v193 = vunpack.c.l.b16 %v45
  %v194 = vunpack.c.l.b16 %v46
  %v195 = vunpack.c.l.b16 %v47
  %v196 = vunpack.c.l.b16 %v48
  %v197 = vunpack.c.l.b16 %v49
  %v198 = vunpack.c.l.b16 %v50
  %v199 = vunpack.c.l.b16 %v51
  %v200 = vunpack.c.l.b16 %v52
  %v201 = vunpack.c.l.b16 %v53
  %v202 = vunpack.c.l.b16 %v54
  %v203 = vunpack.c.l.b16 %v55
  %v204 = vunpack.c.l.b16 %v56
  %v205 = vunpack.c.l.b16 %v57
  %v206 = vunpack.c.l.b16 %v58
  %v207 = vunpack.c.l.b16 %v59
  %v208 = vunpack.c.l.b16 %v60
  %v209 = vunpack.c.l.b16 %v61
  %v210 = vunpack.c.l.b16 %v62
  %v211 = vunpack.c.l.b16 %v63
  %v212 = vunpack.c.l.b16 %v64
  %v213 = vunpack.c.l.b16 %v65
  %v214 = vunpack.c.l.b16 %v66
  %v215 = vunpack.c.l.b16 %v67
  %v216 = vunpack.c.l.b16 %v68
  %v217 = vunpack.c.l.b16 %v69
  %v218 = vunpack.c.l.b16 %v70
  %v219 = vunpack.c.l.b16 %v71
  %v220 = vunpack.c.l.b16 %v72
  %v221 = vunpack.c.l.b16 %v73
  %v222 = vunpack.c.l.b16 %v74
  %v223 = vunpack.c.l.b16 %v75
  %v224 = vunpack.c.l.b16 %v76
  %v225 = vunpack.c.l.b16 %v77
  %v226 = vunpack.c.l.b16 %v78
  %v227 = vunpack.c.l.b16 %v79
  %v228 = vunpack.c.l.b16 %v80
  %v229 = vunpack.c.l.b16 %v81
  %v230 = vunpack.c.l.b16 %v82
  %v231 = vunpack.c.l.b16 %v83
  %v232 = vunpack.c.l.b16 %v84
  %v233 = vunpack.c.l.b16 %v85
  %v234 = vunpack.c.l.b16 %v86
  %v235 = vunpack.c.l.b16 %v87
  %v236 = vunpack.c.l.b16 %v88
  %v237 = vunpack.c.l.b16 %v89
  %v238 = vunpack.c.l.b16 %v90
  %v239 = vunpack.c.l.b16 %v91
  %v240 = vunpack.c.l.b16 %v92
  %v241 = vunpack.c.l.b16 %v93
  %v242 = vpack.c.b16 %v179, %v178
  %v243 = vpack.c.b16 %v181, %v180
  %v244 = vpack.c.b16 %v183, %v182
  %v245 = vpack.c.b16 %v185, %v184
  %v246 = vpack.c.b16 %v187, %v186
  %v247 = vpack.c.b16 %v189, %v188
  %v248 = vpack.c.b16 %v191, %v190
  %v249 = vpack.c.b16 %v193, %v192
  %v250 = vpack.c.b16 %v195, %v194
  %v251 = vpack.c.b16 %v197, %v196
  %v252 = vpack.c.b16 %v199, %v198
  %v253 = vpack.c.b16 %v201, %v200
  %v254 = vpack.c.b16 %v203, %v202
  %v255 = vpack.c.b16 %v205, %v204
  %v256 = vpack.c.b16 %v207, %v206
  %v257 = vpack.c.b16 %v209, %v208
  %v258 = vpack.c.b16 %v211, %v210
  %v259 = vpack.c.b16 %v213, %v212
  %v260 = vpack.c.b16 %v215, %v214
  %v261 = vpack.c.b16 %v217, %v216
  %v262 = vpack.c.b16 %v219, %v218
  %v263 = vpack.c.b16 %v221, %v220
  %v264 = vpack.c.b16 %v223, %v222
  %v265 = vpack.c.b16 %v225, %v224
  %v266 = vpack.c.b16 %v227, %v226
  %v267 = vpack.c.b16 %v229, %v228
  %v268 = vpack.c.b16 %v231, %v230
  %v269 = vpack.c.b16 %v233, %v232
  %v270 = vpack.c.b16 %v235, %v234
  %v271 = vpack.c.b16 %v237, %v236
  %v272 = vpack.c.b16 %v239, %v238
  %v273 = vpack.c.b16 %v241, %v240
  %306 = vmatprep.subr.bf16.mxu0 0
  %307 = vmatpush1.bf16.msra.mxu0 %v249
  %308 = vmatprep.subr.bf16.mxu0 0
  %309 = vmatpush1.bf16.msra.mxu0 %v248
  %310 = vmatprep.subr.bf16.mxu0 0
  %311 = vmatpush1.bf16.msra.mxu0 %v247
  %312 = vmatprep.subr.bf16.mxu0 0
  %313 = vmatpush1.bf16.msra.mxu0 %v246
  %314 = vmatprep.subr.bf16.mxu0 0
  %315 = vmatpush1.bf16.msra.mxu0 %v245
  %316 = vmatprep.subr.bf16.mxu0 0
  %317 = vmatpush1.bf16.msra.mxu0 %v244
  %318 = vmatprep.subr.bf16.mxu0 0
  %319 = vmatpush1.bf16.msra.mxu0 %v243
  %320 = vmatprep.subr.bf16.mxu0 0
  %321 = vmatpush1.bf16.msra.mxu0 %v242
  %322 = vmatprep.subr.bf16.mxu0 0
  %323 = vmatpush2.bf16.msra.mxu0 %v257
  %324 = vmatprep.subr.bf16.mxu0 0
  %325 = vmatpush2.bf16.msra.mxu0 %v256
  %326 = vmatprep.subr.bf16.mxu0 0
  %327 = vmatpush2.bf16.msra.mxu0 %v255
  %328 = vmatprep.subr.bf16.mxu0 0
  %329 = vmatpush2.bf16.msra.mxu0 %v254
  %330 = vmatprep.subr.bf16.mxu0 0
  %331 = vmatpush2.bf16.msra.mxu0 %v253
  %332 = vmatprep.subr.bf16.mxu0 0
  %333 = vmatpush2.bf16.msra.mxu0 %v252
  %334 = vmatprep.subr.bf16.mxu0 0
  %335 = vmatpush2.bf16.msra.mxu0 %v251
  %336 = vmatprep.subr.bf16.mxu0 0
  %337 = vmatpush2.bf16.msra.mxu0 %v250
  %338 = vmatprep.mubr.bf16.mxu0 %v107
  %339 = vmatmul.mubr.bf16.gmra.mxu0 %v106
  %v340 = vpop.f32.mrf.mxu0
  %v341 = vadd.f32 0.0, %v340
  %v342 = vpop.f32.mrf.mxu0
  %v343 = vpop.f32.mrf.mxu0
  %v344 = vadd.f32 0.0, %v343
  %v345 = vpop.f32.mrf.mxu0
  %346 = vdwg.mxu0
  %347 = vmatprep.subr.bf16.mxu0 0
  %348 = vmatpush1.bf16.msra.mxu0 %v265
  %349 = vmatprep.subr.bf16.mxu0 0
  %350 = vmatpush1.bf16.msra.mxu0 %v264
  %351 = vmatprep.subr.bf16.mxu0 0
  %352 = vmatpush1.bf16.msra.mxu0 %v263
  %353 = vmatprep.subr.bf16.mxu0 0
  %354 = vmatpush1.bf16.msra.mxu0 %v262
  %355 = vmatprep.subr.bf16.mxu0 0
  %356 = vmatpush1.bf16.msra.mxu0 %v261
  %357 = vmatprep.subr.bf16.mxu0 0
  %358 = vmatpush1.bf16.msra.mxu0 %v260
  %359 = vmatprep.subr.bf16.mxu0 0
  %360 = vmatpush1.bf16.msra.mxu0 %v259
  %361 = vmatprep.subr.bf16.mxu0 0
  %362 = vmatpush1.bf16.msra.mxu0 %v258
  %363 = vmatprep.subr.bf16.mxu0 0
  %364 = vmatpush2.bf16.msra.mxu0 %v273
  %365 = vmatprep.subr.bf16.mxu0 0
  %366 = vmatpush2.bf16.msra.mxu0 %v272
  %367 = vmatprep.subr.bf16.mxu0 0
  %368 = vmatpush2.bf16.msra.mxu0 %v271
  %369 = vmatprep.subr.bf16.mxu0 0
  %370 = vmatpush2.bf16.msra.mxu0 %v270
  %371 = vmatprep.subr.bf16.mxu0 0
  %372 = vmatpush2.bf16.msra.mxu0 %v269
  %373 = vmatprep.subr.bf16.mxu0 0
  %374 = vmatpush2.bf16.msra.mxu0 %v268
  %375 = vmatprep.subr.bf16.mxu0 0
  %376 = vmatpush2.bf16.msra.mxu0 %v267
  %377 = vmatprep.subr.bf16.mxu0 0
  %378 = vmatpush2.bf16.msra.mxu0 %v266
  %379 = vmatprep.mubr.bf16.mxu0 %v109
  %380 = vmatmul.mubr.bf16.gmra.mxu0 %v108
  %v381 = vpop.f32.mrf.mxu0
  %v382 = vadd.f32 %v341, %v381
  %v383 = vpop.f32.mrf.mxu0
  %v384 = vpop.f32.mrf.mxu0
  %v385 = vadd.f32 %v344, %v384
  %v386 = vpop.f32.mrf.mxu0
  %387 = vdwg.mxu0
  %v388 = vadd.f32 %v24, %v382
  %v389 = vadd.f32 %v25, %v385
  %390 = vst [vmem:[#allocation2] sm:$0xff] %v388
  %391 = vst [vmem:[#allocation2 + $0x8] sm:$0xff] %v389
  // Predicated region
  $region22: #{net_forward.11} parent=0 // pred_check
    %p392 = pneg %p18
  $region23: #{net_forward.11} parent=0 // pred_check_branch
    %394 = sbr.rel (%p392) target = $region25
  $region24: #{net_forward.11} parent=0 // pred_region
    %v395 = vld [vmem:[#allocation2] sm:$0xff]
    %v396 = vld [vmem:[#allocation2 + $0x8] sm:$0xff]
    %v397 = vadd.f32 %v395, %v396
    %v398 = vrot.slane %v397, 4
    %v399 = vadd.f32 %v397, %v398
    %v400 = vrot.slane %v399, 2
    %v401 = vadd.f32 %v399, %v400
    %v402 = vrot.slane %v401, 1
    %v403 = vadd.f32 %v401, %v402
    %v404 = vmul.f32 %v395, %v395
    %v405 = vmul.f32 %v396, %v396
    %v406 = vadd.f32 %v404, %v405
    %v407 = vrot.slane %v406, 4
    %v408 = vadd.f32 %v406, %v407
    %v409 = vrot.slane %v408, 2
    %v410 = vadd.f32 %v408, %v409
    %v411 = vrot.slane %v410, 1
    %v412 = vadd.f32 %v410, %v411
    %v413 = vmul.f32 %v403, 0.5
    %v414 = vmul.f32 %v412, 0.5
    %v415 = vmul.f32 %v413, %v413
    %v416 = vsub.f32 %v414, %v415
    %v417 = vmax.f32 %v416, 0.0
    %v418 = vld [vmem:[%s2] sm:$0x1]
    %v419 = vadd.f32 %v417, 1e-05
    %v420 = vrsqrt.pop %v419
    %v421 = vmul.f32 %v418, %v420
    %v422 = vld [vmem:[%s3] sm:$0x1]
    %v423 = vmul.f32 %v413, %v421
    %v424 = vsub.f32 %v422, %v423
    %v426 = vlaneseq
    %v427 = vshrl.u32 %v426, 7
    %v428 = vsub.s32 0, %v427
    %v429 = vrot.slane %v421, %v428
    %v431 = vmul.f32 %v395, %v429
    %v432 = vmul.f32 %v396, %v429
    %v434 = vlaneseq
    %v435 = vshrl.u32 %v434, 7
    %v436 = vsub.s32 0, %v435
    %v437 = vrot.slane %v424, %v436
    %v439 = vadd.f32 %v431, %v437
    %v440 = vadd.f32 %v432, %v437
    %vm441 = vcmp.ge.f32.partialorder %v439, 0.0
    %vm442 = vcmp.ge.f32.partialorder %v440, 0.0
    %v443 = vmul.f32 %v439, 0.2
    %v444 = vmul.f32 %v440, 0.2
    %v445 = vsel %vm441, %v439, %v443
    %v446 = vsel %vm442, %v440, %v444
    %447 = vst [vmem:[%s4] sm:$0xff] %v445
    %448 = vst [vmem:[%s4 + $0x8] sm:$0xff] %v446
  $region25: #{net_forward.11} parent=0 // pred_fallthru
    _
  // Predicated region
  $region26: #{net_forward.11} parent=0 // pred_check
    _
  $region27: #{net_forward.11} parent=0 // pred_check_branch
    %450 = sbr.rel (0) target = $region29
  $region28: #{net_forward.11} parent=0 // pred_region
    _
  $region29: #{net_forward.11} parent=0 // pred_fallthru
    _
  // Predicated region
  $region30: #{net_forward.11} parent=0 // pred_check
    _
  $region31: #{net_forward.11} parent=0 // pred_check_branch
    %452 = sbr.rel (0) target = $region33
  $region32: #{net_forward.11} parent=0 // pred_region
    _
  $region33: #{net_forward.11} parent=0 // pred_fallthru
    _

// kernel: net_forward.10
$region0: #{net_forward.10}
  #allocation0 [shape = 'u32[]', space=smem, size = 0x4, offset = 0x4, fixed_abs, tag = 'smem constant byte address 0x4 - core index']
  #allocation1 [shape = 'u32[144,128]{1,0:T(1,128)}', space=vmem, size = 0x12000, scoped, tag = 'internal scratch']
  #allocation2 [shape = 'f32[16,128]{1,0:T(8,128)}', space=vmem, size = 0x2000, scoped, tag = 'scratch operand']
  %s0 = inlined_call_operand.vmem [shape: bf16[16,256], index: 0, kind: input, shape index: {}]
  %s1 = inlined_call_operand.vmem [shape: bf16[256,128], index: 1, kind: input, shape index: {}]
  %s2 = inlined_call_operand.vmem [shape: f32[1,128], index: 2, kind: input, shape index: {}]
  %s3 = inlined_call_operand.vmem [shape: f32[1,128], index: 3, kind: input, shape index: {}]
  %s4 = inlined_call_operand.vmem [shape: f32[16,128], index: 4, kind: output, shape index: {}]
  %s5 = sld [smem:[#allocation0]]
  $region34: #{net_forward.10} parent=0
    _
  %s7 = ssub.s32 1, %s5
  %s8 = scalar_select 0, %s7, %s5
  // Predicated region
  $region2: #{net_forward.10} parent=0 // pred_check
    _
  $region3: #{net_forward.10} parent=0 // pred_check_branch
    %10 = sbr.rel (0) target = $region5
  $region4: #{net_forward.10} parent=0 // pred_region
    _
  $region5: #{net_forward.10} parent=0 // pred_fallthru
    _
  // Predicated region
  $region6: #{net_forward.10} parent=0 // pred_check
    _
  $region7: #{net_forward.10} parent=0 // pred_check_branch
    %12 = sbr.rel (0) target = $region9
  $region8: #{net_forward.10} parent=0 // pred_region
    _
  $region9: #{net_forward.10} parent=0 // pred_fallthru
    _
  // Predicated region
  $region10: #{net_forward.10} parent=0 // pred_check
    _
  $region11: #{net_forward.10} parent=0 // pred_check_branch
    %14 = sbr.rel (0) target = $region13
  $region12: #{net_forward.10} parent=0 // pred_region
    _
  $region13: #{net_forward.10} parent=0 // pred_fallthru
    _
  // Predicated region
  $region14: #{net_forward.10} parent=0 // pred_check
    _
  $region15: #{net_forward.10} parent=0 // pred_check_branch
    %16 = sbr.rel (0) target = $region17
  $region16: #{net_forward.10} parent=0 // pred_region
    _
  $region17: #{net_forward.10} parent=0 // pred_fallthru
    _
  %p18 = scmp.eq.s32.totalorder 0, 0
  // Predicated region
  $region18: #{net_forward.10} parent=0 // pred_check
    %p19 = pneg %p18
  $region19: #{net_forward.10} parent=0 // pred_check_branch
    %21 = sbr.rel (%p19) target = $region21
  $region20: #{net_forward.10} parent=0 // pred_region
    %22 = vst [vmem:[#allocation2] sm:$0xff] 0.0
    %23 = vst [vmem:[#allocation2 + $0x8] sm:$0xff] 0.0
  $region21: #{net_forward.10} parent=0 // pred_fallthru
    _
  %v24 = vld [vmem:[#allocation2] sm:$0xff]
  %v25 = vld [vmem:[#allocation2 + $0x8] sm:$0xff]
  %v26 = vld [vmem:[%s0] sm:$0xff]
  %v27 = vld [vmem:[%s0 + $0x8] sm:$0xff]
  %v28 = vld [vmem:[%s1] sm:$0xf]
  %v29 = vld [vmem:[%s1 + $0x4] sm:$0xf]
  %v30 = vld [vmem:[%s1 + $0x8] sm:$0xf]
  %v31 = vld [vmem:[%s1 + $0xc] sm:$0xf]
  %v32 = vld [vmem:[%s1 + $0x10] sm:$0xf]
  %v33 = vld [vmem:[%s1 + $0x14] sm:$0xf]
  %v34 = vld [vmem:[%s1 + $0x18] sm:$0xf]
  %v35 = vld [vmem:[%s1 + $0x1c] sm:$0xf]
  %v36 = vld [vmem:[%s1 + $0x20] sm:$0xf]
  %v37 = vld [vmem:[%s1 + $0x24] sm:$0xf]
  %v38 = vld [vmem:[%s1 + $0x28] sm:$0xf]
  %v39 = vld [vmem:[%s1 + $0x2c] sm:$0xf]
  %v40 = vld [vmem:[%s1 + $0x30] sm:$0xf]
  %v41 = vld [vmem:[%s1 + $0x34] sm:$0xf]
  %v42 = vld [vmem:[%s1 + $0x38] sm:$0xf]
  %v43 = vld [vmem:[%s1 + $0x3c] sm:$0xf]
  %v44 = vld [vmem:[%s1 + $0x40] sm:$0xf]
  %v45 = vld [vmem:[%s1 + $0x44] sm:$0xf]
  %v46 = vld [vmem:[%s1 + $0x48] sm:$0xf]
  %v47 = vld [vmem:[%s1 + $0x4c] sm:$0xf]
  %v48 = vld [vmem:[%s1 + $0x50] sm:$0xf]
  %v49 = vld [vmem:[%s1 + $0x54] sm:$0xf]
  %v50 = vld [vmem:[%s1 + $0x58] sm:$0xf]
  %v51 = vld [vmem:[%s1 + $0x5c] sm:$0xf]
  %v52 = vld [vmem:[%s1 + $0x60] sm:$0xf]
  %v53 = vld [vmem:[%s1 + $0x64] sm:$0xf]
  %v54 = vld [vmem:[%s1 + $0x68] sm:$0xf]
  %v55 = vld [vmem:[%s1 + $0x6c] sm:$0xf]
  %v56 = vld [vmem:[%s1 + $0x70] sm:$0xf]
  %v57 = vld [vmem:[%s1 + $0x74] sm:$0xf]
  %v58 = vld [vmem:[%s1 + $0x78] sm:$0xf]
  %v59 = vld [vmem:[%s1 + $0x7c] sm:$0xf]
  %v62 = vunpack.c.l.b16 %v26
  %v63 = vunpack.c.h.b16 %v26
  %v64 = vunpack.c.l.b16 %v27
  %v65 = vunpack.c.h.b16 %v27
  %v66 = vpack.c.b16 %v64, %v62
  %v67 = vpack.c.b16 %v65, %v63
  %v102 = vunpack.c.l.b16 %v28
  %v103 = vunpack.c.l.b16 %v29
  %v104 = vunpack.c.l.b16 %v30
  %v105 = vunpack.c.l.b16 %v31
  %v106 = vunpack.c.l.b16 %v32
  %v107 = vunpack.c.l.b16 %v33
  %v108 = vunpack.c.l.b16 %v34
  %v109 = vunpack.c.l.b16 %v35
  %v110 = vunpack.c.l.b16 %v36
  %v111 = vunpack.c.l.b16 %v37
  %v112 = vunpack.c.l.b16 %v38
  %v113 = vunpack.c.l.b16 %v39
  %v114 = vunpack.c.l.b16 %v40
  %v115 = vunpack.c.l.b16 %v41
  %v116 = vunpack.c.l.b16 %v42
  %v117 = vunpack.c.l.b16 %v43
  %v118 = vunpack.c.l.b16 %v44
  %v119 = vunpack.c.l.b16 %v45
  %v120 = vunpack.c.l.b16 %v46
  %v121 = vunpack.c.l.b16 %v47
  %v122 = vunpack.c.l.b16 %v48
  %v123 = vunpack.c.l.b16 %v49
  %v124 = vunpack.c.l.b16 %v50
  %v125 = vunpack.c.l.b16 %v51
  %v126 = vunpack.c.l.b16 %v52
  %v127 = vunpack.c.l.b16 %v53
  %v128 = vunpack.c.l.b16 %v54
  %v129 = vunpack.c.l.b16 %v55
  %v130 = vunpack.c.l.b16 %v56
  %v131 = vunpack.c.l.b16 %v57
  %v132 = vunpack.c.l.b16 %v58
  %v133 = vunpack.c.l.b16 %v59
  %v134 = vpack.c.b16 %v103, %v102
  %v135 = vpack.c.b16 %v105, %v104
  %v136 = vpack.c.b16 %v107, %v106
  %v137 = vpack.c.b16 %v109, %v108
  %v138 = vpack.c.b16 %v111, %v110
  %v139 = vpack.c.b16 %v113, %v112
  %v140 = vpack.c.b16 %v115, %v114
  %v141 = vpack.c.b16 %v117, %v116
  %v142 = vpack.c.b16 %v119, %v118
  %v143 = vpack.c.b16 %v121, %v120
  %v144 = vpack.c.b16 %v123, %v122
  %v145 = vpack.c.b16 %v125, %v124
  %v146 = vpack.c.b16 %v127, %v126
  %v147 = vpack.c.b16 %v129, %v128
  %v148 = vpack.c.b16 %v131, %v130
  %v149 = vpack.c.b16 %v133, %v132
  %166 = vmatprep.subr.bf16.mxu0 0
  %167 = vmatpush1.bf16.msra.mxu0 %v141
  %168 = vmatprep.subr.bf16.mxu0 0
  %169 = vmatpush1.bf16.msra.mxu0 %v140
  %170 = vmatprep.subr.bf16.mxu0 0
  %171 = vmatpush1.bf16.msra.mxu0 %v139
  %172 = vmatprep.subr.bf16.mxu0 0
  %173 = vmatpush1.bf16.msra.mxu0 %v138
  %174 = vmatprep.subr.bf16.mxu0 0
  %175 = vmatpush1.bf16.msra.mxu0 %v137
  %176 = vmatprep.subr.bf16.mxu0 0
  %177 = vmatpush1.bf16.msra.mxu0 %v136
  %178 = vmatprep.subr.bf16.mxu0 0
  %179 = vmatpush1.bf16.msra.mxu0 %v135
  %180 = vmatprep.subr.bf16.mxu0 0
  %181 = vmatpush1.bf16.msra.mxu0 %v134
  %182 = vmatprep.subr.bf16.mxu0 0
  %183 = vmatpush2.bf16.msra.mxu0 %v149
  %184 = vmatprep.subr.bf16.mxu0 0
  %185 = vmatpush2.bf16.msra.mxu0 %v148
  %186 = vmatprep.subr.bf16.mxu0 0
  %187 = vmatpush2.bf16.msra.mxu0 %v147
  %188 = vmatprep.subr.bf16.mxu0 0
  %189 = vmatpush2.bf16.msra.mxu0 %v146
  %190 = vmatprep.subr.bf16.mxu0 0
  %191 = vmatpush2.bf16.msra.mxu0 %v145
  %192 = vmatprep.subr.bf16.mxu0 0
  %193 = vmatpush2.bf16.msra.mxu0 %v144
  %194 = vmatprep.subr.bf16.mxu0 0
  %195 = vmatpush2.bf16.msra.mxu0 %v143
  %196 = vmatprep.subr.bf16.mxu0 0
  %197 = vmatpush2.bf16.msra.mxu0 %v142
  %198 = vmatprep.mubr.bf16.mxu0 %v67
  %199 = vmatmul.mubr.bf16.gmra.mxu0 %v66
  %v200 = vpop.f32.mrf.mxu0
  %v201 = vadd.f32 0.0, %v200
  %v202 = vpop.f32.mrf.mxu0
  %v203 = vpop.f32.mrf.mxu0
  %v204 = vadd.f32 0.0, %v203
  %v205 = vpop.f32.mrf.mxu0
  %206 = vdwg.mxu0
  %v207 = vadd.f32 %v24, %v201
  %v208 = vadd.f32 %v25, %v204
  %209 = vst [vmem:[#allocation2] sm:$0xff] %v207
  %210 = vst [vmem:[#allocation2 + $0x8] sm:$0xff] %v208
  // Predicated region
  $region22: #{net_forward.10} parent=0 // pred_check
    %p211 = pneg %p18
  $region23: #{net_forward.10} parent=0 // pred_check_branch
    %213 = sbr.rel (%p211) target = $region25
  $region24: #{net_forward.10} parent=0 // pred_region
    %v214 = vld [vmem:[#allocation2] sm:$0xff]
    %v215 = vld [vmem:[#allocation2 + $0x8] sm:$0xff]
    %v216 = vadd.f32 %v214, %v215
    %v217 = vrot.slane %v216, 4
    %v218 = vadd.f32 %v216, %v217
    %v219 = vrot.slane %v218, 2
    %v220 = vadd.f32 %v218, %v219
    %v221 = vrot.slane %v220, 1
    %v222 = vadd.f32 %v220, %v221
    %v223 = vmul.f32 %v214, %v214
    %v224 = vmul.f32 %v215, %v215
    %v225 = vadd.f32 %v223, %v224
    %v226 = vrot.slane %v225, 4
    %v227 = vadd.f32 %v225, %v226
    %v228 = vrot.slane %v227, 2
    %v229 = vadd.f32 %v227, %v228
    %v230 = vrot.slane %v229, 1
    %v231 = vadd.f32 %v229, %v230
    %v232 = vmul.f32 %v222, 0.125
    %v233 = vmul.f32 %v231, 0.125
    %v234 = vmul.f32 %v232, %v232
    %v235 = vsub.f32 %v233, %v234
    %v236 = vmax.f32 %v235, 0.0
    %v237 = vld [vmem:[%s2] sm:$0x1]
    %v238 = vadd.f32 %v236, 1e-05
    %v239 = vrsqrt.pop %v238
    %v240 = vmul.f32 %v237, %v239
    %v241 = vld [vmem:[%s3] sm:$0x1]
    %v242 = vmul.f32 %v232, %v240
    %v243 = vsub.f32 %v241, %v242
    %v245 = vlaneseq
    %v246 = vshrl.u32 %v245, 7
    %v247 = vsub.s32 0, %v246
    %v248 = vrot.slane %v240, %v247
    %v250 = vmul.f32 %v214, %v248
    %v251 = vmul.f32 %v215, %v248
    %v253 = vlaneseq
    %v254 = vshrl.u32 %v253, 7
    %v255 = vsub.s32 0, %v254
    %v256 = vrot.slane %v243, %v255
    %v258 = vadd.f32 %v250, %v256
    %v259 = vadd.f32 %v251, %v256
    %vm260 = vcmp.ge.f32.partialorder %v258, 0.0
    %vm261 = vcmp.ge.f32.partialorder %v259, 0.0
    %v262 = vmul.f32 %v258, 0.2
    %v263 = vmul.f32 %v259, 0.2
    %v264 = vsel %vm260, %v258, %v262
    %v265 = vsel %vm261, %v259, %v263
    %266 = vst [vmem:[%s4] sm:$0xff] %v264
    %267 = vst [vmem:[%s4 + $0x8] sm:$0xff] %v265
  $region25: #{net_forward.10} parent=0 // pred_fallthru
    _
  // Predicated region
  $region26: #{net_forward.10} parent=0 // pred_check
    _
  $region27: #{net_forward.10} parent=0 // pred_check_branch
    %269 = sbr.rel (0) target = $region29
  $region28: #{net_forward.10} parent=0 // pred_region
    _
  $region29: #{net_forward.10} parent=0 // pred_fallthru
    _
  // Predicated region
  $region30: #{net_forward.10} parent=0 // pred_check
    _
  $region31: #{net_forward.10} parent=0 // pred_check_branch
    %271 = sbr.rel (0) target = $region33
  $region32: #{net_forward.10} parent=0 // pred_region
    _
  $region33: #{net_forward.10} parent=0 // pred_fallthru
    _

// kernel: net_forward.12
$region0: #{net_forward.12}
  #allocation0 [shape = 'u32[]', space=smem, size = 0x4, offset = 0x4, fixed_abs, tag = 'smem constant byte address 0x4 - core index']
  #allocation1 [shape = 'u32[144,128]{1,0:T(1,128)}', space=vmem, size = 0x12000, scoped, tag = 'internal scratch']
  #allocation2 [shape = 'f32[16,512]{1,0:T(8,128)}', space=vmem, size = 0x8000, scoped, tag = 'scratch operand']
  %s0 = inlined_call_operand.vmem [shape: bf16[16,1024], index: 0, kind: input, shape index: {}]
  %s1 = inlined_call_operand.vmem [shape: bf16[1024,512], index: 1, kind: input, shape index: {}]
  %s2 = inlined_call_operand.vmem [shape: f32[1,128], index: 2, kind: input, shape index: {}]
  %s3 = inlined_call_operand.vmem [shape: f32[1,128], index: 3, kind: input, shape index: {}]
  %s4 = inlined_call_operand.vmem [shape: f32[16,512], index: 4, kind: output, shape index: {}]
  %s5 = sld [smem:[#allocation0]]
  $region80: #{net_forward.12} parent=0
    _
  %s7 = ssub.s32 1, %s5
  %s8 = scalar_select 0, %s7, %s5
  $region1: #{net_forward.12} parent=0
    #allocation3 [shape = 'u8[32768]{0}', space=vmem, size = 0x8000, scoped, tag = 'input window, operand 0']
    loop: start=0, step=1, limit=4
    $region2: #{net_forward.12} parent=1 // loop_pre_header
      _
    $region3: #{net_forward.12} parent=1 // loop_header
      %s10 = sphi 0, %s14
      %p11 = scmp.ge.s32.totalorder %s10, 4
      %s20 = sphi 0, %s22
      %s23 = sphi 0, %s20
      %s24 = sphi 0, %s23
      %s40 = sphi 0, %s24
      %s46 = sphi 0, %s48
      %s49 = sphi 0, %s46
      %s50 = sphi 0, %s49
      %s66 = sphi 0, %s50
      %s70 = sphi 0, %s70
      %s72 = sphi 0, %s70
      %s73 = sphi 0, %s72
      %s87 = sphi 0, %s73
      %s91 = sphi 0, %s91
      %s93 = sphi 0, %s91
      %s94 = sphi 0, %s93
      %s108 = sphi 0, %s94
      %s112 = sphi 0, %s112
      %s114 = sphi 0, %s112
      %s115 = sphi 0, %s114
      %s129 = sphi 0, %s115
    $region4: #{net_forward.12} parent=1 // loop_header_branch
      %13 = sbr.rel (%p11) target = $region8
    $region5: #{net_forward.12} parent=1 // loop_body
      %s15 = ssub.s32 %s10, 1
      %s16 = ssub.s32 %s10, 2
      %s17 = sadd.s32 %s10, 1
      %s18 = ssub.s32 %s10, %s17
      %p19 = scmp.eq.s32.totalorder %s18, 0
      %s21 = sadd.s32 %s20, 1
      %s22 = scalar_select %p19, %s20, %s21
      %p25 = pneg %p19
      %p26 = scmp.eq.s32.totalorder %s10, 1
      %p27 = por %p25, %p26
      %p28 = scmp.ne.s32.totalorder %s20, %s23
      %p29 = scmp.eq.s32.totalorder %s10, 0
      %p30 = por %p28, %p29
      %p31 = scmp.ne.s32.totalorder %s20, %s23
      %p32 = scmp.eq.s32.totalorder %s15, 1
      %p33 = por %p31, %p32
      %p34 = scmp.ne.s32.totalorder %s23, %s24
      %p35 = scmp.eq.s32.totalorder %s15, 0
      %p36 = por %p34, %p35
      %p37 = scmp.ne.s32.totalorder %s23, %s24
      %p38 = scmp.eq.s32.totalorder %s16, 1
      %p39 = por %p37, %p38
      %p41 = scmp.ne.s32.totalorder %s24, %s40
      %p42 = scmp.eq.s32.totalorder %s16, 0
      %p43 = por %p41, %p42
      %s44 = ssub.s32 %s10, %s17
      %p45 = scmp.eq.s32.totalorder %s44, 0
      %s47 = sadd.s32 %s46, 1
      %s48 = scalar_select %p45, %s46, %s47
      %p51 = pneg %p45
      %p52 = scmp.eq.s32.totalorder %s10, 1
      %p53 = por %p51, %p52
      %p54 = scmp.ne.s32.totalorder %s46, %s49
      %p55 = scmp.eq.s32.totalorder %s10, 0
      %p56 = por %p54, %p55
      %p57 = scmp.ne.s32.totalorder %s46, %s49
      %p58 = scmp.eq.s32.totalorder %s15, 1
      %p59 = por %p57, %p58
      %p60 = scmp.ne.s32.totalorder %s49, %s50
      %p61 = scmp.eq.s32.totalorder %s15, 0
      %p62 = por %p60, %p61
      %p63 = scmp.ne.s32.totalorder %s49, %s50
      %p64 = scmp.eq.s32.totalorder %s16, 1
      %p65 = por %p63, %p64
      %p67 = scmp.ne.s32.totalorder %s50, %s66
      %p68 = scmp.eq.s32.totalorder %s16, 0
      %p69 = por %p67, %p68
      %s71 = sadd.s32 %s70, 1
      %p74 = scmp.eq.s32.totalorder %s10, 1
      %p75 = scmp.ne.s32.totalorder %s70, %s72
      %p76 = scmp.eq.s32.totalorder %s10, 0
      %p77 = por %p75, %p76
      %p78 = scmp.ne.s32.totalorder %s70, %s72
      %p79 = scmp.eq.s32.totalorder %s15, 1
      %p80 = por %p78, %p79
      %p81 = scmp.ne.s32.totalorder %s72, %s73
      %p82 = scmp.eq.s32.totalorder %s15, 0
      %p83 = por %p81, %p82
      %p84 = scmp.ne.s32.totalorder %s72, %s73
      %p85 = scmp.eq.s32.totalorder %s16, 1
      %p86 = por %p84, %p85
      %p88 = scmp.ne.s32.totalorder %s73, %s87
      %p89 = scmp.eq.s32.totalorder %s16, 0
      %p90 = por %p88, %p89
      %s92 = sadd.s32 %s91, 1
      %p95 = scmp.eq.s32.totalorder %s10, 1
      %p96 = scmp.ne.s32.totalorder %s91, %s93
      %p97 = scmp.eq.s32.totalorder %s10, 0
      %p98 = por %p96, %p97
      %p99 = scmp.ne.s32.totalorder %s91, %s93
      %p100 = scmp.eq.s32.totalorder %s15, 1
      %p101 = por %p99, %p100
      %p102 = scmp.ne.s32.totalorder %s93, %s94
      %p103 = scmp.eq.s32.totalorder %s15, 0
      %p104 = por %p102, %p103
      %p105 = scmp.ne.s32.totalorder %s93, %s94
      %p106 = scmp.eq.s32.totalorder %s16, 1
      %p107 = por %p105, %p106
      %p109 = scmp.ne.s32.totalorder %s94, %s108
      %p110 = scmp.eq.s32.totalorder %s16, 0
      %p111 = por %p109, %p110
      %s113 = sadd.s32 %s112, 1
      %p116 = scmp.eq.s32.totalorder %s10, 1
      %p117 = scmp.ne.s32.totalorder %s112, %s114
      %p118 = scmp.eq.s32.totalorder %s10, 0
      %p119 = por %p117, %p118
      %p120 = scmp.ne.s32.totalorder %s112, %s114
      %p121 = scmp.eq.s32.totalorder %s15, 1
      %p122 = por %p120, %p121
      %p123 = scmp.ne.s32.totalorder %s114, %s115
      %p124 = scmp.eq.s32.totalorder %s15, 0
      %p125 = por %p123, %p124
      %p126 = scmp.ne.s32.totalorder %s114, %s115
      %p127 = scmp.eq.s32.totalorder %s16, 1
      %p128 = por %p126, %p127
      %p130 = scmp.ne.s32.totalorder %s115, %s129
      %p131 = scmp.eq.s32.totalorder %s16, 0
      %p132 = por %p130, %p131
      %p133 = scmp.le.s32.totalorder 1, %s10
      %p134 = scmp.lt.s32.totalorder %s10, 3
      %p135 = pnand %p133, %p134
      %p136 = pneg %p135
      // Predicated region
      $region9: #{net_forward.12} parent=5 // pred_check
        _
      $region10: #{net_forward.12} parent=5 // pred_check_branch
        %138 = sbr.rel (%p135) target = $region12
      $region11: #{net_forward.12} parent=5 // pred_region
        %s139 = ssub.s32 %s10, 1
        // Predicated region
        $region13: #{net_forward.12} parent=11 // pred_check
          %p140 = pneg %p83
        $region14: #{net_forward.12} parent=11 // pred_check_branch
          %142 = sbr.rel (%p140) target = $region16
        $region15: #{net_forward.12} parent=11 // pred_region
          _
        $region16: #{net_forward.12} parent=11 // pred_fallthru
          _
        // Predicated region
        $region17: #{net_forward.12} parent=11 // pred_check
          %p143 = pneg %p104
        $region18: #{net_forward.12} parent=11 // pred_check_branch
          %145 = sbr.rel (%p143) target = $region20
        $region19: #{net_forward.12} parent=11 // pred_region
          _
        $region20: #{net_forward.12} parent=11 // pred_fallthru
          _
      $region12: #{net_forward.12} parent=5 // pred_fallthru
        _
      %p146 = scmp.lt.s32.totalorder %s10, 2
      // Predicated region
      $region21: #{net_forward.12} parent=5 // pred_check
        %p147 = pneg %p146
      $region22: #{net_forward.12} parent=5 // pred_check_branch
        %149 = sbr.rel (%p147) target = $region24
      $region23: #{net_forward.12} parent=5 // pred_region
        // Predicated region
        $region25: #{net_forward.12} parent=23 // pred_check
          %p150 = pneg %p30
        $region26: #{net_forward.12} parent=23 // pred_check_branch
          %152 = sbr.rel (%p150) target = $region28
        $region27: #{net_forward.12} parent=23 // pred_region
          %s153 = sand.u32 %s20, 1
          %s154 = sand.u32 %s20, 1
          %s155 = smul.addr %s154, 32
          %s156 = scalar_lea.vmem [#allocation3], %s155
          %s157 = smul.u32 4, %s10
          %s158 = smul.addr %s157, 4
          %s159 = scalar_lea.vmem %s0, %s158
          // Predicated region
          $region29: #{net_forward.12} parent=27 // pred_check
            _
          $region30: #{net_forward.12} parent=27 // pred_check_branch
            %161 = sbr.rel (0) target = $region32
          $region31: #{net_forward.12} parent=27 // pred_region
            // Predicated region
            $region33: #{net_forward.12} parent=31 // pred_check
              _
            $region34: #{net_forward.12} parent=31 // pred_check_branch
              %163 = sbr.rel (0) target = $region36
            $region35: #{net_forward.12} parent=31 // pred_region
              loop: start=0, step=1, limit=1
              $region37: #{net_forward.12} parent=35 // loop_pre_header
                _
              $region38: #{net_forward.12} parent=35 // loop_header
                %s165 = sphi 0, %s169
                %p166 = scmp.ge.s32.totalorder %s165, 1
                %s170 = sphi %s159, %s159
                %s171 = sphi %s156, %s156
              $region39: #{net_forward.12} parent=35 // loop_header_branch
                %168 = sbr.rel (%p166) target = $region43
              $region40: #{net_forward.12} parent=35 // loop_body
                %v172 = vld [vmem:[%s170] sm:$0xff]
                %173 = vst [vmem:[%s171] sm:$0xff] %v172
                %v174 = vld [vmem:[%s170 + $0x8] sm:$0xff]
                %175 = vst [vmem:[%s171 + $0x8] sm:$0xff] %v174
                %v176 = vld [vmem:[%s170 + $0x20] sm:$0xff]
                %177 = vst [vmem:[%s171 + $0x10] sm:$0xff] %v176
                %v178 = vld [vmem:[%s170 + $0x28] sm:$0xff]
                %179 = vst [vmem:[%s171 + $0x18] sm:$0xff] %v178
              $region41: #{net_forward.12} parent=35 // loop_footer
                %s169 = sadd.s32 1, %s165
              $region42: #{net_forward.12} parent=35 // loop_footer_branch
                %164 = sbr.rel target = $region38
              $region43: #{net_forward.12} parent=35 // loop_exit
                _
            $region36: #{net_forward.12} parent=31 // pred_fallthru
              _
            // Predicated region
            $region44: #{net_forward.12} parent=31 // pred_check
              _
            $region45: #{net_forward.12} parent=31 // pred_check_branch
              %181 = sbr.rel target = $region47
            $region46: #{net_forward.12} parent=31 // pred_region
              _
            $region47: #{net_forward.12} parent=31 // pred_fallthru
              _
          $region32: #{net_forward.12} parent=27 // pred_fallthru
            _
          %182 = vnop
        $region28: #{net_forward.12} parent=23 // pred_fallthru
          _
        // Predicated region
        $region48: #{net_forward.12} parent=23 // pred_check
          %p183 = pneg %p56
        $region49: #{net_forward.12} parent=23 // pred_check_branch
          %185 = sbr.rel (%p183) target = $region51
        $region50: #{net_forward.12} parent=23 // pred_region
          %s186 = smul.u32 64, %s10
          %p187 = scmp.lt.s32.totalorder %s186, 127
          %s188 = scalar_select %p187, %s186, 127
          %s189 = smul.addr %s188, 4
          %s190 = smul.addr %s189, 4
          %s191 = scalar_lea.vmem %s1, %s190
          %s192 = smul.u32 64, %s10
        $region51: #{net_forward.12} parent=23 // pred_fallthru
          _
      $region24: #{net_forward.12} parent=5 // pred_fallthru
        _
      %p193 = scmp.le.s32.totalorder 1, %s10
      %p194 = scmp.lt.s32.totalorder %s10, 3
      %p195 = pnand %p193, %p194
      %p196 = pneg %p195
      // Predicated region
      $region52: #{net_forward.12} parent=5 // pred_check
        _
      $region53: #{net_forward.12} parent=5 // pred_check_branch
        %198 = sbr.rel (%p195) target = $region55
      $region54: #{net_forward.12} parent=5 // pred_region
        %s199 = ssub.s32 %s10, 1
        %s200 = sand.u32 %s23, 1
        %s201 = sand.u32 %s23, 1
        %s202 = smul.addr %s201, 32
        %s203 = scalar_lea.vmem [#allocation3], %s202
        // Predicated region
        $region56: #{net_forward.12} parent=54 // pred_check
          %p204 = pneg %p36
        $region57: #{net_forward.12} parent=54 // pred_check_branch
          %206 = sbr.rel (%p204) target = $region59
        $region58: #{net_forward.12} parent=54 // pred_region
          _
        $region59: #{net_forward.12} parent=54 // pred_fallthru
          _
        %s207 = sand.u32 %s23, 1
        %s208 = sand.u32 %s23, 1
        %s209 = smul.addr %s208, 32
        %s210 = scalar_lea.vmem [#allocation3], %s209
        %p211 = pneg %p36
        %p212 = pneg %p33
        %s213 = smul.u32 64, %s15
        %p214 = scmp.lt.s32.totalorder %s213, 127
        %s215 = scalar_select %p214, %s213, 127
        %s216 = smul.addr %s215, 4
        %s217 = smul.addr %s216, 4
        %s218 = scalar_lea.vmem %s1, %s217
        %p219 = pneg %p62
        %p220 = pneg %p59
        %p221 = pneg %p83
        %p222 = pneg %p80
        %p223 = pneg %p104
        %p224 = pneg %p101
        %p225 = pneg %p125
        %p226 = pneg %p122
        %s227 = smul.u32 4, %s15
        %s228 = smul.u32 64, %s15
        %p229 = scmp.lt.s32.totalorder %s228, 127
        %s230 = scalar_select %p229, %s228, 127
        %s231 = smul.addr %s230, 4
        %s232 = smul.addr %s231, 4
        %s233 = scalar_lea.vmem %s1, %s232
        %s234 = smul.u32 64, %s15
        %p235 = scmp.eq.s32.totalorder %s15, 0
        // Predicated region
        $region60: #{net_forward.12} parent=54 // pred_check
          %p236 = pneg %p235
        $region61: #{net_forward.12} parent=54 // pred_check_branch
          %238 = sbr.rel (%p236) target = $region63
        $region62: #{net_forward.12} parent=54 // pred_region
          %239 = vst [vmem:[#allocation2] sm:$0xff] 0.0
          %240 = vst [vmem:[#allocation2 + $0x8] sm:$0xff] 0.0
          %241 = vst [vmem:[#allocation2 + $0x10] sm:$0xff] 0.0
          %242 = vst [vmem:[#allocation2 + $0x18] sm:$0xff] 0.0
          %243 = vst [vmem:[#allocation2 + $0x20] sm:$0xff] 0.0
          %244 = vst [vmem:[#allocation2 + $0x28] sm:$0xff] 0.0
          %245 = vst [vmem:[#allocation2 + $0x30] sm:$0xff] 0.0
          %246 = vst [vmem:[#allocation2 + $0x38] sm:$0xff] 0.0
        $region63: #{net_forward.12} parent=54 // pred_fallthru
          _
        %v247 = vld [vmem:[#allocation2] sm:$0xff]
        %v248 = vld [vmem:[#allocation2 + $0x8] sm:$0xff]
        %v249 = vld [vmem:[#allocation2 + $0x10] sm:$0xff]
        %v250 = vld [vmem:[#allocation2 + $0x18] sm:$0xff]
        %v251 = vld [vmem:[#allocation2 + $0x20] sm:$0xff]
        %v252 = vld [vmem:[#allocation2 + $0x28] sm:$0xff]
        %v253 = vld [vmem:[#allocation2 + $0x30] sm:$0xff]
        %v254 = vld [vmem:[#allocation2 + $0x38] sm:$0xff]
        %v255 = vld [vmem:[%s203] sm:$0xff]
        %v256 = vld [vmem:[%s203 + $0x8] sm:$0xff]
        %v257 = vld [vmem:[%s203 + $0x10] sm:$0xff]
        %v258 = vld [vmem:[%s203 + $0x18] sm:$0xff]
        %v259 = vld [vmem:[%s233] sm:$0xff]
        %v260 = vld [vmem:[%s233 + $0x8] sm:$0xff]
        %v261 = vld [vmem:[%s233 + $0x10] sm:$0xff]
        %v262 = vld [vmem:[%s233 + $0x18] sm:$0xff]
        %v263 = vld [vmem:[%s233 + $0x20] sm:$0xff]
        %v264 = vld [vmem:[%s233 + $0x28] sm:$0xff]
        %v265 = vld [vmem:[%s233 + $0x30] sm:$0xff]
        %v266 = vld [vmem:[%s233 + $0x38] sm:$0xff]
        %v267 = vld [vmem:[%s233 + $0x40] sm:$0xff]
        %v268 = vld [vmem:[%s233 + $0x48] sm:$0xff]
        %v269 = vld [vmem:[%s233 + $0x50] sm:$0xff]
        %v270 = vld [vmem:[%s233 + $0x58] sm:$0xff]
        %v271 = vld [vmem:[%s233 + $0x60] sm:$0xff]
        %v272 = vld [vmem:[%s233 + $0x68] sm:$0xff]
        %v273 = vld [vmem:[%s233 + $0x70] sm:$0xff]
        %v274 = vld [vmem:[%s233 + $0x78] sm:$0xff]
        %v275 = vld [vmem:[%s233 + $0x80] sm:$0xff]
        %v276 = vld [vmem:[%s233 + $0x88] sm:$0xff]
        %v277 = vld [vmem:[%s233 + $0x90] sm:$0xff]
        %v278 = vld [vmem:[%s233 + $0x98] sm:$0xff]
        %v279 = vld [vmem:[%s233 + $0xa0] sm:$0xff]
        %v280 = vld [vmem:[%s233 + $0xa8] sm:$0xff]
        %v281 = vld [vmem:[%s233 + $0xb0] sm:$0xff]
        %v282 = vld [vmem:[%s233 + $0xb8] sm:$0xff]
        %v283 = vld [vmem:[%s233 + $0xc0] sm:$0xff]
        %v284 = vld [vmem:[%s233 + $0xc8] sm:$0xff]
        %v285 = vld [vmem:[%s233 + $0xd0] sm:$0xff]
        %v286 = vld [vmem:[%s233 + $0xd8] sm:$0xff]
        %v287 = vld [vmem:[%s233 + $0xe0] sm:$0xff]
        %v288 = vld [vmem:[%s233 + $0xe8] sm:$0xff]
        %v289 = vld [vmem:[%s233 + $0xf0] sm:$0xff]
        %v290 = vld [vmem:[%s233 + $0xf8] sm:$0xff]
        %v291 = vld [vmem:[%s233 + $0x100] sm:$0xff]
        %v292 = vld [vmem:[%s233 + $0x108] sm:$0xff]
        %v293 = vld [vmem:[%s233 + $0x110] sm:$0xff]
        %v294 = vld [vmem:[%s233 + $0x118] sm:$0xff]
        %v295 = vld [vmem:[%s233 + $0x120] sm:$0xff]
        %v296 = vld [vmem:[%s233 + $0x128] sm:$0xff]
        %v297 = vld [vmem:[%s233 + $0x130] sm:$0xff]
        %v298 = vld [vmem:[%s233 + $0x138] sm:$0xff]
        %v299 = vld [vmem:[%s233 + $0x140] sm:$0xff]
        %v300 = vld [vmem:[%s233 + $0x148] sm:$0xff]
        %v301 = vld [vmem:[%s233 + $0x150] sm:$0xff]
        %v302 = vld [vmem:[%s233 + $0x158] sm:$0xff]
        %v303 = vld [vmem:[%s233 + $0x160] sm:$0xff]
        %v304 = vld [vmem:[%s233 + $0x168] sm:$0xff]
        %v305 = vld [vmem:[%s233 + $0x170] sm:$0xff]
        %v306 = vld [vmem:[%s233 + $0x178] sm:$0xff]
        %v307 = vld [vmem:[%s233 + $0x180] sm:$0xff]
        %v308 = vld [vmem:[%s233 + $0x188] sm:$0xff]
        %v309 = vld [vmem:[%s233 + $0x190] sm:$0xff]
        %v310 = vld [vmem:[%s233 + $0x198] sm:$0xff]
        %v311 = vld [vmem:[%s233 + $0x1a0] sm:$0xff]
        %v312 = vld [vmem:[%s233 + $0x1a8] sm:$0xff]
        %v313 = vld [vmem:[%s233 + $0x1b0] sm:$0xff]
        %v314 = vld [vmem:[%s233 + $0x1b8] sm:$0xff]
        %v315 = vld [vmem:[%s233 + $0x1c0] sm:$0xff]
        %v316 = vld [vmem:[%s233 + $0x1c8] sm:$0xff]
        %v317 = vld [vmem:[%s233 + $0x1d0] sm:$0xff]
        %v318 = vld [vmem:[%s233 + $0x1d8] sm:$0xff]
        %v319 = vld [vmem:[%s233 + $0x1e0] sm:$0xff]
        %v320 = vld [vmem:[%s233 + $0x1e8] sm:$0xff]
        %v321 = vld [vmem:[%s233 + $0x1f0] sm:$0xff]
        %v322 = vld [vmem:[%s233 + $0x1f8] sm:$0xff]
        %v323 = vld [vmem:[%s233 + $0x200] sm:$0xff]
        %v324 = vld [vmem:[%s233 + $0x208] sm:$0xff]
        %v325 = vld [vmem:[%s233 + $0x210] sm:$0xff]
        %v326 = vld [vmem:[%s233 + $0x218] sm:$0xff]
        %v327 = vld [vmem:[%s233 + $0x220] sm:$0xff]
        %v328 = vld [vmem:[%s233 + $0x228] sm:$0xff]
        %v329 = vld [vmem:[%s233 + $0x230] sm:$0xff]
        %v330 = vld [vmem:[%s233 + $0x238] sm:$0xff]
        %v331 = vld [vmem:[%s233 + $0x240] sm:$0xff]
        %v332 = vld [vmem:[%s233 + $0x248] sm:$0xff]
        %v333 = vld [vmem:[%s233 + $0x250] sm:$0xff]
        %v334 = vld [vmem:[%s233 + $0x258] sm:$0xff]
        %v335 = vld [vmem:[%s233 + $0x260] sm:$0xff]
        %v336 = vld [vmem:[%s233 + $0x268] sm:$0xff]
        %v337 = vld [vmem:[%s233 + $0x270] sm:$0xff]
        %v338 = vld [vmem:[%s233 + $0x278] sm:$0xff]
        %v339 = vld [vmem:[%s233 + $0x280] sm:$0xff]
        %v340 = vld [vmem:[%s233 + $0x288] sm:$0xff]
        %v341 = vld [vmem:[%s233 + $0x290] sm:$0xff]
        %v342 = vld [vmem:[%s233 + $0x298] sm:$0xff]
        %v343 = vld [vmem:[%s233 + $0x2a0] sm:$0xff]
        %v344 = vld [vmem:[%s233 + $0x2a8] sm:$0xff]
        %v345 = vld [vmem:[%s233 + $0x2b0] sm:$0xff]
        %v346 = vld [vmem:[%s233 + $0x2b8] sm:$0xff]
        %v347 = vld [vmem:[%s233 + $0x2c0] sm:$0xff]
        %v348 = vld [vmem:[%s233 + $0x2c8] sm:$0xff]
        %v349 = vld [vmem:[%s233 + $0x2d0] sm:$0xff]
        %v350 = vld [vmem:[%s233 + $0x2d8] sm:$0xff]
        %v351 = vld [vmem:[%s233 + $0x2e0] sm:$0xff]
        %v352 = vld [vmem:[%s233 + $0x2e8] sm:$0xff]
        %v353 = vld [vmem:[%s233 + $0x2f0] sm:$0xff]
        %v354 = vld [vmem:[%s233 + $0x2f8] sm:$0xff]
        %v355 = vld [vmem:[%s233 + $0x300] sm:$0xff]
        %v356 = vld [vmem:[%s233 + $0x308] sm:$0xff]
        %v357 = vld [vmem:[%s233 + $0x310] sm:$0xff]
        %v358 = vld [vmem:[%s233 + $0x318] sm:$0xff]
        %v359 = vld [vmem:[%s233 + $0x320] sm:$0xff]
        %v360 = vld [vmem:[%s233 + $0x328] sm:$0xff]
        %v361 = vld [vmem:[%s233 + $0x330] sm:$0xff]
        %v362 = vld [vmem:[%s233 + $0x338] sm:$0xff]
        %v363 = vld [vmem:[%s233 + $0x340] sm:$0xff]
        %v364 = vld [vmem:[%s233 + $0x348] sm:$0xff]
        %v365 = vld [vmem:[%s233 + $0x350] sm:$0xff]
        %v366 = vld [vmem:[%s233 + $0x358] sm:$0xff]
        %v367 = vld [vmem:[%s233 + $0x360] sm:$0xff]
        %v368 = vld [vmem:[%s233 + $0x368] sm:$0xff]
        %v369 = vld [vmem:[%s233 + $0x370] sm:$0xff]
        %v370 = vld [vmem:[%s233 + $0x378] sm:$0xff]
        %v371 = vld [vmem:[%s233 + $0x380] sm:$0xff]
        %v372 = vld [vmem:[%s233 + $0x388] sm:$0xff]
        %v373 = vld [vmem:[%s233 + $0x390] sm:$0xff]
        %v374 = vld [vmem:[%s233 + $0x398] sm:$0xff]
        %v375 = vld [vmem:[%s233 + $0x3a0] sm:$0xff]
        %v376 = vld [vmem:[%s233 + $0x3a8] sm:$0xff]
        %v377 = vld [vmem:[%s233 + $0x3b0] sm:$0xff]
        %v378 = vld [vmem:[%s233 + $0x3b8] sm:$0xff]
        %v379 = vld [vmem:[%s233 + $0x3c0] sm:$0xff]
        %v380 = vld [vmem:[%s233 + $0x3c8] sm:$0xff]
        %v381 = vld [vmem:[%s233 + $0x3d0] sm:$0xff]
        %v382 = vld [vmem:[%s233 + $0x3d8] sm:$0xff]
        %v383 = vld [vmem:[%s233 + $0x3e0] sm:$0xff]
        %v384 = vld [vmem:[%s233 + $0x3e8] sm:$0xff]
        %v385 = vld [vmem:[%s233 + $0x3f0] sm:$0xff]
        %v386 = vld [vmem:[%s233 + $0x3f8] sm:$0xff]
        %v391 = vunpack.c.l.b16 %v255
        %v392 = vunpack.c.h.b16 %v255
        %v393 = vunpack.c.l.b16 %v256
        %v394 = vunpack.c.h.b16 %v256
        %v395 = vunpack.c.l.b16 %v257
        %v396 = vunpack.c.h.b16 %v257
        %v397 = vunpack.c.l.b16 %v258
        %v398 = vunpack.c.h.b16 %v258
        %v399 = vpack.c.b16 %v395, %v391
        %v400 = vpack.c.b16 %v396, %v392
        %v401 = vpack.c.b16 %v397, %v393
        %v402 = vpack.c.b16 %v398, %v394
        %v535 = vunpack.c.l.b16 %v259
        %v536 = vunpack.c.h.b16 %v259
        %v537 = vunpack.c.l.b16 %v260
        %v538 = vunpack.c.h.b16 %v260
        %v539 = vunpack.c.l.b16 %v261
        %v540 = vunpack.c.h.b16 %v261
        %v541 = vunpack.c.l.b16 %v262
        %v542 = vunpack.c.h.b16 %v262
        %v543 = vunpack.c.l.b16 %v263
        %v544 = vunpack.c.h.b16 %v263
        %v545 = vunpack.c.l.b16 %v264
        %v546 = vunpack.c.h.b16 %v264
        %v547 = vunpack.c.l.b16 %v265
        %v548 = vunpack.c.h.b16 %v265
        %v549 = vunpack.c.l.b16 %v266
        %v550 = vunpack.c.h.b16 %v266
        %v551 = vunpack.c.l.b16 %v267
        %v552 = vunpack.c.h.b16 %v267
        %v553 = vunpack.c.l.b16 %v268
        %v554 = vunpack.c.h.b16 %v268
        %v555 = vunpack.c.l.b16 %v269
        %v556 = vunpack.c.h.b16 %v269
        %v557 = vunpack.c.l.b16 %v270
        %v558 = vunpack.c.h.b16 %v270
        %v559 = vunpack.c.l.b16 %v271
        %v560 = vunpack.c.h.b16 %v271
        %v561 = vunpack.c.l.b16 %v272
        %v562 = vunpack.c.h.b16 %v272
        %v563 = vunpack.c.l.b16 %v273
        %v564 = vunpack.c.h.b16 %v273
        %v565 = vunpack.c.l.b16 %v274
        %v566 = vunpack.c.h.b16 %v274
        %v567 = vunpack.c.l.b16 %v275
        %v568 = vunpack.c.h.b16 %v275
        %v569 = vunpack.c.l.b16 %v276
        %v570 = vunpack.c.h.b16 %v276
        %v571 = vunpack.c.l.b16 %v277
        %v572 = vunpack.c.h.b16 %v277
        %v573 = vunpack.c.l.b16 %v278
        %v574 = vunpack.c.h.b16 %v278
        %v575 = vunpack.c.l.b16 %v279
        %v576 = vunpack.c.h.b16 %v279
        %v577 = vunpack.c.l.b16 %v280
        %v578 = vunpack.c.h.b16 %v280
        %v579 = vunpack.c.l.b16 %v281
        %v580 = vunpack.c.h.b16 %v281
        %v581 = vunpack.c.l.b16 %v282
        %v582 = vunpack.c.h.b16 %v282
        %v583 = vunpack.c.l.b16 %v283
        %v584 = vunpack.c.h.b16 %v283
        %v585 = vunpack.c.l.b16 %v284
        %v586 = vunpack.c.h.b16 %v284
        %v587 = vunpack.c.l.b16 %v285
        %v588 = vunpack.c.h.b16 %v285
        %v589 = vunpack.c.l.b16 %v286
        %v590 = vunpack.c.h.b16 %v286
        %v591 = vunpack.c.l.b16 %v287
        %v592 = vunpack.c.h.b16 %v287
        %v593 = vunpack.c.l.b16 %v288
        %v594 = vunpack.c.h.b16 %v288
        %v595 = vunpack.c.l.b16 %v289
        %v596 = vunpack.c.h.b16 %v289
        %v597 = vunpack.c.l.b16 %v290
        %v598 = vunpack.c.h.b16 %v290
        %v599 = vunpack.c.l.b16 %v291
        %v600 = vunpack.c.h.b16 %v291
        %v601 = vunpack.c.l.b16 %v292
        %v602 = vunpack.c.h.b16 %v292
        %v603 = vunpack.c.l.b16 %v293
        %v604 = vunpack.c.h.b16 %v293
        %v605 = vunpack.c.l.b16 %v294
        %v606 = vunpack.c.h.b16 %v294
        %v607 = vunpack.c.l.b16 %v295
        %v608 = vunpack.c.h.b16 %v295
        %v609 = vunpack.c.l.b16 %v296
        %v610 = vunpack.c.h.b16 %v296
        %v611 = vunpack.c.l.b16 %v297
        %v612 = vunpack.c.h.b16 %v297
        %v613 = vunpack.c.l.b16 %v298
        %v614 = vunpack.c.h.b16 %v298
        %v615 = vunpack.c.l.b16 %v299
        %v616 = vunpack.c.h.b16 %v299
        %v617 = vunpack.c.l.b16 %v300
        %v618 = vunpack.c.h.b16 %v300
        %v619 = vunpack.c.l.b16 %v301
        %v620 = vunpack.c.h.b16 %v301
        %v621 = vunpack.c.l.b16 %v302
        %v622 = vunpack.c.h.b16 %v302
        %v623 = vunpack.c.l.b16 %v303
        %v624 = vunpack.c.h.b16 %v303
        %v625 = vunpack.c.l.b16 %v304
        %v626 = vunpack.c.h.b16 %v304
        %v627 = vunpack.c.l.b16 %v305
        %v628 = vunpack.c.h.b16 %v305
        %v629 = vunpack.c.l.b16 %v306
        %v630 = vunpack.c.h.b16 %v306
        %v631 = vunpack.c.l.b16 %v307
        %v632 = vunpack.c.h.b16 %v307
        %v633 = vunpack.c.l.b16 %v308
        %v634 = vunpack.c.h.b16 %v308
        %v635 = vunpack.c.l.b16 %v309
        %v636 = vunpack.c.h.b16 %v309
        %v637 = vunpack.c.l.b16 %v310
        %v638 = vunpack.c.h.b16 %v310
        %v639 = vunpack.c.l.b16 %v311
        %v640 = vunpack.c.h.b16 %v311
        %v641 = vunpack.c.l.b16 %v312
        %v642 = vunpack.c.h.b16 %v312
        %v643 = vunpack.c.l.b16 %v313
        %v644 = vunpack.c.h.b16 %v313
        %v645 = vunpack.c.l.b16 %v314
        %v646 = vunpack.c.h.b16 %v314
        %v647 = vunpack.c.l.b16 %v315
        %v648 = vunpack.c.h.b16 %v315
        %v649 = vunpack.c.l.b16 %v316
        %v650 = vunpack.c.h.b16 %v316
        %v651 = vunpack.c.l.b16 %v317
        %v652 = vunpack.c.h.b16 %v317
        %v653 = vunpack.c.l.b16 %v318
        %v654 = vunpack.c.h.b16 %v318
        %v655 = vunpack.c.l.b16 %v319
        %v656 = vunpack.c.h.b16 %v319
        %v657 = vunpack.c.l.b16 %v320
        %v658 = vunpack.c.h.b16 %v320
        %v659 = vunpack.c.l.b16 %v321
        %v660 = vunpack.c.h.b16 %v321
        %v661 = vunpack.c.l.b16 %v322
        %v662 = vunpack.c.h.b16 %v322
        %v663 = vunpack.c.l.b16 %v323
        %v664 = vunpack.c.h.b16 %v323
        %v665 = vunpack.c.l.b16 %v324
        %v666 = vunpack.c.h.b16 %v324
        %v667 = vunpack.c.l.b16 %v325
        %v668 = vunpack.c.h.b16 %v325
        %v669 = vunpack.c.l.b16 %v326
        %v670 = vunpack.c.h.b16 %v326
        %v671 = vunpack.c.l.b16 %v327
        %v672 = vunpack.c.h.b16 %v327
        %v673 = vunpack.c.l.b16 %v328
        %v674 = vunpack.c.h.b16 %v328
        %v675 = vunpack.c.l.b16 %v329
        %v676 = vunpack.c.h.b16 %v329
        %v677 = vunpack.c.l.b16 %v330
        %v678 = vunpack.c.h.b16 %v330
        %v679 = vunpack.c.l.b16 %v331
        %v680 = vunpack.c.h.b16 %v331
        %v681 = vunpack.c.l.b16 %v332
        %v682 = vunpack.c.h.b16 %v332
        %v683 = vunpack.c.l.b16 %v333
        %v684 = vunpack.c.h.b16 %v333
        %v685 = vunpack.c.l.b16 %v334
        %v686 = vunpack.c.h.b16 %v334
        %v687 = vunpack.c.l.b16 %v335
        %v688 = vunpack.c.h.b16 %v335
        %v689 = vunpack.c.l.b16 %v336
        %v690 = vunpack.c.h.b16 %v336
        %v691 = vunpack.c.l.b16 %v337
        %v692 = vunpack.c.h.b16 %v337
        %v693 = vunpack.c.l.b16 %v338
        %v694 = vunpack.c.h.b16 %v338
        %v695 = vunpack.c.l.b16 %v339
        %v696 = vunpack.c.h.b16 %v339
        %v697 = vunpack.c.l.b16 %v340
        %v698 = vunpack.c.h.b16 %v340
        %v699 = vunpack.c.l.b16 %v341
        %v700 = vunpack.c.h.b16 %v341
        %v701 = vunpack.c.l.b16 %v342
        %v702 = vunpack.c.h.b16 %v342
        %v703 = vunpack.c.l.b16 %v343
        %v704 = vunpack.c.h.b16 %v343
        %v705 = vunpack.c.l.b16 %v344
        %v706 = vunpack.c.h.b16 %v344
        %v707 = vunpack.c.l.b16 %v345
        %v708 = vunpack.c.h.b16 %v345
        %v709 = vunpack.c.l.b16 %v346
        %v710 = vunpack.c.h.b16 %v346
        %v711 = vunpack.c.l.b16 %v347
        %v712 = vunpack.c.h.b16 %v347
        %v713 = vunpack.c.l.b16 %v348
        %v714 = vunpack.c.h.b16 %v348
        %v715 = vunpack.c.l.b16 %v349
        %v716 = vunpack.c.h.b16 %v349
        %v717 = vunpack.c.l.b16 %v350
        %v718 = vunpack.c.h.b16 %v350
        %v719 = vunpack.c.l.b16 %v351
        %v720 = vunpack.c.h.b16 %v351
        %v721 = vunpack.c.l.b16 %v352
        %v722 = vunpack.c.h.b16 %v352
        %v723 = vunpack.c.l.b16 %v353
        %v724 = vunpack.c.h.b16 %v353
        %v725 = vunpack.c.l.b16 %v354
        %v726 = vunpack.c.h.b16 %v354
        %v727 = vunpack.c.l.b16 %v355
        %v728 = vunpack.c.h.b16 %v355
        %v729 = vunpack.c.l.b16 %v356
        %v730 = vunpack.c.h.b16 %v356
        %v731 = vunpack.c.l.b16 %v357
        %v732 = vunpack.c.h.b16 %v357
        %v733 = vunpack.c.l.b16 %v358
        %v734 = vunpack.c.h.b16 %v358
        %v735 = vunpack.c.l.b16 %v359
        %v736 = vunpack.c.h.b16 %v359
        %v737 = vunpack.c.l.b16 %v360
        %v738 = vunpack.c.h.b16 %v360
        %v739 = vunpack.c.l.b16 %v361
        %v740 = vunpack.c.h.b16 %v361
        %v741 = vunpack.c.l.b16 %v362
        %v742 = vunpack.c.h.b16 %v362
        %v743 = vunpack.c.l.b16 %v363
        %v744 = vunpack.c.h.b16 %v363
        %v745 = vunpack.c.l.b16 %v364
        %v746 = vunpack.c.h.b16 %v364
        %v747 = vunpack.c.l.b16 %v365
        %v748 = vunpack.c.h.b16 %v365
        %v749 = vunpack.c.l.b16 %v366
        %v750 = vunpack.c.h.b16 %v366
        %v751 = vunpack.c.l.b16 %v367
        %v752 = vunpack.c.h.b16 %v367
        %v753 = vunpack.c.l.b16 %v368
        %v754 = vunpack.c.h.b16 %v368
        %v755 = vunpack.c.l.b16 %v369
        %v756 = vunpack.c.h.b16 %v369
        %v757 = vunpack.c.l.b16 %v370
        %v758 = vunpack.c.h.b16 %v370
        %v759 = vunpack.c.l.b16 %v371
        %v760 = vunpack.c.h.b16 %v371
        %v761 = vunpack.c.l.b16 %v372
        %v762 = vunpack.c.h.b16 %v372
        %v763 = vunpack.c.l.b16 %v373
        %v764 = vunpack.c.h.b16 %v373
        %v765 = vunpack.c.l.b16 %v374
        %v766 = vunpack.c.h.b16 %v374
        %v767 = vunpack.c.l.b16 %v375
        %v768 = vunpack.c.h.b16 %v375
        %v769 = vunpack.c.l.b16 %v376
        %v770 = vunpack.c.h.b16 %v376
        %v771 = vunpack.c.l.b16 %v377
        %v772 = vunpack.c.h.b16 %v377
        %v773 = vunpack.c.l.b16 %v378
        %v774 = vunpack.c.h.b16 %v378
        %v775 = vunpack.c.l.b16 %v379
        %v776 = vunpack.c.h.b16 %v379
        %v777 = vunpack.c.l.b16 %v380
        %v778 = vunpack.c.h.b16 %v380
        %v779 = vunpack.c.l.b16 %v381
        %v780 = vunpack.c.h.b16 %v381
        %v781 = vunpack.c.l.b16 %v382
        %v782 = vunpack.c.h.b16 %v382
        %v783 = vunpack.c.l.b16 %v383
        %v784 = vunpack.c.h.b16 %v383
        %v785 = vunpack.c.l.b16 %v384
        %v786 = vunpack.c.h.b16 %v384
        %v787 = vunpack.c.l.b16 %v385
        %v788 = vunpack.c.h.b16 %v385
        %v789 = vunpack.c.l.b16 %v386
        %v790 = vunpack.c.h.b16 %v386
        %v791 = vpack.c.b16 %v539, %v535
        %v792 = vpack.c.b16 %v540, %v536
        %v793 = vpack.c.b16 %v541, %v537
        %v794 = vpack.c.b16 %v542, %v538
        %v795 = vpack.c.b16 %v547, %v543
        %v796 = vpack.c.b16 %v548, %v544
        %v797 = vpack.c.b16 %v549, %v545
        %v798 = vpack.c.b16 %v550, %v546
        %v799 = vpack.c.b16 %v555, %v551
        %v800 = vpack.c.b16 %v556, %v552
        %v801 = vpack.c.b16 %v557, %v553
        %v802 = vpack.c.b16 %v558, %v554
        %v803 = vpack.c.b16 %v563, %v559
        %v804 = vpack.c.b16 %v564, %v560
        %v805 = vpack.c.b16 %v565, %v561
        %v806 = vpack.c.b16 %v566, %v562
        %v807 = vpack.c.b16 %v571, %v567
        %v808 = vpack.c.b16 %v572, %v568
        %v809 = vpack.c.b16 %v573, %v569
        %v810 = vpack.c.b16 %v574, %v570
        %v811 = vpack.c.b16 %v579, %v575
        %v812 = vpack.c.b16 %v580, %v576
        %v813 = vpack.c.b16 %v581, %v577
        %v814 = vpack.c.b16 %v582, %v578
        %v815 = vpack.c.b16 %v587, %v583
        %v816 = vpack.c.b16 %v588, %v584
        %v817 = vpack.c.b16 %v589, %v585
        %v818 = vpack.c.b16 %v590, %v586
        %v819 = vpack.c.b16 %v595, %v591
        %v820 = vpack.c.b16 %v596, %v592
        %v821 = vpack.c.b16 %v597, %v593
        %v822 = vpack.c.b16 %v598, %v594
        %v823 = vpack.c.b16 %v603, %v599
        %v824 = vpack.c.b16 %v604, %v600
        %v825 = vpack.c.b16 %v605, %v601
        %v826 = vpack.c.b16 %v606, %v602
        %v827 = vpack.c.b16 %v611, %v607
        %v828 = vpack.c.b16 %v612, %v608
        %v829 = vpack.c.b16 %v613, %v609
        %v830 = vpack.c.b16 %v614, %v610
        %v831 = vpack.c.b16 %v619, %v615
        %v832 = vpack.c.b16 %v620, %v616
        %v833 = vpack.c.b16 %v621, %v617
        %v834 = vpack.c.b16 %v622, %v618
        %v835 = vpack.c.b16 %v627, %v623
        %v836 = vpack.c.b16 %v628, %v624
        %v837 = vpack.c.b16 %v629, %v625
        %v838 = vpack.c.b16 %v630, %v626
        %v839 = vpack.c.b16 %v635, %v631
        %v840 = vpack.c.b16 %v636, %v632
        %v841 = vpack.c.b16 %v637, %v633
        %v842 = vpack.c.b16 %v638, %v634
        %v843 = vpack.c.b16 %v643, %v639
        %v844 = vpack.c.b16 %v644, %v640
        %v845 = vpack.c.b16 %v645, %v641
        %v846 = vpack.c.b16 %v646, %v642
        %v847 = vpack.c.b16 %v651, %v647
        %v848 = vpack.c.b16 %v652, %v648
        %v849 = vpack.c.b16 %v653, %v649
        %v850 = vpack.c.b16 %v654, %v650
        %v851 = vpack.c.b16 %v659, %v655
        %v852 = vpack.c.b16 %v660, %v656
        %v853 = vpack.c.b16 %v661, %v657
        %v854 = vpack.c.b16 %v662, %v658
        %v855 = vpack.c.b16 %v667, %v663
        %v856 = vpack.c.b16 %v668, %v664
        %v857 = vpack.c.b16 %v669, %v665
        %v858 = vpack.c.b16 %v670, %v666
        %v859 = vpack.c.b16 %v675, %v671
        %v860 = vpack.c.b16 %v676, %v672
        %v861 = vpack.c.b16 %v677, %v673
        %v862 = vpack.c.b16 %v678, %v674
        %v863 = vpack.c.b16 %v683, %v679
        %v864 = vpack.c.b16 %v684, %v680
        %v865 = vpack.c.b16 %v685, %v681
        %v866 = vpack.c.b16 %v686, %v682
        %v867 = vpack.c.b16 %v691, %v687
        %v868 = vpack.c.b16 %v692, %v688
        %v869 = vpack.c.b16 %v693, %v689
        %v870 = vpack.c.b16 %v694, %v690
        %v871 = vpack.c.b16 %v699, %v695
        %v872 = vpack.c.b16 %v700, %v696
        %v873 = vpack.c.b16 %v701, %v697
        %v874 = vpack.c.b16 %v702, %v698
        %v875 = vpack.c.b16 %v707, %v703
        %v876 = vpack.c.b16 %v708, %v704
        %v877 = vpack.c.b16 %v709, %v705
        %v878 = vpack.c.b16 %v710, %v706
        %v879 = vpack.c.b16 %v715, %v711
        %v880 = vpack.c.b16 %v716, %v712
        %v881 = vpack.c.b16 %v717, %v713
        %v882 = vpack.c.b16 %v718, %v714
        %v883 = vpack.c.b16 %v723, %v719
        %v884 = vpack.c.b16 %v724, %v720
        %v885 = vpack.c.b16 %v725, %v721
        %v886 = vpack.c.b16 %v726, %v722
        %v887 = vpack.c.b16 %v731, %v727
        %v888 = vpack.c.b16 %v732, %v728
        %v889 = vpack.c.b16 %v733, %v729
        %v890 = vpack.c.b16 %v734, %v730
        %v891 = vpack.c.b16 %v739, %v735
        %v892 = vpack.c.b16 %v740, %v736
        %v893 = vpack.c.b16 %v741, %v737
        %v894 = vpack.c.b16 %v742, %v738
        %v895 = vpack.c.b16 %v747, %v743
        %v896 = vpack.c.b16 %v748, %v744
        %v897 = vpack.c.b16 %v749, %v745
        %v898 = vpack.c.b16 %v750, %v746
        %v899 = vpack.c.b16 %v755, %v751
        %v900 = vpack.c.b16 %v756, %v752
        %v901 = vpack.c.b16 %v757, %v753
        %v902 = vpack.c.b16 %v758, %v754
        %v903 = vpack.c.b16 %v763, %v759
        %v904 = vpack.c.b16 %v764, %v760
        %v905 = vpack.c.b16 %v765, %v761
        %v906 = vpack.c.b16 %v766, %v762
        %v907 = vpack.c.b16 %v771, %v767
        %v908 = vpack.c.b16 %v772, %v768
        %v909 = vpack.c.b16 %v773, %v769
        %v910 = vpack.c.b16 %v774, %v770
        %v911 = vpack.c.b16 %v779, %v775
        %v912 = vpack.c.b16 %v780, %v776
        %v913 = vpack.c.b16 %v781, %v777
        %v914 = vpack.c.b16 %v782, %v778
        %v915 = vpack.c.b16 %v787, %v783
        %v916 = vpack.c.b16 %v788, %v784
        %v917 = vpack.c.b16 %v789, %v785
        %v918 = vpack.c.b16 %v790, %v786
        %1047 = vmatprep.subr.bf16.mxu0 %v820
        %1048 = vmatpush1.bf16.msra.mxu0 %v819
        %1049 = vmatprep.subr.bf16.mxu0 %v816
        %1050 = vmatpush1.bf16.msra.mxu0 %v815
        %1051 = vmatprep.subr.bf16.mxu0 %v812
        %1052 = vmatpush1.bf16.msra.mxu0 %v811
        %1053 = vmatprep.subr.bf16.mxu0 %v808
        %1054 = vmatpush1.bf16.msra.mxu0 %v807
        %1055 = vmatprep.subr.bf16.mxu0 %v804
        %1056 = vmatpush1.bf16.msra.mxu0 %v803
        %1057 = vmatprep.subr.bf16.mxu0 %v800
        %1058 = vmatpush1.bf16.msra.mxu0 %v799
        %1059 = vmatprep.subr.bf16.mxu0 %v796
        %1060 = vmatpush1.bf16.msra.mxu0 %v795
        %1061 = vmatprep.subr.bf16.mxu0 %v792
        %1062 = vmatpush1.bf16.msra.mxu0 %v791
        %1063 = vmatprep.subr.bf16.mxu0 %v852
        %1064 = vmatpush2.bf16.msra.mxu0 %v851
        %1065 = vmatprep.subr.bf16.mxu0 %v848
        %1066 = vmatpush2.bf16.msra.mxu0 %v847
        %1067 = vmatprep.subr.bf16.mxu0 %v844
        %1068 = vmatpush2.bf16.msra.mxu0 %v843
        %1069 = vmatprep.subr.bf16.mxu0 %v840
        %1070 = vmatpush2.bf16.msra.mxu0 %v839
        %1071 = vmatprep.subr.bf16.mxu0 %v836
        %1072 = vmatpush2.bf16.msra.mxu0 %v835
        %1073 = vmatprep.subr.bf16.mxu0 %v832
        %1074 = vmatpush2.bf16.msra.mxu0 %v831
        %1075 = vmatprep.subr.bf16.mxu0 %v828
        %1076 = vmatpush2.bf16.msra.mxu0 %v827
        %1077 = vmatprep.subr.bf16.mxu0 %v824
        %1078 = vmatpush2.bf16.msra.mxu0 %v823
        %1079 = vmatprep.mubr.bf16.mxu0 %v400
        %1080 = vmatmul.mubr.bf16.gmra.mxu0 %v399
        %v1081 = vpop.f32.mrf.mxu0
        %v1082 = vadd.f32 0.0, %v1081
        %v1083 = vpop.f32.mrf.mxu0
        %v1084 = vadd.f32 0.0, %v1083
        %v1085 = vpop.f32.mrf.mxu0
        %v1086 = vadd.f32 0.0, %v1085
        %v1087 = vpop.f32.mrf.mxu0
        %v1088 = vadd.f32 0.0, %v1087
        %1089 = vdwg.mxu0
        %1090 = vmatprep.subr.bf16.mxu0 %v884
        %1091 = vmatpush1.bf16.msra.mxu0 %v883
        %1092 = vmatprep.subr.bf16.mxu0 %v880
        %1093 = vmatpush1.bf16.msra.mxu0 %v879
        %1094 = vmatprep.subr.bf16.mxu0 %v876
        %1095 = vmatpush1.bf16.msra.mxu0 %v875
        %1096 = vmatprep.subr.bf16.mxu0 %v872
        %1097 = vmatpush1.bf16.msra.mxu0 %v871
        %1098 = vmatprep.subr.bf16.mxu0 %v868
        %1099 = vmatpush1.bf16.msra.mxu0 %v867
        %1100 = vmatprep.subr.bf16.mxu0 %v864
        %1101 = vmatpush1.bf16.msra.mxu0 %v863
        %1102 = vmatprep.subr.bf16.mxu0 %v860
        %1103 = vmatpush1.bf16.msra.mxu0 %v859
        %1104 = vmatprep.subr.bf16.mxu0 %v856
        %1105 = vmatpush1.bf16.msra.mxu0 %v855
        %1106 = vmatprep.subr.bf16.mxu0 %v916
        %1107 = vmatpush2.bf16.msra.mxu0 %v915
        %1108 = vmatprep.subr.bf16.mxu0 %v912
        %1109 = vmatpush2.bf16.msra.mxu0 %v911
        %1110 = vmatprep.subr.bf16.mxu0 %v908
        %1111 = vmatpush2.bf16.msra.mxu0 %v907
        %1112 = vmatprep.subr.bf16.mxu0 %v904
        %1113 = vmatpush2.bf16.msra.mxu0 %v903
        %1114 = vmatprep.subr.bf16.mxu0 %v900
        %1115 = vmatpush2.bf16.msra.mxu0 %v899
        %1116 = vmatprep.subr.bf16.mxu0 %v896
        %1117 = vmatpush2.bf16.msra.mxu0 %v895
        %1118 = vmatprep.subr.bf16.mxu0 %v892
        %1119 = vmatpush2.bf16.msra.mxu0 %v891
        %1120 = vmatprep.subr.bf16.mxu0 %v888
        %1121 = vmatpush2.bf16.msra.mxu0 %v887
        %1122 = vmatprep.mubr.bf16.mxu0 %v402
        %1123 = vmatmul.mubr.bf16.gmra.mxu0 %v401
        %v1124 = vpop.f32.mrf.mxu0
        %v1125 = vadd.f32 %v1082, %v1124
        %v1126 = vpop.f32.mrf.mxu0
        %v1127 = vadd.f32 %v1084, %v1126
        %v1128 = vpop.f32.mrf.mxu0
        %v1129 = vadd.f32 %v1086, %v1128
        %v1130 = vpop.f32.mrf.mxu0
        %v1131 = vadd.f32 %v1088, %v1130
        %1132 = vdwg.mxu0
        %1133 = vmatprep.subr.bf16.mxu0 %v822
        %1134 = vmatpush1.bf16.msra.mxu0 %v821
        %1135 = vmatprep.subr.bf16.mxu0 %v818
        %1136 = vmatpush1.bf16.msra.mxu0 %v817
        %1137 = vmatprep.subr.bf16.mxu0 %v814
        %1138 = vmatpush1.bf16.msra.mxu0 %v813
        %1139 = vmatprep.subr.bf16.mxu0 %v810
        %1140 = vmatpush1.bf16.msra.mxu0 %v809
        %1141 = vmatprep.subr.bf16.mxu0 %v806
        %1142 = vmatpush1.bf16.msra.mxu0 %v805
        %1143 = vmatprep.subr.bf16.mxu0 %v802
        %1144 = vmatpush1.bf16.msra.mxu0 %v801
        %1145 = vmatprep.subr.bf16.mxu0 %v798
        %1146 = vmatpush1.bf16.msra.mxu0 %v797
        %1147 = vmatprep.subr.bf16.mxu0 %v794
        %1148 = vmatpush1.bf16.msra.mxu0 %v793
        %1149 = vmatprep.subr.bf16.mxu0 %v854
        %1150 = vmatpush2.bf16.msra.mxu0 %v853
        %1151 = vmatprep.subr.bf16.mxu0 %v850
        %1152 = vmatpush2.bf16.msra.mxu0 %v849
        %1153 = vmatprep.subr.bf16.mxu0 %v846
        %1154 = vmatpush2.bf16.msra.mxu0 %v845
        %1155 = vmatprep.subr.bf16.mxu0 %v842
        %1156 = vmatpush2.bf16.msra.mxu0 %v841
        %1157 = vmatprep.subr.bf16.mxu0 %v838
        %1158 = vmatpush2.bf16.msra.mxu0 %v837
        %1159 = vmatprep.subr.bf16.mxu0 %v834
        %1160 = vmatpush2.bf16.msra.mxu0 %v833
        %1161 = vmatprep.subr.bf16.mxu0 %v830
        %1162 = vmatpush2.bf16.msra.mxu0 %v829
        %1163 = vmatprep.subr.bf16.mxu0 %v826
        %1164 = vmatpush2.bf16.msra.mxu0 %v825
        %1165 = vmatprep.mubr.bf16.mxu0 %v400
        %1166 = vmatmul.mubr.bf16.gmra.mxu0 %v399
        %v1167 = vpop.f32.mrf.mxu0
        %v1168 = vadd.f32 0.0, %v1167
        %v1169 = vpop.f32.mrf.mxu0
        %v1170 = vadd.f32 0.0, %v1169
        %v1171 = vpop.f32.mrf.mxu0
        %v1172 = vadd.f32 0.0, %v1171
        %v1173 = vpop.f32.mrf.mxu0
        %v1174 = vadd.f32 0.0, %v1173
        %1175 = vdwg.mxu0
        %1176 = vmatprep.subr.bf16.mxu0 %v886
        %1177 = vmatpush1.bf16.msra.mxu0 %v885
        %1178 = vmatprep.subr.bf16.mxu0 %v882
        %1179 = vmatpush1.bf16.msra.mxu0 %v881
        %1180 = vmatprep.subr.bf16.mxu0 %v878
        %1181 = vmatpush1.bf16.msra.mxu0 %v877
        %1182 = vmatprep.subr.bf16.mxu0 %v874
        %1183 = vmatpush1.bf16.msra.mxu0 %v873
        %1184 = vmatprep.subr.bf16.mxu0 %v870
        %1185 = vmatpush1.bf16.msra.mxu0 %v869
        %1186 = vmatprep.subr.bf16.mxu0 %v866
        %1187 = vmatpush1.bf16.msra.mxu0 %v865
        %1188 = vmatprep.subr.bf16.mxu0 %v862
        %1189 = vmatpush1.bf16.msra.mxu0 %v861
        %1190 = vmatprep.subr.bf16.mxu0 %v858
        %1191 = vmatpush1.bf16.msra.mxu0 %v857
        %1192 = vmatprep.subr.bf16.mxu0 %v918
        %1193 = vmatpush2.bf16.msra.mxu0 %v917
        %1194 = vmatprep.subr.bf16.mxu0 %v914
        %1195 = vmatpush2.bf16.msra.mxu0 %v913
        %1196 = vmatprep.subr.bf16.mxu0 %v910
        %1197 = vmatpush2.bf16.msra.mxu0 %v909
        %1198 = vmatprep.subr.bf16.mxu0 %v906
        %1199 = vmatpush2.bf16.msra.mxu0 %v905
        %1200 = vmatprep.subr.bf16.mxu0 %v902
        %1201 = vmatpush2.bf16.msra.mxu0 %v901
        %1202 = vmatprep.subr.bf16.mxu0 %v898
        %1203 = vmatpush2.bf16.msra.mxu0 %v897
        %1204 = vmatprep.subr.bf16.mxu0 %v894
        %1205 = vmatpush2.bf16.msra.mxu0 %v893
        %1206 = vmatprep.subr.bf16.mxu0 %v890
        %1207 = vmatpush2.bf16.msra.mxu0 %v889
        %1208 = vmatprep.mubr.bf16.mxu0 %v402
        %1209 = vmatmul.mubr.bf16.gmra.mxu0 %v401
        %v1210 = vpop.f32.mrf.mxu0
        %v1211 = vadd.f32 %v1168, %v1210
        %v1212 = vpop.f32.mrf.mxu0
        %v1213 = vadd.f32 %v1170, %v1212
        %v1214 = vpop.f32.mrf.mxu0
        %v1215 = vadd.f32 %v1172, %v1214
        %v1216 = vpop.f32.mrf.mxu0
        %v1217 = vadd.f32 %v1174, %v1216
        %1218 = vdwg.mxu0
        %v1219 = vadd.f32 %v247, %v1125
        %v1220 = vadd.f32 %v248, %v1127
        %v1221 = vadd.f32 %v249, %v1211
        %v1222 = vadd.f32 %v250, %v1213
        %v1223 = vadd.f32 %v251, %v1129
        %v1224 = vadd.f32 %v252, %v1131
        %v1225 = vadd.f32 %v253, %v1215
        %v1226 = vadd.f32 %v254, %v1217
        %1227 = vst [vmem:[#allocation2] sm:$0xff] %v1219
        %1228 = vst [vmem:[#allocation2 + $0x8] sm:$0xff] %v1220
        %1229 = vst [vmem:[#allocation2 + $0x10] sm:$0xff] %v1221
        %1230 = vst [vmem:[#allocation2 + $0x18] sm:$0xff] %v1222
        %1231 = vst [vmem:[#allocation2 + $0x20] sm:$0xff] %v1223
        %1232 = vst [vmem:[#allocation2 + $0x28] sm:$0xff] %v1224
        %1233 = vst [vmem:[#allocation2 + $0x30] sm:$0xff] %v1225
        %1234 = vst [vmem:[#allocation2 + $0x38] sm:$0xff] %v1226
        %p1235 = scmp.eq.s32.totalorder %s15, 1
        // Predicated region
        $region64: #{net_forward.12} parent=54 // pred_check
          %p1236 = pneg %p1235
        $region65: #{net_forward.12} parent=54 // pred_check_branch
          %1238 = sbr.rel (%p1236) target = $region67
        $region66: #{net_forward.12} parent=54 // pred_region
          %v1239 = vld [vmem:[#allocation2] sm:$0xff]
          %v1240 = vld [vmem:[#allocation2 + $0x8] sm:$0xff]
          %v1241 = vld [vmem:[#allocation2 + $0x10] sm:$0xff]
          %v1242 = vld [vmem:[#allocation2 + $0x18] sm:$0xff]
          %v1243 = vld [vmem:[#allocation2 + $0x20] sm:$0xff]
          %v1244 = vld [vmem:[#allocation2 + $0x28] sm:$0xff]
          %v1245 = vld [vmem:[#allocation2 + $0x30] sm:$0xff]
          %v1246 = vld [vmem:[#allocation2 + $0x38] sm:$0xff]
          %v1247 = vadd.f32 %v1239, %v1243
          %v1248 = vrot.slane %v1247, 4
          %v1249 = vadd.f32 %v1247, %v1248
          %v1250 = vrot.slane %v1249, 2
          %v1251 = vadd.f32 %v1249, %v1250
          %v1252 = vrot.slane %v1251, 1
          %v1253 = vadd.f32 %v1251, %v1252
          %v1254 = vadd.f32 %v1240, %v1244
          %v1255 = vrot.slane %v1254, 4
          %v1256 = vadd.f32 %v1254, %v1255
          %v1257 = vrot.slane %v1256, 2
          %v1258 = vadd.f32 %v1256, %v1257
          %v1259 = vrot.slane %v1258, 1
          %v1260 = vadd.f32 %v1258, %v1259
          %v1261 = vadd.f32 %v1241, %v1245
          %v1262 = vrot.slane %v1261, 4
          %v1263 = vadd.f32 %v1261, %v1262
          %v1264 = vrot.slane %v1263, 2
          %v1265 = vadd.f32 %v1263, %v1264
          %v1266 = vrot.slane %v1265, 1
          %v1267 = vadd.f32 %v1265, %v1266
          %v1268 = vadd.f32 %v1242, %v1246
          %v1269 = vrot.slane %v1268, 4
          %v1270 = vadd.f32 %v1268, %v1269
          %v1271 = vrot.slane %v1270, 2
          %v1272 = vadd.f32 %v1270, %v1271
          %v1273 = vrot.slane %v1272, 1
          %v1274 = vadd.f32 %v1272, %v1273
          %v1275 = vmul.f32 %v1239, %v1239
          %v1276 = vmul.f32 %v1240, %v1240
          %v1277 = vmul.f32 %v1241, %v1241
          %v1278 = vmul.f32 %v1242, %v1242
          %v1279 = vmul.f32 %v1243, %v1243
          %v1280 = vmul.f32 %v1244, %v1244
          %v1281 = vmul.f32 %v1245, %v1245
          %v1282 = vmul.f32 %v1246, %v1246
          %v1283 = vadd.f32 %v1275, %v1279
          %v1284 = vrot.slane %v1283, 4
          %v1285 = vadd.f32 %v1283, %v1284
          %v1286 = vrot.slane %v1285, 2
          %v1287 = vadd.f32 %v1285, %v1286
          %v1288 = vrot.slane %v1287, 1
          %v1289 = vadd.f32 %v1287, %v1288
          %v1290 = vadd.f32 %v1276, %v1280
          %v1291 = vrot.slane %v1290, 4
          %v1292 = vadd.f32 %v1290, %v1291
          %v1293 = vrot.slane %v1292, 2
          %v1294 = vadd.f32 %v1292, %v1293
          %v1295 = vrot.slane %v1294, 1
          %v1296 = vadd.f32 %v1294, %v1295
          %v1297 = vadd.f32 %v1277, %v1281
          %v1298 = vrot.slane %v1297, 4
          %v1299 = vadd.f32 %v1297, %v1298
          %v1300 = vrot.slane %v1299, 2
          %v1301 = vadd.f32 %v1299, %v1300
          %v1302 = vrot.slane %v1301, 1
          %v1303 = vadd.f32 %v1301, %v1302
          %v1304 = vadd.f32 %v1278, %v1282
          %v1305 = vrot.slane %v1304, 4
          %v1306 = vadd.f32 %v1304, %v1305
          %v1307 = vrot.slane %v1306, 2
          %v1308 = vadd.f32 %v1306, %v1307
          %v1309 = vrot.slane %v1308, 1
          %v1310 = vadd.f32 %v1308, %v1309
          %v1311 = vadd.f32 %v1253, 0.0
          %v1312 = vadd.f32 %v1311, %v1260
          %v1313 = vadd.f32 %v1312, %v1267
          %v1314 = vadd.f32 %v1313, %v1274
          %v1315 = vadd.f32 %v1289, 0.0
          %v1316 = vadd.f32 %v1315, %v1296
          %v1317 = vadd.f32 %v1316, %v1303
          %v1318 = vadd.f32 %v1317, %v1310
          %v1319 = vmul.f32 %v1314, 0.125
          %v1320 = vmul.f32 %v1318, 0.125
          %v1321 = vmul.f32 %v1319, %v1319
          %v1322 = vsub.f32 %v1320, %v1321
          %v1323 = vmax.f32 %v1322, 0.0
          %v1324 = vld [vmem:[%s2] sm:$0x1]
          %v1325 = vadd.f32 %v1323, 1e-05
          %v1326 = vrsqrt.pop %v1325
          %v1327 = vmul.f32 %v1324, %v1326
          %v1328 = vld [vmem:[%s3] sm:$0x1]
          %v1329 = vmul.f32 %v1319, %v1327
          %v1330 = vsub.f32 %v1328, %v1329
          %v1331 = vlaneseq
          %v1332 = vshrl.u32 %v1331, 7
          %v1333 = vsub.s32 0, %v1332
          %v1334 = vrot.slane %v1327, %v1333
          %v1335 = vmul.f32 %v1239, %v1334
          %v1336 = vmul.f32 %v1240, %v1334
          %v1337 = vmul.f32 %v1241, %v1334
          %v1338 = vmul.f32 %v1242, %v1334
          %v1339 = vmul.f32 %v1243, %v1334
          %v1340 = vmul.f32 %v1244, %v1334
          %v1341 = vmul.f32 %v1245, %v1334
          %v1342 = vmul.f32 %v1246, %v1334
          %v1343 = vlaneseq
          %v1344 = vshrl.u32 %v1343, 7
          %v1345 = vsub.s32 0, %v1344
          %v1346 = vrot.slane %v1330, %v1345
          %v1347 = vadd.f32 %v1335, %v1346
          %v1348 = vadd.f32 %v1336, %v1346
          %v1349 = vadd.f32 %v1337, %v1346
          %v1350 = vadd.f32 %v1338, %v1346
          %v1351 = vadd.f32 %v1339, %v1346
          %v1352 = vadd.f32 %v1340, %v1346
          %v1353 = vadd.f32 %v1341, %v1346
          %v1354 = vadd.f32 %v1342, %v1346
          %vm1355 = vcmp.ge.f32.partialorder %v1347, 0.0
          %vm1356 = vcmp.ge.f32.partialorder %v1348, 0.0
          %vm1357 = vcmp.ge.f32.partialorder %v1349, 0.0
          %vm1358 = vcmp.ge.f32.partialorder %v1350, 0.0
          %vm1359 = vcmp.ge.f32.partialorder %v1351, 0.0
          %vm1360 = vcmp.ge.f32.partialorder %v1352, 0.0
          %vm1361 = vcmp.ge.f32.partialorder %v1353, 0.0
          %vm1362 = vcmp.ge.f32.partialorder %v1354, 0.0
          %v1363 = vmul.f32 %v1347, 0.2
          %v1364 = vmul.f32 %v1348, 0.2
          %v1365 = vmul.f32 %v1349, 0.2
          %v1366 = vmul.f32 %v1350, 0.2
          %v1367 = vmul.f32 %v1351, 0.2
          %v1368 = vmul.f32 %v1352, 0.2
          %v1369 = vmul.f32 %v1353, 0.2
          %v1370 = vmul.f32 %v1354, 0.2
          %v1371 = vsel %vm1355, %v1347, %v1363
          %v1372 = vsel %vm1356, %v1348, %v1364
          %v1373 = vsel %vm1357, %v1349, %v1365
          %v1374 = vsel %vm1358, %v1350, %v1366
          %v1375 = vsel %vm1359, %v1351, %v1367
          %v1376 = vsel %vm1360, %v1352, %v1368
          %v1377 = vsel %vm1361, %v1353, %v1369
          %v1378 = vsel %vm1362, %v1354, %v1370
          %1379 = vst [vmem:[%s4] sm:$0xff] %v1371
          %1380 = vst [vmem:[%s4 + $0x8] sm:$0xff] %v1372
          %1381 = vst [vmem:[%s4 + $0x10] sm:$0xff] %v1373
          %1382 = vst [vmem:[%s4 + $0x18] sm:$0xff] %v1374
          %1383 = vst [vmem:[%s4 + $0x20] sm:$0xff] %v1375
          %1384 = vst [vmem:[%s4 + $0x28] sm:$0xff] %v1376
          %1385 = vst [vmem:[%s4 + $0x30] sm:$0xff] %v1377
          %1386 = vst [vmem:[%s4 + $0x38] sm:$0xff] %v1378
        $region67: #{net_forward.12} parent=54 // pred_fallthru
          _
        // Predicated region
        $region68: #{net_forward.12} parent=54 // pred_check
          %p1387 = pneg %p122
        $region69: #{net_forward.12} parent=54 // pred_check_branch
          %1389 = sbr.rel (%p1387) target = $region71
        $region70: #{net_forward.12} parent=54 // pred_region
          _
        $region71: #{net_forward.12} parent=54 // pred_fallthru
          _
        // Predicated region
        $region72: #{net_forward.12} parent=54 // pred_check
          %p1390 = pneg %p122
        $region73: #{net_forward.12} parent=54 // pred_check_branch
          %1392 = sbr.rel (%p1390) target = $region75
        $region74: #{net_forward.12} parent=54 // pred_region
          _
        $region75: #{net_forward.12} parent=54 // pred_fallthru
          _
      $region55: #{net_forward.12} parent=5 // pred_fallthru
        _
      %p1393 = scmp.le.s32.totalorder 2, %s10
      // Predicated region
      $region76: #{net_forward.12} parent=5 // pred_check
        %p1394 = pneg %p1393
      $region77: #{net_forward.12} parent=5 // pred_check_branch
        %1396 = sbr.rel (%p1394) target = $region79
      $region78: #{net_forward.12} parent=5 // pred_region
        %s1397 = ssub.s32 %s10, 2
      $region79: #{net_forward.12} parent=5 // pred_fallthru
        _
    $region6: #{net_forward.12} parent=1 // loop_footer
      %s14 = sadd.s32 1, %s10
    $region7: #{net_forward.12} parent=1 // loop_footer_branch
      %9 = sbr.rel target = $region3
    $region8: #{net_forward.12} parent=1 // loop_exit
      _

// kernel: net_forward.13
$region0: #{net_forward.13}
  #allocation0 [shape = 'u32[]', space=smem, size = 0x4, offset = 0x4, fixed_abs, tag = 'smem constant byte address 0x4 - core index']
  #allocation1 [shape = 'u32[144,128]{1,0:T(1,128)}', space=vmem, size = 0x12000, scoped, tag = 'internal scratch']
  #allocation2 [shape = 'f32[16,512]{1,0:T(8,128)}', space=vmem, size = 0x8000, scoped, tag = 'scratch operand']
  %s0 = inlined_call_operand.vmem [shape: bf16[16,384], index: 0, kind: input, shape index: {}]
  %s1 = inlined_call_operand.vmem [shape: bf16[384,512], index: 1, kind: input, shape index: {}]
  %s2 = inlined_call_operand.vmem [shape: f32[1,128], index: 2, kind: input, shape index: {}]
  %s3 = inlined_call_operand.vmem [shape: f32[1,128], index: 3, kind: input, shape index: {}]
  %s4 = inlined_call_operand.vmem [shape: f32[16,512], index: 4, kind: output, shape index: {}]
  %s5 = sld [smem:[#allocation0]]
  $region34: #{net_forward.13} parent=0
    _
  %s7 = ssub.s32 1, %s5
  %s8 = scalar_select 0, %s7, %s5
  // Predicated region
  $region2: #{net_forward.13} parent=0 // pred_check
    _
  $region3: #{net_forward.13} parent=0 // pred_check_branch
    %10 = sbr.rel (0) target = $region5
  $region4: #{net_forward.13} parent=0 // pred_region
    _
  $region5: #{net_forward.13} parent=0 // pred_fallthru
    _
  // Predicated region
  $region6: #{net_forward.13} parent=0 // pred_check
    _
  $region7: #{net_forward.13} parent=0 // pred_check_branch
    %12 = sbr.rel (0) target = $region9
  $region8: #{net_forward.13} parent=0 // pred_region
    _
  $region9: #{net_forward.13} parent=0 // pred_fallthru
    _
  // Predicated region
  $region10: #{net_forward.13} parent=0 // pred_check
    _
  $region11: #{net_forward.13} parent=0 // pred_check_branch
    %14 = sbr.rel (0) target = $region13
  $region12: #{net_forward.13} parent=0 // pred_region
    _
  $region13: #{net_forward.13} parent=0 // pred_fallthru
    _
  // Predicated region
  $region14: #{net_forward.13} parent=0 // pred_check
    _
  $region15: #{net_forward.13} parent=0 // pred_check_branch
    %16 = sbr.rel (0) target = $region17
  $region16: #{net_forward.13} parent=0 // pred_region
    _
  $region17: #{net_forward.13} parent=0 // pred_fallthru
    _
  %p18 = scmp.eq.s32.totalorder 0, 0
  // Predicated region
  $region18: #{net_forward.13} parent=0 // pred_check
    %p19 = pneg %p18
  $region19: #{net_forward.13} parent=0 // pred_check_branch
    %21 = sbr.rel (%p19) target = $region21
  $region20: #{net_forward.13} parent=0 // pred_region
    %22 = vst [vmem:[#allocation2] sm:$0xff] 0.0
    %23 = vst [vmem:[#allocation2 + $0x8] sm:$0xff] 0.0
    %24 = vst [vmem:[#allocation2 + $0x10] sm:$0xff] 0.0
    %25 = vst [vmem:[#allocation2 + $0x18] sm:$0xff] 0.0
    %26 = vst [vmem:[#allocation2 + $0x20] sm:$0xff] 0.0
    %27 = vst [vmem:[#allocation2 + $0x28] sm:$0xff] 0.0
    %28 = vst [vmem:[#allocation2 + $0x30] sm:$0xff] 0.0
    %29 = vst [vmem:[#allocation2 + $0x38] sm:$0xff] 0.0
  $region21: #{net_forward.13} parent=0 // pred_fallthru
    _
  %v30 = vld [vmem:[#allocation2] sm:$0xff]
  %v31 = vld [vmem:[#allocation2 + $0x8] sm:$0xff]
  %v32 = vld [vmem:[#allocation2 + $0x10] sm:$0xff]
  %v33 = vld [vmem:[#allocation2 + $0x18] sm:$0xff]
  %v34 = vld [vmem:[#allocation2 + $0x20] sm:$0xff]
  %v35 = vld [vmem:[#allocation2 + $0x28] sm:$0xff]
  %v36 = vld [vmem:[#allocation2 + $0x30] sm:$0xff]
  %v37 = vld [vmem:[#allocation2 + $0x38] sm:$0xff]
  %v38 = vld [vmem:[%s0] sm:$0xff]
  %v39 = vld [vmem:[%s0 + $0x8] sm:$0xf]
  %v40 = vld [vmem:[%s0 + $0xc] sm:$0xff]
  %v41 = vld [vmem:[%s0 + $0x14] sm:$0xf]
  %v42 = vld [vmem:[%s1] sm:$0xff]
  %v43 = vld [vmem:[%s1 + $0x8] sm:$0xff]
  %v44 = vld [vmem:[%s1 + $0x10] sm:$0xff]
  %v45 = vld [vmem:[%s1 + $0x18] sm:$0xff]
  %v46 = vld [vmem:[%s1 + $0x20] sm:$0xff]
  %v47 = vld [vmem:[%s1 + $0x28] sm:$0xff]
  %v48 = vld [vmem:[%s1 + $0x30] sm:$0xff]
  %v49 = vld [vmem:[%s1 + $0x38] sm:$0xff]
  %v50 = vld [vmem:[%s1 + $0x40] sm:$0xff]
  %v51 = vld [vmem:[%s1 + $0x48] sm:$0xff]
  %v52 = vld [vmem:[%s1 + $0x50] sm:$0xff]
  %v53 = vld [vmem:[%s1 + $0x58] sm:$0xff]
  %v54 = vld [vmem:[%s1 + $0x60] sm:$0xff]
  %v55 = vld [vmem:[%s1 + $0x68] sm:$0xff]
  %v56 = vld [vmem:[%s1 + $0x70] sm:$0xff]
  %v57 = vld [vmem:[%s1 + $0x78] sm:$0xff]
  %v58 = vld [vmem:[%s1 + $0x80] sm:$0xff]
  %v59 = vld [vmem:[%s1 + $0x88] sm:$0xff]
  %v60 = vld [vmem:[%s1 + $0x90] sm:$0xff]
  %v61 = vld [vmem:[%s1 + $0x98] sm:$0xff]
  %v62 = vld [vmem:[%s1 + $0xa0] sm:$0xff]
  %v63 = vld [vmem:[%s1 + $0xa8] sm:$0xff]
  %v64 = vld [vmem:[%s1 + $0xb0] sm:$0xff]
  %v65 = vld [vmem:[%s1 + $0xb8] sm:$0xff]
  %v66 = vld [vmem:[%s1 + $0xc0] sm:$0xff]
  %v67 = vld [vmem:[%s1 + $0xc8] sm:$0xff]
  %v68 = vld [vmem:[%s1 + $0xd0] sm:$0xff]
  %v69 = vld [vmem:[%s1 + $0xd8] sm:$0xff]
  %v70 = vld [vmem:[%s1 + $0xe0] sm:$0xff]
  %v71 = vld [vmem:[%s1 + $0xe8] sm:$0xff]
  %v72 = vld [vmem:[%s1 + $0xf0] sm:$0xff]
  %v73 = vld [vmem:[%s1 + $0xf8] sm:$0xff]
  %v74 = vld [vmem:[%s1 + $0x100] sm:$0xff]
  %v75 = vld [vmem:[%s1 + $0x108] sm:$0xff]
  %v76 = vld [vmem:[%s1 + $0x110] sm:$0xff]
  %v77 = vld [vmem:[%s1 + $0x118] sm:$0xff]
  %v78 = vld [vmem:[%s1 + $0x120] sm:$0xff]
  %v79 = vld [vmem:[%s1 + $0x128] sm:$0xff]
  %v80 = vld [vmem:[%s1 + $0x130] sm:$0xff]
  %v81 = vld [vmem:[%s1 + $0x138] sm:$0xff]
  %v82 = vld [vmem:[%s1 + $0x140] sm:$0xff]
  %v83 = vld [vmem:[%s1 + $0x148] sm:$0xff]
  %v84 = vld [vmem:[%s1 + $0x150] sm:$0xff]
  %v85 = vld [vmem:[%s1 + $0x158] sm:$0xff]
  %v86 = vld [vmem:[%s1 + $0x160] sm:$0xff]
  %v87 = vld [vmem:[%s1 + $0x168] sm:$0xff]
  %v88 = vld [vmem:[%s1 + $0x170] sm:$0xff]
  %v89 = vld [vmem:[%s1 + $0x178] sm:$0xff]
  %v90 = vld [vmem:[%s1 + $0x180] sm:$0xff]
  %v91 = vld [vmem:[%s1 + $0x188] sm:$0xff]
  %v92 = vld [vmem:[%s1 + $0x190] sm:$0xff]
  %v93 = vld [vmem:[%s1 + $0x198] sm:$0xff]
  %v94 = vld [vmem:[%s1 + $0x1a0] sm:$0xff]
  %v95 = vld [vmem:[%s1 + $0x1a8] sm:$0xff]
  %v96 = vld [vmem:[%s1 + $0x1b0] sm:$0xff]
  %v97 = vld [vmem:[%s1 + $0x1b8] sm:$0xff]
  %v98 = vld [vmem:[%s1 + $0x1c0] sm:$0xff]
  %v99 = vld [vmem:[%s1 + $0x1c8] sm:$0xff]
  %v100 = vld [vmem:[%s1 + $0x1d0] sm:$0xff]
  %v101 = vld [vmem:[%s1 + $0x1d8] sm:$0xff]
  %v102 = vld [vmem:[%s1 + $0x1e0] sm:$0xff]
  %v103 = vld [vmem:[%s1 + $0x1e8] sm:$0xff]
  %v104 = vld [vmem:[%s1 + $0x1f0] sm:$0xff]
  %v105 = vld [vmem:[%s1 + $0x1f8] sm:$0xff]
  %v106 = vld [vmem:[%s1 + $0x200] sm:$0xff]
  %v107 = vld [vmem:[%s1 + $0x208] sm:$0xff]
  %v108 = vld [vmem:[%s1 + $0x210] sm:$0xff]
  %v109 = vld [vmem:[%s1 + $0x218] sm:$0xff]
  %v110 = vld [vmem:[%s1 + $0x220] sm:$0xff]
  %v111 = vld [vmem:[%s1 + $0x228] sm:$0xff]
  %v112 = vld [vmem:[%s1 + $0x230] sm:$0xff]
  %v113 = vld [vmem:[%s1 + $0x238] sm:$0xff]
  %v114 = vld [vmem:[%s1 + $0x240] sm:$0xff]
  %v115 = vld [vmem:[%s1 + $0x248] sm:$0xff]
  %v116 = vld [vmem:[%s1 + $0x250] sm:$0xff]
  %v117 = vld [vmem:[%s1 + $0x258] sm:$0xff]
  %v118 = vld [vmem:[%s1 + $0x260] sm:$0xff]
  %v119 = vld [vmem:[%s1 + $0x268] sm:$0xff]
  %v120 = vld [vmem:[%s1 + $0x270] sm:$0xff]
  %v121 = vld [vmem:[%s1 + $0x278] sm:$0xff]
  %v122 = vld [vmem:[%s1 + $0x280] sm:$0xff]
  %v123 = vld [vmem:[%s1 + $0x288] sm:$0xff]
  %v124 = vld [vmem:[%s1 + $0x290] sm:$0xff]
  %v125 = vld [vmem:[%s1 + $0x298] sm:$0xff]
  %v126 = vld [vmem:[%s1 + $0x2a0] sm:$0xff]
  %v127 = vld [vmem:[%s1 + $0x2a8] sm:$0xff]
  %v128 = vld [vmem:[%s1 + $0x2b0] sm:$0xff]
  %v129 = vld [vmem:[%s1 + $0x2b8] sm:$0xff]
  %v130 = vld [vmem:[%s1 + $0x2c0] sm:$0xff]
  %v131 = vld [vmem:[%s1 + $0x2c8] sm:$0xff]
  %v132 = vld [vmem:[%s1 + $0x2d0] sm:$0xff]
  %v133 = vld [vmem:[%s1 + $0x2d8] sm:$0xff]
  %v134 = vld [vmem:[%s1 + $0x2e0] sm:$0xff]
  %v135 = vld [vmem:[%s1 + $0x2e8] sm:$0xff]
  %v136 = vld [vmem:[%s1 + $0x2f0] sm:$0xff]
  %v137 = vld [vmem:[%s1 + $0x2f8] sm:$0xff]
  %v142 = vunpack.c.l.b16 %v38
  %v143 = vunpack.c.h.b16 %v38
  %v144 = vunpack.c.l.b16 %v39
  %v145 = vunpack.c.l.b16 %v40
  %v146 = vunpack.c.h.b16 %v40
  %v147 = vunpack.c.l.b16 %v41
  %v148 = vpack.c.b16 %v145, %v142
  %v149 = vpack.c.b16 %v146, %v143
  %v150 = vpack.c.b16 %v147, %v144
  %v250 = vunpack.c.l.b16 %v42
  %v251 = vunpack.c.h.b16 %v42
  %v252 = vunpack.c.l.b16 %v43
  %v253 = vunpack.c.h.b16 %v43
  %v254 = vunpack.c.l.b16 %v44
  %v255 = vunpack.c.h.b16 %v44
  %v256 = vunpack.c.l.b16 %v45
  %v257 = vunpack.c.h.b16 %v45
  %v258 = vunpack.c.l.b16 %v46
  %v259 = vunpack.c.h.b16 %v46
  %v260 = vunpack.c.l.b16 %v47
  %v261 = vunpack.c.h.b16 %v47
  %v262 = vunpack.c.l.b16 %v48
  %v263 = vunpack.c.h.b16 %v48
  %v264 = vunpack.c.l.b16 %v49
  %v265 = vunpack.c.h.b16 %v49
  %v266 = vunpack.c.l.b16 %v50
  %v267 = vunpack.c.h.b16 %v50
  %v268 = vunpack.c.l.b16 %v51
  %v269 = vunpack.c.h.b16 %v51
  %v270 = vunpack.c.l.b16 %v52
  %v271 = vunpack.c.h.b16 %v52
  %v272 = vunpack.c.l.b16 %v53
  %v273 = vunpack.c.h.b16 %v53
  %v274 = vunpack.c.l.b16 %v54
  %v275 = vunpack.c.h.b16 %v54
  %v276 = vunpack.c.l.b16 %v55
  %v277 = vunpack.c.h.b16 %v55
  %v278 = vunpack.c.l.b16 %v56
  %v279 = vunpack.c.h.b16 %v56
  %v280 = vunpack.c.l.b16 %v57
  %v281 = vunpack.c.h.b16 %v57
  %v282 = vunpack.c.l.b16 %v58
  %v283 = vunpack.c.h.b16 %v58
  %v284 = vunpack.c.l.b16 %v59
  %v285 = vunpack.c.h.b16 %v59
  %v286 = vunpack.c.l.b16 %v60
  %v287 = vunpack.c.h.b16 %v60
  %v288 = vunpack.c.l.b16 %v61
  %v289 = vunpack.c.h.b16 %v61
  %v290 = vunpack.c.l.b16 %v62
  %v291 = vunpack.c.h.b16 %v62
  %v292 = vunpack.c.l.b16 %v63
  %v293 = vunpack.c.h.b16 %v63
  %v294 = vunpack.c.l.b16 %v64
  %v295 = vunpack.c.h.b16 %v64
  %v296 = vunpack.c.l.b16 %v65
  %v297 = vunpack.c.h.b16 %v65
  %v298 = vunpack.c.l.b16 %v66
  %v299 = vunpack.c.h.b16 %v66
  %v300 = vunpack.c.l.b16 %v67
  %v301 = vunpack.c.h.b16 %v67
  %v302 = vunpack.c.l.b16 %v68
  %v303 = vunpack.c.h.b16 %v68
  %v304 = vunpack.c.l.b16 %v69
  %v305 = vunpack.c.h.b16 %v69
  %v306 = vunpack.c.l.b16 %v70
  %v307 = vunpack.c.h.b16 %v70
  %v308 = vunpack.c.l.b16 %v71
  %v309 = vunpack.c.h.b16 %v71
  %v310 = vunpack.c.l.b16 %v72
  %v311 = vunpack.c.h.b16 %v72
  %v312 = vunpack.c.l.b16 %v73
  %v313 = vunpack.c.h.b16 %v73
  %v314 = vunpack.c.l.b16 %v74
  %v315 = vunpack.c.h.b16 %v74
  %v316 = vunpack.c.l.b16 %v75
  %v317 = vunpack.c.h.b16 %v75
  %v318 = vunpack.c.l.b16 %v76
  %v319 = vunpack.c.h.b16 %v76
  %v320 = vunpack.c.l.b16 %v77
  %v321 = vunpack.c.h.b16 %v77
  %v322 = vunpack.c.l.b16 %v78
  %v323 = vunpack.c.h.b16 %v78
  %v324 = vunpack.c.l.b16 %v79
  %v325 = vunpack.c.h.b16 %v79
  %v326 = vunpack.c.l.b16 %v80
  %v327 = vunpack.c.h.b16 %v80
  %v328 = vunpack.c.l.b16 %v81
  %v329 = vunpack.c.h.b16 %v81
  %v330 = vunpack.c.l.b16 %v82
  %v331 = vunpack.c.h.b16 %v82
  %v332 = vunpack.c.l.b16 %v83
  %v333 = vunpack.c.h.b16 %v83
  %v334 = vunpack.c.l.b16 %v84
  %v335 = vunpack.c.h.b16 %v84
  %v336 = vunpack.c.l.b16 %v85
  %v337 = vunpack.c.h.b16 %v85
  %v338 = vunpack.c.l.b16 %v86
  %v339 = vunpack.c.h.b16 %v86
  %v340 = vunpack.c.l.b16 %v87
  %v341 = vunpack.c.h.b16 %v87
  %v342 = vunpack.c.l.b16 %v88
  %v343 = vunpack.c.h.b16 %v88
  %v344 = vunpack.c.l.b16 %v89
  %v345 = vunpack.c.h.b16 %v89
  %v346 = vunpack.c.l.b16 %v90
  %v347 = vunpack.c.h.b16 %v90
  %v348 = vunpack.c.l.b16 %v91
  %v349 = vunpack.c.h.b16 %v91
  %v350 = vunpack.c.l.b16 %v92
  %v351 = vunpack.c.h.b16 %v92
  %v352 = vunpack.c.l.b16 %v93
  %v353 = vunpack.c.h.b16 %v93
  %v354 = vunpack.c.l.b16 %v94
  %v355 = vunpack.c.h.b16 %v94
  %v356 = vunpack.c.l.b16 %v95
  %v357 = vunpack.c.h.b16 %v95
  %v358 = vunpack.c.l.b16 %v96
  %v359 = vunpack.c.h.b16 %v96
  %v360 = vunpack.c.l.b16 %v97
  %v361 = vunpack.c.h.b16 %v97
  %v362 = vunpack.c.l.b16 %v98
  %v363 = vunpack.c.h.b16 %v98
  %v364 = vunpack.c.l.b16 %v99
  %v365 = vunpack.c.h.b16 %v99
  %v366 = vunpack.c.l.b16 %v100
  %v367 = vunpack.c.h.b16 %v100
  %v368 = vunpack.c.l.b16 %v101
  %v369 = vunpack.c.h.b16 %v101
  %v370 = vunpack.c.l.b16 %v102
  %v371 = vunpack.c.h.b16 %v102
  %v372 = vunpack.c.l.b16 %v103
  %v373 = vunpack.c.h.b16 %v103
  %v374 = vunpack.c.l.b16 %v104
  %v375 = vunpack.c.h.b16 %v104
  %v376 = vunpack.c.l.b16 %v105
  %v377 = vunpack.c.h.b16 %v105
  %v378 = vunpack.c.l.b16 %v106
  %v379 = vunpack.c.h.b16 %v106
  %v380 = vunpack.c.l.b16 %v107
  %v381 = vunpack.c.h.b16 %v107
  %v382 = vunpack.c.l.b16 %v108
  %v383 = vunpack.c.h.b16 %v108
  %v384 = vunpack.c.l.b16 %v109
  %v385 = vunpack.c.h.b16 %v109
  %v386 = vunpack.c.l.b16 %v110
  %v387 = vunpack.c.h.b16 %v110
  %v388 = vunpack.c.l.b16 %v111
  %v389 = vunpack.c.h.b16 %v111
  %v390 = vunpack.c.l.b16 %v112
  %v391 = vunpack.c.h.b16 %v112
  %v392 = vunpack.c.l.b16 %v113
  %v393 = vunpack.c.h.b16 %v113
  %v394 = vunpack.c.l.b16 %v114
  %v395 = vunpack.c.h.b16 %v114
  %v396 = vunpack.c.l.b16 %v115
  %v397 = vunpack.c.h.b16 %v115
  %v398 = vunpack.c.l.b16 %v116
  %v399 = vunpack.c.h.b16 %v116
  %v400 = vunpack.c.l.b16 %v117
  %v401 = vunpack.c.h.b16 %v117
  %v402 = vunpack.c.l.b16 %v118
  %v403 = vunpack.c.h.b16 %v118
  %v404 = vunpack.c.l.b16 %v119
  %v405 = vunpack.c.h.b16 %v119
  %v406 = vunpack.c.l.b16 %v120
  %v407 = vunpack.c.h.b16 %v120
  %v408 = vunpack.c.l.b16 %v121
  %v409 = vunpack.c.h.b16 %v121
  %v410 = vunpack.c.l.b16 %v122
  %v411 = vunpack.c.h.b16 %v122
  %v412 = vunpack.c.l.b16 %v123
  %v413 = vunpack.c.h.b16 %v123
  %v414 = vunpack.c.l.b16 %v124
  %v415 = vunpack.c.h.b16 %v124
  %v416 = vunpack.c.l.b16 %v125
  %v417 = vunpack.c.h.b16 %v125
  %v418 = vunpack.c.l.b16 %v126
  %v419 = vunpack.c.h.b16 %v126
  %v420 = vunpack.c.l.b16 %v127
  %v421 = vunpack.c.h.b16 %v127
  %v422 = vunpack.c.l.b16 %v128
  %v423 = vunpack.c.h.b16 %v128
  %v424 = vunpack.c.l.b16 %v129
  %v425 = vunpack.c.h.b16 %v129
  %v426 = vunpack.c.l.b16 %v130
  %v427 = vunpack.c.h.b16 %v130
  %v428 = vunpack.c.l.b16 %v131
  %v429 = vunpack.c.h.b16 %v131
  %v430 = vunpack.c.l.b16 %v132
  %v431 = vunpack.c.h.b16 %v132
  %v432 = vunpack.c.l.b16 %v133
  %v433 = vunpack.c.h.b16 %v133
  %v434 = vunpack.c.l.b16 %v134
  %v435 = vunpack.c.h.b16 %v134
  %v436 = vunpack.c.l.b16 %v135
  %v437 = vunpack.c.h.b16 %v135
  %v438 = vunpack.c.l.b16 %v136
  %v439 = vunpack.c.h.b16 %v136
  %v440 = vunpack.c.l.b16 %v137
  %v441 = vunpack.c.h.b16 %v137
  %v442 = vpack.c.b16 %v254, %v250
  %v443 = vpack.c.b16 %v255, %v251
  %v444 = vpack.c.b16 %v256, %v252
  %v445 = vpack.c.b16 %v257, %v253
  %v446 = vpack.c.b16 %v262, %v258
  %v447 = vpack.c.b16 %v263, %v259
  %v448 = vpack.c.b16 %v264, %v260
  %v449 = vpack.c.b16 %v265, %v261
  %v450 = vpack.c.b16 %v270, %v266
  %v451 = vpack.c.b16 %v271, %v267
  %v452 = vpack.c.b16 %v272, %v268
  %v453 = vpack.c.b16 %v273, %v269
  %v454 = vpack.c.b16 %v278, %v274
  %v455 = vpack.c.b16 %v279, %v275
  %v456 = vpack.c.b16 %v280, %v276
  %v457 = vpack.c.b16 %v281, %v277
  %v458 = vpack.c.b16 %v286, %v282
  %v459 = vpack.c.b16 %v287, %v283
  %v460 = vpack.c.b16 %v288, %v284
  %v461 = vpack.c.b16 %v289, %v285
  %v462 = vpack.c.b16 %v294, %v290
  %v463 = vpack.c.b16 %v295, %v291
  %v464 = vpack.c.b16 %v296, %v292
  %v465 = vpack.c.b16 %v297, %v293
  %v466 = vpack.c.b16 %v302, %v298
  %v467 = vpack.c.b16 %v303, %v299
  %v468 = vpack.c.b16 %v304, %v300
  %v469 = vpack.c.b16 %v305, %v301
  %v470 = vpack.c.b16 %v310, %v306
  %v471 = vpack.c.b16 %v311, %v307
  %v472 = vpack.c.b16 %v312, %v308
  %v473 = vpack.c.b16 %v313, %v309
  %v474 = vpack.c.b16 %v318, %v314
  %v475 = vpack.c.b16 %v319, %v315
  %v476 = vpack.c.b16 %v320, %v316
  %v477 = vpack.c.b16 %v321, %v317
  %v478 = vpack.c.b16 %v326, %v322
  %v479 = vpack.c.b16 %v327, %v323
  %v480 = vpack.c.b16 %v328, %v324
  %v481 = vpack.c.b16 %v329, %v325
  %v482 = vpack.c.b16 %v334, %v330
  %v483 = vpack.c.b16 %v335, %v331
  %v484 = vpack.c.b16 %v336, %v332
  %v485 = vpack.c.b16 %v337, %v333
  %v486 = vpack.c.b16 %v342, %v338
  %v487 = vpack.c.b16 %v343, %v339
  %v488 = vpack.c.b16 %v344, %v340
  %v489 = vpack.c.b16 %v345, %v341
  %v490 = vpack.c.b16 %v350, %v346
  %v491 = vpack.c.b16 %v351, %v347
  %v492 = vpack.c.b16 %v352, %v348
  %v493 = vpack.c.b16 %v353, %v349
  %v494 = vpack.c.b16 %v358, %v354
  %v495 = vpack.c.b16 %v359, %v355
  %v496 = vpack.c.b16 %v360, %v356
  %v497 = vpack.c.b16 %v361, %v357
  %v498 = vpack.c.b16 %v366, %v362
  %v499 = vpack.c.b16 %v367, %v363
  %v500 = vpack.c.b16 %v368, %v364
  %v501 = vpack.c.b16 %v369, %v365
  %v502 = vpack.c.b16 %v374, %v370
  %v503 = vpack.c.b16 %v375, %v371
  %v504 = vpack.c.b16 %v376, %v372
  %v505 = vpack.c.b16 %v377, %v373
  %v506 = vpack.c.b16 %v382, %v378
  %v507 = vpack.c.b16 %v383, %v379
  %v508 = vpack.c.b16 %v384, %v380
  %v509 = vpack.c.b16 %v385, %v381
  %v510 = vpack.c.b16 %v390, %v386
  %v511 = vpack.c.b16 %v391, %v387
  %v512 = vpack.c.b16 %v392, %v388
  %v513 = vpack.c.b16 %v393, %v389
  %v514 = vpack.c.b16 %v398, %v394
  %v515 = vpack.c.b16 %v399, %v395
  %v516 = vpack.c.b16 %v400, %v396
  %v517 = vpack.c.b16 %v401, %v397
  %v518 = vpack.c.b16 %v406, %v402
  %v519 = vpack.c.b16 %v407, %v403
  %v520 = vpack.c.b16 %v408, %v404
  %v521 = vpack.c.b16 %v409, %v405
  %v522 = vpack.c.b16 %v414, %v410
  %v523 = vpack.c.b16 %v415, %v411
  %v524 = vpack.c.b16 %v416, %v412
  %v525 = vpack.c.b16 %v417, %v413
  %v526 = vpack.c.b16 %v422, %v418
  %v527 = vpack.c.b16 %v423, %v419
  %v528 = vpack.c.b16 %v424, %v420
  %v529 = vpack.c.b16 %v425, %v421
  %v530 = vpack.c.b16 %v430, %v426
  %v531 = vpack.c.b16 %v431, %v427
  %v532 = vpack.c.b16 %v432, %v428
  %v533 = vpack.c.b16 %v433, %v429
  %v534 = vpack.c.b16 %v438, %v434
  %v535 = vpack.c.b16 %v439, %v435
  %v536 = vpack.c.b16 %v440, %v436
  %v537 = vpack.c.b16 %v441, %v437
  %634 = vmatprep.subr.bf16.mxu0 %v471
  %635 = vmatpush1.bf16.msra.mxu0 %v470
  %636 = vmatprep.subr.bf16.mxu0 %v467
  %637 = vmatpush1.bf16.msra.mxu0 %v466
  %638 = vmatprep.subr.bf16.mxu0 %v463
  %639 = vmatpush1.bf16.msra.mxu0 %v462
  %640 = vmatprep.subr.bf16.mxu0 %v459
  %641 = vmatpush1.bf16.msra.mxu0 %v458
  %642 = vmatprep.subr.bf16.mxu0 %v455
  %643 = vmatpush1.bf16.msra.mxu0 %v454
  %644 = vmatprep.subr.bf16.mxu0 %v451
  %645 = vmatpush1.bf16.msra.mxu0 %v450
  %646 = vmatprep.subr.bf16.mxu0 %v447
  %647 = vmatpush1.bf16.msra.mxu0 %v446
  %648 = vmatprep.subr.bf16.mxu0 %v443
  %649 = vmatpush1.bf16.msra.mxu0 %v442
  %650 = vmatprep.subr.bf16.mxu0 %v503
  %651 = vmatpush2.bf16.msra.mxu0 %v502
  %652 = vmatprep.subr.bf16.mxu0 %v499
  %653 = vmatpush2.bf16.msra.mxu0 %v498
  %654 = vmatprep.subr.bf16.mxu0 %v495
  %655 = vmatpush2.bf16.msra.mxu0 %v494
  %656 = vmatprep.subr.bf16.mxu0 %v491
  %657 = vmatpush2.bf16.msra.mxu0 %v490
  %658 = vmatprep.subr.bf16.mxu0 %v487
  %659 = vmatpush2.bf16.msra.mxu0 %v486
  %660 = vmatprep.subr.bf16.mxu0 %v483
  %661 = vmatpush2.bf16.msra.mxu0 %v482
  %662 = vmatprep.subr.bf16.mxu0 %v479
  %663 = vmatpush2.bf16.msra.mxu0 %v478
  %664 = vmatprep.subr.bf16.mxu0 %v475
  %665 = vmatpush2.bf16.msra.mxu0 %v474
  %666 = vmatprep.mubr.bf16.mxu0 %v149
  %667 = vmatmul.mubr.bf16.gmra.mxu0 %v148
  %v668 = vpop.f32.mrf.mxu0
  %v669 = vadd.f32 0.0, %v668
  %v670 = vpop.f32.mrf.mxu0
  %v671 = vadd.f32 0.0, %v670
  %v672 = vpop.f32.mrf.mxu0
  %v673 = vadd.f32 0.0, %v672
  %v674 = vpop.f32.mrf.mxu0
  %v675 = vadd.f32 0.0, %v674
  %676 = vdwg.mxu0
  %677 = vmatprep.subr.bf16.mxu0 %v535
  %678 = vmatpush1.bf16.msra.mxu0 %v534
  %679 = vmatprep.subr.bf16.mxu0 %v531
  %680 = vmatpush1.bf16.msra.mxu0 %v530
  %681 = vmatprep.subr.bf16.mxu0 %v527
  %682 = vmatpush1.bf16.msra.mxu0 %v526
  %683 = vmatprep.subr.bf16.mxu0 %v523
  %684 = vmatpush1.bf16.msra.mxu0 %v522
  %685 = vmatprep.subr.bf16.mxu0 %v519
  %686 = vmatpush1.bf16.msra.mxu0 %v518
  %687 = vmatprep.subr.bf16.mxu0 %v515
  %688 = vmatpush1.bf16.msra.mxu0 %v514
  %689 = vmatprep.subr.bf16.mxu0 %v511
  %690 = vmatpush1.bf16.msra.mxu0 %v510
  %691 = vmatprep.subr.bf16.mxu0 %v507
  %692 = vmatpush1.bf16.msra.mxu0 %v506
  %693 = vmatprep.subr.bf16.mxu0 0
  %694 = vmatpush2.bf16.msra.mxu0 0
  %695 = vmatprep.subr.bf16.mxu0 0
  %696 = vmatpush2.bf16.msra.mxu0 0
  %697 = vmatprep.subr.bf16.mxu0 0
  %698 = vmatpush2.bf16.msra.mxu0 0
  %699 = vmatprep.subr.bf16.mxu0 0
  %700 = vmatpush2.bf16.msra.mxu0 0
  %701 = vmatprep.subr.bf16.mxu0 0
  %702 = vmatpush2.bf16.msra.mxu0 0
  %703 = vmatprep.subr.bf16.mxu0 0
  %704 = vmatpush2.bf16.msra.mxu0 0
  %705 = vmatprep.subr.bf16.mxu0 0
  %706 = vmatpush2.bf16.msra.mxu0 0
  %707 = vmatprep.subr.bf16.mxu0 0
  %708 = vmatpush2.bf16.msra.mxu0 0
  %709 = vmatprep.mubr.bf16.mxu0 0
  %710 = vmatmul.mubr.bf16.gmra.mxu0 %v150
  %v711 = vpop.f32.mrf.mxu0
  %v712 = vadd.f32 %v669, %v711
  %v713 = vpop.f32.mrf.mxu0
  %v714 = vadd.f32 %v671, %v713
  %v715 = vpop.f32.mrf.mxu0
  %v716 = vadd.f32 %v673, %v715
  %v717 = vpop.f32.mrf.mxu0
  %v718 = vadd.f32 %v675, %v717
  %719 = vdwg.mxu0
  %720 = vmatprep.subr.bf16.mxu0 %v473
  %721 = vmatpush1.bf16.msra.mxu0 %v472
  %722 = vmatprep.subr.bf16.mxu0 %v469
  %723 = vmatpush1.bf16.msra.mxu0 %v468
  %724 = vmatprep.subr.bf16.mxu0 %v465
  %725 = vmatpush1.bf16.msra.mxu0 %v464
  %726 = vmatprep.subr.bf16.mxu0 %v461
  %727 = vmatpush1.bf16.msra.mxu0 %v460
  %728 = vmatprep.subr.bf16.mxu0 %v457
  %729 = vmatpush1.bf16.msra.mxu0 %v456
  %730 = vmatprep.subr.bf16.mxu0 %v453
  %731 = vmatpush1.bf16.msra.mxu0 %v452
  %732 = vmatprep.subr.bf16.mxu0 %v449
  %733 = vmatpush1.bf16.msra.mxu0 %v448
  %734 = vmatprep.subr.bf16.mxu0 %v445
  %735 = vmatpush1.bf16.msra.mxu0 %v444
  %736 = vmatprep.subr.bf16.mxu0 %v505
  %737 = vmatpush2.bf16.msra.mxu0 %v504
  %738 = vmatprep.subr.bf16.mxu0 %v501
  %739 = vmatpush2.bf16.msra.mxu0 %v500
  %740 = vmatprep.subr.bf16.mxu0 %v497
  %741 = vmatpush2.bf16.msra.mxu0 %v496
  %742 = vmatprep.subr.bf16.mxu0 %v493
  %743 = vmatpush2.bf16.msra.mxu0 %v492
  %744 = vmatprep.subr.bf16.mxu0 %v489
  %745 = vmatpush2.bf16.msra.mxu0 %v488
  %746 = vmatprep.subr.bf16.mxu0 %v485
  %747 = vmatpush2.bf16.msra.mxu0 %v484
  %748 = vmatprep.subr.bf16.mxu0 %v481
  %749 = vmatpush2.bf16.msra.mxu0 %v480
  %750 = vmatprep.subr.bf16.mxu0 %v477
  %751 = vmatpush2.bf16.msra.mxu0 %v476
  %752 = vmatprep.mubr.bf16.mxu0 %v149
  %753 = vmatmul.mubr.bf16.gmra.mxu0 %v148
  %v754 = vpop.f32.mrf.mxu0
  %v755 = vadd.f32 0.0, %v754
  %v756 = vpop.f32.mrf.mxu0
  %v757 = vadd.f32 0.0, %v756
  %v758 = vpop.f32.mrf.mxu0
  %v759 = vadd.f32 0.0, %v758
  %v760 = vpop.f32.mrf.mxu0
  %v761 = vadd.f32 0.0, %v760
  %762 = vdwg.mxu0
  %763 = vmatprep.subr.bf16.mxu0 %v537
  %764 = vmatpush1.bf16.msra.mxu0 %v536
  %765 = vmatprep.subr.bf16.mxu0 %v533
  %766 = vmatpush1.bf16.msra.mxu0 %v532
  %767 = vmatprep.subr.bf16.mxu0 %v529
  %768 = vmatpush1.bf16.msra.mxu0 %v528
  %769 = vmatprep.subr.bf16.mxu0 %v525
  %770 = vmatpush1.bf16.msra.mxu0 %v524
  %771 = vmatprep.subr.bf16.mxu0 %v521
  %772 = vmatpush1.bf16.msra.mxu0 %v520
  %773 = vmatprep.subr.bf16.mxu0 %v517
  %774 = vmatpush1.bf16.msra.mxu0 %v516
  %775 = vmatprep.subr.bf16.mxu0 %v513
  %776 = vmatpush1.bf16.msra.mxu0 %v512
  %777 = vmatprep.subr.bf16.mxu0 %v509
  %778 = vmatpush1.bf16.msra.mxu0 %v508
  %779 = vmatprep.subr.bf16.mxu0 0
  %780 = vmatpush2.bf16.msra.mxu0 0
  %781 = vmatprep.subr.bf16.mxu0 0
  %782 = vmatpush2.bf16.msra.mxu0 0
  %783 = vmatprep.subr.bf16.mxu0 0
  %784 = vmatpush2.bf16.msra.mxu0 0
  %785 = vmatprep.subr.bf16.mxu0 0
  %786 = vmatpush2.bf16.msra.mxu0 0
  %787 = vmatprep.subr.bf16.mxu0 0
  %788 = vmatpush2.bf16.msra.mxu0 0
  %789 = vmatprep.subr.bf16.mxu0 0
  %790 = vmatpush2.bf16.msra.mxu0 0
  %791 = vmatprep.subr.bf16.mxu0 0
  %792 = vmatpush2.bf16.msra.mxu0 0
  %793 = vmatprep.subr.bf16.mxu0 0
  %794 = vmatpush2.bf16.msra.mxu0 0
  %795 = vmatprep.mubr.bf16.mxu0 0
  %796 = vmatmul.mubr.bf16.gmra.mxu0 %v150
  %v797 = vpop.f32.mrf.mxu0
  %v798 = vadd.f32 %v755, %v797
  %v799 = vpop.f32.mrf.mxu0
  %v800 = vadd.f32 %v757, %v799
  %v801 = vpop.f32.mrf.mxu0
  %v802 = vadd.f32 %v759, %v801
  %v803 = vpop.f32.mrf.mxu0
  %v804 = vadd.f32 %v761, %v803
  %805 = vdwg.mxu0
  %v806 = vadd.f32 %v30, %v712
  %v807 = vadd.f32 %v31, %v714
  %v808 = vadd.f32 %v32, %v798
  %v809 = vadd.f32 %v33, %v800
  %v810 = vadd.f32 %v34, %v716
  %v811 = vadd.f32 %v35, %v718
  %v812 = vadd.f32 %v36, %v802
  %v813 = vadd.f32 %v37, %v804
  %814 = vst [vmem:[#allocation2] sm:$0xff] %v806
  %815 = vst [vmem:[#allocation2 + $0x8] sm:$0xff] %v807
  %816 = vst [vmem:[#allocation2 + $0x10] sm:$0xff] %v808
  %817 = vst [vmem:[#allocation2 + $0x18] sm:$0xff] %v809
  %818 = vst [vmem:[#allocation2 + $0x20] sm:$0xff] %v810
  %819 = vst [vmem:[#allocation2 + $0x28] sm:$0xff] %v811
  %820 = vst [vmem:[#allocation2 + $0x30] sm:$0xff] %v812
  %821 = vst [vmem:[#allocation2 + $0x38] sm:$0xff] %v813
  // Predicated region
  $region22: #{net_forward.13} parent=0 // pred_check
    %p822 = pneg %p18
  $region23: #{net_forward.13} parent=0 // pred_check_branch
    %824 = sbr.rel (%p822) target = $region25
  $region24: #{net_forward.13} parent=0 // pred_region
    %v825 = vld [vmem:[#allocation2] sm:$0xff]
    %v826 = vld [vmem:[#allocation2 + $0x8] sm:$0xff]
    %v827 = vld [vmem:[#allocation2 + $0x10] sm:$0xff]
    %v828 = vld [vmem:[#allocation2 + $0x18] sm:$0xff]
    %v829 = vld [vmem:[#allocation2 + $0x20] sm:$0xff]
    %v830 = vld [vmem:[#allocation2 + $0x28] sm:$0xff]
    %v831 = vld [vmem:[#allocation2 + $0x30] sm:$0xff]
    %v832 = vld [vmem:[#allocation2 + $0x38] sm:$0xff]
    %v833 = vadd.f32 %v825, %v829
    %v834 = vrot.slane %v833, 4
    %v835 = vadd.f32 %v833, %v834
    %v836 = vrot.slane %v835, 2
    %v837 = vadd.f32 %v835, %v836
    %v838 = vrot.slane %v837, 1
    %v839 = vadd.f32 %v837, %v838
    %v840 = vadd.f32 %v826, %v830
    %v841 = vrot.slane %v840, 4
    %v842 = vadd.f32 %v840, %v841
    %v843 = vrot.slane %v842, 2
    %v844 = vadd.f32 %v842, %v843
    %v845 = vrot.slane %v844, 1
    %v846 = vadd.f32 %v844, %v845
    %v847 = vadd.f32 %v827, %v831
    %v848 = vrot.slane %v847, 4
    %v849 = vadd.f32 %v847, %v848
    %v850 = vrot.slane %v849, 2
    %v851 = vadd.f32 %v849, %v850
    %v852 = vrot.slane %v851, 1
    %v853 = vadd.f32 %v851, %v852
    %v854 = vadd.f32 %v828, %v832
    %v855 = vrot.slane %v854, 4
    %v856 = vadd.f32 %v854, %v855
    %v857 = vrot.slane %v856, 2
    %v858 = vadd.f32 %v856, %v857
    %v859 = vrot.slane %v858, 1
    %v860 = vadd.f32 %v858, %v859
    %v861 = vmul.f32 %v825, %v825
    %v862 = vmul.f32 %v826, %v826
    %v863 = vmul.f32 %v827, %v827
    %v864 = vmul.f32 %v828, %v828
    %v865 = vmul.f32 %v829, %v829
    %v866 = vmul.f32 %v830, %v830
    %v867 = vmul.f32 %v831, %v831
    %v868 = vmul.f32 %v832, %v832
    %v869 = vadd.f32 %v861, %v865
    %v870 = vrot.slane %v869, 4
    %v871 = vadd.f32 %v869, %v870
    %v872 = vrot.slane %v871, 2
    %v873 = vadd.f32 %v871, %v872
    %v874 = vrot.slane %v873, 1
    %v875 = vadd.f32 %v873, %v874
    %v876 = vadd.f32 %v862, %v866
    %v877 = vrot.slane %v876, 4
    %v878 = vadd.f32 %v876, %v877
    %v879 = vrot.slane %v878, 2
    %v880 = vadd.f32 %v878, %v879
    %v881 = vrot.slane %v880, 1
    %v882 = vadd.f32 %v880, %v881
    %v883 = vadd.f32 %v863, %v867
    %v884 = vrot.slane %v883, 4
    %v885 = vadd.f32 %v883, %v884
    %v886 = vrot.slane %v885, 2
    %v887 = vadd.f32 %v885, %v886
    %v888 = vrot.slane %v887, 1
    %v889 = vadd.f32 %v887, %v888
    %v890 = vadd.f32 %v864, %v868
    %v891 = vrot.slane %v890, 4
    %v892 = vadd.f32 %v890, %v891
    %v893 = vrot.slane %v892, 2
    %v894 = vadd.f32 %v892, %v893
    %v895 = vrot.slane %v894, 1
    %v896 = vadd.f32 %v894, %v895
    %v897 = vadd.f32 %v839, 0.0
    %v898 = vadd.f32 %v897, %v846
    %v899 = vadd.f32 %v898, %v853
    %v900 = vadd.f32 %v899, %v860
    %v901 = vadd.f32 %v875, 0.0
    %v902 = vadd.f32 %v901, %v882
    %v903 = vadd.f32 %v902, %v889
    %v904 = vadd.f32 %v903, %v896
    %v905 = vmul.f32 %v900, 0.03125
    %v906 = vmul.f32 %v904, 0.03125
    %v907 = vmul.f32 %v905, %v905
    %v908 = vsub.f32 %v906, %v907
    %v909 = vmax.f32 %v908, 0.0
    %v910 = vld [vmem:[%s2] sm:$0x1]
    %v911 = vadd.f32 %v909, 1e-05
    %v912 = vrsqrt.pop %v911
    %v913 = vmul.f32 %v910, %v912
    %v914 = vld [vmem:[%s3] sm:$0x1]
    %v915 = vmul.f32 %v905, %v913
    %v916 = vsub.f32 %v914, %v915
    %v917 = vlaneseq
    %v918 = vshrl.u32 %v917, 7
    %v919 = vsub.s32 0, %v918
    %v920 = vrot.slane %v913, %v919
    %v921 = vmul.f32 %v825, %v920
    %v922 = vmul.f32 %v826, %v920
    %v923 = vmul.f32 %v827, %v920
    %v924 = vmul.f32 %v828, %v920
    %v925 = vmul.f32 %v829, %v920
    %v926 = vmul.f32 %v830, %v920
    %v927 = vmul.f32 %v831, %v920
    %v928 = vmul.f32 %v832, %v920
    %v929 = vlaneseq
    %v930 = vshrl.u32 %v929, 7
    %v931 = vsub.s32 0, %v930
    %v932 = vrot.slane %v916, %v931
    %v933 = vadd.f32 %v921, %v932
    %v934 = vadd.f32 %v922, %v932
    %v935 = vadd.f32 %v923, %v932
    %v936 = vadd.f32 %v924, %v932
    %v937 = vadd.f32 %v925, %v932
    %v938 = vadd.f32 %v926, %v932
    %v939 = vadd.f32 %v927, %v932
    %v940 = vadd.f32 %v928, %v932
    %vm941 = vcmp.ge.f32.partialorder %v933, 0.0
    %vm942 = vcmp.ge.f32.partialorder %v934, 0.0
    %vm943 = vcmp.ge.f32.partialorder %v935, 0.0
    %vm944 = vcmp.ge.f32.partialorder %v936, 0.0
    %vm945 = vcmp.ge.f32.partialorder %v937, 0.0
    %vm946 = vcmp.ge.f32.partialorder %v938, 0.0
    %vm947 = vcmp.ge.f32.partialorder %v939, 0.0
    %vm948 = vcmp.ge.f32.partialorder %v940, 0.0
    %v949 = vmul.f32 %v933, 0.2
    %v950 = vmul.f32 %v934, 0.2
    %v951 = vmul.f32 %v935, 0.2
    %v952 = vmul.f32 %v936, 0.2
    %v953 = vmul.f32 %v937, 0.2
    %v954 = vmul.f32 %v938, 0.2
    %v955 = vmul.f32 %v939, 0.2
    %v956 = vmul.f32 %v940, 0.2
    %v957 = vsel %vm941, %v933, %v949
    %v958 = vsel %vm942, %v934, %v950
    %v959 = vsel %vm943, %v935, %v951
    %v960 = vsel %vm944, %v936, %v952
    %v961 = vsel %vm945, %v937, %v953
    %v962 = vsel %vm946, %v938, %v954
    %v963 = vsel %vm947, %v939, %v955
    %v964 = vsel %vm948, %v940, %v956
    %965 = vst [vmem:[%s4] sm:$0xff] %v957
    %966 = vst [vmem:[%s4 + $0x8] sm:$0xff] %v958
    %967 = vst [vmem:[%s4 + $0x10] sm:$0xff] %v959
    %968 = vst [vmem:[%s4 + $0x18] sm:$0xff] %v960
    %969 = vst [vmem:[%s4 + $0x20] sm:$0xff] %v961
    %970 = vst [vmem:[%s4 + $0x28] sm:$0xff] %v962
    %971 = vst [vmem:[%s4 + $0x30] sm:$0xff] %v963
    %972 = vst [vmem:[%s4 + $0x38] sm:$0xff] %v964
  $region25: #{net_forward.13} parent=0 // pred_fallthru
    _
  // Predicated region
  $region26: #{net_forward.13} parent=0 // pred_check
    _
  $region27: #{net_forward.13} parent=0 // pred_check_branch
    %974 = sbr.rel (0) target = $region29
  $region28: #{net_forward.13} parent=0 // pred_region
    _
  $region29: #{net_forward.13} parent=0 // pred_fallthru
    _
  // Predicated region
  $region30: #{net_forward.13} parent=0 // pred_check
    _
  $region31: #{net_forward.13} parent=0 // pred_check_branch
    %976 = sbr.rel (0) target = $region33
  $region32: #{net_forward.13} parent=0 // pred_region
    _
  $region33: #{net_forward.13} parent=0 // pred_fallthru
    _

// kernel: net_forward.14
$region0: #{net_forward.14}
  #allocation0 [shape = 'u32[]', space=smem, size = 0x4, offset = 0x4, fixed_abs, tag = 'smem constant byte address 0x4 - core index']
  #allocation1 [shape = 'u32[144,128]{1,0:T(1,128)}', space=vmem, size = 0x12000, scoped, tag = 'internal scratch']
  #allocation2 [shape = 'f32[32,512]{1,0:T(8,128)}', space=vmem, size = 0x10000, scoped, tag = 'scratch operand']
  %s0 = inlined_call_operand.vmem [shape: bf16[32,256], index: 0, kind: input, shape index: {}]
  %s1 = inlined_call_operand.vmem [shape: bf16[256,512], index: 1, kind: input, shape index: {}]
  %s2 = inlined_call_operand.vmem [shape: f32[1,128], index: 2, kind: input, shape index: {}]
  %s3 = inlined_call_operand.vmem [shape: f32[1,128], index: 3, kind: input, shape index: {}]
  %s4 = inlined_call_operand.vmem [shape: f32[32,512], index: 4, kind: output, shape index: {}]
  %s5 = sld [smem:[#allocation0]]
  $region34: #{net_forward.14} parent=0
    _
  %s7 = ssub.s32 1, %s5
  %s8 = scalar_select 0, %s7, %s5
  // Predicated region
  $region2: #{net_forward.14} parent=0 // pred_check
    _
  $region3: #{net_forward.14} parent=0 // pred_check_branch
    %10 = sbr.rel (0) target = $region5
  $region4: #{net_forward.14} parent=0 // pred_region
    _
  $region5: #{net_forward.14} parent=0 // pred_fallthru
    _
  // Predicated region
  $region6: #{net_forward.14} parent=0 // pred_check
    _
  $region7: #{net_forward.14} parent=0 // pred_check_branch
    %12 = sbr.rel (0) target = $region9
  $region8: #{net_forward.14} parent=0 // pred_region
    _
  $region9: #{net_forward.14} parent=0 // pred_fallthru
    _
  // Predicated region
  $region10: #{net_forward.14} parent=0 // pred_check
    _
  $region11: #{net_forward.14} parent=0 // pred_check_branch
    %14 = sbr.rel (0) target = $region13
  $region12: #{net_forward.14} parent=0 // pred_region
    _
  $region13: #{net_forward.14} parent=0 // pred_fallthru
    _
  // Predicated region
  $region14: #{net_forward.14} parent=0 // pred_check
    _
  $region15: #{net_forward.14} parent=0 // pred_check_branch
    %16 = sbr.rel (0) target = $region17
  $region16: #{net_forward.14} parent=0 // pred_region
    _
  $region17: #{net_forward.14} parent=0 // pred_fallthru
    _
  %p17 = scmp.eq.s32.totalorder 0, 0
  // Predicated region
  $region18: #{net_forward.14} parent=0 // pred_check
    %p18 = pneg %p17
  $region19: #{net_forward.14} parent=0 // pred_check_branch
    %20 = sbr.rel (%p18) target = $region21
  $region20: #{net_forward.14} parent=0 // pred_region
    %21 = vst [vmem:[#allocation2] sm:$0xff] 0.0
    %22 = vst [vmem:[#allocation2 + $0x8] sm:$0xff] 0.0
    %23 = vst [vmem:[#allocation2 + $0x10] sm:$0xff] 0.0
    %24 = vst [vmem:[#allocation2 + $0x18] sm:$0xff] 0.0
    %25 = vst [vmem:[#allocation2 + $0x20] sm:$0xff] 0.0
    %26 = vst [vmem:[#allocation2 + $0x28] sm:$0xff] 0.0
    %27 = vst [vmem:[#allocation2 + $0x30] sm:$0xff] 0.0
    %28 = vst [vmem:[#allocation2 + $0x38] sm:$0xff] 0.0
    %29 = vst [vmem:[#allocation2 + $0x40] sm:$0xff] 0.0
    %30 = vst [vmem:[#allocation2 + $0x48] sm:$0xff] 0.0
    %31 = vst [vmem:[#allocation2 + $0x50] sm:$0xff] 0.0
    %32 = vst [vmem:[#allocation2 + $0x58] sm:$0xff] 0.0
    %33 = vst [vmem:[#allocation2 + $0x60] sm:$0xff] 0.0
    %34 = vst [vmem:[#allocation2 + $0x68] sm:$0xff] 0.0
    %35 = vst [vmem:[#allocation2 + $0x70] sm:$0xff] 0.0
    %36 = vst [vmem:[#allocation2 + $0x78] sm:$0xff] 0.0
  $region21: #{net_forward.14} parent=0 // pred_fallthru
    _
  %v37 = vld [vmem:[#allocation2] sm:$0xff]
  %v38 = vld [vmem:[#allocation2 + $0x8] sm:$0xff]
  %v39 = vld [vmem:[#allocation2 + $0x10] sm:$0xff]
  %v40 = vld [vmem:[#allocation2 + $0x18] sm:$0xff]
  %v41 = vld [vmem:[#allocation2 + $0x20] sm:$0xff]
  %v42 = vld [vmem:[#allocation2 + $0x28] sm:$0xff]
  %v43 = vld [vmem:[#allocation2 + $0x30] sm:$0xff]
  %v44 = vld [vmem:[#allocation2 + $0x38] sm:$0xff]
  %v45 = vld [vmem:[#allocation2 + $0x40] sm:$0xff]
  %v46 = vld [vmem:[#allocation2 + $0x48] sm:$0xff]
  %v47 = vld [vmem:[#allocation2 + $0x50] sm:$0xff]
  %v48 = vld [vmem:[#allocation2 + $0x58] sm:$0xff]
  %v49 = vld [vmem:[#allocation2 + $0x60] sm:$0xff]
  %v50 = vld [vmem:[#allocation2 + $0x68] sm:$0xff]
  %v51 = vld [vmem:[#allocation2 + $0x70] sm:$0xff]
  %v52 = vld [vmem:[#allocation2 + $0x78] sm:$0xff]
  %v53 = vld [vmem:[%s0] sm:$0xff]
  %v54 = vld [vmem:[%s0 + $0x8] sm:$0xff]
  %v55 = vld [vmem:[%s0 + $0x10] sm:$0xff]
  %v56 = vld [vmem:[%s0 + $0x18] sm:$0xff]
  %v57 = vld [vmem:[%s1] sm:$0xff]
  %v58 = vld [vmem:[%s1 + $0x8] sm:$0xff]
  %v59 = vld [vmem:[%s1 + $0x10] sm:$0xff]
  %v60 = vld [vmem:[%s1 + $0x18] sm:$0xff]
  %v61 = vld [vmem:[%s1 + $0x20] sm:$0xff]
  %v62 = vld [vmem:[%s1 + $0x28] sm:$0xff]
  %v63 = vld [vmem:[%s1 + $0x30] sm:$0xff]
  %v64 = vld [vmem:[%s1 + $0x38] sm:$0xff]
  %v65 = vld [vmem:[%s1 + $0x40] sm:$0xff]
  %v66 = vld [vmem:[%s1 + $0x48] sm:$0xff]
  %v67 = vld [vmem:[%s1 + $0x50] sm:$0xff]
  %v68 = vld [vmem:[%s1 + $0x58] sm:$0xff]
  %v69 = vld [vmem:[%s1 + $0x60] sm:$0xff]
  %v70 = vld [vmem:[%s1 + $0x68] sm:$0xff]
  %v71 = vld [vmem:[%s1 + $0x70] sm:$0xff]
  %v72 = vld [vmem:[%s1 + $0x78] sm:$0xff]
  %v73 = vld [vmem:[%s1 + $0x80] sm:$0xff]
  %v74 = vld [vmem:[%s1 + $0x88] sm:$0xff]
  %v75 = vld [vmem:[%s1 + $0x90] sm:$0xff]
  %v76 = vld [vmem:[%s1 + $0x98] sm:$0xff]
  %v77 = vld [vmem:[%s1 + $0xa0] sm:$0xff]
  %v78 = vld [vmem:[%s1 + $0xa8] sm:$0xff]
  %v79 = vld [vmem:[%s1 + $0xb0] sm:$0xff]
  %v80 = vld [vmem:[%s1 + $0xb8] sm:$0xff]
  %v81 = vld [vmem:[%s1 + $0xc0] sm:$0xff]
  %v82 = vld [vmem:[%s1 + $0xc8] sm:$0xff]
  %v83 = vld [vmem:[%s1 + $0xd0] sm:$0xff]
  %v84 = vld [vmem:[%s1 + $0xd8] sm:$0xff]
  %v85 = vld [vmem:[%s1 + $0xe0] sm:$0xff]
  %v86 = vld [vmem:[%s1 + $0xe8] sm:$0xff]
  %v87 = vld [vmem:[%s1 + $0xf0] sm:$0xff]
  %v88 = vld [vmem:[%s1 + $0xf8] sm:$0xff]
  %v89 = vld [vmem:[%s1 + $0x100] sm:$0xff]
  %v90 = vld [vmem:[%s1 + $0x108] sm:$0xff]
  %v91 = vld [vmem:[%s1 + $0x110] sm:$0xff]
  %v92 = vld [vmem:[%s1 + $0x118] sm:$0xff]
  %v93 = vld [vmem:[%s1 + $0x120] sm:$0xff]
  %v94 = vld [vmem:[%s1 + $0x128] sm:$0xff]
  %v95 = vld [vmem:[%s1 + $0x130] sm:$0xff]
  %v96 = vld [vmem:[%s1 + $0x138] sm:$0xff]
  %v97 = vld [vmem:[%s1 + $0x140] sm:$0xff]
  %v98 = vld [vmem:[%s1 + $0x148] sm:$0xff]
  %v99 = vld [vmem:[%s1 + $0x150] sm:$0xff]
  %v100 = vld [vmem:[%s1 + $0x158] sm:$0xff]
  %v101 = vld [vmem:[%s1 + $0x160] sm:$0xff]
  %v102 = vld [vmem:[%s1 + $0x168] sm:$0xff]
  %v103 = vld [vmem:[%s1 + $0x170] sm:$0xff]
  %v104 = vld [vmem:[%s1 + $0x178] sm:$0xff]
  %v105 = vld [vmem:[%s1 + $0x180] sm:$0xff]
  %v106 = vld [vmem:[%s1 + $0x188] sm:$0xff]
  %v107 = vld [vmem:[%s1 + $0x190] sm:$0xff]
  %v108 = vld [vmem:[%s1 + $0x198] sm:$0xff]
  %v109 = vld [vmem:[%s1 + $0x1a0] sm:$0xff]
  %v110 = vld [vmem:[%s1 + $0x1a8] sm:$0xff]
  %v111 = vld [vmem:[%s1 + $0x1b0] sm:$0xff]
  %v112 = vld [vmem:[%s1 + $0x1b8] sm:$0xff]
  %v113 = vld [vmem:[%s1 + $0x1c0] sm:$0xff]
  %v114 = vld [vmem:[%s1 + $0x1c8] sm:$0xff]
  %v115 = vld [vmem:[%s1 + $0x1d0] sm:$0xff]
  %v116 = vld [vmem:[%s1 + $0x1d8] sm:$0xff]
  %v117 = vld [vmem:[%s1 + $0x1e0] sm:$0xff]
  %v118 = vld [vmem:[%s1 + $0x1e8] sm:$0xff]
  %v119 = vld [vmem:[%s1 + $0x1f0] sm:$0xff]
  %v120 = vld [vmem:[%s1 + $0x1f8] sm:$0xff]
  %v125 = vunpack.c.l.b16 %v53
  %v126 = vunpack.c.h.b16 %v53
  %v127 = vunpack.c.l.b16 %v54
  %v128 = vunpack.c.h.b16 %v54
  %v129 = vunpack.c.l.b16 %v55
  %v130 = vunpack.c.h.b16 %v55
  %v131 = vunpack.c.l.b16 %v56
  %v132 = vunpack.c.h.b16 %v56
  %v133 = vpack.c.b16 %v127, %v125
  %v134 = vpack.c.b16 %v128, %v126
  %v135 = vpack.c.b16 %v131, %v129
  %v136 = vpack.c.b16 %v132, %v130
  %v205 = vunpack.c.l.b16 %v57
  %v206 = vunpack.c.h.b16 %v57
  %v207 = vunpack.c.l.b16 %v58
  %v208 = vunpack.c.h.b16 %v58
  %v209 = vunpack.c.l.b16 %v59
  %v210 = vunpack.c.h.b16 %v59
  %v211 = vunpack.c.l.b16 %v60
  %v212 = vunpack.c.h.b16 %v60
  %v213 = vunpack.c.l.b16 %v61
  %v214 = vunpack.c.h.b16 %v61
  %v215 = vunpack.c.l.b16 %v62
  %v216 = vunpack.c.h.b16 %v62
  %v217 = vunpack.c.l.b16 %v63
  %v218 = vunpack.c.h.b16 %v63
  %v219 = vunpack.c.l.b16 %v64
  %v220 = vunpack.c.h.b16 %v64
  %v221 = vunpack.c.l.b16 %v65
  %v222 = vunpack.c.h.b16 %v65
  %v223 = vunpack.c.l.b16 %v66
  %v224 = vunpack.c.h.b16 %v66
  %v225 = vunpack.c.l.b16 %v67
  %v226 = vunpack.c.h.b16 %v67
  %v227 = vunpack.c.l.b16 %v68
  %v228 = vunpack.c.h.b16 %v68
  %v229 = vunpack.c.l.b16 %v69
  %v230 = vunpack.c.h.b16 %v69
  %v231 = vunpack.c.l.b16 %v70
  %v232 = vunpack.c.h.b16 %v70
  %v233 = vunpack.c.l.b16 %v71
  %v234 = vunpack.c.h.b16 %v71
  %v235 = vunpack.c.l.b16 %v72
  %v236 = vunpack.c.h.b16 %v72
  %v237 = vunpack.c.l.b16 %v73
  %v238 = vunpack.c.h.b16 %v73
  %v239 = vunpack.c.l.b16 %v74
  %v240 = vunpack.c.h.b16 %v74
  %v241 = vunpack.c.l.b16 %v75
  %v242 = vunpack.c.h.b16 %v75
  %v243 = vunpack.c.l.b16 %v76
  %v244 = vunpack.c.h.b16 %v76
  %v245 = vunpack.c.l.b16 %v77
  %v246 = vunpack.c.h.b16 %v77
  %v247 = vunpack.c.l.b16 %v78
  %v248 = vunpack.c.h.b16 %v78
  %v249 = vunpack.c.l.b16 %v79
  %v250 = vunpack.c.h.b16 %v79
  %v251 = vunpack.c.l.b16 %v80
  %v252 = vunpack.c.h.b16 %v80
  %v253 = vunpack.c.l.b16 %v81
  %v254 = vunpack.c.h.b16 %v81
  %v255 = vunpack.c.l.b16 %v82
  %v256 = vunpack.c.h.b16 %v82
  %v257 = vunpack.c.l.b16 %v83
  %v258 = vunpack.c.h.b16 %v83
  %v259 = vunpack.c.l.b16 %v84
  %v260 = vunpack.c.h.b16 %v84
  %v261 = vunpack.c.l.b16 %v85
  %v262 = vunpack.c.h.b16 %v85
  %v263 = vunpack.c.l.b16 %v86
  %v264 = vunpack.c.h.b16 %v86
  %v265 = vunpack.c.l.b16 %v87
  %v266 = vunpack.c.h.b16 %v87
  %v267 = vunpack.c.l.b16 %v88
  %v268 = vunpack.c.h.b16 %v88
  %v269 = vunpack.c.l.b16 %v89
  %v270 = vunpack.c.h.b16 %v89
  %v271 = vunpack.c.l.b16 %v90
  %v272 = vunpack.c.h.b16 %v90
  %v273 = vunpack.c.l.b16 %v91
  %v274 = vunpack.c.h.b16 %v91
  %v275 = vunpack.c.l.b16 %v92
  %v276 = vunpack.c.h.b16 %v92
  %v277 = vunpack.c.l.b16 %v93
  %v278 = vunpack.c.h.b16 %v93
  %v279 = vunpack.c.l.b16 %v94
  %v280 = vunpack.c.h.b16 %v94
  %v281 = vunpack.c.l.b16 %v95
  %v282 = vunpack.c.h.b16 %v95
  %v283 = vunpack.c.l.b16 %v96
  %v284 = vunpack.c.h.b16 %v96
  %v285 = vunpack.c.l.b16 %v97
  %v286 = vunpack.c.h.b16 %v97
  %v287 = vunpack.c.l.b16 %v98
  %v288 = vunpack.c.h.b16 %v98
  %v289 = vunpack.c.l.b16 %v99
  %v290 = vunpack.c.h.b16 %v99
  %v291 = vunpack.c.l.b16 %v100
  %v292 = vunpack.c.h.b16 %v100
  %v293 = vunpack.c.l.b16 %v101
  %v294 = vunpack.c.h.b16 %v101
  %v295 = vunpack.c.l.b16 %v102
  %v296 = vunpack.c.h.b16 %v102
  %v297 = vunpack.c.l.b16 %v103
  %v298 = vunpack.c.h.b16 %v103
  %v299 = vunpack.c.l.b16 %v104
  %v300 = vunpack.c.h.b16 %v104
  %v301 = vunpack.c.l.b16 %v105
  %v302 = vunpack.c.h.b16 %v105
  %v303 = vunpack.c.l.b16 %v106
  %v304 = vunpack.c.h.b16 %v106
  %v305 = vunpack.c.l.b16 %v107
  %v306 = vunpack.c.h.b16 %v107
  %v307 = vunpack.c.l.b16 %v108
  %v308 = vunpack.c.h.b16 %v108
  %v309 = vunpack.c.l.b16 %v109
  %v310 = vunpack.c.h.b16 %v109
  %v311 = vunpack.c.l.b16 %v110
  %v312 = vunpack.c.h.b16 %v110
  %v313 = vunpack.c.l.b16 %v111
  %v314 = vunpack.c.h.b16 %v111
  %v315 = vunpack.c.l.b16 %v112
  %v316 = vunpack.c.h.b16 %v112
  %v317 = vunpack.c.l.b16 %v113
  %v318 = vunpack.c.h.b16 %v113
  %v319 = vunpack.c.l.b16 %v114
  %v320 = vunpack.c.h.b16 %v114
  %v321 = vunpack.c.l.b16 %v115
  %v322 = vunpack.c.h.b16 %v115
  %v323 = vunpack.c.l.b16 %v116
  %v324 = vunpack.c.h.b16 %v116
  %v325 = vunpack.c.l.b16 %v117
  %v326 = vunpack.c.h.b16 %v117
  %v327 = vunpack.c.l.b16 %v118
  %v328 = vunpack.c.h.b16 %v118
  %v329 = vunpack.c.l.b16 %v119
  %v330 = vunpack.c.h.b16 %v119
  %v331 = vunpack.c.l.b16 %v120
  %v332 = vunpack.c.h.b16 %v120
  %v333 = vpack.c.b16 %v209, %v205
  %v334 = vpack.c.b16 %v210, %v206
  %v335 = vpack.c.b16 %v211, %v207
  %v336 = vpack.c.b16 %v212, %v208
  %v337 = vpack.c.b16 %v217, %v213
  %v338 = vpack.c.b16 %v218, %v214
  %v339 = vpack.c.b16 %v219, %v215
  %v340 = vpack.c.b16 %v220, %v216
  %v341 = vpack.c.b16 %v225, %v221
  %v342 = vpack.c.b16 %v226, %v222
  %v343 = vpack.c.b16 %v227, %v223
  %v344 = vpack.c.b16 %v228, %v224
  %v345 = vpack.c.b16 %v233, %v229
  %v346 = vpack.c.b16 %v234, %v230
  %v347 = vpack.c.b16 %v235, %v231
  %v348 = vpack.c.b16 %v236, %v232
  %v349 = vpack.c.b16 %v241, %v237
  %v350 = vpack.c.b16 %v242, %v238
  %v351 = vpack.c.b16 %v243, %v239
  %v352 = vpack.c.b16 %v244, %v240
  %v353 = vpack.c.b16 %v249, %v245
  %v354 = vpack.c.b16 %v250, %v246
  %v355 = vpack.c.b16 %v251, %v247
  %v356 = vpack.c.b16 %v252, %v248
  %v357 = vpack.c.b16 %v257, %v253
  %v358 = vpack.c.b16 %v258, %v254
  %v359 = vpack.c.b16 %v259, %v255
  %v360 = vpack.c.b16 %v260, %v256
  %v361 = vpack.c.b16 %v265, %v261
  %v362 = vpack.c.b16 %v266, %v262
  %v363 = vpack.c.b16 %v267, %v263
  %v364 = vpack.c.b16 %v268, %v264
  %v365 = vpack.c.b16 %v273, %v269
  %v366 = vpack.c.b16 %v274, %v270
  %v367 = vpack.c.b16 %v275, %v271
  %v368 = vpack.c.b16 %v276, %v272
  %v369 = vpack.c.b16 %v281, %v277
  %v370 = vpack.c.b16 %v282, %v278
  %v371 = vpack.c.b16 %v283, %v279
  %v372 = vpack.c.b16 %v284, %v280
  %v373 = vpack.c.b16 %v289, %v285
  %v374 = vpack.c.b16 %v290, %v286
  %v375 = vpack.c.b16 %v291, %v287
  %v376 = vpack.c.b16 %v292, %v288
  %v377 = vpack.c.b16 %v297, %v293
  %v378 = vpack.c.b16 %v298, %v294
  %v379 = vpack.c.b16 %v299, %v295
  %v380 = vpack.c.b16 %v300, %v296
  %v381 = vpack.c.b16 %v305, %v301
  %v382 = vpack.c.b16 %v306, %v302
  %v383 = vpack.c.b16 %v307, %v303
  %v384 = vpack.c.b16 %v308, %v304
  %v385 = vpack.c.b16 %v313, %v309
  %v386 = vpack.c.b16 %v314, %v310
  %v387 = vpack.c.b16 %v315, %v311
  %v388 = vpack.c.b16 %v316, %v312
  %v389 = vpack.c.b16 %v321, %v317
  %v390 = vpack.c.b16 %v322, %v318
  %v391 = vpack.c.b16 %v323, %v319
  %v392 = vpack.c.b16 %v324, %v320
  %v393 = vpack.c.b16 %v329, %v325
  %v394 = vpack.c.b16 %v330, %v326
  %v395 = vpack.c.b16 %v331, %v327
  %v396 = vpack.c.b16 %v332, %v328
  %461 = vmatprep.subr.bf16.mxu0 %v362
  %462 = vmatpush1.bf16.msra.mxu0 %v361
  %463 = vmatprep.subr.bf16.mxu0 %v358
  %464 = vmatpush1.bf16.msra.mxu0 %v357
  %465 = vmatprep.subr.bf16.mxu0 %v354
  %466 = vmatpush1.bf16.msra.mxu0 %v353
  %467 = vmatprep.subr.bf16.mxu0 %v350
  %468 = vmatpush1.bf16.msra.mxu0 %v349
  %469 = vmatprep.subr.bf16.mxu0 %v346
  %470 = vmatpush1.bf16.msra.mxu0 %v345
  %471 = vmatprep.subr.bf16.mxu0 %v342
  %472 = vmatpush1.bf16.msra.mxu0 %v341
  %473 = vmatprep.subr.bf16.mxu0 %v338
  %474 = vmatpush1.bf16.msra.mxu0 %v337
  %475 = vmatprep.subr.bf16.mxu0 %v334
  %476 = vmatpush1.bf16.msra.mxu0 %v333
  %477 = vmatprep.subr.bf16.mxu0 %v394
  %478 = vmatpush2.bf16.msra.mxu0 %v393
  %479 = vmatprep.subr.bf16.mxu0 %v390
  %480 = vmatpush2.bf16.msra.mxu0 %v389
  %481 = vmatprep.subr.bf16.mxu0 %v386
  %482 = vmatpush2.bf16.msra.mxu0 %v385
  %483 = vmatprep.subr.bf16.mxu0 %v382
  %484 = vmatpush2.bf16.msra.mxu0 %v381
  %485 = vmatprep.subr.bf16.mxu0 %v378
  %486 = vmatpush2.bf16.msra.mxu0 %v377
  %487 = vmatprep.subr.bf16.mxu0 %v374
  %488 = vmatpush2.bf16.msra.mxu0 %v373
  %489 = vmatprep.subr.bf16.mxu0 %v370
  %490 = vmatpush2.bf16.msra.mxu0 %v369
  %491 = vmatprep.subr.bf16.mxu0 %v366
  %492 = vmatpush2.bf16.msra.mxu0 %v365
  %493 = vmatprep.mubr.bf16.mxu0 %v134
  %494 = vmatmul.mubr.bf16.gmra.mxu0 %v133
  %v495 = vpop.f32.mrf.mxu0
  %v496 = vadd.f32 0.0, %v495
  %v497 = vpop.f32.mrf.mxu0
  %v498 = vadd.f32 0.0, %v497
  %v499 = vpop.f32.mrf.mxu0
  %v500 = vadd.f32 0.0, %v499
  %v501 = vpop.f32.mrf.mxu0
  %v502 = vadd.f32 0.0, %v501
  %503 = vmatprep.mubr.bf16.mxu0 %v136
  %504 = vmatmul.mubr.bf16.gmra.mxu0 %v135
  %v505 = vpop.f32.mrf.mxu0
  %v506 = vadd.f32 0.0, %v505
  %v507 = vpop.f32.mrf.mxu0
  %v508 = vadd.f32 0.0, %v507
  %v509 = vpop.f32.mrf.mxu0
  %v510 = vadd.f32 0.0, %v509
  %v511 = vpop.f32.mrf.mxu0
  %v512 = vadd.f32 0.0, %v511
  %513 = vdwg.mxu0
  %514 = vmatprep.subr.bf16.mxu0 %v364
  %515 = vmatpush1.bf16.msra.mxu0 %v363
  %516 = vmatprep.subr.bf16.mxu0 %v360
  %517 = vmatpush1.bf16.msra.mxu0 %v359
  %518 = vmatprep.subr.bf16.mxu0 %v356
  %519 = vmatpush1.bf16.msra.mxu0 %v355
  %520 = vmatprep.subr.bf16.mxu0 %v352
  %521 = vmatpush1.bf16.msra.mxu0 %v351
  %522 = vmatprep.subr.bf16.mxu0 %v348
  %523 = vmatpush1.bf16.msra.mxu0 %v347
  %524 = vmatprep.subr.bf16.mxu0 %v344
  %525 = vmatpush1.bf16.msra.mxu0 %v343
  %526 = vmatprep.subr.bf16.mxu0 %v340
  %527 = vmatpush1.bf16.msra.mxu0 %v339
  %528 = vmatprep.subr.bf16.mxu0 %v336
  %529 = vmatpush1.bf16.msra.mxu0 %v335
  %530 = vmatprep.subr.bf16.mxu0 %v396
  %531 = vmatpush2.bf16.msra.mxu0 %v395
  %532 = vmatprep.subr.bf16.mxu0 %v392
  %533 = vmatpush2.bf16.msra.mxu0 %v391
  %534 = vmatprep.subr.bf16.mxu0 %v388
  %535 = vmatpush2.bf16.msra.mxu0 %v387
  %536 = vmatprep.subr.bf16.mxu0 %v384
  %537 = vmatpush2.bf16.msra.mxu0 %v383
  %538 = vmatprep.subr.bf16.mxu0 %v380
  %539 = vmatpush2.bf16.msra.mxu0 %v379
  %540 = vmatprep.subr.bf16.mxu0 %v376
  %541 = vmatpush2.bf16.msra.mxu0 %v375
  %542 = vmatprep.subr.bf16.mxu0 %v372
  %543 = vmatpush2.bf16.msra.mxu0 %v371
  %544 = vmatprep.subr.bf16.mxu0 %v368
  %545 = vmatpush2.bf16.msra.mxu0 %v367
  %546 = vmatprep.mubr.bf16.mxu0 %v134
  %547 = vmatmul.mubr.bf16.gmra.mxu0 %v133
  %v548 = vpop.f32.mrf.mxu0
  %v549 = vadd.f32 0.0, %v548
  %v550 = vpop.f32.mrf.mxu0
  %v551 = vadd.f32 0.0, %v550
  %v552 = vpop.f32.mrf.mxu0
  %v553 = vadd.f32 0.0, %v552
  %v554 = vpop.f32.mrf.mxu0
  %v555 = vadd.f32 0.0, %v554
  %556 = vmatprep.mubr.bf16.mxu0 %v136
  %557 = vmatmul.mubr.bf16.gmra.mxu0 %v135
  %v558 = vpop.f32.mrf.mxu0
  %v559 = vadd.f32 0.0, %v558
  %v560 = vpop.f32.mrf.mxu0
  %v561 = vadd.f32 0.0, %v560
  %v562 = vpop.f32.mrf.mxu0
  %v563 = vadd.f32 0.0, %v562
  %v564 = vpop.f32.mrf.mxu0
  %v565 = vadd.f32 0.0, %v564
  %566 = vdwg.mxu0
  %v567 = vadd.f32 %v37, %v496
  %v568 = vadd.f32 %v38, %v498
  %v569 = vadd.f32 %v39, %v549
  %v570 = vadd.f32 %v40, %v551
  %v571 = vadd.f32 %v41, %v500
  %v572 = vadd.f32 %v42, %v502
  %v573 = vadd.f32 %v43, %v553
  %v574 = vadd.f32 %v44, %v555
  %v575 = vadd.f32 %v45, %v506
  %v576 = vadd.f32 %v46, %v508
  %v577 = vadd.f32 %v47, %v559
  %v578 = vadd.f32 %v48, %v561
  %v579 = vadd.f32 %v49, %v510
  %v580 = vadd.f32 %v50, %v512
  %v581 = vadd.f32 %v51, %v563
  %v582 = vadd.f32 %v52, %v565
  %583 = vst [vmem:[#allocation2] sm:$0xff] %v567
  %584 = vst [vmem:[#allocation2 + $0x8] sm:$0xff] %v568
  %585 = vst [vmem:[#allocation2 + $0x10] sm:$0xff] %v569
  %586 = vst [vmem:[#allocation2 + $0x18] sm:$0xff] %v570
  %587 = vst [vmem:[#allocation2 + $0x20] sm:$0xff] %v571
  %588 = vst [vmem:[#allocation2 + $0x28] sm:$0xff] %v572
  %589 = vst [vmem:[#allocation2 + $0x30] sm:$0xff] %v573
  %590 = vst [vmem:[#allocation2 + $0x38] sm:$0xff] %v574
  %591 = vst [vmem:[#allocation2 + $0x40] sm:$0xff] %v575
  %592 = vst [vmem:[#allocation2 + $0x48] sm:$0xff] %v576
  %593 = vst [vmem:[#allocation2 + $0x50] sm:$0xff] %v577
  %594 = vst [vmem:[#allocation2 + $0x58] sm:$0xff] %v578
  %595 = vst [vmem:[#allocation2 + $0x60] sm:$0xff] %v579
  %596 = vst [vmem:[#allocation2 + $0x68] sm:$0xff] %v580
  %597 = vst [vmem:[#allocation2 + $0x70] sm:$0xff] %v581
  %598 = vst [vmem:[#allocation2 + $0x78] sm:$0xff] %v582
  // Predicated region
  $region22: #{net_forward.14} parent=0 // pred_check
    %p599 = pneg %p17
  $region23: #{net_forward.14} parent=0 // pred_check_branch
    %601 = sbr.rel (%p599) target = $region25
  $region24: #{net_forward.14} parent=0 // pred_region
    %v602 = vld [vmem:[#allocation2] sm:$0xff]
    %v603 = vld [vmem:[#allocation2 + $0x8] sm:$0xff]
    %v604 = vld [vmem:[#allocation2 + $0x10] sm:$0xff]
    %v605 = vld [vmem:[#allocation2 + $0x18] sm:$0xff]
    %v606 = vld [vmem:[#allocation2 + $0x20] sm:$0xff]
    %v607 = vld [vmem:[#allocation2 + $0x28] sm:$0xff]
    %v608 = vld [vmem:[#allocation2 + $0x30] sm:$0xff]
    %v609 = vld [vmem:[#allocation2 + $0x38] sm:$0xff]
    %v610 = vld [vmem:[#allocation2 + $0x40] sm:$0xff]
    %v611 = vld [vmem:[#allocation2 + $0x48] sm:$0xff]
    %v612 = vld [vmem:[#allocation2 + $0x50] sm:$0xff]
    %v613 = vld [vmem:[#allocation2 + $0x58] sm:$0xff]
    %v614 = vld [vmem:[#allocation2 + $0x60] sm:$0xff]
    %v615 = vld [vmem:[#allocation2 + $0x68] sm:$0xff]
    %v616 = vld [vmem:[#allocation2 + $0x70] sm:$0xff]
    %v617 = vld [vmem:[#allocation2 + $0x78] sm:$0xff]
    %v618 = vadd.f32 %v602, %v606
    %v619 = vadd.f32 %v618, %v610
    %v620 = vadd.f32 %v619, %v614
    %v621 = vrot.slane %v620, 4
    %v622 = vadd.f32 %v620, %v621
    %v623 = vrot.slane %v622, 2
    %v624 = vadd.f32 %v622, %v623
    %v625 = vrot.slane %v624, 1
    %v626 = vadd.f32 %v624, %v625
    %v627 = vadd.f32 %v603, %v607
    %v628 = vadd.f32 %v627, %v611
    %v629 = vadd.f32 %v628, %v615
    %v630 = vrot.slane %v629, 4
    %v631 = vadd.f32 %v629, %v630
    %v632 = vrot.slane %v631, 2
    %v633 = vadd.f32 %v631, %v632
    %v634 = vrot.slane %v633, 1
    %v635 = vadd.f32 %v633, %v634
    %v636 = vadd.f32 %v604, %v608
    %v637 = vadd.f32 %v636, %v612
    %v638 = vadd.f32 %v637, %v616
    %v639 = vrot.slane %v638, 4
    %v640 = vadd.f32 %v638, %v639
    %v641 = vrot.slane %v640, 2
    %v642 = vadd.f32 %v640, %v641
    %v643 = vrot.slane %v642, 1
    %v644 = vadd.f32 %v642, %v643
    %v645 = vadd.f32 %v605, %v609
    %v646 = vadd.f32 %v645, %v613
    %v647 = vadd.f32 %v646, %v617
    %v648 = vrot.slane %v647, 4
    %v649 = vadd.f32 %v647, %v648
    %v650 = vrot.slane %v649, 2
    %v651 = vadd.f32 %v649, %v650
    %v652 = vrot.slane %v651, 1
    %v653 = vadd.f32 %v651, %v652
    %v654 = vmul.f32 %v602, %v602
    %v655 = vmul.f32 %v603, %v603
    %v656 = vmul.f32 %v604, %v604
    %v657 = vmul.f32 %v605, %v605
    %v658 = vmul.f32 %v606, %v606
    %v659 = vmul.f32 %v607, %v607
    %v660 = vmul.f32 %v608, %v608
    %v661 = vmul.f32 %v609, %v609
    %v662 = vmul.f32 %v610, %v610
    %v663 = vmul.f32 %v611, %v611
    %v664 = vmul.f32 %v612, %v612
    %v665 = vmul.f32 %v613, %v613
    %v666 = vmul.f32 %v614, %v614
    %v667 = vmul.f32 %v615, %v615
    %v668 = vmul.f32 %v616, %v616
    %v669 = vmul.f32 %v617, %v617
    %v670 = vadd.f32 %v654, %v658
    %v671 = vadd.f32 %v670, %v662
    %v672 = vadd.f32 %v671, %v666
    %v673 = vrot.slane %v672, 4
    %v674 = vadd.f32 %v672, %v673
    %v675 = vrot.slane %v674, 2
    %v676 = vadd.f32 %v674, %v675
    %v677 = vrot.slane %v676, 1
    %v678 = vadd.f32 %v676, %v677
    %v679 = vadd.f32 %v655, %v659
    %v680 = vadd.f32 %v679, %v663
    %v681 = vadd.f32 %v680, %v667
    %v682 = vrot.slane %v681, 4
    %v683 = vadd.f32 %v681, %v682
    %v684 = vrot.slane %v683, 2
    %v685 = vadd.f32 %v683, %v684
    %v686 = vrot.slane %v685, 1
    %v687 = vadd.f32 %v685, %v686
    %v688 = vadd.f32 %v656, %v660
    %v689 = vadd.f32 %v688, %v664
    %v690 = vadd.f32 %v689, %v668
    %v691 = vrot.slane %v690, 4
    %v692 = vadd.f32 %v690, %v691
    %v693 = vrot.slane %v692, 2
    %v694 = vadd.f32 %v692, %v693
    %v695 = vrot.slane %v694, 1
    %v696 = vadd.f32 %v694, %v695
    %v697 = vadd.f32 %v657, %v661
    %v698 = vadd.f32 %v697, %v665
    %v699 = vadd.f32 %v698, %v669
    %v700 = vrot.slane %v699, 4
    %v701 = vadd.f32 %v699, %v700
    %v702 = vrot.slane %v701, 2
    %v703 = vadd.f32 %v701, %v702
    %v704 = vrot.slane %v703, 1
    %v705 = vadd.f32 %v703, %v704
    %v706 = vadd.f32 %v626, 0.0
    %v707 = vadd.f32 %v706, %v635
    %v708 = vadd.f32 %v707, %v644
    %v709 = vadd.f32 %v708, %v653
    %v710 = vadd.f32 %v678, 0.0
    %v711 = vadd.f32 %v710, %v687
    %v712 = vadd.f32 %v711, %v696
    %v713 = vadd.f32 %v712, %v705
    %v714 = vmul.f32 %v709, 0.0078125
    %v715 = vmul.f32 %v713, 0.0078125
    %v716 = vmul.f32 %v714, %v714
    %v717 = vsub.f32 %v715, %v716
    %v718 = vmax.f32 %v717, 0.0
    %v719 = vld [vmem:[%s2] sm:$0x1]
    %v720 = vadd.f32 %v718, 1e-05
    %v721 = vrsqrt.pop %v720
    %v722 = vmul.f32 %v719, %v721
    %v723 = vld [vmem:[%s3] sm:$0x1]
    %v724 = vmul.f32 %v714, %v722
    %v725 = vsub.f32 %v723, %v724
    %v726 = vlaneseq
    %v727 = vshrl.u32 %v726, 7
    %v728 = vsub.s32 0, %v727
    %v729 = vrot.slane %v722, %v728
    %v730 = vmul.f32 %v602, %v729
    %v731 = vmul.f32 %v603, %v729
    %v732 = vmul.f32 %v604, %v729
    %v733 = vmul.f32 %v605, %v729
    %v734 = vmul.f32 %v606, %v729
    %v735 = vmul.f32 %v607, %v729
    %v736 = vmul.f32 %v608, %v729
    %v737 = vmul.f32 %v609, %v729
    %v738 = vmul.f32 %v610, %v729
    %v739 = vmul.f32 %v611, %v729
    %v740 = vmul.f32 %v612, %v729
    %v741 = vmul.f32 %v613, %v729
    %v742 = vmul.f32 %v614, %v729
    %v743 = vmul.f32 %v615, %v729
    %v744 = vmul.f32 %v616, %v729
    %v745 = vmul.f32 %v617, %v729
    %v746 = vlaneseq
    %v747 = vshrl.u32 %v746, 7
    %v748 = vsub.s32 0, %v747
    %v749 = vrot.slane %v725, %v748
    %v750 = vadd.f32 %v730, %v749
    %v751 = vadd.f32 %v731, %v749
    %v752 = vadd.f32 %v732, %v749
    %v753 = vadd.f32 %v733, %v749
    %v754 = vadd.f32 %v734, %v749
    %v755 = vadd.f32 %v735, %v749
    %v756 = vadd.f32 %v736, %v749
    %v757 = vadd.f32 %v737, %v749
    %v758 = vadd.f32 %v738, %v749
    %v759 = vadd.f32 %v739, %v749
    %v760 = vadd.f32 %v740, %v749
    %v761 = vadd.f32 %v741, %v749
    %v762 = vadd.f32 %v742, %v749
    %v763 = vadd.f32 %v743, %v749
    %v764 = vadd.f32 %v744, %v749
    %v765 = vadd.f32 %v745, %v749
    %vm766 = vcmp.ge.f32.partialorder %v750, 0.0
    %vm767 = vcmp.ge.f32.partialorder %v751, 0.0
    %vm768 = vcmp.ge.f32.partialorder %v752, 0.0
    %vm769 = vcmp.ge.f32.partialorder %v753, 0.0
    %vm770 = vcmp.ge.f32.partialorder %v754, 0.0
    %vm771 = vcmp.ge.f32.partialorder %v755, 0.0
    %vm772 = vcmp.ge.f32.partialorder %v756, 0.0
    %vm773 = vcmp.ge.f32.partialorder %v757, 0.0
    %vm774 = vcmp.ge.f32.partialorder %v758, 0.0
    %vm775 = vcmp.ge.f32.partialorder %v759, 0.0
    %vm776 = vcmp.ge.f32.partialorder %v760, 0.0
    %vm777 = vcmp.ge.f32.partialorder %v761, 0.0
    %vm778 = vcmp.ge.f32.partialorder %v762, 0.0
    %vm779 = vcmp.ge.f32.partialorder %v763, 0.0
    %vm780 = vcmp.ge.f32.partialorder %v764, 0.0
    %vm781 = vcmp.ge.f32.partialorder %v765, 0.0
    %v782 = vmul.f32 %v750, 0.2
    %v783 = vmul.f32 %v751, 0.2
    %v784 = vmul.f32 %v752, 0.2
    %v785 = vmul.f32 %v753, 0.2
    %v786 = vmul.f32 %v754, 0.2
    %v787 = vmul.f32 %v755, 0.2
    %v788 = vmul.f32 %v756, 0.2
    %v789 = vmul.f32 %v757, 0.2
    %v790 = vmul.f32 %v758, 0.2
    %v791 = vmul.f32 %v759, 0.2
    %v792 = vmul.f32 %v760, 0.2
    %v793 = vmul.f32 %v761, 0.2
    %v794 = vmul.f32 %v762, 0.2
    %v795 = vmul.f32 %v763, 0.2
    %v796 = vmul.f32 %v764, 0.2
    %v797 = vmul.f32 %v765, 0.2
    %v798 = vsel %vm766, %v750, %v782
    %v799 = vsel %vm767, %v751, %v783
    %v800 = vsel %vm768, %v752, %v784
    %v801 = vsel %vm769, %v753, %v785
    %v802 = vsel %vm770, %v754, %v786
    %v803 = vsel %vm771, %v755, %v787
    %v804 = vsel %vm772, %v756, %v788
    %v805 = vsel %vm773, %v757, %v789
    %v806 = vsel %vm774, %v758, %v790
    %v807 = vsel %vm775, %v759, %v791
    %v808 = vsel %vm776, %v760, %v792
    %v809 = vsel %vm777, %v761, %v793
    %v810 = vsel %vm778, %v762, %v794
    %v811 = vsel %vm779, %v763, %v795
    %v812 = vsel %vm780, %v764, %v796
    %v813 = vsel %vm781, %v765, %v797
    %814 = vst [vmem:[%s4] sm:$0xff] %v798
    %815 = vst [vmem:[%s4 + $0x8] sm:$0xff] %v799
    %816 = vst [vmem:[%s4 + $0x10] sm:$0xff] %v800
    %817 = vst [vmem:[%s4 + $0x18] sm:$0xff] %v801
    %818 = vst [vmem:[%s4 + $0x20] sm:$0xff] %v802
    %819 = vst [vmem:[%s4 + $0x28] sm:$0xff] %v803
    %820 = vst [vmem:[%s4 + $0x30] sm:$0xff] %v804
    %821 = vst [vmem:[%s4 + $0x38] sm:$0xff] %v805
    %822 = vst [vmem:[%s4 + $0x40] sm:$0xff] %v806
    %823 = vst [vmem:[%s4 + $0x48] sm:$0xff] %v807
    %824 = vst [vmem:[%s4 + $0x50] sm:$0xff] %v808
    %825 = vst [vmem:[%s4 + $0x58] sm:$0xff] %v809
    %826 = vst [vmem:[%s4 + $0x60] sm:$0xff] %v810
    %827 = vst [vmem:[%s4 + $0x68] sm:$0xff] %v811
    %828 = vst [vmem:[%s4 + $0x70] sm:$0xff] %v812
    %829 = vst [vmem:[%s4 + $0x78] sm:$0xff] %v813
  $region25: #{net_forward.14} parent=0 // pred_fallthru
    _
  // Predicated region
  $region26: #{net_forward.14} parent=0 // pred_check
    _
  $region27: #{net_forward.14} parent=0 // pred_check_branch
    %831 = sbr.rel (0) target = $region29
  $region28: #{net_forward.14} parent=0 // pred_region
    _
  $region29: #{net_forward.14} parent=0 // pred_fallthru
    _
  // Predicated region
  $region30: #{net_forward.14} parent=0 // pred_check
    _
  $region31: #{net_forward.14} parent=0 // pred_check_branch
    %833 = sbr.rel (0) target = $region33
  $region32: #{net_forward.14} parent=0 // pred_region
    _
  $region33: #{net_forward.14} parent=0 // pred_fallthru
    _

// kernel: net_forward.15
$region0: #{net_forward.15}
  #allocation0 [shape = 'u32[]', space=smem, size = 0x4, offset = 0x4, fixed_abs, tag = 'smem constant byte address 0x4 - core index']
  #allocation1 [shape = 'u32[144,128]{1,0:T(1,128)}', space=vmem, size = 0x12000, scoped, tag = 'internal scratch']
  #allocation2 [shape = 'f32[128,512]{1,0:T(8,128)}', space=vmem, size = 0x40000, scoped, tag = 'scratch operand']
  %s0 = inlined_call_operand.vmem [shape: bf16[128,128], index: 0, kind: input, shape index: {}]
  %s1 = inlined_call_operand.vmem [shape: bf16[128,512], index: 1, kind: input, shape index: {}]
  %s2 = inlined_call_operand.vmem [shape: f32[1,128], index: 2, kind: input, shape index: {}]
  %s3 = inlined_call_operand.vmem [shape: f32[1,128], index: 3, kind: input, shape index: {}]
  %s4 = inlined_call_operand.vmem [shape: f32[128,512], index: 4, kind: output, shape index: {}]
  %s5 = sld [smem:[#allocation0]]
  $region34: #{net_forward.15} parent=0
    _
  %s7 = ssub.s32 1, %s5
  %s8 = scalar_select 0, %s7, %s5
  // Predicated region
  $region2: #{net_forward.15} parent=0 // pred_check
    _
  $region3: #{net_forward.15} parent=0 // pred_check_branch
    %10 = sbr.rel (0) target = $region5
  $region4: #{net_forward.15} parent=0 // pred_region
    _
  $region5: #{net_forward.15} parent=0 // pred_fallthru
    _
  // Predicated region
  $region6: #{net_forward.15} parent=0 // pred_check
    _
  $region7: #{net_forward.15} parent=0 // pred_check_branch
    %12 = sbr.rel (0) target = $region9
  $region8: #{net_forward.15} parent=0 // pred_region
    _
  $region9: #{net_forward.15} parent=0 // pred_fallthru
    _
  // Predicated region
  $region10: #{net_forward.15} parent=0 // pred_check
    _
  $region11: #{net_forward.15} parent=0 // pred_check_branch
    %14 = sbr.rel (0) target = $region13
  $region12: #{net_forward.15} parent=0 // pred_region
    _
  $region13: #{net_forward.15} parent=0 // pred_fallthru
    _
  // Predicated region
  $region14: #{net_forward.15} parent=0 // pred_check
    _
  $region15: #{net_forward.15} parent=0 // pred_check_branch
    %16 = sbr.rel (0) target = $region17
  $region16: #{net_forward.15} parent=0 // pred_region
    _
  $region17: #{net_forward.15} parent=0 // pred_fallthru
    _
  %p18 = scmp.eq.s32.totalorder 0, 0
  // Predicated region
  $region18: #{net_forward.15} parent=0 // pred_check
    %p19 = pneg %p18
  $region19: #{net_forward.15} parent=0 // pred_check_branch
    %21 = sbr.rel (%p19) target = $region21
  $region20: #{net_forward.15} parent=0 // pred_region
    %22 = vst [vmem:[#allocation2] sm:$0xff] 0.0
    %23 = vst [vmem:[#allocation2 + $0x8] sm:$0xff] 0.0
    %24 = vst [vmem:[#allocation2 + $0x10] sm:$0xff] 0.0
    %25 = vst [vmem:[#allocation2 + $0x18] sm:$0xff] 0.0
    %26 = vst [vmem:[#allocation2 + $0x20] sm:$0xff] 0.0
    %27 = vst [vmem:[#allocation2 + $0x28] sm:$0xff] 0.0
    %28 = vst [vmem:[#allocation2 + $0x30] sm:$0xff] 0.0
    %29 = vst [vmem:[#allocation2 + $0x38] sm:$0xff] 0.0
    %30 = vst [vmem:[#allocation2 + $0x40] sm:$0xff] 0.0
    %31 = vst [vmem:[#allocation2 + $0x48] sm:$0xff] 0.0
    %32 = vst [vmem:[#allocation2 + $0x50] sm:$0xff] 0.0
    %33 = vst [vmem:[#allocation2 + $0x58] sm:$0xff] 0.0
    %34 = vst [vmem:[#allocation2 + $0x60] sm:$0xff] 0.0
    %35 = vst [vmem:[#allocation2 + $0x68] sm:$0xff] 0.0
    %36 = vst [vmem:[#allocation2 + $0x70] sm:$0xff] 0.0
    %37 = vst [vmem:[#allocation2 + $0x78] sm:$0xff] 0.0
    %38 = vst [vmem:[#allocation2 + $0x80] sm:$0xff] 0.0
    %39 = vst [vmem:[#allocation2 + $0x88] sm:$0xff] 0.0
    %40 = vst [vmem:[#allocation2 + $0x90] sm:$0xff] 0.0
    %41 = vst [vmem:[#allocation2 + $0x98] sm:$0xff] 0.0
    %42 = vst [vmem:[#allocation2 + $0xa0] sm:$0xff] 0.0
    %43 = vst [vmem:[#allocation2 + $0xa8] sm:$0xff] 0.0
    %44 = vst [vmem:[#allocation2 + $0xb0] sm:$0xff] 0.0
    %45 = vst [vmem:[#allocation2 + $0xb8] sm:$0xff] 0.0
    %46 = vst [vmem:[#allocation2 + $0xc0] sm:$0xff] 0.0
    %47 = vst [vmem:[#allocation2 + $0xc8] sm:$0xff] 0.0
    %48 = vst [vmem:[#allocation2 + $0xd0] sm:$0xff] 0.0
    %49 = vst [vmem:[#allocation2 + $0xd8] sm:$0xff] 0.0
    %50 = vst [vmem:[#allocation2 + $0xe0] sm:$0xff] 0.0
    %51 = vst [vmem:[#allocation2 + $0xe8] sm:$0xff] 0.0
    %52 = vst [vmem:[#allocation2 + $0xf0] sm:$0xff] 0.0
    %53 = vst [vmem:[#allocation2 + $0xf8] sm:$0xff] 0.0
    %54 = vst [vmem:[#allocation2 + $0x100] sm:$0xff] 0.0
    %55 = vst [vmem:[#allocation2 + $0x108] sm:$0xff] 0.0
    %56 = vst [vmem:[#allocation2 + $0x110] sm:$0xff] 0.0
    %57 = vst [vmem:[#allocation2 + $0x118] sm:$0xff] 0.0
    %58 = vst [vmem:[#allocation2 + $0x120] sm:$0xff] 0.0
    %59 = vst [vmem:[#allocation2 + $0x128] sm:$0xff] 0.0
    %60 = vst [vmem:[#allocation2 + $0x130] sm:$0xff] 0.0
    %61 = vst [vmem:[#allocation2 + $0x138] sm:$0xff] 0.0
    %62 = vst [vmem:[#allocation2 + $0x140] sm:$0xff] 0.0
    %63 = vst [vmem:[#allocation2 + $0x148] sm:$0xff] 0.0
    %64 = vst [vmem:[#allocation2 + $0x150] sm:$0xff] 0.0
    %65 = vst [vmem:[#allocation2 + $0x158] sm:$0xff] 0.0
    %66 = vst [vmem:[#allocation2 + $0x160] sm:$0xff] 0.0
    %67 = vst [vmem:[#allocation2 + $0x168] sm:$0xff] 0.0
    %68 = vst [vmem:[#allocation2 + $0x170] sm:$0xff] 0.0
    %69 = vst [vmem:[#allocation2 + $0x178] sm:$0xff] 0.0
    %70 = vst [vmem:[#allocation2 + $0x180] sm:$0xff] 0.0
    %71 = vst [vmem:[#allocation2 + $0x188] sm:$0xff] 0.0
    %72 = vst [vmem:[#allocation2 + $0x190] sm:$0xff] 0.0
    %73 = vst [vmem:[#allocation2 + $0x198] sm:$0xff] 0.0
    %74 = vst [vmem:[#allocation2 + $0x1a0] sm:$0xff] 0.0
    %75 = vst [vmem:[#allocation2 + $0x1a8] sm:$0xff] 0.0
    %76 = vst [vmem:[#allocation2 + $0x1b0] sm:$0xff] 0.0
    %77 = vst [vmem:[#allocation2 + $0x1b8] sm:$0xff] 0.0
    %78 = vst [vmem:[#allocation2 + $0x1c0] sm:$0xff] 0.0
    %79 = vst [vmem:[#allocation2 + $0x1c8] sm:$0xff] 0.0
    %80 = vst [vmem:[#allocation2 + $0x1d0] sm:$0xff] 0.0
    %81 = vst [vmem:[#allocation2 + $0x1d8] sm:$0xff] 0.0
    %82 = vst [vmem:[#allocation2 + $0x1e0] sm:$0xff] 0.0
    %83 = vst [vmem:[#allocation2 + $0x1e8] sm:$0xff] 0.0
    %84 = vst [vmem:[#allocation2 + $0x1f0] sm:$0xff] 0.0
    %85 = vst [vmem:[#allocation2 + $0x1f8] sm:$0xff] 0.0
  $region21: #{net_forward.15} parent=0 // pred_fallthru
    _
  %v86 = vld [vmem:[#allocation2] sm:$0xff]
  %v87 = vld [vmem:[#allocation2 + $0x8] sm:$0xff]
  %v88 = vld [vmem:[#allocation2 + $0x10] sm:$0xff]
  %v89 = vld [vmem:[#allocation2 + $0x18] sm:$0xff]
  %v90 = vld [vmem:[#allocation2 + $0x20] sm:$0xff]
  %v91 = vld [vmem:[#allocation2 + $0x28] sm:$0xff]
  %v92 = vld [vmem:[#allocation2 + $0x30] sm:$0xff]
  %v93 = vld [vmem:[#allocation2 + $0x38] sm:$0xff]
  %v94 = vld [vmem:[#allocation2 + $0x40] sm:$0xff]
  %v95 = vld [vmem:[#allocation2 + $0x48] sm:$0xff]
  %v96 = vld [vmem:[#allocation2 + $0x50] sm:$0xff]
  %v97 = vld [vmem:[#allocation2 + $0x58] sm:$0xff]
  %v98 = vld [vmem:[#allocation2 + $0x60] sm:$0xff]
  %v99 = vld [vmem:[#allocation2 + $0x68] sm:$0xff]
  %v100 = vld [vmem:[#allocation2 + $0x70] sm:$0xff]
  %v101 = vld [vmem:[#allocation2 + $0x78] sm:$0xff]
  %v102 = vld [vmem:[#allocation2 + $0x80] sm:$0xff]
  %v103 = vld [vmem:[#allocation2 + $0x88] sm:$0xff]
  %v104 = vld [vmem:[#allocation2 + $0x90] sm:$0xff]
  %v105 = vld [vmem:[#allocation2 + $0x98] sm:$0xff]
  %v106 = vld [vmem:[#allocation2 + $0xa0] sm:$0xff]
  %v107 = vld [vmem:[#allocation2 + $0xa8] sm:$0xff]
  %v108 = vld [vmem:[#allocation2 + $0xb0] sm:$0xff]
  %v109 = vld [vmem:[#allocation2 + $0xb8] sm:$0xff]
  %v110 = vld [vmem:[#allocation2 + $0xc0] sm:$0xff]
  %v111 = vld [vmem:[#allocation2 + $0xc8] sm:$0xff]
  %v112 = vld [vmem:[#allocation2 + $0xd0] sm:$0xff]
  %v113 = vld [vmem:[#allocation2 + $0xd8] sm:$0xff]
  %v114 = vld [vmem:[#allocation2 + $0xe0] sm:$0xff]
  %v115 = vld [vmem:[#allocation2 + $0xe8] sm:$0xff]
  %v116 = vld [vmem:[#allocation2 + $0xf0] sm:$0xff]
  %v117 = vld [vmem:[#allocation2 + $0xf8] sm:$0xff]
  %v118 = vld [vmem:[#allocation2 + $0x100] sm:$0xff]
  %v119 = vld [vmem:[#allocation2 + $0x108] sm:$0xff]
  %v120 = vld [vmem:[#allocation2 + $0x110] sm:$0xff]
  %v121 = vld [vmem:[#allocation2 + $0x118] sm:$0xff]
  %v122 = vld [vmem:[#allocation2 + $0x120] sm:$0xff]
  %v123 = vld [vmem:[#allocation2 + $0x128] sm:$0xff]
  %v124 = vld [vmem:[#allocation2 + $0x130] sm:$0xff]
  %v125 = vld [vmem:[#allocation2 + $0x138] sm:$0xff]
  %v126 = vld [vmem:[#allocation2 + $0x140] sm:$0xff]
  %v127 = vld [vmem:[#allocation2 + $0x148] sm:$0xff]
  %v128 = vld [vmem:[#allocation2 + $0x150] sm:$0xff]
  %v129 = vld [vmem:[#allocation2 + $0x158] sm:$0xff]
  %v130 = vld [vmem:[#allocation2 + $0x160] sm:$0xff]
  %v131 = vld [vmem:[#allocation2 + $0x168] sm:$0xff]
  %v132 = vld [vmem:[#allocation2 + $0x170] sm:$0xff]
  %v133 = vld [vmem:[#allocation2 + $0x178] sm:$0xff]
  %v134 = vld [vmem:[#allocation2 + $0x180] sm:$0xff]
  %v135 = vld [vmem:[#allocation2 + $0x188] sm:$0xff]
  %v136 = vld [vmem:[#allocation2 + $0x190] sm:$0xff]
  %v137 = vld [vmem:[#allocation2 + $0x198] sm:$0xff]
  %v138 = vld [vmem:[#allocation2 + $0x1a0] sm:$0xff]
  %v139 = vld [vmem:[#allocation2 + $0x1a8] sm:$0xff]
  %v140 = vld [vmem:[#allocation2 + $0x1b0] sm:$0xff]
  %v141 = vld [vmem:[#allocation2 + $0x1b8] sm:$0xff]
  %v142 = vld [vmem:[#allocation2 + $0x1c0] sm:$0xff]
  %v143 = vld [vmem:[#allocation2 + $0x1c8] sm:$0xff]
  %v144 = vld [vmem:[#allocation2 + $0x1d0] sm:$0xff]
  %v145 = vld [vmem:[#allocation2 + $0x1d8] sm:$0xff]
  %v146 = vld [vmem:[#allocation2 + $0x1e0] sm:$0xff]
  %v147 = vld [vmem:[#allocation2 + $0x1e8] sm:$0xff]
  %v148 = vld [vmem:[#allocation2 + $0x1f0] sm:$0xff]
  %v149 = vld [vmem:[#allocation2 + $0x1f8] sm:$0xff]
  %v150 = vld [vmem:[%s0] sm:$0xf]
  %v151 = vld [vmem:[%s0 + $0x4] sm:$0xf]
  %v152 = vld [vmem:[%s0 + $0x8] sm:$0xf]
  %v153 = vld [vmem:[%s0 + $0xc] sm:$0xf]
  %v154 = vld [vmem:[%s0 + $0x10] sm:$0xf]
  %v155 = vld [vmem:[%s0 + $0x14] sm:$0xf]
  %v156 = vld [vmem:[%s0 + $0x18] sm:$0xf]
  %v157 = vld [vmem:[%s0 + $0x1c] sm:$0xf]
  %v158 = vld [vmem:[%s0 + $0x20] sm:$0xf]
  %v159 = vld [vmem:[%s0 + $0x24] sm:$0xf]
  %v160 = vld [vmem:[%s0 + $0x28] sm:$0xf]
  %v161 = vld [vmem:[%s0 + $0x2c] sm:$0xf]
  %v162 = vld [vmem:[%s0 + $0x30] sm:$0xf]
  %v163 = vld [vmem:[%s0 + $0x34] sm:$0xf]
  %v164 = vld [vmem:[%s0 + $0x38] sm:$0xf]
  %v165 = vld [vmem:[%s0 + $0x3c] sm:$0xf]
  %v166 = vld [vmem:[%s1] sm:$0xff]
  %v167 = vld [vmem:[%s1 + $0x8] sm:$0xff]
  %v168 = vld [vmem:[%s1 + $0x10] sm:$0xff]
  %v169 = vld [vmem:[%s1 + $0x18] sm:$0xff]
  %v170 = vld [vmem:[%s1 + $0x20] sm:$0xff]
  %v171 = vld [vmem:[%s1 + $0x28] sm:$0xff]
  %v172 = vld [vmem:[%s1 + $0x30] sm:$0xff]
  %v173 = vld [vmem:[%s1 + $0x38] sm:$0xff]
  %v174 = vld [vmem:[%s1 + $0x40] sm:$0xff]
  %v175 = vld [vmem:[%s1 + $0x48] sm:$0xff]
  %v176 = vld [vmem:[%s1 + $0x50] sm:$0xff]
  %v177 = vld [vmem:[%s1 + $0x58] sm:$0xff]
  %v178 = vld [vmem:[%s1 + $0x60] sm:$0xff]
  %v179 = vld [vmem:[%s1 + $0x68] sm:$0xff]
  %v180 = vld [vmem:[%s1 + $0x70] sm:$0xff]
  %v181 = vld [vmem:[%s1 + $0x78] sm:$0xff]
  %v182 = vld [vmem:[%s1 + $0x80] sm:$0xff]
  %v183 = vld [vmem:[%s1 + $0x88] sm:$0xff]
  %v184 = vld [vmem:[%s1 + $0x90] sm:$0xff]
  %v185 = vld [vmem:[%s1 + $0x98] sm:$0xff]
  %v186 = vld [vmem:[%s1 + $0xa0] sm:$0xff]
  %v187 = vld [vmem:[%s1 + $0xa8] sm:$0xff]
  %v188 = vld [vmem:[%s1 + $0xb0] sm:$0xff]
  %v189 = vld [vmem:[%s1 + $0xb8] sm:$0xff]
  %v190 = vld [vmem:[%s1 + $0xc0] sm:$0xff]
  %v191 = vld [vmem:[%s1 + $0xc8] sm:$0xff]
  %v192 = vld [vmem:[%s1 + $0xd0] sm:$0xff]
  %v193 = vld [vmem:[%s1 + $0xd8] sm:$0xff]
  %v194 = vld [vmem:[%s1 + $0xe0] sm:$0xff]
  %v195 = vld [vmem:[%s1 + $0xe8] sm:$0xff]
  %v196 = vld [vmem:[%s1 + $0xf0] sm:$0xff]
  %v197 = vld [vmem:[%s1 + $0xf8] sm:$0xff]
  %v214 = vunpack.c.l.b16 %v150
  %v215 = vunpack.c.l.b16 %v151
  %v216 = vunpack.c.l.b16 %v152
  %v217 = vunpack.c.l.b16 %v153
  %v218 = vunpack.c.l.b16 %v154
  %v219 = vunpack.c.l.b16 %v155
  %v220 = vunpack.c.l.b16 %v156
  %v221 = vunpack.c.l.b16 %v157
  %v222 = vunpack.c.l.b16 %v158
  %v223 = vunpack.c.l.b16 %v159
  %v224 = vunpack.c.l.b16 %v160
  %v225 = vunpack.c.l.b16 %v161
  %v226 = vunpack.c.l.b16 %v162
  %v227 = vunpack.c.l.b16 %v163
  %v228 = vunpack.c.l.b16 %v164
  %v229 = vunpack.c.l.b16 %v165
  %v230 = vpack.c.b16 %v215, %v214
  %v231 = vpack.c.b16 %v217, %v216
  %v232 = vpack.c.b16 %v219, %v218
  %v233 = vpack.c.b16 %v221, %v220
  %v234 = vpack.c.b16 %v223, %v222
  %v235 = vpack.c.b16 %v225, %v224
  %v236 = vpack.c.b16 %v227, %v226
  %v237 = vpack.c.b16 %v229, %v228
  %v278 = vunpack.c.l.b16 %v166
  %v279 = vunpack.c.h.b16 %v166
  %v280 = vunpack.c.l.b16 %v167
  %v281 = vunpack.c.h.b16 %v167
  %v282 = vunpack.c.l.b16 %v168
  %v283 = vunpack.c.h.b16 %v168
  %v284 = vunpack.c.l.b16 %v169
  %v285 = vunpack.c.h.b16 %v169
  %v286 = vunpack.c.l.b16 %v170
  %v287 = vunpack.c.h.b16 %v170
  %v288 = vunpack.c.l.b16 %v171
  %v289 = vunpack.c.h.b16 %v171
  %v290 = vunpack.c.l.b16 %v172
  %v291 = vunpack.c.h.b16 %v172
  %v292 = vunpack.c.l.b16 %v173
  %v293 = vunpack.c.h.b16 %v173
  %v294 = vunpack.c.l.b16 %v174
  %v295 = vunpack.c.h.b16 %v174
  %v296 = vunpack.c.l.b16 %v175
  %v297 = vunpack.c.h.b16 %v175
  %v298 = vunpack.c.l.b16 %v176
  %v299 = vunpack.c.h.b16 %v176
  %v300 = vunpack.c.l.b16 %v177
  %v301 = vunpack.c.h.b16 %v177
  %v302 = vunpack.c.l.b16 %v178
  %v303 = vunpack.c.h.b16 %v178
  %v304 = vunpack.c.l.b16 %v179
  %v305 = vunpack.c.h.b16 %v179
  %v306 = vunpack.c.l.b16 %v180
  %v307 = vunpack.c.h.b16 %v180
  %v308 = vunpack.c.l.b16 %v181
  %v309 = vunpack.c.h.b16 %v181
  %v310 = vunpack.c.l.b16 %v182
  %v311 = vunpack.c.h.b16 %v182
  %v312 = vunpack.c.l.b16 %v183
  %v313 = vunpack.c.h.b16 %v183
  %v314 = vunpack.c.l.b16 %v184
  %v315 = vunpack.c.h.b16 %v184
  %v316 = vunpack.c.l.b16 %v185
  %v317 = vunpack.c.h.b16 %v185
  %v318 = vunpack.c.l.b16 %v186
  %v319 = vunpack.c.h.b16 %v186
  %v320 = vunpack.c.l.b16 %v187
  %v321 = vunpack.c.h.b16 %v187
  %v322 = vunpack.c.l.b16 %v188
  %v323 = vunpack.c.h.b16 %v188
  %v324 = vunpack.c.l.b16 %v189
  %v325 = vunpack.c.h.b16 %v189
  %v326 = vunpack.c.l.b16 %v190
  %v327 = vunpack.c.h.b16 %v190
  %v328 = vunpack.c.l.b16 %v191
  %v329 = vunpack.c.h.b16 %v191
  %v330 = vunpack.c.l.b16 %v192
  %v331 = vunpack.c.h.b16 %v192
  %v332 = vunpack.c.l.b16 %v193
  %v333 = vunpack.c.h.b16 %v193
  %v334 = vunpack.c.l.b16 %v194
  %v335 = vunpack.c.h.b16 %v194
  %v336 = vunpack.c.l.b16 %v195
  %v337 = vunpack.c.h.b16 %v195
  %v338 = vunpack.c.l.b16 %v196
  %v339 = vunpack.c.h.b16 %v196
  %v340 = vunpack.c.l.b16 %v197
  %v341 = vunpack.c.h.b16 %v197
  %v342 = vpack.c.b16 %v282, %v278
  %v343 = vpack.c.b16 %v283, %v279
  %v344 = vpack.c.b16 %v284, %v280
  %v345 = vpack.c.b16 %v285, %v281
  %v346 = vpack.c.b16 %v290, %v286
  %v347 = vpack.c.b16 %v291, %v287
  %v348 = vpack.c.b16 %v292, %v288
  %v349 = vpack.c.b16 %v293, %v289
  %v350 = vpack.c.b16 %v298, %v294
  %v351 = vpack.c.b16 %v299, %v295
  %v352 = vpack.c.b16 %v300, %v296
  %v353 = vpack.c.b16 %v301, %v297
  %v354 = vpack.c.b16 %v306, %v302
  %v355 = vpack.c.b16 %v307, %v303
  %v356 = vpack.c.b16 %v308, %v304
  %v357 = vpack.c.b16 %v309, %v305
  %v358 = vpack.c.b16 %v314, %v310
  %v359 = vpack.c.b16 %v315, %v311
  %v360 = vpack.c.b16 %v316, %v312
  %v361 = vpack.c.b16 %v317, %v313
  %v362 = vpack.c.b16 %v322, %v318
  %v363 = vpack.c.b16 %v323, %v319
  %v364 = vpack.c.b16 %v324, %v320
  %v365 = vpack.c.b16 %v325, %v321
  %v366 = vpack.c.b16 %v330, %v326
  %v367 = vpack.c.b16 %v331, %v327
  %v368 = vpack.c.b16 %v332, %v328
  %v369 = vpack.c.b16 %v333, %v329
  %v370 = vpack.c.b16 %v338, %v334
  %v371 = vpack.c.b16 %v339, %v335
  %v372 = vpack.c.b16 %v340, %v336
  %v373 = vpack.c.b16 %v341, %v337
  %406 = vmatprep.subr.bf16.mxu0 %v371
  %407 = vmatpush1.bf16.msra.mxu0 %v370
  %408 = vmatprep.subr.bf16.mxu0 %v367
  %409 = vmatpush1.bf16.msra.mxu0 %v366
  %410 = vmatprep.subr.bf16.mxu0 %v363
  %411 = vmatpush1.bf16.msra.mxu0 %v362
  %412 = vmatprep.subr.bf16.mxu0 %v359
  %413 = vmatpush1.bf16.msra.mxu0 %v358
  %414 = vmatprep.subr.bf16.mxu0 %v355
  %415 = vmatpush1.bf16.msra.mxu0 %v354
  %416 = vmatprep.subr.bf16.mxu0 %v351
  %417 = vmatpush1.bf16.msra.mxu0 %v350
  %418 = vmatprep.subr.bf16.mxu0 %v347
  %419 = vmatpush1.bf16.msra.mxu0 %v346
  %420 = vmatprep.subr.bf16.mxu0 %v343
  %421 = vmatpush1.bf16.msra.mxu0 %v342
  %422 = vmatprep.subr.bf16.mxu0 0
  %423 = vmatpush2.bf16.msra.mxu0 0
  %424 = vmatprep.subr.bf16.mxu0 0
  %425 = vmatpush2.bf16.msra.mxu0 0
  %426 = vmatprep.subr.bf16.mxu0 0
  %427 = vmatpush2.bf16.msra.mxu0 0
  %428 = vmatprep.subr.bf16.mxu0 0
  %429 = vmatpush2.bf16.msra.mxu0 0
  %430 = vmatprep.subr.bf16.mxu0 0
  %431 = vmatpush2.bf16.msra.mxu0 0
  %432 = vmatprep.subr.bf16.mxu0 0
  %433 = vmatpush2.bf16.msra.mxu0 0
  %434 = vmatprep.subr.bf16.mxu0 0
  %435 = vmatpush2.bf16.msra.mxu0 0
  %436 = vmatprep.subr.bf16.mxu0 0
  %437 = vmatpush2.bf16.msra.mxu0 0
  %438 = vmatprep.mubr.bf16.mxu0 0
  %439 = vmatmul.mubr.bf16.gmra.mxu0 %v230
  %v440 = vpop.f32.mrf.mxu0
  %v441 = vadd.f32 0.0, %v440
  %v442 = vpop.f32.mrf.mxu0
  %v443 = vadd.f32 0.0, %v442
  %v444 = vpop.f32.mrf.mxu0
  %v445 = vadd.f32 0.0, %v444
  %v446 = vpop.f32.mrf.mxu0
  %v447 = vadd.f32 0.0, %v446
  %448 = vmatprep.mubr.bf16.mxu0 0
  %449 = vmatmul.mubr.bf16.gmra.mxu0 %v231
  %v450 = vpop.f32.mrf.mxu0
  %v451 = vadd.f32 0.0, %v450
  %v452 = vpop.f32.mrf.mxu0
  %v453 = vadd.f32 0.0, %v452
  %v454 = vpop.f32.mrf.mxu0
  %v455 = vadd.f32 0.0, %v454
  %v456 = vpop.f32.mrf.mxu0
  %v457 = vadd.f32 0.0, %v456
  %458 = vmatprep.mubr.bf16.mxu0 0
  %459 = vmatmul.mubr.bf16.gmra.mxu0 %v232
  %v460 = vpop.f32.mrf.mxu0
  %v461 = vadd.f32 0.0, %v460
  %v462 = vpop.f32.mrf.mxu0
  %v463 = vadd.f32 0.0, %v462
  %v464 = vpop.f32.mrf.mxu0
  %v465 = vadd.f32 0.0, %v464
  %v466 = vpop.f32.mrf.mxu0
  %v467 = vadd.f32 0.0, %v466
  %468 = vmatprep.mubr.bf16.mxu0 0
  %469 = vmatmul.mubr.bf16.gmra.mxu0 %v233
  %v470 = vpop.f32.mrf.mxu0
  %v471 = vadd.f32 0.0, %v470
  %v472 = vpop.f32.mrf.mxu0
  %v473 = vadd.f32 0.0, %v472
  %v474 = vpop.f32.mrf.mxu0
  %v475 = vadd.f32 0.0, %v474
  %v476 = vpop.f32.mrf.mxu0
  %v477 = vadd.f32 0.0, %v476
  %478 = vmatprep.mubr.bf16.mxu0 0
  %479 = vmatmul.mubr.bf16.gmra.mxu0 %v234
  %v480 = vpop.f32.mrf.mxu0
  %v481 = vadd.f32 0.0, %v480
  %v482 = vpop.f32.mrf.mxu0
  %v483 = vadd.f32 0.0, %v482
  %v484 = vpop.f32.mrf.mxu0
  %v485 = vadd.f32 0.0, %v484
  %v486 = vpop.f32.mrf.mxu0
  %v487 = vadd.f32 0.0, %v486
  %488 = vmatprep.mubr.bf16.mxu0 0
  %489 = vmatmul.mubr.bf16.gmra.mxu0 %v235
  %v490 = vpop.f32.mrf.mxu0
  %v491 = vadd.f32 0.0, %v490
  %v492 = vpop.f32.mrf.mxu0
  %v493 = vadd.f32 0.0, %v492
  %v494 = vpop.f32.mrf.mxu0
  %v495 = vadd.f32 0.0, %v494
  %v496 = vpop.f32.mrf.mxu0
  %v497 = vadd.f32 0.0, %v496
  %498 = vmatprep.mubr.bf16.mxu0 0
  %499 = vmatmul.mubr.bf16.gmra.mxu0 %v236
  %v500 = vpop.f32.mrf.mxu0
  %v501 = vadd.f32 0.0, %v500
  %v502 = vpop.f32.mrf.mxu0
  %v503 = vadd.f32 0.0, %v502
  %v504 = vpop.f32.mrf.mxu0
  %v505 = vadd.f32 0.0, %v504
  %v506 = vpop.f32.mrf.mxu0
  %v507 = vadd.f32 0.0, %v506
  %508 = vmatprep.mubr.bf16.mxu0 0
  %509 = vmatmul.mubr.bf16.gmra.mxu0 %v237
  %v510 = vpop.f32.mrf.mxu0
  %v511 = vadd.f32 0.0, %v510
  %v512 = vpop.f32.mrf.mxu0
  %v513 = vadd.f32 0.0, %v512
  %v514 = vpop.f32.mrf.mxu0
  %v515 = vadd.f32 0.0, %v514
  %v516 = vpop.f32.mrf.mxu0
  %v517 = vadd.f32 0.0, %v516
  %518 = vdwg.mxu0
  %519 = vmatprep.subr.bf16.mxu0 %v373
  %520 = vmatpush1.bf16.msra.mxu0 %v372
  %521 = vmatprep.subr.bf16.mxu0 %v369
  %522 = vmatpush1.bf16.msra.mxu0 %v368
  %523 = vmatprep.subr.bf16.mxu0 %v365
  %524 = vmatpush1.bf16.msra.mxu0 %v364
  %525 = vmatprep.subr.bf16.mxu0 %v361
  %526 = vmatpush1.bf16.msra.mxu0 %v360
  %527 = vmatprep.subr.bf16.mxu0 %v357
  %528 = vmatpush1.bf16.msra.mxu0 %v356
  %529 = vmatprep.subr.bf16.mxu0 %v353
  %530 = vmatpush1.bf16.msra.mxu0 %v352
  %531 = vmatprep.subr.bf16.mxu0 %v349
  %532 = vmatpush1.bf16.msra.mxu0 %v348
  %533 = vmatprep.subr.bf16.mxu0 %v345
  %534 = vmatpush1.bf16.msra.mxu0 %v344
  %535 = vmatprep.subr.bf16.mxu0 0
  %536 = vmatpush2.bf16.msra.mxu0 0
  %537 = vmatprep.subr.bf16.mxu0 0
  %538 = vmatpush2.bf16.msra.mxu0 0
  %539 = vmatprep.subr.bf16.mxu0 0
  %540 = vmatpush2.bf16.msra.mxu0 0
  %541 = vmatprep.subr.bf16.mxu0 0
  %542 = vmatpush2.bf16.msra.mxu0 0
  %543 = vmatprep.subr.bf16.mxu0 0
  %544 = vmatpush2.bf16.msra.mxu0 0
  %545 = vmatprep.subr.bf16.mxu0 0
  %546 = vmatpush2.bf16.msra.mxu0 0
  %547 = vmatprep.subr.bf16.mxu0 0
  %548 = vmatpush2.bf16.msra.mxu0 0
  %549 = vmatprep.subr.bf16.mxu0 0
  %550 = vmatpush2.bf16.msra.mxu0 0
  %551 = vmatprep.mubr.bf16.mxu0 0
  %552 = vmatmul.mubr.bf16.gmra.mxu0 %v230
  %v553 = vpop.f32.mrf.mxu0
  %v554 = vadd.f32 0.0, %v553
  %v555 = vpop.f32.mrf.mxu0
  %v556 = vadd.f32 0.0, %v555
  %v557 = vpop.f32.mrf.mxu0
  %v558 = vadd.f32 0.0, %v557
  %v559 = vpop.f32.mrf.mxu0
  %v560 = vadd.f32 0.0, %v559
  %561 = vmatprep.mubr.bf16.mxu0 0
  %562 = vmatmul.mubr.bf16.gmra.mxu0 %v231
  %v563 = vpop.f32.mrf.mxu0
  %v564 = vadd.f32 0.0, %v563
  %v565 = vpop.f32.mrf.mxu0
  %v566 = vadd.f32 0.0, %v565
  %v567 = vpop.f32.mrf.mxu0
  %v568 = vadd.f32 0.0, %v567
  %v569 = vpop.f32.mrf.mxu0
  %v570 = vadd.f32 0.0, %v569
  %571 = vmatprep.mubr.bf16.mxu0 0
  %572 = vmatmul.mubr.bf16.gmra.mxu0 %v232
  %v573 = vpop.f32.mrf.mxu0
  %v574 = vadd.f32 0.0, %v573
  %v575 = vpop.f32.mrf.mxu0
  %v576 = vadd.f32 0.0, %v575
  %v577 = vpop.f32.mrf.mxu0
  %v578 = vadd.f32 0.0, %v577
  %v579 = vpop.f32.mrf.mxu0
  %v580 = vadd.f32 0.0, %v579
  %581 = vmatprep.mubr.bf16.mxu0 0
  %582 = vmatmul.mubr.bf16.gmra.mxu0 %v233
  %v583 = vpop.f32.mrf.mxu0
  %v584 = vadd.f32 0.0, %v583
  %v585 = vpop.f32.mrf.mxu0
  %v586 = vadd.f32 0.0, %v585
  %v587 = vpop.f32.mrf.mxu0
  %v588 = vadd.f32 0.0, %v587
  %v589 = vpop.f32.mrf.mxu0
  %v590 = vadd.f32 0.0, %v589
  %591 = vmatprep.mubr.bf16.mxu0 0
  %592 = vmatmul.mubr.bf16.gmra.mxu0 %v234
  %v593 = vpop.f32.mrf.mxu0
  %v594 = vadd.f32 0.0, %v593
  %v595 = vpop.f32.mrf.mxu0
  %v596 = vadd.f32 0.0, %v595
  %v597 = vpop.f32.mrf.mxu0
  %v598 = vadd.f32 0.0, %v597
  %v599 = vpop.f32.mrf.mxu0
  %v600 = vadd.f32 0.0, %v599
  %601 = vmatprep.mubr.bf16.mxu0 0
  %602 = vmatmul.mubr.bf16.gmra.mxu0 %v235
  %v603 = vpop.f32.mrf.mxu0
  %v604 = vadd.f32 0.0, %v603
  %v605 = vpop.f32.mrf.mxu0
  %v606 = vadd.f32 0.0, %v605
  %v607 = vpop.f32.mrf.mxu0
  %v608 = vadd.f32 0.0, %v607
  %v609 = vpop.f32.mrf.mxu0
  %v610 = vadd.f32 0.0, %v609
  %611 = vmatprep.mubr.bf16.mxu0 0
  %612 = vmatmul.mubr.bf16.gmra.mxu0 %v236
  %v613 = vpop.f32.mrf.mxu0
  %v614 = vadd.f32 0.0, %v613
  %v615 = vpop.f32.mrf.mxu0
  %v616 = vadd.f32 0.0, %v615
  %v617 = vpop.f32.mrf.mxu0
  %v618 = vadd.f32 0.0, %v617
  %v619 = vpop.f32.mrf.mxu0
  %v620 = vadd.f32 0.0, %v619
  %621 = vmatprep.mubr.bf16.mxu0 0
  %622 = vmatmul.mubr.bf16.gmra.mxu0 %v237
  %v623 = vpop.f32.mrf.mxu0
  %v624 = vadd.f32 0.0, %v623
  %v625 = vpop.f32.mrf.mxu0
  %v626 = vadd.f32 0.0, %v625
  %v627 = vpop.f32.mrf.mxu0
  %v628 = vadd.f32 0.0, %v627
  %v629 = vpop.f32.mrf.mxu0
  %v630 = vadd.f32 0.0, %v629
  %631 = vdwg.mxu0
  %v632 = vadd.f32 %v86, %v441
  %v633 = vadd.f32 %v87, %v443
  %v634 = vadd.f32 %v88, %v554
  %v635 = vadd.f32 %v89, %v556
  %v636 = vadd.f32 %v90, %v445
  %v637 = vadd.f32 %v91, %v447
  %v638 = vadd.f32 %v92, %v558
  %v639 = vadd.f32 %v93, %v560
  %v640 = vadd.f32 %v94, %v451
  %v641 = vadd.f32 %v95, %v453
  %v642 = vadd.f32 %v96, %v564
  %v643 = vadd.f32 %v97, %v566
  %v644 = vadd.f32 %v98, %v455
  %v645 = vadd.f32 %v99, %v457
  %v646 = vadd.f32 %v100, %v568
  %v647 = vadd.f32 %v101, %v570
  %v648 = vadd.f32 %v102, %v461
  %v649 = vadd.f32 %v103, %v463
  %v650 = vadd.f32 %v104, %v574
  %v651 = vadd.f32 %v105, %v576
  %v652 = vadd.f32 %v106, %v465
  %v653 = vadd.f32 %v107, %v467
  %v654 = vadd.f32 %v108, %v578
  %v655 = vadd.f32 %v109, %v580
  %v656 = vadd.f32 %v110, %v471
  %v657 = vadd.f32 %v111, %v473
  %v658 = vadd.f32 %v112, %v584
  %v659 = vadd.f32 %v113, %v586
  %v660 = vadd.f32 %v114, %v475
  %v661 = vadd.f32 %v115, %v477
  %v662 = vadd.f32 %v116, %v588
  %v663 = vadd.f32 %v117, %v590
  %v664 = vadd.f32 %v118, %v481
  %v665 = vadd.f32 %v119, %v483
  %v666 = vadd.f32 %v120, %v594
  %v667 = vadd.f32 %v121, %v596
  %v668 = vadd.f32 %v122, %v485
  %v669 = vadd.f32 %v123, %v487
  %v670 = vadd.f32 %v124, %v598
  %v671 = vadd.f32 %v125, %v600
  %v672 = vadd.f32 %v126, %v491
  %v673 = vadd.f32 %v127, %v493
  %v674 = vadd.f32 %v128, %v604
  %v675 = vadd.f32 %v129, %v606
  %v676 = vadd.f32 %v130, %v495
  %v677 = vadd.f32 %v131, %v497
  %v678 = vadd.f32 %v132, %v608
  %v679 = vadd.f32 %v133, %v610
  %v680 = vadd.f32 %v134, %v501
  %v681 = vadd.f32 %v135, %v503
  %v682 = vadd.f32 %v136, %v614
  %v683 = vadd.f32 %v137, %v616
  %v684 = vadd.f32 %v138, %v505
  %v685 = vadd.f32 %v139, %v507
  %v686 = vadd.f32 %v140, %v618
  %v687 = vadd.f32 %v141, %v620
  %v688 = vadd.f32 %v142, %v511
  %v689 = vadd.f32 %v143, %v513
  %v690 = vadd.f32 %v144, %v624
  %v691 = vadd.f32 %v145, %v626
  %v692 = vadd.f32 %v146, %v515
  %v693 = vadd.f32 %v147, %v517
  %v694 = vadd.f32 %v148, %v628
  %v695 = vadd.f32 %v149, %v630
  %696 = vst [vmem:[#allocation2] sm:$0xff] %v632
  %697 = vst [vmem:[#allocation2 + $0x8] sm:$0xff] %v633
  %698 = vst [vmem:[#allocation2 + $0x10] sm:$0xff] %v634
  %699 = vst [vmem:[#allocation2 + $0x18] sm:$0xff] %v635
  %700 = vst [vmem:[#allocation2 + $0x20] sm:$0xff] %v636
  %701 = vst [vmem:[#allocation2 + $0x28] sm:$0xff] %v637
  %702 = vst [vmem:[#allocation2 + $0x30] sm:$0xff] %v638
  %703 = vst [vmem:[#allocation2 + $0x38] sm:$0xff] %v639
  %704 = vst [vmem:[#allocation2 + $0x40] sm:$0xff] %v640
  %705 = vst [vmem:[#allocation2 + $0x48] sm:$0xff] %v641
  %706 = vst [vmem:[#allocation2 + $0x50] sm:$0xff] %v642
  %707 = vst [vmem:[#allocation2 + $0x58] sm:$0xff] %v643
  %708 = vst [vmem:[#allocation2 + $0x60] sm:$0xff] %v644
  %709 = vst [vmem:[#allocation2 + $0x68] sm:$0xff] %v645
  %710 = vst [vmem:[#allocation2 + $0x70] sm:$0xff] %v646
  %711 = vst [vmem:[#allocation2 + $0x78] sm:$0xff] %v647
  %712 = vst [vmem:[#allocation2 + $0x80] sm:$0xff] %v648
  %713 = vst [vmem:[#allocation2 + $0x88] sm:$0xff] %v649
  %714 = vst [vmem:[#allocation2 + $0x90] sm:$0xff] %v650
  %715 = vst [vmem:[#allocation2 + $0x98] sm:$0xff] %v651
  %716 = vst [vmem:[#allocation2 + $0xa0] sm:$0xff] %v652
  %717 = vst [vmem:[#allocation2 + $0xa8] sm:$0xff] %v653
  %718 = vst [vmem:[#allocation2 + $0xb0] sm:$0xff] %v654
  %719 = vst [vmem:[#allocation2 + $0xb8] sm:$0xff] %v655
  %720 = vst [vmem:[#allocation2 + $0xc0] sm:$0xff] %v656
  %721 = vst [vmem:[#allocation2 + $0xc8] sm:$0xff] %v657
  %722 = vst [vmem:[#allocation2 + $0xd0] sm:$0xff] %v658
  %723 = vst [vmem:[#allocation2 + $0xd8] sm:$0xff] %v659
  %724 = vst [vmem:[#allocation2 + $0xe0] sm:$0xff] %v660
  %725 = vst [vmem:[#allocation2 + $0xe8] sm:$0xff] %v661
  %726 = vst [vmem:[#allocation2 + $0xf0] sm:$0xff] %v662
  %727 = vst [vmem:[#allocation2 + $0xf8] sm:$0xff] %v663
  %728 = vst [vmem:[#allocation2 + $0x100] sm:$0xff] %v664
  %729 = vst [vmem:[#allocation2 + $0x108] sm:$0xff] %v665
  %730 = vst [vmem:[#allocation2 + $0x110] sm:$0xff] %v666
  %731 = vst [vmem:[#allocation2 + $0x118] sm:$0xff] %v667
  %732 = vst [vmem:[#allocation2 + $0x120] sm:$0xff] %v668
  %733 = vst [vmem:[#allocation2 + $0x128] sm:$0xff] %v669
  %734 = vst [vmem:[#allocation2 + $0x130] sm:$0xff] %v670
  %735 = vst [vmem:[#allocation2 + $0x138] sm:$0xff] %v671
  %736 = vst [vmem:[#allocation2 + $0x140] sm:$0xff] %v672
  %737 = vst [vmem:[#allocation2 + $0x148] sm:$0xff] %v673
  %738 = vst [vmem:[#allocation2 + $0x150] sm:$0xff] %v674
  %739 = vst [vmem:[#allocation2 + $0x158] sm:$0xff] %v675
  %740 = vst [vmem:[#allocation2 + $0x160] sm:$0xff] %v676
  %741 = vst [vmem:[#allocation2 + $0x168] sm:$0xff] %v677
  %742 = vst [vmem:[#allocation2 + $0x170] sm:$0xff] %v678
  %743 = vst [vmem:[#allocation2 + $0x178] sm:$0xff] %v679
  %744 = vst [vmem:[#allocation2 + $0x180] sm:$0xff] %v680
  %745 = vst [vmem:[#allocation2 + $0x188] sm:$0xff] %v681
  %746 = vst [vmem:[#allocation2 + $0x190] sm:$0xff] %v682
  %747 = vst [vmem:[#allocation2 + $0x198] sm:$0xff] %v683
  %748 = vst [vmem:[#allocation2 + $0x1a0] sm:$0xff] %v684
  %749 = vst [vmem:[#allocation2 + $0x1a8] sm:$0xff] %v685
  %750 = vst [vmem:[#allocation2 + $0x1b0] sm:$0xff] %v686
  %751 = vst [vmem:[#allocation2 + $0x1b8] sm:$0xff] %v687
  %752 = vst [vmem:[#allocation2 + $0x1c0] sm:$0xff] %v688
  %753 = vst [vmem:[#allocation2 + $0x1c8] sm:$0xff] %v689
  %754 = vst [vmem:[#allocation2 + $0x1d0] sm:$0xff] %v690
  %755 = vst [vmem:[#allocation2 + $0x1d8] sm:$0xff] %v691
  %756 = vst [vmem:[#allocation2 + $0x1e0] sm:$0xff] %v692
  %757 = vst [vmem:[#allocation2 + $0x1e8] sm:$0xff] %v693
  %758 = vst [vmem:[#allocation2 + $0x1f0] sm:$0xff] %v694
  %759 = vst [vmem:[#allocation2 + $0x1f8] sm:$0xff] %v695
  // Predicated region
  $region22: #{net_forward.15} parent=0 // pred_check
    %p760 = pneg %p18
  $region23: #{net_forward.15} parent=0 // pred_check_branch
    %762 = sbr.rel (%p760) target = $region25
  $region24: #{net_forward.15} parent=0 // pred_region
    %v763 = vld [vmem:[#allocation2] sm:$0xff]
    %v764 = vld [vmem:[#allocation2 + $0x8] sm:$0xff]
    %v765 = vld [vmem:[#allocation2 + $0x10] sm:$0xff]
    %v766 = vld [vmem:[#allocation2 + $0x18] sm:$0xff]
    %v767 = vld [vmem:[#allocation2 + $0x20] sm:$0xff]
    %v768 = vld [vmem:[#allocation2 + $0x28] sm:$0xff]
    %v769 = vld [vmem:[#allocation2 + $0x30] sm:$0xff]
    %v770 = vld [vmem:[#allocation2 + $0x38] sm:$0xff]
    %v771 = vld [vmem:[#allocation2 + $0x40] sm:$0xff]
    %v772 = vld [vmem:[#allocation2 + $0x48] sm:$0xff]
    %v773 = vld [vmem:[#allocation2 + $0x50] sm:$0xff]
    %v774 = vld [vmem:[#allocation2 + $0x58] sm:$0xff]
    %v775 = vld [vmem:[#allocation2 + $0x60] sm:$0xff]
    %v776 = vld [vmem:[#allocation2 + $0x68] sm:$0xff]
    %v777 = vld [vmem:[#allocation2 + $0x70] sm:$0xff]
    %v778 = vld [vmem:[#allocation2 + $0x78] sm:$0xff]
    %v779 = vld [vmem:[#allocation2 + $0x80] sm:$0xff]
    %v780 = vld [vmem:[#allocation2 + $0x88] sm:$0xff]
    %v781 = vld [vmem:[#allocation2 + $0x90] sm:$0xff]
    %v782 = vld [vmem:[#allocation2 + $0x98] sm:$0xff]
    %v783 = vld [vmem:[#allocation2 + $0xa0] sm:$0xff]
    %v784 = vld [vmem:[#allocation2 + $0xa8] sm:$0xff]
    %v785 = vld [vmem:[#allocation2 + $0xb0] sm:$0xff]
    %v786 = vld [vmem:[#allocation2 + $0xb8] sm:$0xff]
    %v787 = vld [vmem:[#allocation2 + $0xc0] sm:$0xff]
    %v788 = vld [vmem:[#allocation2 + $0xc8] sm:$0xff]
    %v789 = vld [vmem:[#allocation2 + $0xd0] sm:$0xff]
    %v790 = vld [vmem:[#allocation2 + $0xd8] sm:$0xff]
    %v791 = vld [vmem:[#allocation2 + $0xe0] sm:$0xff]
    %v792 = vld [vmem:[#allocation2 + $0xe8] sm:$0xff]
    %v793 = vld [vmem:[#allocation2 + $0xf0] sm:$0xff]
    %v794 = vld [vmem:[#allocation2 + $0xf8] sm:$0xff]
    %v795 = vld [vmem:[#allocation2 + $0x100] sm:$0xff]
    %v796 = vld [vmem:[#allocation2 + $0x108] sm:$0xff]
    %v797 = vld [vmem:[#allocation2 + $0x110] sm:$0xff]
    %v798 = vld [vmem:[#allocation2 + $0x118] sm:$0xff]
    %v799 = vld [vmem:[#allocation2 + $0x120] sm:$0xff]
    %v800 = vld [vmem:[#allocation2 + $0x128] sm:$0xff]
    %v801 = vld [vmem:[#allocation2 + $0x130] sm:$0xff]
    %v802 = vld [vmem:[#allocation2 + $0x138] sm:$0xff]
    %v803 = vld [vmem:[#allocation2 + $0x140] sm:$0xff]
    %v804 = vld [vmem:[#allocation2 + $0x148] sm:$0xff]
    %v805 = vld [vmem:[#allocation2 + $0x150] sm:$0xff]
    %v806 = vld [vmem:[#allocation2 + $0x158] sm:$0xff]
    %v807 = vld [vmem:[#allocation2 + $0x160] sm:$0xff]
    %v808 = vld [vmem:[#allocation2 + $0x168] sm:$0xff]
    %v809 = vld [vmem:[#allocation2 + $0x170] sm:$0xff]
    %v810 = vld [vmem:[#allocation2 + $0x178] sm:$0xff]
    %v811 = vld [vmem:[#allocation2 + $0x180] sm:$0xff]
    %v812 = vld [vmem:[#allocation2 + $0x188] sm:$0xff]
    %v813 = vld [vmem:[#allocation2 + $0x190] sm:$0xff]
    %v814 = vld [vmem:[#allocation2 + $0x198] sm:$0xff]
    %v815 = vld [vmem:[#allocation2 + $0x1a0] sm:$0xff]
    %v816 = vld [vmem:[#allocation2 + $0x1a8] sm:$0xff]
    %v817 = vld [vmem:[#allocation2 + $0x1b0] sm:$0xff]
    %v818 = vld [vmem:[#allocation2 + $0x1b8] sm:$0xff]
    %v819 = vld [vmem:[#allocation2 + $0x1c0] sm:$0xff]
    %v820 = vld [vmem:[#allocation2 + $0x1c8] sm:$0xff]
    %v821 = vld [vmem:[#allocation2 + $0x1d0] sm:$0xff]
    %v822 = vld [vmem:[#allocation2 + $0x1d8] sm:$0xff]
    %v823 = vld [vmem:[#allocation2 + $0x1e0] sm:$0xff]
    %v824 = vld [vmem:[#allocation2 + $0x1e8] sm:$0xff]
    %v825 = vld [vmem:[#allocation2 + $0x1f0] sm:$0xff]
    %v826 = vld [vmem:[#allocation2 + $0x1f8] sm:$0xff]
    %v827 = vadd.f32 %v763, %v767
    %v828 = vadd.f32 %v827, %v771
    %v829 = vadd.f32 %v828, %v775
    %v830 = vadd.f32 %v829, %v779
    %v831 = vadd.f32 %v830, %v783
    %v832 = vadd.f32 %v831, %v787
    %v833 = vadd.f32 %v832, %v791
    %v834 = vadd.f32 %v833, %v795
    %v835 = vadd.f32 %v834, %v799
    %v836 = vadd.f32 %v835, %v803
    %v837 = vadd.f32 %v836, %v807
    %v838 = vadd.f32 %v837, %v811
    %v839 = vadd.f32 %v838, %v815
    %v840 = vadd.f32 %v839, %v819
    %v841 = vadd.f32 %v840, %v823
    %v842 = vrot.slane %v841, 4
    %v843 = vadd.f32 %v841, %v842
    %v844 = vrot.slane %v843, 2
    %v845 = vadd.f32 %v843, %v844
    %v846 = vrot.slane %v845, 1
    %v847 = vadd.f32 %v845, %v846
    %v848 = vadd.f32 %v764, %v768
    %v849 = vadd.f32 %v848, %v772
    %v850 = vadd.f32 %v849, %v776
    %v851 = vadd.f32 %v850, %v780
    %v852 = vadd.f32 %v851, %v784
    %v853 = vadd.f32 %v852, %v788
    %v854 = vadd.f32 %v853, %v792
    %v855 = vadd.f32 %v854, %v796
    %v856 = vadd.f32 %v855, %v800
    %v857 = vadd.f32 %v856, %v804
    %v858 = vadd.f32 %v857, %v808
    %v859 = vadd.f32 %v858, %v812
    %v860 = vadd.f32 %v859, %v816
    %v861 = vadd.f32 %v860, %v820
    %v862 = vadd.f32 %v861, %v824
    %v863 = vrot.slane %v862, 4
    %v864 = vadd.f32 %v862, %v863
    %v865 = vrot.slane %v864, 2
    %v866 = vadd.f32 %v864, %v865
    %v867 = vrot.slane %v866, 1
    %v868 = vadd.f32 %v866, %v867
    %v869 = vadd.f32 %v765, %v769
    %v870 = vadd.f32 %v869, %v773
    %v871 = vadd.f32 %v870, %v777
    %v872 = vadd.f32 %v871, %v781
    %v873 = vadd.f32 %v872, %v785
    %v874 = vadd.f32 %v873, %v789
    %v875 = vadd.f32 %v874, %v793
    %v876 = vadd.f32 %v875, %v797
    %v877 = vadd.f32 %v876, %v801
    %v878 = vadd.f32 %v877, %v805
    %v879 = vadd.f32 %v878, %v809
    %v880 = vadd.f32 %v879, %v813
    %v881 = vadd.f32 %v880, %v817
    %v882 = vadd.f32 %v881, %v821
    %v883 = vadd.f32 %v882, %v825
    %v884 = vrot.slane %v883, 4
    %v885 = vadd.f32 %v883, %v884
    %v886 = vrot.slane %v885, 2
    %v887 = vadd.f32 %v885, %v886
    %v888 = vrot.slane %v887, 1
    %v889 = vadd.f32 %v887, %v888
    %v890 = vadd.f32 %v766, %v770
    %v891 = vadd.f32 %v890, %v774
    %v892 = vadd.f32 %v891, %v778
    %v893 = vadd.f32 %v892, %v782
    %v894 = vadd.f32 %v893, %v786
    %v895 = vadd.f32 %v894, %v790
    %v896 = vadd.f32 %v895, %v794
    %v897 = vadd.f32 %v896, %v798
    %v898 = vadd.f32 %v897, %v802
    %v899 = vadd.f32 %v898, %v806
    %v900 = vadd.f32 %v899, %v810
    %v901 = vadd.f32 %v900, %v814
    %v902 = vadd.f32 %v901, %v818
    %v903 = vadd.f32 %v902, %v822
    %v904 = vadd.f32 %v903, %v826
    %v905 = vrot.slane %v904, 4
    %v906 = vadd.f32 %v904, %v905
    %v907 = vrot.slane %v906, 2
    %v908 = vadd.f32 %v906, %v907
    %v909 = vrot.slane %v908, 1
    %v910 = vadd.f32 %v908, %v909
    %v911 = vmul.f32 %v763, %v763
    %v912 = vmul.f32 %v764, %v764
    %v913 = vmul.f32 %v765, %v765
    %v914 = vmul.f32 %v766, %v766
    %v915 = vmul.f32 %v767, %v767
    %v916 = vmul.f32 %v768, %v768
    %v917 = vmul.f32 %v769, %v769
    %v918 = vmul.f32 %v770, %v770
    %v919 = vmul.f32 %v771, %v771
    %v920 = vmul.f32 %v772, %v772
    %v921 = vmul.f32 %v773, %v773
    %v922 = vmul.f32 %v774, %v774
    %v923 = vmul.f32 %v775, %v775
    %v924 = vmul.f32 %v776, %v776
    %v925 = vmul.f32 %v777, %v777
    %v926 = vmul.f32 %v778, %v778
    %v927 = vmul.f32 %v779, %v779
    %v928 = vmul.f32 %v780, %v780
    %v929 = vmul.f32 %v781, %v781
    %v930 = vmul.f32 %v782, %v782
    %v931 = vmul.f32 %v783, %v783
    %v932 = vmul.f32 %v784, %v784
    %v933 = vmul.f32 %v785, %v785
    %v934 = vmul.f32 %v786, %v786
    %v935 = vmul.f32 %v787, %v787
    %v936 = vmul.f32 %v788, %v788
    %v937 = vmul.f32 %v789, %v789
    %v938 = vmul.f32 %v790, %v790
    %v939 = vmul.f32 %v791, %v791
    %v940 = vmul.f32 %v792, %v792
    %v941 = vmul.f32 %v793, %v793
    %v942 = vmul.f32 %v794, %v794
    %v943 = vmul.f32 %v795, %v795
    %v944 = vmul.f32 %v796, %v796
    %v945 = vmul.f32 %v797, %v797
    %v946 = vmul.f32 %v798, %v798
    %v947 = vmul.f32 %v799, %v799
    %v948 = vmul.f32 %v800, %v800
    %v949 = vmul.f32 %v801, %v801
    %v950 = vmul.f32 %v802, %v802
    %v951 = vmul.f32 %v803, %v803
    %v952 = vmul.f32 %v804, %v804
    %v953 = vmul.f32 %v805, %v805
    %v954 = vmul.f32 %v806, %v806
    %v955 = vmul.f32 %v807, %v807
    %v956 = vmul.f32 %v808, %v808
    %v957 = vmul.f32 %v809, %v809
    %v958 = vmul.f32 %v810, %v810
    %v959 = vmul.f32 %v811, %v811
    %v960 = vmul.f32 %v812, %v812
    %v961 = vmul.f32 %v813, %v813
    %v962 = vmul.f32 %v814, %v814
    %v963 = vmul.f32 %v815, %v815
    %v964 = vmul.f32 %v816, %v816
    %v965 = vmul.f32 %v817, %v817
    %v966 = vmul.f32 %v818, %v818
    %v967 = vmul.f32 %v819, %v819
    %v968 = vmul.f32 %v820, %v820
    %v969 = vmul.f32 %v821, %v821
    %v970 = vmul.f32 %v822, %v822
    %v971 = vmul.f32 %v823, %v823
    %v972 = vmul.f32 %v824, %v824
    %v973 = vmul.f32 %v825, %v825
    %v974 = vmul.f32 %v826, %v826
    %v975 = vadd.f32 %v911, %v915
    %v976 = vadd.f32 %v975, %v919
    %v977 = vadd.f32 %v976, %v923
    %v978 = vadd.f32 %v977, %v927
    %v979 = vadd.f32 %v978, %v931
    %v980 = vadd.f32 %v979, %v935
    %v981 = vadd.f32 %v980, %v939
    %v982 = vadd.f32 %v981, %v943
    %v983 = vadd.f32 %v982, %v947
    %v984 = vadd.f32 %v983, %v951
    %v985 = vadd.f32 %v984, %v955
    %v986 = vadd.f32 %v985, %v959
    %v987 = vadd.f32 %v986, %v963
    %v988 = vadd.f32 %v987, %v967
    %v989 = vadd.f32 %v988, %v971
    %v990 = vrot.slane %v989, 4
    %v991 = vadd.f32 %v989, %v990
    %v992 = vrot.slane %v991, 2
    %v993 = vadd.f32 %v991, %v992
    %v994 = vrot.slane %v993, 1
    %v995 = vadd.f32 %v993, %v994
    %v996 = vadd.f32 %v912, %v916
    %v997 = vadd.f32 %v996, %v920
    %v998 = vadd.f32 %v997, %v924
    %v999 = vadd.f32 %v998, %v928
    %v1000 = vadd.f32 %v999, %v932
    %v1001 = vadd.f32 %v1000, %v936
    %v1002 = vadd.f32 %v1001, %v940
    %v1003 = vadd.f32 %v1002, %v944
    %v1004 = vadd.f32 %v1003, %v948
    %v1005 = vadd.f32 %v1004, %v952
    %v1006 = vadd.f32 %v1005, %v956
    %v1007 = vadd.f32 %v1006, %v960
    %v1008 = vadd.f32 %v1007, %v964
    %v1009 = vadd.f32 %v1008, %v968
    %v1010 = vadd.f32 %v1009, %v972
    %v1011 = vrot.slane %v1010, 4
    %v1012 = vadd.f32 %v1010, %v1011
    %v1013 = vrot.slane %v1012, 2
    %v1014 = vadd.f32 %v1012, %v1013
    %v1015 = vrot.slane %v1014, 1
    %v1016 = vadd.f32 %v1014, %v1015
    %v1017 = vadd.f32 %v913, %v917
    %v1018 = vadd.f32 %v1017, %v921
    %v1019 = vadd.f32 %v1018, %v925
    %v1020 = vadd.f32 %v1019, %v929
    %v1021 = vadd.f32 %v1020, %v933
    %v1022 = vadd.f32 %v1021, %v937
    %v1023 = vadd.f32 %v1022, %v941
    %v1024 = vadd.f32 %v1023, %v945
    %v1025 = vadd.f32 %v1024, %v949
    %v1026 = vadd.f32 %v1025, %v953
    %v1027 = vadd.f32 %v1026, %v957
    %v1028 = vadd.f32 %v1027, %v961
    %v1029 = vadd.f32 %v1028, %v965
    %v1030 = vadd.f32 %v1029, %v969
    %v1031 = vadd.f32 %v1030, %v973
    %v1032 = vrot.slane %v1031, 4
    %v1033 = vadd.f32 %v1031, %v1032
    %v1034 = vrot.slane %v1033, 2
    %v1035 = vadd.f32 %v1033, %v1034
    %v1036 = vrot.slane %v1035, 1
    %v1037 = vadd.f32 %v1035, %v1036
    %v1038 = vadd.f32 %v914, %v918
    %v1039 = vadd.f32 %v1038, %v922
    %v1040 = vadd.f32 %v1039, %v926
    %v1041 = vadd.f32 %v1040, %v930
    %v1042 = vadd.f32 %v1041, %v934
    %v1043 = vadd.f32 %v1042, %v938
    %v1044 = vadd.f32 %v1043, %v942
    %v1045 = vadd.f32 %v1044, %v946
    %v1046 = vadd.f32 %v1045, %v950
    %v1047 = vadd.f32 %v1046, %v954
    %v1048 = vadd.f32 %v1047, %v958
    %v1049 = vadd.f32 %v1048, %v962
    %v1050 = vadd.f32 %v1049, %v966
    %v1051 = vadd.f32 %v1050, %v970
    %v1052 = vadd.f32 %v1051, %v974
    %v1053 = vrot.slane %v1052, 4
    %v1054 = vadd.f32 %v1052, %v1053
    %v1055 = vrot.slane %v1054, 2
    %v1056 = vadd.f32 %v1054, %v1055
    %v1057 = vrot.slane %v1056, 1
    %v1058 = vadd.f32 %v1056, %v1057
    %v1059 = vadd.f32 %v847, 0.0
    %v1060 = vadd.f32 %v1059, %v868
    %v1061 = vadd.f32 %v1060, %v889
    %v1062 = vadd.f32 %v1061, %v910
    %v1063 = vadd.f32 %v995, 0.0
    %v1064 = vadd.f32 %v1063, %v1016
    %v1065 = vadd.f32 %v1064, %v1037
    %v1066 = vadd.f32 %v1065, %v1058
    %v1067 = vmul.f32 %v1062, 0.001953125
    %v1068 = vmul.f32 %v1066, 0.001953125
    %v1069 = vmul.f32 %v1067, %v1067
    %v1070 = vsub.f32 %v1068, %v1069
    %v1071 = vmax.f32 %v1070, 0.0
    %v1072 = vld [vmem:[%s2] sm:$0x1]
    %v1073 = vadd.f32 %v1071, 1e-05
    %v1074 = vrsqrt.pop %v1073
    %v1075 = vmul.f32 %v1072, %v1074
    %v1076 = vld [vmem:[%s3] sm:$0x1]
    %v1077 = vmul.f32 %v1067, %v1075
    %v1078 = vsub.f32 %v1076, %v1077
    %v1079 = vlaneseq
    %v1080 = vshrl.u32 %v1079, 7
    %v1081 = vsub.s32 0, %v1080
    %v1082 = vrot.slane %v1075, %v1081
    %v1083 = vmul.f32 %v763, %v1082
    %v1084 = vmul.f32 %v764, %v1082
    %v1085 = vmul.f32 %v765, %v1082
    %v1086 = vmul.f32 %v766, %v1082
    %v1087 = vmul.f32 %v767, %v1082
    %v1088 = vmul.f32 %v768, %v1082
    %v1089 = vmul.f32 %v769, %v1082
    %v1090 = vmul.f32 %v770, %v1082
    %v1091 = vmul.f32 %v771, %v1082
    %v1092 = vmul.f32 %v772, %v1082
    %v1093 = vmul.f32 %v773, %v1082
    %v1094 = vmul.f32 %v774, %v1082
    %v1095 = vmul.f32 %v775, %v1082
    %v1096 = vmul.f32 %v776, %v1082
    %v1097 = vmul.f32 %v777, %v1082
    %v1098 = vmul.f32 %v778, %v1082
    %v1099 = vmul.f32 %v779, %v1082
    %v1100 = vmul.f32 %v780, %v1082
    %v1101 = vmul.f32 %v781, %v1082
    %v1102 = vmul.f32 %v782, %v1082
    %v1103 = vmul.f32 %v783, %v1082
    %v1104 = vmul.f32 %v784, %v1082
    %v1105 = vmul.f32 %v785, %v1082
    %v1106 = vmul.f32 %v786, %v1082
    %v1107 = vmul.f32 %v787, %v1082
    %v1108 = vmul.f32 %v788, %v1082
    %v1109 = vmul.f32 %v789, %v1082
    %v1110 = vmul.f32 %v790, %v1082
    %v1111 = vmul.f32 %v791, %v1082
    %v1112 = vmul.f32 %v792, %v1082
    %v1113 = vmul.f32 %v793, %v1082
    %v1114 = vmul.f32 %v794, %v1082
    %v1115 = vmul.f32 %v795, %v1082
    %v1116 = vmul.f32 %v796, %v1082
    %v1117 = vmul.f32 %v797, %v1082
    %v1118 = vmul.f32 %v798, %v1082
    %v1119 = vmul.f32 %v799, %v1082
    %v1120 = vmul.f32 %v800, %v1082
    %v1121 = vmul.f32 %v801, %v1082
    %v1122 = vmul.f32 %v802, %v1082
    %v1123 = vmul.f32 %v803, %v1082
    %v1124 = vmul.f32 %v804, %v1082
    %v1125 = vmul.f32 %v805, %v1082
    %v1126 = vmul.f32 %v806, %v1082
    %v1127 = vmul.f32 %v807, %v1082
    %v1128 = vmul.f32 %v808, %v1082
    %v1129 = vmul.f32 %v809, %v1082
    %v1130 = vmul.f32 %v810, %v1082
    %v1131 = vmul.f32 %v811, %v1082
    %v1132 = vmul.f32 %v812, %v1082
    %v1133 = vmul.f32 %v813, %v1082
    %v1134 = vmul.f32 %v814, %v1082
    %v1135 = vmul.f32 %v815, %v1082
    %v1136 = vmul.f32 %v816, %v1082
    %v1137 = vmul.f32 %v817, %v1082
    %v1138 = vmul.f32 %v818, %v1082
    %v1139 = vmul.f32 %v819, %v1082
    %v1140 = vmul.f32 %v820, %v1082
    %v1141 = vmul.f32 %v821, %v1082
    %v1142 = vmul.f32 %v822, %v1082
    %v1143 = vmul.f32 %v823, %v1082
    %v1144 = vmul.f32 %v824, %v1082
    %v1145 = vmul.f32 %v825, %v1082
    %v1146 = vmul.f32 %v826, %v1082
    %v1147 = vlaneseq
    %v1148 = vshrl.u32 %v1147, 7
    %v1149 = vsub.s32 0, %v1148
    %v1150 = vrot.slane %v1078, %v1149
    %v1151 = vadd.f32 %v1083, %v1150
    %v1152 = vadd.f32 %v1084, %v1150
    %v1153 = vadd.f32 %v1085, %v1150
    %v1154 = vadd.f32 %v1086, %v1150
    %v1155 = vadd.f32 %v1087, %v1150
    %v1156 = vadd.f32 %v1088, %v1150
    %v1157 = vadd.f32 %v1089, %v1150
    %v1158 = vadd.f32 %v1090, %v1150
    %v1159 = vadd.f32 %v1091, %v1150
    %v1160 = vadd.f32 %v1092, %v1150
    %v1161 = vadd.f32 %v1093, %v1150
    %v1162 = vadd.f32 %v1094, %v1150
    %v1163 = vadd.f32 %v1095, %v1150
    %v1164 = vadd.f32 %v1096, %v1150
    %v1165 = vadd.f32 %v1097, %v1150
    %v1166 = vadd.f32 %v1098, %v1150
    %v1167 = vadd.f32 %v1099, %v1150
    %v1168 = vadd.f32 %v1100, %v1150
    %v1169 = vadd.f32 %v1101, %v1150
    %v1170 = vadd.f32 %v1102, %v1150
    %v1171 = vadd.f32 %v1103, %v1150
    %v1172 = vadd.f32 %v1104, %v1150
    %v1173 = vadd.f32 %v1105, %v1150
    %v1174 = vadd.f32 %v1106, %v1150
    %v1175 = vadd.f32 %v1107, %v1150
    %v1176 = vadd.f32 %v1108, %v1150
    %v1177 = vadd.f32 %v1109, %v1150
    %v1178 = vadd.f32 %v1110, %v1150
    %v1179 = vadd.f32 %v1111, %v1150
    %v1180 = vadd.f32 %v1112, %v1150
    %v1181 = vadd.f32 %v1113, %v1150
    %v1182 = vadd.f32 %v1114, %v1150
    %v1183 = vadd.f32 %v1115, %v1150
    %v1184 = vadd.f32 %v1116, %v1150
    %v1185 = vadd.f32 %v1117, %v1150
    %v1186 = vadd.f32 %v1118, %v1150
    %v1187 = vadd.f32 %v1119, %v1150
    %v1188 = vadd.f32 %v1120, %v1150
    %v1189 = vadd.f32 %v1121, %v1150
    %v1190 = vadd.f32 %v1122, %v1150
    %v1191 = vadd.f32 %v1123, %v1150
    %v1192 = vadd.f32 %v1124, %v1150
    %v1193 = vadd.f32 %v1125, %v1150
    %v1194 = vadd.f32 %v1126, %v1150
    %v1195 = vadd.f32 %v1127, %v1150
    %v1196 = vadd.f32 %v1128, %v1150
    %v1197 = vadd.f32 %v1129, %v1150
    %v1198 = vadd.f32 %v1130, %v1150
    %v1199 = vadd.f32 %v1131, %v1150
    %v1200 = vadd.f32 %v1132, %v1150
    %v1201 = vadd.f32 %v1133, %v1150
    %v1202 = vadd.f32 %v1134, %v1150
    %v1203 = vadd.f32 %v1135, %v1150
    %v1204 = vadd.f32 %v1136, %v1150
    %v1205 = vadd.f32 %v1137, %v1150
    %v1206 = vadd.f32 %v1138, %v1150
    %v1207 = vadd.f32 %v1139, %v1150
    %v1208 = vadd.f32 %v1140, %v1150
    %v1209 = vadd.f32 %v1141, %v1150
    %v1210 = vadd.f32 %v1142, %v1150
    %v1211 = vadd.f32 %v1143, %v1150
    %v1212 = vadd.f32 %v1144, %v1150
    %v1213 = vadd.f32 %v1145, %v1150
    %v1214 = vadd.f32 %v1146, %v1150
    %vm1215 = vcmp.ge.f32.partialorder %v1151, 0.0
    %vm1216 = vcmp.ge.f32.partialorder %v1152, 0.0
    %vm1217 = vcmp.ge.f32.partialorder %v1153, 0.0
    %vm1218 = vcmp.ge.f32.partialorder %v1154, 0.0
    %vm1219 = vcmp.ge.f32.partialorder %v1155, 0.0
    %vm1220 = vcmp.ge.f32.partialorder %v1156, 0.0
    %vm1221 = vcmp.ge.f32.partialorder %v1157, 0.0
    %vm1222 = vcmp.ge.f32.partialorder %v1158, 0.0
    %vm1223 = vcmp.ge.f32.partialorder %v1159, 0.0
    %vm1224 = vcmp.ge.f32.partialorder %v1160, 0.0
    %vm1225 = vcmp.ge.f32.partialorder %v1161, 0.0
    %vm1226 = vcmp.ge.f32.partialorder %v1162, 0.0
    %vm1227 = vcmp.ge.f32.partialorder %v1163, 0.0
    %vm1228 = vcmp.ge.f32.partialorder %v1164, 0.0
    %vm1229 = vcmp.ge.f32.partialorder %v1165, 0.0
    %vm1230 = vcmp.ge.f32.partialorder %v1166, 0.0
    %vm1231 = vcmp.ge.f32.partialorder %v1167, 0.0
    %vm1232 = vcmp.ge.f32.partialorder %v1168, 0.0
    %vm1233 = vcmp.ge.f32.partialorder %v1169, 0.0
    %vm1234 = vcmp.ge.f32.partialorder %v1170, 0.0
    %vm1235 = vcmp.ge.f32.partialorder %v1171, 0.0
    %vm1236 = vcmp.ge.f32.partialorder %v1172, 0.0
    %vm1237 = vcmp.ge.f32.partialorder %v1173, 0.0
    %vm1238 = vcmp.ge.f32.partialorder %v1174, 0.0
    %vm1239 = vcmp.ge.f32.partialorder %v1175, 0.0
    %vm1240 = vcmp.ge.f32.partialorder %v1176, 0.0
    %vm1241 = vcmp.ge.f32.partialorder %v1177, 0.0
    %vm1242 = vcmp.ge.f32.partialorder %v1178, 0.0
    %vm1243 = vcmp.ge.f32.partialorder %v1179, 0.0
    %vm1244 = vcmp.ge.f32.partialorder %v1180, 0.0
    %vm1245 = vcmp.ge.f32.partialorder %v1181, 0.0
    %vm1246 = vcmp.ge.f32.partialorder %v1182, 0.0
    %vm1247 = vcmp.ge.f32.partialorder %v1183, 0.0
    %vm1248 = vcmp.ge.f32.partialorder %v1184, 0.0
    %vm1249 = vcmp.ge.f32.partialorder %v1185, 0.0
    %vm1250 = vcmp.ge.f32.partialorder %v1186, 0.0
    %vm1251 = vcmp.ge.f32.partialorder %v1187, 0.0
    %vm1252 = vcmp.ge.f32.partialorder %v1188, 0.0
    %vm1253 = vcmp.ge.f32.partialorder %v1189, 0.0
    %vm1254 = vcmp.ge.f32.partialorder %v1190, 0.0
    %vm1255 = vcmp.ge.f32.partialorder %v1191, 0.0
    %vm1256 = vcmp.ge.f32.partialorder %v1192, 0.0
    %vm1257 = vcmp.ge.f32.partialorder %v1193, 0.0
    %vm1258 = vcmp.ge.f32.partialorder %v1194, 0.0
    %vm1259 = vcmp.ge.f32.partialorder %v1195, 0.0
    %vm1260 = vcmp.ge.f32.partialorder %v1196, 0.0
    %vm1261 = vcmp.ge.f32.partialorder %v1197, 0.0
    %vm1262 = vcmp.ge.f32.partialorder %v1198, 0.0
    %vm1263 = vcmp.ge.f32.partialorder %v1199, 0.0
    %vm1264 = vcmp.ge.f32.partialorder %v1200, 0.0
    %vm1265 = vcmp.ge.f32.partialorder %v1201, 0.0
    %vm1266 = vcmp.ge.f32.partialorder %v1202, 0.0
    %vm1267 = vcmp.ge.f32.partialorder %v1203, 0.0
    %vm1268 = vcmp.ge.f32.partialorder %v1204, 0.0
    %vm1269 = vcmp.ge.f32.partialorder %v1205, 0.0
    %vm1270 = vcmp.ge.f32.partialorder %v1206, 0.0
    %vm1271 = vcmp.ge.f32.partialorder %v1207, 0.0
    %vm1272 = vcmp.ge.f32.partialorder %v1208, 0.0
    %vm1273 = vcmp.ge.f32.partialorder %v1209, 0.0
    %vm1274 = vcmp.ge.f32.partialorder %v1210, 0.0
    %vm1275 = vcmp.ge.f32.partialorder %v1211, 0.0
    %vm1276 = vcmp.ge.f32.partialorder %v1212, 0.0
    %vm1277 = vcmp.ge.f32.partialorder %v1213, 0.0
    %vm1278 = vcmp.ge.f32.partialorder %v1214, 0.0
    %v1279 = vmul.f32 %v1151, 0.2
    %v1280 = vmul.f32 %v1152, 0.2
    %v1281 = vmul.f32 %v1153, 0.2
    %v1282 = vmul.f32 %v1154, 0.2
    %v1283 = vmul.f32 %v1155, 0.2
    %v1284 = vmul.f32 %v1156, 0.2
    %v1285 = vmul.f32 %v1157, 0.2
    %v1286 = vmul.f32 %v1158, 0.2
    %v1287 = vmul.f32 %v1159, 0.2
    %v1288 = vmul.f32 %v1160, 0.2
    %v1289 = vmul.f32 %v1161, 0.2
    %v1290 = vmul.f32 %v1162, 0.2
    %v1291 = vmul.f32 %v1163, 0.2
    %v1292 = vmul.f32 %v1164, 0.2
    %v1293 = vmul.f32 %v1165, 0.2
    %v1294 = vmul.f32 %v1166, 0.2
    %v1295 = vmul.f32 %v1167, 0.2
    %v1296 = vmul.f32 %v1168, 0.2
    %v1297 = vmul.f32 %v1169, 0.2
    %v1298 = vmul.f32 %v1170, 0.2
    %v1299 = vmul.f32 %v1171, 0.2
    %v1300 = vmul.f32 %v1172, 0.2
    %v1301 = vmul.f32 %v1173, 0.2
    %v1302 = vmul.f32 %v1174, 0.2
    %v1303 = vmul.f32 %v1175, 0.2
    %v1304 = vmul.f32 %v1176, 0.2
    %v1305 = vmul.f32 %v1177, 0.2
    %v1306 = vmul.f32 %v1178, 0.2
    %v1307 = vmul.f32 %v1179, 0.2
    %v1308 = vmul.f32 %v1180, 0.2
    %v1309 = vmul.f32 %v1181, 0.2
    %v1310 = vmul.f32 %v1182, 0.2
    %v1311 = vmul.f32 %v1183, 0.2
    %v1312 = vmul.f32 %v1184, 0.2
    %v1313 = vmul.f32 %v1185, 0.2
    %v1314 = vmul.f32 %v1186, 0.2
    %v1315 = vmul.f32 %v1187, 0.2
    %v1316 = vmul.f32 %v1188, 0.2
    %v1317 = vmul.f32 %v1189, 0.2
    %v1318 = vmul.f32 %v1190, 0.2
    %v1319 = vmul.f32 %v1191, 0.2
    %v1320 = vmul.f32 %v1192, 0.2
    %v1321 = vmul.f32 %v1193, 0.2
    %v1322 = vmul.f32 %v1194, 0.2
    %v1323 = vmul.f32 %v1195, 0.2
    %v1324 = vmul.f32 %v1196, 0.2
    %v1325 = vmul.f32 %v1197, 0.2
    %v1326 = vmul.f32 %v1198, 0.2
    %v1327 = vmul.f32 %v1199, 0.2
    %v1328 = vmul.f32 %v1200, 0.2
    %v1329 = vmul.f32 %v1201, 0.2
    %v1330 = vmul.f32 %v1202, 0.2
    %v1331 = vmul.f32 %v1203, 0.2
    %v1332 = vmul.f32 %v1204, 0.2
    %v1333 = vmul.f32 %v1205, 0.2
    %v1334 = vmul.f32 %v1206, 0.2
    %v1335 = vmul.f32 %v1207, 0.2
    %v1336 = vmul.f32 %v1208, 0.2
    %v1337 = vmul.f32 %v1209, 0.2
    %v1338 = vmul.f32 %v1210, 0.2
    %v1339 = vmul.f32 %v1211, 0.2
    %v1340 = vmul.f32 %v1212, 0.2
    %v1341 = vmul.f32 %v1213, 0.2
    %v1342 = vmul.f32 %v1214, 0.2
    %v1343 = vsel %vm1215, %v1151, %v1279
    %v1344 = vsel %vm1216, %v1152, %v1280
    %v1345 = vsel %vm1217, %v1153, %v1281
    %v1346 = vsel %vm1218, %v1154, %v1282
    %v1347 = vsel %vm1219, %v1155, %v1283
    %v1348 = vsel %vm1220, %v1156, %v1284
    %v1349 = vsel %vm1221, %v1157, %v1285
    %v1350 = vsel %vm1222, %v1158, %v1286
    %v1351 = vsel %vm1223, %v1159, %v1287
    %v1352 = vsel %vm1224, %v1160, %v1288
    %v1353 = vsel %vm1225, %v1161, %v1289
    %v1354 = vsel %vm1226, %v1162, %v1290
    %v1355 = vsel %vm1227, %v1163, %v1291
    %v1356 = vsel %vm1228, %v1164, %v1292
    %v1357 = vsel %vm1229, %v1165, %v1293
    %v1358 = vsel %vm1230, %v1166, %v1294
    %v1359 = vsel %vm1231, %v1167, %v1295
    %v1360 = vsel %vm1232, %v1168, %v1296
    %v1361 = vsel %vm1233, %v1169, %v1297
    %v1362 = vsel %vm1234, %v1170, %v1298
    %v1363 = vsel %vm1235, %v1171, %v1299
    %v1364 = vsel %vm1236, %v1172, %v1300
    %v1365 = vsel %vm1237, %v1173, %v1301
    %v1366 = vsel %vm1238, %v1174, %v1302
    %v1367 = vsel %vm1239, %v1175, %v1303
    %v1368 = vsel %vm1240, %v1176, %v1304
    %v1369 = vsel %vm1241, %v1177, %v1305
    %v1370 = vsel %vm1242, %v1178, %v1306
    %v1371 = vsel %vm1243, %v1179, %v1307
    %v1372 = vsel %vm1244, %v1180, %v1308
    %v1373 = vsel %vm1245, %v1181, %v1309
    %v1374 = vsel %vm1246, %v1182, %v1310
    %v1375 = vsel %vm1247, %v1183, %v1311
    %v1376 = vsel %vm1248, %v1184, %v1312
    %v1377 = vsel %vm1249, %v1185, %v1313
    %v1378 = vsel %vm1250, %v1186, %v1314
    %v1379 = vsel %vm1251, %v1187, %v1315
    %v1380 = vsel %vm1252, %v1188, %v1316
    %v1381 = vsel %vm1253, %v1189, %v1317
    %v1382 = vsel %vm1254, %v1190, %v1318
    %v1383 = vsel %vm1255, %v1191, %v1319
    %v1384 = vsel %vm1256, %v1192, %v1320
    %v1385 = vsel %vm1257, %v1193, %v1321
    %v1386 = vsel %vm1258, %v1194, %v1322
    %v1387 = vsel %vm1259, %v1195, %v1323
    %v1388 = vsel %vm1260, %v1196, %v1324
    %v1389 = vsel %vm1261, %v1197, %v1325
    %v1390 = vsel %vm1262, %v1198, %v1326
    %v1391 = vsel %vm1263, %v1199, %v1327
    %v1392 = vsel %vm1264, %v1200, %v1328
    %v1393 = vsel %vm1265, %v1201, %v1329
    %v1394 = vsel %vm1266, %v1202, %v1330
    %v1395 = vsel %vm1267, %v1203, %v1331
    %v1396 = vsel %vm1268, %v1204, %v1332
    %v1397 = vsel %vm1269, %v1205, %v1333
    %v1398 = vsel %vm1270, %v1206, %v1334
    %v1399 = vsel %vm1271, %v1207, %v1335
    %v1400 = vsel %vm1272, %v1208, %v1336
    %v1401 = vsel %vm1273, %v1209, %v1337
    %v1402 = vsel %vm1274, %v1210, %v1338
    %v1403 = vsel %vm1275, %v1211, %v1339
    %v1404 = vsel %vm1276, %v1212, %v1340
    %v1405 = vsel %vm1277, %v1213, %v1341
    %v1406 = vsel %vm1278, %v1214, %v1342
    %v1407 = vxor.u32 %v1343, 2147483648
    %v1408 = vxor.u32 %v1344, 2147483648
    %v1409 = vxor.u32 %v1345, 2147483648
    %v1410 = vxor.u32 %v1346, 2147483648
    %v1411 = vxor.u32 %v1347, 2147483648
    %v1412 = vxor.u32 %v1348, 2147483648
    %v1413 = vxor.u32 %v1349, 2147483648
    %v1414 = vxor.u32 %v1350, 2147483648
    %v1415 = vxor.u32 %v1351, 2147483648
    %v1416 = vxor.u32 %v1352, 2147483648
    %v1417 = vxor.u32 %v1353, 2147483648
    %v1418 = vxor.u32 %v1354, 2147483648
    %v1419 = vxor.u32 %v1355, 2147483648
    %v1420 = vxor.u32 %v1356, 2147483648
    %v1421 = vxor.u32 %v1357, 2147483648
    %v1422 = vxor.u32 %v1358, 2147483648
    %v1423 = vxor.u32 %v1359, 2147483648
    %v1424 = vxor.u32 %v1360, 2147483648
    %v1425 = vxor.u32 %v1361, 2147483648
    %v1426 = vxor.u32 %v1362, 2147483648
    %v1427 = vxor.u32 %v1363, 2147483648
    %v1428 = vxor.u32 %v1364, 2147483648
    %v1429 = vxor.u32 %v1365, 2147483648
    %v1430 = vxor.u32 %v1366, 2147483648
    %v1431 = vxor.u32 %v1367, 2147483648
    %v1432 = vxor.u32 %v1368, 2147483648
    %v1433 = vxor.u32 %v1369, 2147483648
    %v1434 = vxor.u32 %v1370, 2147483648
    %v1435 = vxor.u32 %v1371, 2147483648
    %v1436 = vxor.u32 %v1372, 2147483648
    %v1437 = vxor.u32 %v1373, 2147483648
    %v1438 = vxor.u32 %v1374, 2147483648
    %v1439 = vxor.u32 %v1375, 2147483648
    %v1440 = vxor.u32 %v1376, 2147483648
    %v1441 = vxor.u32 %v1377, 2147483648
    %v1442 = vxor.u32 %v1378, 2147483648
    %v1443 = vxor.u32 %v1379, 2147483648
    %v1444 = vxor.u32 %v1380, 2147483648
    %v1445 = vxor.u32 %v1381, 2147483648
    %v1446 = vxor.u32 %v1382, 2147483648
    %v1447 = vxor.u32 %v1383, 2147483648
    %v1448 = vxor.u32 %v1384, 2147483648
    %v1449 = vxor.u32 %v1385, 2147483648
    %v1450 = vxor.u32 %v1386, 2147483648
    %v1451 = vxor.u32 %v1387, 2147483648
    %v1452 = vxor.u32 %v1388, 2147483648
    %v1453 = vxor.u32 %v1389, 2147483648
    %v1454 = vxor.u32 %v1390, 2147483648
    %v1455 = vxor.u32 %v1391, 2147483648
    %v1456 = vxor.u32 %v1392, 2147483648
    %v1457 = vxor.u32 %v1393, 2147483648
    %v1458 = vxor.u32 %v1394, 2147483648
    %v1459 = vxor.u32 %v1395, 2147483648
    %v1460 = vxor.u32 %v1396, 2147483648
    %v1461 = vxor.u32 %v1397, 2147483648
    %v1462 = vxor.u32 %v1398, 2147483648
    %v1463 = vxor.u32 %v1399, 2147483648
    %v1464 = vxor.u32 %v1400, 2147483648
    %v1465 = vxor.u32 %v1401, 2147483648
    %v1466 = vxor.u32 %v1402, 2147483648
    %v1467 = vxor.u32 %v1403, 2147483648
    %v1468 = vxor.u32 %v1404, 2147483648
    %v1469 = vxor.u32 %v1405, 2147483648
    %v1470 = vxor.u32 %v1406, 2147483648
    %v1471 = vmul.f32 %v1407, 1.442695
    %v1472 = vpow.pop %v1471
    %v1473 = vmul.f32 %v1408, 1.442695
    %v1474 = vpow.pop %v1473
    %v1475 = vmul.f32 %v1409, 1.442695
    %v1476 = vpow.pop %v1475
    %v1477 = vmul.f32 %v1410, 1.442695
    %v1478 = vpow.pop %v1477
    %v1479 = vmul.f32 %v1411, 1.442695
    %v1480 = vpow.pop %v1479
    %v1481 = vmul.f32 %v1412, 1.442695
    %v1482 = vpow.pop %v1481
    %v1483 = vmul.f32 %v1413, 1.442695
    %v1484 = vpow.pop %v1483
    %v1485 = vmul.f32 %v1414, 1.442695
    %v1486 = vpow.pop %v1485
    %v1487 = vmul.f32 %v1415, 1.442695
    %v1488 = vpow.pop %v1487
    %v1489 = vmul.f32 %v1416, 1.442695
    %v1490 = vpow.pop %v1489
    %v1491 = vmul.f32 %v1417, 1.442695
    %v1492 = vpow.pop %v1491
    %v1493 = vmul.f32 %v1418, 1.442695
    %v1494 = vpow.pop %v1493
    %v1495 = vmul.f32 %v1419, 1.442695
    %v1496 = vpow.pop %v1495
    %v1497 = vmul.f32 %v1420, 1.442695
    %v1498 = vpow.pop %v1497
    %v1499 = vmul.f32 %v1421, 1.442695
    %v1500 = vpow.pop %v1499
    %v1501 = vmul.f32 %v1422, 1.442695
    %v1502 = vpow.pop %v1501
    %v1503 = vmul.f32 %v1423, 1.442695
    %v1504 = vpow.pop %v1503
    %v1505 = vmul.f32 %v1424, 1.442695
    %v1506 = vpow.pop %v1505
    %v1507 = vmul.f32 %v1425, 1.442695
    %v1508 = vpow.pop %v1507
    %v1509 = vmul.f32 %v1426, 1.442695
    %v1510 = vpow.pop %v1509
    %v1511 = vmul.f32 %v1427, 1.442695
    %v1512 = vpow.pop %v1511
    %v1513 = vmul.f32 %v1428, 1.442695
    %v1514 = vpow.pop %v1513
    %v1515 = vmul.f32 %v1429, 1.442695
    %v1516 = vpow.pop %v1515
    %v1517 = vmul.f32 %v1430, 1.442695
    %v1518 = vpow.pop %v1517
    %v1519 = vmul.f32 %v1431, 1.442695
    %v1520 = vpow.pop %v1519
    %v1521 = vmul.f32 %v1432, 1.442695
    %v1522 = vpow.pop %v1521
    %v1523 = vmul.f32 %v1433, 1.442695
    %v1524 = vpow.pop %v1523
    %v1525 = vmul.f32 %v1434, 1.442695
    %v1526 = vpow.pop %v1525
    %v1527 = vmul.f32 %v1435, 1.442695
    %v1528 = vpow.pop %v1527
    %v1529 = vmul.f32 %v1436, 1.442695
    %v1530 = vpow.pop %v1529
    %v1531 = vmul.f32 %v1437, 1.442695
    %v1532 = vpow.pop %v1531
    %v1533 = vmul.f32 %v1438, 1.442695
    %v1534 = vpow.pop %v1533
    %v1535 = vmul.f32 %v1439, 1.442695
    %v1536 = vpow.pop %v1535
    %v1537 = vmul.f32 %v1440, 1.442695
    %v1538 = vpow.pop %v1537
    %v1539 = vmul.f32 %v1441, 1.442695
    %v1540 = vpow.pop %v1539
    %v1541 = vmul.f32 %v1442, 1.442695
    %v1542 = vpow.pop %v1541
    %v1543 = vmul.f32 %v1443, 1.442695
    %v1544 = vpow.pop %v1543
    %v1545 = vmul.f32 %v1444, 1.442695
    %v1546 = vpow.pop %v1545
    %v1547 = vmul.f32 %v1445, 1.442695
    %v1548 = vpow.pop %v1547
    %v1549 = vmul.f32 %v1446, 1.442695
    %v1550 = vpow.pop %v1549
    %v1551 = vmul.f32 %v1447, 1.442695
    %v1552 = vpow.pop %v1551
    %v1553 = vmul.f32 %v1448, 1.442695
    %v1554 = vpow.pop %v1553
    %v1555 = vmul.f32 %v1449, 1.442695
    %v1556 = vpow.pop %v1555
    %v1557 = vmul.f32 %v1450, 1.442695
    %v1558 = vpow.pop %v1557
    %v1559 = vmul.f32 %v1451, 1.442695
    %v1560 = vpow.pop %v1559
    %v1561 = vmul.f32 %v1452, 1.442695
    %v1562 = vpow.pop %v1561
    %v1563 = vmul.f32 %v1453, 1.442695
    %v1564 = vpow.pop %v1563
    %v1565 = vmul.f32 %v1454, 1.442695
    %v1566 = vpow.pop %v1565
    %v1567 = vmul.f32 %v1455, 1.442695
    %v1568 = vpow.pop %v1567
    %v1569 = vmul.f32 %v1456, 1.442695
    %v1570 = vpow.pop %v1569
    %v1571 = vmul.f32 %v1457, 1.442695
    %v1572 = vpow.pop %v1571
    %v1573 = vmul.f32 %v1458, 1.442695
    %v1574 = vpow.pop %v1573
    %v1575 = vmul.f32 %v1459, 1.442695
    %v1576 = vpow.pop %v1575
    %v1577 = vmul.f32 %v1460, 1.442695
    %v1578 = vpow.pop %v1577
    %v1579 = vmul.f32 %v1461, 1.442695
    %v1580 = vpow.pop %v1579
    %v1581 = vmul.f32 %v1462, 1.442695
    %v1582 = vpow.pop %v1581
    %v1583 = vmul.f32 %v1463, 1.442695
    %v1584 = vpow.pop %v1583
    %v1585 = vmul.f32 %v1464, 1.442695
    %v1586 = vpow.pop %v1585
    %v1587 = vmul.f32 %v1465, 1.442695
    %v1588 = vpow.pop %v1587
    %v1589 = vmul.f32 %v1466, 1.442695
    %v1590 = vpow.pop %v1589
    %v1591 = vmul.f32 %v1467, 1.442695
    %v1592 = vpow.pop %v1591
    %v1593 = vmul.f32 %v1468, 1.442695
    %v1594 = vpow.pop %v1593
    %v1595 = vmul.f32 %v1469, 1.442695
    %v1596 = vpow.pop %v1595
    %v1597 = vmul.f32 %v1470, 1.442695
    %v1598 = vpow.pop %v1597
    %v1599 = vadd.f32 %v1472, 1.0
    %v1600 = vadd.f32 %v1474, 1.0
    %v1601 = vadd.f32 %v1476, 1.0
    %v1602 = vadd.f32 %v1478, 1.0
    %v1603 = vadd.f32 %v1480, 1.0
    %v1604 = vadd.f32 %v1482, 1.0
    %v1605 = vadd.f32 %v1484, 1.0
    %v1606 = vadd.f32 %v1486, 1.0
    %v1607 = vadd.f32 %v1488, 1.0
    %v1608 = vadd.f32 %v1490, 1.0
    %v1609 = vadd.f32 %v1492, 1.0
    %v1610 = vadd.f32 %v1494, 1.0
    %v1611 = vadd.f32 %v1496, 1.0
    %v1612 = vadd.f32 %v1498, 1.0
    %v1613 = vadd.f32 %v1500, 1.0
    %v1614 = vadd.f32 %v1502, 1.0
    %v1615 = vadd.f32 %v1504, 1.0
    %v1616 = vadd.f32 %v1506, 1.0
    %v1617 = vadd.f32 %v1508, 1.0
    %v1618 = vadd.f32 %v1510, 1.0
    %v1619 = vadd.f32 %v1512, 1.0
    %v1620 = vadd.f32 %v1514, 1.0
    %v1621 = vadd.f32 %v1516, 1.0
    %v1622 = vadd.f32 %v1518, 1.0
    %v1623 = vadd.f32 %v1520, 1.0
    %v1624 = vadd.f32 %v1522, 1.0
    %v1625 = vadd.f32 %v1524, 1.0
    %v1626 = vadd.f32 %v1526, 1.0
    %v1627 = vadd.f32 %v1528, 1.0
    %v1628 = vadd.f32 %v1530, 1.0
    %v1629 = vadd.f32 %v1532, 1.0
    %v1630 = vadd.f32 %v1534, 1.0
    %v1631 = vadd.f32 %v1536, 1.0
    %v1632 = vadd.f32 %v1538, 1.0
    %v1633 = vadd.f32 %v1540, 1.0
    %v1634 = vadd.f32 %v1542, 1.0
    %v1635 = vadd.f32 %v1544, 1.0
    %v1636 = vadd.f32 %v1546, 1.0
    %v1637 = vadd.f32 %v1548, 1.0
    %v1638 = vadd.f32 %v1550, 1.0
    %v1639 = vadd.f32 %v1552, 1.0
    %v1640 = vadd.f32 %v1554, 1.0
    %v1641 = vadd.f32 %v1556, 1.0
    %v1642 = vadd.f32 %v1558, 1.0
    %v1643 = vadd.f32 %v1560, 1.0
    %v1644 = vadd.f32 %v1562, 1.0
    %v1645 = vadd.f32 %v1564, 1.0
    %v1646 = vadd.f32 %v1566, 1.0
    %v1647 = vadd.f32 %v1568, 1.0
    %v1648 = vadd.f32 %v1570, 1.0
    %v1649 = vadd.f32 %v1572, 1.0
    %v1650 = vadd.f32 %v1574, 1.0
    %v1651 = vadd.f32 %v1576, 1.0
    %v1652 = vadd.f32 %v1578, 1.0
    %v1653 = vadd.f32 %v1580, 1.0
    %v1654 = vadd.f32 %v1582, 1.0
    %v1655 = vadd.f32 %v1584, 1.0
    %v1656 = vadd.f32 %v1586, 1.0
    %v1657 = vadd.f32 %v1588, 1.0
    %v1658 = vadd.f32 %v1590, 1.0
    %v1659 = vadd.f32 %v1592, 1.0
    %v1660 = vadd.f32 %v1594, 1.0
    %v1661 = vadd.f32 %v1596, 1.0
    %v1662 = vadd.f32 %v1598, 1.0
    %v1663 = vrcp.pop %v1599
    %v1664 = vmul.f32 1.0, %v1663
    %v1665 = vrcp.pop %v1600
    %v1666 = vmul.f32 1.0, %v1665
    %v1667 = vrcp.pop %v1601
    %v1668 = vmul.f32 1.0, %v1667
    %v1669 = vrcp.pop %v1602
    %v1670 = vmul.f32 1.0, %v1669
    %v1671 = vrcp.pop %v1603
    %v1672 = vmul.f32 1.0, %v1671
    %v1673 = vrcp.pop %v1604
    %v1674 = vmul.f32 1.0, %v1673
    %v1675 = vrcp.pop %v1605
    %v1676 = vmul.f32 1.0, %v1675
    %v1677 = vrcp.pop %v1606
    %v1678 = vmul.f32 1.0, %v1677
    %v1679 = vrcp.pop %v1607
    %v1680 = vmul.f32 1.0, %v1679
    %v1681 = vrcp.pop %v1608
    %v1682 = vmul.f32 1.0, %v1681
    %v1683 = vrcp.pop %v1609
    %v1684 = vmul.f32 1.0, %v1683
    %v1685 = vrcp.pop %v1610
    %v1686 = vmul.f32 1.0, %v1685
    %v1687 = vrcp.pop %v1611
    %v1688 = vmul.f32 1.0, %v1687
    %v1689 = vrcp.pop %v1612
    %v1690 = vmul.f32 1.0, %v1689
    %v1691 = vrcp.pop %v1613
    %v1692 = vmul.f32 1.0, %v1691
    %v1693 = vrcp.pop %v1614
    %v1694 = vmul.f32 1.0, %v1693
    %v1695 = vrcp.pop %v1615
    %v1696 = vmul.f32 1.0, %v1695
    %v1697 = vrcp.pop %v1616
    %v1698 = vmul.f32 1.0, %v1697
    %v1699 = vrcp.pop %v1617
    %v1700 = vmul.f32 1.0, %v1699
    %v1701 = vrcp.pop %v1618
    %v1702 = vmul.f32 1.0, %v1701
    %v1703 = vrcp.pop %v1619
    %v1704 = vmul.f32 1.0, %v1703
    %v1705 = vrcp.pop %v1620
    %v1706 = vmul.f32 1.0, %v1705
    %v1707 = vrcp.pop %v1621
    %v1708 = vmul.f32 1.0, %v1707
    %v1709 = vrcp.pop %v1622
    %v1710 = vmul.f32 1.0, %v1709
    %v1711 = vrcp.pop %v1623
    %v1712 = vmul.f32 1.0, %v1711
    %v1713 = vrcp.pop %v1624
    %v1714 = vmul.f32 1.0, %v1713
    %v1715 = vrcp.pop %v1625
    %v1716 = vmul.f32 1.0, %v1715
    %v1717 = vrcp.pop %v1626
    %v1718 = vmul.f32 1.0, %v1717
    %v1719 = vrcp.pop %v1627
    %v1720 = vmul.f32 1.0, %v1719
    %v1721 = vrcp.pop %v1628
    %v1722 = vmul.f32 1.0, %v1721
    %v1723 = vrcp.pop %v1629
    %v1724 = vmul.f32 1.0, %v1723
    %v1725 = vrcp.pop %v1630
    %v1726 = vmul.f32 1.0, %v1725
    %v1727 = vrcp.pop %v1631
    %v1728 = vmul.f32 1.0, %v1727
    %v1729 = vrcp.pop %v1632
    %v1730 = vmul.f32 1.0, %v1729
    %v1731 = vrcp.pop %v1633
    %v1732 = vmul.f32 1.0, %v1731
    %v1733 = vrcp.pop %v1634
    %v1734 = vmul.f32 1.0, %v1733
    %v1735 = vrcp.pop %v1635
    %v1736 = vmul.f32 1.0, %v1735
    %v1737 = vrcp.pop %v1636
    %v1738 = vmul.f32 1.0, %v1737
    %v1739 = vrcp.pop %v1637
    %v1740 = vmul.f32 1.0, %v1739
    %v1741 = vrcp.pop %v1638
    %v1742 = vmul.f32 1.0, %v1741
    %v1743 = vrcp.pop %v1639
    %v1744 = vmul.f32 1.0, %v1743
    %v1745 = vrcp.pop %v1640
    %v1746 = vmul.f32 1.0, %v1745
    %v1747 = vrcp.pop %v1641
    %v1748 = vmul.f32 1.0, %v1747
    %v1749 = vrcp.pop %v1642
    %v1750 = vmul.f32 1.0, %v1749
    %v1751 = vrcp.pop %v1643
    %v1752 = vmul.f32 1.0, %v1751
    %v1753 = vrcp.pop %v1644
    %v1754 = vmul.f32 1.0, %v1753
    %v1755 = vrcp.pop %v1645
    %v1756 = vmul.f32 1.0, %v1755
    %v1757 = vrcp.pop %v1646
    %v1758 = vmul.f32 1.0, %v1757
    %v1759 = vrcp.pop %v1647
    %v1760 = vmul.f32 1.0, %v1759
    %v1761 = vrcp.pop %v1648
    %v1762 = vmul.f32 1.0, %v1761
    %v1763 = vrcp.pop %v1649
    %v1764 = vmul.f32 1.0, %v1763
    %v1765 = vrcp.pop %v1650
    %v1766 = vmul.f32 1.0, %v1765
    %v1767 = vrcp.pop %v1651
    %v1768 = vmul.f32 1.0, %v1767
    %v1769 = vrcp.pop %v1652
    %v1770 = vmul.f32 1.0, %v1769
    %v1771 = vrcp.pop %v1653
    %v1772 = vmul.f32 1.0, %v1771
    %v1773 = vrcp.pop %v1654
    %v1774 = vmul.f32 1.0, %v1773
    %v1775 = vrcp.pop %v1655
    %v1776 = vmul.f32 1.0, %v1775
    %v1777 = vrcp.pop %v1656
    %v1778 = vmul.f32 1.0, %v1777
    %v1779 = vrcp.pop %v1657
    %v1780 = vmul.f32 1.0, %v1779
    %v1781 = vrcp.pop %v1658
    %v1782 = vmul.f32 1.0, %v1781
    %v1783 = vrcp.pop %v1659
    %v1784 = vmul.f32 1.0, %v1783
    %v1785 = vrcp.pop %v1660
    %v1786 = vmul.f32 1.0, %v1785
    %v1787 = vrcp.pop %v1661
    %v1788 = vmul.f32 1.0, %v1787
    %v1789 = vrcp.pop %v1662
    %v1790 = vmul.f32 1.0, %v1789
    %1791 = vst [vmem:[%s4] sm:$0xff] %v1664
    %1792 = vst [vmem:[%s4 + $0x8] sm:$0xff] %v1666
    %1793 = vst [vmem:[%s4 + $0x10] sm:$0xff] %v1668
    %1794 = vst [vmem:[%s4 + $0x18] sm:$0xff] %v1670
    %1795 = vst [vmem:[%s4 + $0x20] sm:$0xff] %v1672
    %1796 = vst [vmem:[%s4 + $0x28] sm:$0xff] %v1674
    %1797 = vst [vmem:[%s4 + $0x30] sm:$0xff] %v1676
    %1798 = vst [vmem:[%s4 + $0x38] sm:$0xff] %v1678
    %1799 = vst [vmem:[%s4 + $0x40] sm:$0xff] %v1680
    %1800 = vst [vmem:[%s4 + $0x48] sm:$0xff] %v1682
    %1801 = vst [vmem:[%s4 + $0x50] sm:$0xff] %v1684
    %1802 = vst [vmem:[%s4 + $0x58] sm:$0xff] %v1686
    %1803 = vst [vmem:[%s4 + $0x60] sm:$0xff] %v1688
    %1804 = vst [vmem:[%s4 + $0x68] sm:$0xff] %v1690
    %1805 = vst [vmem:[%s4 + $0x70] sm:$0xff] %v1692
    %1806 = vst [vmem:[%s4 + $0x78] sm:$0xff] %v1694
    %1807 = vst [vmem:[%s4 + $0x80] sm:$0xff] %v1696
    %1808 = vst [vmem:[%s4 + $0x88] sm:$0xff] %v1698
    %1809 = vst [vmem:[%s4 + $0x90] sm:$0xff] %v1700
    %1810 = vst [vmem:[%s4 + $0x98] sm:$0xff] %v1702
    %1811 = vst [vmem:[%s4 + $0xa0] sm:$0xff] %v1704
    %1812 = vst [vmem:[%s4 + $0xa8] sm:$0xff] %v1706
    %1813 = vst [vmem:[%s4 + $0xb0] sm:$0xff] %v1708
    %1814 = vst [vmem:[%s4 + $0xb8] sm:$0xff] %v1710
    %1815 = vst [vmem:[%s4 + $0xc0] sm:$0xff] %v1712
    %1816 = vst [vmem:[%s4 + $0xc8] sm:$0xff] %v1714
    %1817 = vst [vmem:[%s4 + $0xd0] sm:$0xff] %v1716
    %1818 = vst [vmem:[%s4 + $0xd8] sm:$0xff] %v1718
    %1819 = vst [vmem:[%s4 + $0xe0] sm:$0xff] %v1720
    %1820 = vst [vmem:[%s4 + $0xe8] sm:$0xff] %v1722
    %1821 = vst [vmem:[%s4 + $0xf0] sm:$0xff] %v1724
    %1822 = vst [vmem:[%s4 + $0xf8] sm:$0xff] %v1726
    %1823 = vst [vmem:[%s4 + $0x100] sm:$0xff] %v1728
    %1824 = vst [vmem:[%s4 + $0x108] sm:$0xff] %v1730
    %1825 = vst [vmem:[%s4 + $0x110] sm:$0xff] %v1732
    %1826 = vst [vmem:[%s4 + $0x118] sm:$0xff] %v1734
    %1827 = vst [vmem:[%s4 + $0x120] sm:$0xff] %v1736
    %1828 = vst [vmem:[%s4 + $0x128] sm:$0xff] %v1738
    %1829 = vst [vmem:[%s4 + $0x130] sm:$0xff] %v1740
    %1830 = vst [vmem:[%s4 + $0x138] sm:$0xff] %v1742
    %1831 = vst [vmem:[%s4 + $0x140] sm:$0xff] %v1744
    %1832 = vst [vmem:[%s4 + $0x148] sm:$0xff] %v1746
    %1833 = vst [vmem:[%s4 + $0x150] sm:$0xff] %v1748
    %1834 = vst [vmem:[%s4 + $0x158] sm:$0xff] %v1750
    %1835 = vst [vmem:[%s4 + $0x160] sm:$0xff] %v1752
    %1836 = vst [vmem:[%s4 + $0x168] sm:$0xff] %v1754
    %1837 = vst [vmem:[%s4 + $0x170] sm:$0xff] %v1756
    %1838 = vst [vmem:[%s4 + $0x178] sm:$0xff] %v1758
    %1839 = vst [vmem:[%s4 + $0x180] sm:$0xff] %v1760
    %1840 = vst [vmem:[%s4 + $0x188] sm:$0xff] %v1762
    %1841 = vst [vmem:[%s4 + $0x190] sm:$0xff] %v1764
    %1842 = vst [vmem:[%s4 + $0x198] sm:$0xff] %v1766
    %1843 = vst [vmem:[%s4 + $0x1a0] sm:$0xff] %v1768
    %1844 = vst [vmem:[%s4 + $0x1a8] sm:$0xff] %v1770
    %1845 = vst [vmem:[%s4 + $0x1b0] sm:$0xff] %v1772
    %1846 = vst [vmem:[%s4 + $0x1b8] sm:$0xff] %v1774
    %1847 = vst [vmem:[%s4 + $0x1c0] sm:$0xff] %v1776
    %1848 = vst [vmem:[%s4 + $0x1c8] sm:$0xff] %v1778
    %1849 = vst [vmem:[%s4 + $0x1d0] sm:$0xff] %v1780
    %1850 = vst [vmem:[%s4 + $0x1d8] sm:$0xff] %v1782
    %1851 = vst [vmem:[%s4 + $0x1e0] sm:$0xff] %v1784
    %1852 = vst [vmem:[%s4 + $0x1e8] sm:$0xff] %v1786
    %1853 = vst [vmem:[%s4 + $0x1f0] sm:$0xff] %v1788
    %1854 = vst [vmem:[%s4 + $0x1f8] sm:$0xff] %v1790
  $region25: #{net_forward.15} parent=0 // pred_fallthru
    _
  // Predicated region
  $region26: #{net_forward.15} parent=0 // pred_check
    _
  $region27: #{net_forward.15} parent=0 // pred_check_branch
    %1856 = sbr.rel (0) target = $region29
  $region28: #{net_forward.15} parent=0 // pred_region
    _
  $region29: #{net_forward.15} parent=0 // pred_fallthru
    _
  // Predicated region
  $region30: #{net_forward.15} parent=0 // pred_check
    _
  $region31: #{net_forward.15} parent=0 // pred_check_branch
    %1858 = sbr.rel (0) target = $region33
  $region32: #{net_forward.15} parent=0 // pred_region
    _
  $region33: #{net_forward.15} parent=0 // pred_fallthru
    _

</llo_original>
